<compile_context>
chip_gen: v7x
topology: tpu7x:2x2x1
jax: 0.10.0
libtpu: 0.0.40
codegen_flags: <defaults>
</compile_context>

<pallas_src>
import functools

import jax
import jax.numpy as jnp
import numpy as np
from jax.experimental import pallas as pl
from jax.experimental.pallas import tpu as pltpu


# ----------------------------------------------------------------------------------
# Kernels
# ----------------------------------------------------------------------------------
def _sinkhorn_from_R(R, u_ref, o_ref, *, q_bucket_size, kv_bucket_size, dim,
                     temperature, sinkhorn_iter):
    """Shared tail: fused scale + ReLU + gumbel-sinkhorn, all in f32."""
    scale = (dim ** -0.5) / (q_bucket_size * kv_bucket_size)
    R = jnp.maximum(R * scale, 0.0)

    eps = 1e-6
    u = u_ref[...].astype(jnp.float32)
    gumbel = -jnp.log(-jnp.log(u + eps) + eps)
    r = (jnp.log(R + eps) + gumbel) * (1.0 / temperature)

    def lse(x, axis):
        m = jnp.max(x, axis=axis, keepdims=True)
        return m + jnp.log(jnp.sum(jnp.exp(x - m), axis=axis, keepdims=True))

    for _ in range(sinkhorn_iter):
        r = r - lse(r, axis=2)   # torch dim=2 (kv buckets)
        r = r - lse(r, axis=1)   # torch dim=1 (q buckets)

    o_ref[...] = jnp.exp(r).astype(o_ref.dtype)


def _attention_sort_kernel_mxu(q_ref, k_ref, u_ref, o_ref, *,
                               q_buckets, q_bucket_size,
                               kv_buckets, kv_bucket_size,
                               dim, temperature, sinkhorn_iter):
    """Bucket pooling as batched MXU matmuls on the native-dtype block."""
    b_blk = q_ref.shape[0]
    seq_q = q_ref.shape[1]
    seq_k = k_ref.shape[1]
    in_dtype = q_ref.dtype

    # 0/1 token->bucket membership masks built from 2-D iotas (no integer division:
    # multiply + compares only).  Cast to the input dtype so bf16 inputs hit the MXU
    # bf16 path with f32 accumulation.
    def pool_mask(n_buckets, seq, bsz):
        bkt = jax.lax.broadcasted_iota(jnp.int32, (n_buckets, seq), 0)
        tok = jax.lax.broadcasted_iota(jnp.int32, (n_buckets, seq), 1)
        start = bkt * bsz
        return jnp.logical_and(tok >= start, tok < start + bsz).astype(in_dtype)

    pq = jnp.broadcast_to(pool_mask(q_buckets, seq_q, q_bucket_size)[None],
                          (b_blk, q_buckets, seq_q))
    pk = jnp.broadcast_to(pool_mask(kv_buckets, seq_k, kv_bucket_size)[None],
                          (b_blk, kv_buckets, seq_k))

    # Bucket sums on the MXU (f32 accumulation), directly from the native-dtype block.
    sq = jnp.einsum('bqs,bsd->bqd', pq, q_ref[...],
                    preferred_element_type=jnp.float32)      # (B, q_buckets, dim) f32
    sk = jnp.einsum('bks,bsd->bkd', pk, k_ref[...],
                    preferred_element_type=jnp.float32)      # (B, kv_buckets, dim) f32

    # R[b,i,j] = <sum_q_bucket_i, sum_k_bucket_j>; mean + dim^-0.5 scales fused later.
    R = jnp.einsum('bqd,bkd->bqk', sq, sk, preferred_element_type=jnp.float32)
    _sinkhorn_from_R(R, u_ref, o_ref,
                     q_bucket_size=q_bucket_size, kv_bucket_size=kv_bucket_size,
                     dim=dim, temperature=temperature, sinkhorn_iter=sinkhorn_iter)


def _attention_sort_kernel_vpu(q_ref, k_ref, u_ref, o_ref, *,
                               q_buckets, q_bucket_size,
                               kv_buckets, kv_bucket_size,
                               dim, temperature, sinkhorn_iter):
    """Fallback: f32 reshape+sum bucket pooling (previously validated path)."""
    b_blk = q_ref.shape[0]
    qf = q_ref[...].astype(jnp.float32)
    kf = k_ref[...].astype(jnp.float32)
    sq = jnp.sum(qf.reshape(b_blk, q_buckets, q_bucket_size, dim), axis=2)
    sk = jnp.sum(kf.reshape(b_blk, kv_buckets, kv_bucket_size, dim), axis=2)
    R = jnp.einsum('bqd,bkd->bqk', sq, sk, preferred_element_type=jnp.float32)
    _sinkhorn_from_R(R, u_ref, o_ref,
                     q_bucket_size=q_bucket_size, kv_bucket_size=kv_bucket_size,
                     dim=dim, temperature=temperature, sinkhorn_iter=sinkhorn_iter)


# ----------------------------------------------------------------------------------
# Wrapper
# ----------------------------------------------------------------------------------
def _tpu_vmem_and_cores():
    """Best-effort query of per-core VMEM capacity and TensorCore count."""
    vmem_bytes = 128 * 1024 * 1024
    num_cores = 1
    try:
        info = pltpu.get_tpu_info()
        vmem_bytes = int(getattr(info, 'vmem_capacity_bytes', vmem_bytes))
        num_cores = int(getattr(info, 'num_cores', num_cores))
    except Exception:
        pass
    try:
        kind = jax.devices()[0].device_kind.lower()
        if 'v7' in kind:  # v7x has 2 TensorCores per chip
            num_cores = max(num_cores, 2)
    except Exception:
        pass
    return vmem_bytes, num_cores


def _choose_block_batch(bh, per_bh_bytes, budget_bytes, num_cores):
    """Largest divisor of bh that fits the VMEM budget; on multi-TC chips prefer a
    grid length that is a multiple of the core count so no TensorCore idles."""
    divisors = [d for d in range(1, bh + 1) if bh % d == 0]
    fitting = [d for d in divisors if d * per_bh_bytes <= budget_bytes]
    if not fitting:
        # TODO(synk): add a seq-axis reduction grid (pl.when init/finalize accumulator)
        # so extremely long sequences don't have to fit in a single block.
        return 1
    best = max(fitting)
    if num_cores > 1:
        even = [d for d in fitting if (bh // d) % num_cores == 0]
        if even:
            best = max(even)
    return best


def attention_sort_net(q, k, *, heads, bucket_size, kv_bucket_size, dim,
                       temperature, sinkhorn_iter, n_sortcut=0, noise_key=None):
    bh, seq_q, d = q.shape
    _, seq_k, dk = k.shape
    assert d == dim and dk == dim
    assert bh % heads == 0

    if n_sortcut == 0:
        assert seq_q % bucket_size == 0, "seq_q must be divisible by bucket_size"
        q_buckets, q_bucket_size = seq_q // bucket_size, bucket_size
    else:
        q_buckets, q_bucket_size = 1, seq_q
    assert seq_k % kv_bucket_size == 0, "seq_k must be divisible by kv_bucket_size"
    kv_buckets = seq_k // kv_bucket_size

    if noise_key is None:
        noise_key = jax.random.PRNGKey(0)
    # uniform(0,1) sample -> gumbel noise is built inside the kernel.
    u = jax.random.uniform(noise_key, (bh, q_buckets, kv_buckets), dtype=jnp.float32)

    # Generation-aware VMEM budget: v7x has 64 MiB per TC (keep the scoped limit near
    # its default); v5e/v6e have 128 MiB so the limit and per-step blocks can be much
    # larger, which is what the HBM-bound DMA pipeline wants.
    vmem_bytes, num_cores = _tpu_vmem_and_cores()
    if vmem_bytes <= 96 * 1024 * 1024:          # v7x-class
        vmem_limit = 30 * 1024 * 1024
    else:                                        # v5e / v6e
        vmem_limit = 64 * 1024 * 1024
    budget = (vmem_limit * 3) // 5               # headroom for vregs / compiler scratch

    q_bytes = seq_q * dim * q.dtype.itemsize
    k_bytes = seq_k * dim * k.dtype.itemsize
    u_bytes = q_buckets * kv_buckets * 4         # u input and f32 output block

    def build(use_mxu_pool):
        if use_mxu_pool:
            # pooling masks + f32 pooled buckets are the only sizeable temporaries.
            tmp = ((q_buckets * seq_q + kv_buckets * seq_k) * q.dtype.itemsize
                   + (q_buckets + kv_buckets) * dim * 4)
        else:
            # fallback kernel materializes an f32 copy of the whole q/k block.
            tmp = (seq_q + seq_k) * dim * 4
        per_bh = (2 * (q_bytes + k_bytes + 2 * u_bytes)   # double-buffered in/out blocks
                  + tmp + 8 * q_buckets * kv_buckets * 4) # sinkhorn working set
        b_blk = _choose_block_batch(bh, per_bh, budget, num_cores)
        grid = bh // b_blk

        kern = _attention_sort_kernel_mxu if use_mxu_pool else _attention_sort_kernel_vpu
        kernel = functools.partial(
            kern,
            q_buckets=q_buckets, q_bucket_size=q_bucket_size,
            kv_buckets=kv_buckets, kv_bucket_size=kv_bucket_size,
            dim=dim, temperature=temperature, sinkhorn_iter=sinkhorn_iter)

        return pl.pallas_call(
            kernel,
            out_shape=jax.ShapeDtypeStruct((bh, q_buckets, kv_buckets), jnp.float32),
            grid_spec=pltpu.PrefetchScalarGridSpec(
                num_scalar_prefetch=0,
                grid=(grid,),
                in_specs=[
                    pl.BlockSpec((b_blk, seq_q, dim), lambda i: (i, 0, 0)),
                    pl.BlockSpec((b_blk, seq_k, dim), lambda i: (i, 0, 0)),
                    pl.BlockSpec((b_blk, q_buckets, kv_buckets), lambda i: (i, 0, 0)),
                ],
                out_specs=pl.BlockSpec((b_blk, q_buckets, kv_buckets),
                                       lambda i: (i, 0, 0)),
            ),
            compiler_params=pltpu.CompilerParams(
                dimension_semantics=("parallel",),
                vmem_limit_bytes=vmem_limit),
        )

    try:
        out = build(True)(q, k, u)      # primary: MXU pooling, native-dtype DMAs
        jax.block_until_ready(out)
    except Exception:
        # TODO(synk): drop once batched NN dot_general lowering is confirmed on all
        # target generations; fallback uses the previously validated VPU-sum pooling.
        out = build(False)(q, k, u)
    return out, u


# ----------------------------------------------------------------------------------
# Pure-JAX reference (mirror of the PyTorch forward, using the same uniform sample u)
# ----------------------------------------------------------------------------------
def _reference(q, k, u, *, bucket_size, kv_bucket_size, dim, temperature,
               sinkhorn_iter, n_sortcut=0):
    q = q.astype(jnp.float32)
    k = k.astype(jnp.float32)
    bh, seq_q, _ = q.shape
    seq_k = k.shape[1]
    if n_sortcut == 0:
        b_q = q.reshape(bh, seq_q // bucket_size, bucket_size, dim)
    else:
        b_q = q.reshape(bh, 1, seq_q, dim)
    b_k = k.reshape(bh, seq_k // kv_bucket_size, kv_bucket_size, dim)
    sq = b_q.mean(axis=2)
    sk = b_k.mean(axis=2)
    R = jnp.einsum('bie,bje->bij', sq, sk) * dim ** (-0.5)
    R = jnp.maximum(R, 0.0)
    eps = 1e-6
    gumbel = -jnp.log(-jnp.log(u + eps) + eps)
    r = (jnp.log(R + eps) + gumbel) / temperature
    for _ in range(sinkhorn_iter):
        r = r - jax.scipy.special.logsumexp(r, axis=2, keepdims=True)
        r = r - jax.scipy.special.logsumexp(r, axis=1, keepdims=True)
    return jnp.exp(r)


if __name__ == "__main__":
    # Small, module-consistent shapes.
    batch, heads = 2, 4
    seq_q, seq_k, dim = 16, 16, 32
    bucket_size, kv_bucket_size = 4, 4
    temperature, sinkhorn_iter, n_sortcut = 0.7, 8, 0
    bh = batch * heads

    key = jax.random.PRNGKey(0)
    kq, kk, kn = jax.random.split(key, 3)
    q = jax.random.normal(kq, (bh, seq_q, dim), dtype=jnp.float32)
    k = jax.random.normal(kk, (bh, seq_k, dim), dtype=jnp.float32)

    # --- f32 inputs ---
    out, u = attention_sort_net(
        q, k, heads=heads, bucket_size=bucket_size, kv_bucket_size=kv_bucket_size,
        dim=dim, temperature=temperature, sinkhorn_iter=sinkhorn_iter,
        n_sortcut=n_sortcut, noise_key=kn)
    out = jax.block_until_ready(out)
    ref = _reference(q, k, u, bucket_size=bucket_size, kv_bucket_size=kv_bucket_size,
                     dim=dim, temperature=temperature, sinkhorn_iter=sinkhorn_iter,
                     n_sortcut=n_sortcut)
    assert out.shape == (bh, seq_q // bucket_size, seq_k // kv_bucket_size)
    np.testing.assert_allclose(np.asarray(out), np.asarray(ref), rtol=2e-4, atol=2e-5)

    # --- bf16 inputs: kernel DMAs bf16 directly (half the HBM traffic), math in f32 ---
    q_bf, k_bf = q.astype(jnp.bfloat16), k.astype(jnp.bfloat16)
    out_bf, u_bf = attention_sort_net(
        q_bf, k_bf, heads=heads, bucket_size=bucket_size,
        kv_bucket_size=kv_bucket_size, dim=dim, temperature=temperature,
        sinkhorn_iter=sinkhorn_iter, n_sortcut=n_sortcut, noise_key=kn)
    out_bf = jax.block_until_ready(out_bf)
    ref_bf = _reference(q_bf, k_bf, u_bf, bucket_size=bucket_size,
                        kv_bucket_size=kv_bucket_size, dim=dim,
                        temperature=temperature, sinkhorn_iter=sinkhorn_iter,
                        n_sortcut=n_sortcut)
    np.testing.assert_allclose(np.asarray(out_bf), np.asarray(ref_bf),
                               rtol=5e-4, atol=1e-4)

    print("KERNEL_OK")
</pallas_src>

<mosaic_0001>
module attributes {stable_mosaic.version = 11 : i64} {
  func.func @_attention_sort_kernel_mxu(%arg0: i32, %arg1: memref<8x16x32xf32, #tpu.memory_space<vmem>>, %arg2: memref<8x16x32xf32, #tpu.memory_space<vmem>>, %arg3: memref<8x4x4xf32, #tpu.memory_space<vmem>>, %arg4: memref<8x4x4xf32, #tpu.memory_space<vmem>>) attributes {dimension_semantics = [#tpu.dimension_semantics<parallel>], iteration_bounds = array<i64: 1>, scalar_prefetch = 0 : i64, scratch_operands = 0 : i64, tpu.core_type = #tpu.core_type<tc>, window_params = [{transform_indices = @transform_0, window_bounds = array<i64: 8, 16, 32>}, {transform_indices = @transform_1, window_bounds = array<i64: 8, 16, 32>}, {transform_indices = @transform_2, window_bounds = array<i64: 8, 4, 4>}, {transform_indices = @transform_3, window_bounds = array<i64: 8, 4, 4>}]} {
    %0 = tpu.iota {dimensions = array<i32: 0>} : vector<4x16xi32>
    %1 = tpu.iota {dimensions = array<i32: 1>} : vector<4x16xi32>
    %c4_i32 = arith.constant 4 : i32
    %2 = vector.broadcast %c4_i32 : i32 to vector<4x16xi32>
    %3 = arith.muli %0, %2 : vector<4x16xi32>
    %4 = arith.cmpi sge, %1, %3 : vector<4x16xi32>
    %c4_i32_0 = arith.constant 4 : i32
    %5 = vector.broadcast %c4_i32_0 : i32 to vector<4x16xi32>
    %6 = arith.addi %3, %5 : vector<4x16xi32>
    %7 = arith.cmpi slt, %1, %6 : vector<4x16xi32>
    %8 = arith.andi %4, %7 : vector<4x16xi1>
    %9 = arith.extui %8 : vector<4x16xi1> to vector<4x16xi32>
    %10 = arith.sitofp %9 : vector<4x16xi32> to vector<4x16xf32>
    %11 = vector.shape_cast %10 : vector<4x16xf32> to vector<1x4x16xf32>
    %12 = vector.shape_cast %11 : vector<1x4x16xf32> to vector<1x4x16xf32>
    %13 = vector.broadcast %12 : vector<1x4x16xf32> to vector<8x4x16xf32>
    %14 = tpu.iota {dimensions = array<i32: 0>} : vector<4x16xi32>
    %15 = tpu.iota {dimensions = array<i32: 1>} : vector<4x16xi32>
    %c4_i32_1 = arith.constant 4 : i32
    %16 = vector.broadcast %c4_i32_1 : i32 to vector<4x16xi32>
    %17 = arith.muli %14, %16 : vector<4x16xi32>
    %18 = arith.cmpi sge, %15, %17 : vector<4x16xi32>
    %c4_i32_2 = arith.constant 4 : i32
    %19 = vector.broadcast %c4_i32_2 : i32 to vector<4x16xi32>
    %20 = arith.addi %17, %19 : vector<4x16xi32>
    %21 = arith.cmpi slt, %15, %20 : vector<4x16xi32>
    %22 = arith.andi %18, %21 : vector<4x16xi1>
    %23 = arith.extui %22 : vector<4x16xi1> to vector<4x16xi32>
    %24 = arith.sitofp %23 : vector<4x16xi32> to vector<4x16xf32>
    %25 = vector.shape_cast %24 : vector<4x16xf32> to vector<1x4x16xf32>
    %26 = vector.shape_cast %25 : vector<1x4x16xf32> to vector<1x4x16xf32>
    %27 = vector.broadcast %26 : vector<1x4x16xf32> to vector<8x4x16xf32>
    %c0 = arith.constant 0 : index
    %c0_3 = arith.constant 0 : index
    %c0_4 = arith.constant 0 : index
    %28 = vector.load %arg1[%c0, %c0_3, %c0_4] : memref<8x16x32xf32, #tpu.memory_space<vmem>>, vector<8x16x32xf32>
    "tpu.trace_start"() <{level = 10 : i32, message = "bqs,bsd->bqd"}> : () -> ()
    %cst = arith.constant dense<0.000000e+00> : vector<8x4x32xf32>
    %29 = tpu.matmul %13, %28, %cst {dimension_numbers = #tpu.dot_dimension_numbers<[2], [1], [1], [2], [0, 0, 0, 1, 1, 2], [0], [0]>} : vector<8x4x16xf32>, vector<8x16x32xf32>, vector<8x4x32xf32> -> vector<8x4x32xf32>
    "tpu.trace_stop"() : () -> ()
    %c0_5 = arith.constant 0 : index
    %c0_6 = arith.constant 0 : index
    %c0_7 = arith.constant 0 : index
    %30 = vector.load %arg2[%c0_5, %c0_6, %c0_7] : memref<8x16x32xf32, #tpu.memory_space<vmem>>, vector<8x16x32xf32>
    "tpu.trace_start"() <{level = 10 : i32, message = "bks,bsd->bkd"}> : () -> ()
    %cst_8 = arith.constant dense<0.000000e+00> : vector<8x4x32xf32>
    %31 = tpu.matmul %27, %30, %cst_8 {dimension_numbers = #tpu.dot_dimension_numbers<[2], [1], [1], [2], [0, 0, 0, 1, 1, 2], [0], [0]>} : vector<8x4x16xf32>, vector<8x16x32xf32>, vector<8x4x32xf32> -> vector<8x4x32xf32>
    "tpu.trace_stop"() : () -> ()
    "tpu.trace_start"() <{level = 10 : i32, message = "bqd,bkd->bqk"}> : () -> ()
    %cst_9 = arith.constant dense<0.000000e+00> : vector<8x4x4xf32>
    %32 = tpu.matmul %29, %31, %cst_9 {dimension_numbers = #tpu.dot_dimension_numbers<[2], [2], [1], [1], [0, 0, 0, 1, 1, 1], [0], [0]>} : vector<8x4x32xf32>, vector<8x4x32xf32>, vector<8x4x4xf32> -> vector<8x4x4xf32>
    "tpu.trace_stop"() : () -> ()
    %cst_10 = arith.constant 0.0110485433 : f32
    %33 = vector.broadcast %cst_10 : f32 to vector<8x4x4xf32>
    %34 = arith.mulf %32, %33 : vector<8x4x4xf32>
    %cst_11 = arith.constant 0.000000e+00 : f32
    %35 = vector.broadcast %cst_11 : f32 to vector<8x4x4xf32>
    %36 = arith.maximumf %34, %35 : vector<8x4x4xf32>
    %c0_12 = arith.constant 0 : index
    %c0_13 = arith.constant 0 : index
    %c0_14 = arith.constant 0 : index
    %37 = vector.load %arg3[%c0_12, %c0_13, %c0_14] : memref<8x4x4xf32, #tpu.memory_space<vmem>>, vector<8x4x4xf32>
    %cst_15 = arith.constant 9.99999997E-7 : f32
    %38 = vector.broadcast %cst_15 : f32 to vector<8x4x4xf32>
    %39 = arith.addf %37, %38 : vector<8x4x4xf32>
    %40 = math.log %39 : vector<8x4x4xf32>
    %cst_16 = arith.constant 0.000000e+00 : f32
    %41 = vector.broadcast %cst_16 : f32 to vector<8x4x4xf32>
    %42 = arith.subf %41, %40 : vector<8x4x4xf32>
    %cst_17 = arith.constant 9.99999997E-7 : f32
    %43 = vector.broadcast %cst_17 : f32 to vector<8x4x4xf32>
    %44 = arith.addf %42, %43 : vector<8x4x4xf32>
    %45 = math.log %44 : vector<8x4x4xf32>
    %cst_18 = arith.constant 0.000000e+00 : f32
    %46 = vector.broadcast %cst_18 : f32 to vector<8x4x4xf32>
    %47 = arith.subf %46, %45 : vector<8x4x4xf32>
    %cst_19 = arith.constant 9.99999997E-7 : f32
    %48 = vector.broadcast %cst_19 : f32 to vector<8x4x4xf32>
    %49 = arith.addf %36, %48 : vector<8x4x4xf32>
    %50 = math.log %49 : vector<8x4x4xf32>
    %51 = arith.addf %50, %47 : vector<8x4x4xf32>
    %cst_20 = arith.constant 1.42857146 : f32
    %52 = vector.broadcast %cst_20 : f32 to vector<8x4x4xf32>
    %53 = arith.mulf %51, %52 : vector<8x4x4xf32>
    %cst_21 = arith.constant dense<0xFF800000> : vector<8x4xf32>
    %54 = vector.multi_reduction <maximumf>, %53, %cst_21 [2] : vector<8x4x4xf32> to vector<8x4xf32>
    %55 = vector.shape_cast %54 : vector<8x4xf32> to vector<8x4x1xf32>
    %56 = vector.broadcast %55 : vector<8x4x1xf32> to vector<8x4x4xf32>
    %57 = arith.subf %53, %56 : vector<8x4x4xf32>
    %58 = math.exp %57 : vector<8x4x4xf32>
    %cst_22 = arith.constant dense<0.000000e+00> : vector<8x4xf32>
    %59 = vector.multi_reduction <add>, %58, %cst_22 [2] : vector<8x4x4xf32> to vector<8x4xf32>
    %60 = vector.shape_cast %59 : vector<8x4xf32> to vector<8x4x1xf32>
    %61 = math.log %60 : vector<8x4x1xf32>
    %62 = arith.addf %55, %61 : vector<8x4x1xf32>
    %63 = vector.broadcast %62 : vector<8x4x1xf32> to vector<8x4x4xf32>
    %64 = arith.subf %53, %63 : vector<8x4x4xf32>
    %cst_23 = arith.constant dense<0xFF800000> : vector<8x4xf32>
    %65 = vector.multi_reduction <maximumf>, %64, %cst_23 [1] : vector<8x4x4xf32> to vector<8x4xf32>
    %66 = vector.shape_cast %65 : vector<8x4xf32> to vector<8x1x4xf32>
    %67 = vector.broadcast %66 : vector<8x1x4xf32> to vector<8x4x4xf32>
    %68 = arith.subf %64, %67 : vector<8x4x4xf32>
    %69 = math.exp %68 : vector<8x4x4xf32>
    %cst_24 = arith.constant dense<0.000000e+00> : vector<8x4xf32>
    %70 = vector.multi_reduction <add>, %69, %cst_24 [1] : vector<8x4x4xf32> to vector<8x4xf32>
    %71 = vector.shape_cast %70 : vector<8x4xf32> to vector<8x1x4xf32>
    %72 = math.log %71 : vector<8x1x4xf32>
    %73 = arith.addf %66, %72 : vector<8x1x4xf32>
    %74 = vector.broadcast %73 : vector<8x1x4xf32> to vector<8x4x4xf32>
    %75 = arith.subf %64, %74 : vector<8x4x4xf32>
    %cst_25 = arith.constant dense<0xFF800000> : vector<8x4xf32>
    %76 = vector.multi_reduction <maximumf>, %75, %cst_25 [2] : vector<8x4x4xf32> to vector<8x4xf32>
    %77 = vector.shape_cast %76 : vector<8x4xf32> to vector<8x4x1xf32>
    %78 = vector.broadcast %77 : vector<8x4x1xf32> to vector<8x4x4xf32>
    %79 = arith.subf %75, %78 : vector<8x4x4xf32>
    %80 = math.exp %79 : vector<8x4x4xf32>
    %cst_26 = arith.constant dense<0.000000e+00> : vector<8x4xf32>
    %81 = vector.multi_reduction <add>, %80, %cst_26 [2] : vector<8x4x4xf32> to vector<8x4xf32>
    %82 = vector.shape_cast %81 : vector<8x4xf32> to vector<8x4x1xf32>
    %83 = math.log %82 : vector<8x4x1xf32>
    %84 = arith.addf %77, %83 : vector<8x4x1xf32>
    %85 = vector.broadcast %84 : vector<8x4x1xf32> to vector<8x4x4xf32>
    %86 = arith.subf %75, %85 : vector<8x4x4xf32>
    %cst_27 = arith.constant dense<0xFF800000> : vector<8x4xf32>
    %87 = vector.multi_reduction <maximumf>, %86, %cst_27 [1] : vector<8x4x4xf32> to vector<8x4xf32>
    %88 = vector.shape_cast %87 : vector<8x4xf32> to vector<8x1x4xf32>
    %89 = vector.broadcast %88 : vector<8x1x4xf32> to vector<8x4x4xf32>
    %90 = arith.subf %86, %89 : vector<8x4x4xf32>
    %91 = math.exp %90 : vector<8x4x4xf32>
    %cst_28 = arith.constant dense<0.000000e+00> : vector<8x4xf32>
    %92 = vector.multi_reduction <add>, %91, %cst_28 [1] : vector<8x4x4xf32> to vector<8x4xf32>
    %93 = vector.shape_cast %92 : vector<8x4xf32> to vector<8x1x4xf32>
    %94 = math.log %93 : vector<8x1x4xf32>
    %95 = arith.addf %88, %94 : vector<8x1x4xf32>
    %96 = vector.broadcast %95 : vector<8x1x4xf32> to vector<8x4x4xf32>
    %97 = arith.subf %86, %96 : vector<8x4x4xf32>
    %cst_29 = arith.constant dense<0xFF800000> : vector<8x4xf32>
    %98 = vector.multi_reduction <maximumf>, %97, %cst_29 [2] : vector<8x4x4xf32> to vector<8x4xf32>
    %99 = vector.shape_cast %98 : vector<8x4xf32> to vector<8x4x1xf32>
    %100 = vector.broadcast %99 : vector<8x4x1xf32> to vector<8x4x4xf32>
    %101 = arith.subf %97, %100 : vector<8x4x4xf32>
    %102 = math.exp %101 : vector<8x4x4xf32>
    %cst_30 = arith.constant dense<0.000000e+00> : vector<8x4xf32>
    %103 = vector.multi_reduction <add>, %102, %cst_30 [2] : vector<8x4x4xf32> to vector<8x4xf32>
    %104 = vector.shape_cast %103 : vector<8x4xf32> to vector<8x4x1xf32>
    %105 = math.log %104 : vector<8x4x1xf32>
    %106 = arith.addf %99, %105 : vector<8x4x1xf32>
    %107 = vector.broadcast %106 : vector<8x4x1xf32> to vector<8x4x4xf32>
    %108 = arith.subf %97, %107 : vector<8x4x4xf32>
    %cst_31 = arith.constant dense<0xFF800000> : vector<8x4xf32>
    %109 = vector.multi_reduction <maximumf>, %108, %cst_31 [1] : vector<8x4x4xf32> to vector<8x4xf32>
    %110 = vector.shape_cast %109 : vector<8x4xf32> to vector<8x1x4xf32>
    %111 = vector.broadcast %110 : vector<8x1x4xf32> to vector<8x4x4xf32>
    %112 = arith.subf %108, %111 : vector<8x4x4xf32>
    %113 = math.exp %112 : vector<8x4x4xf32>
    %cst_32 = arith.constant dense<0.000000e+00> : vector<8x4xf32>
    %114 = vector.multi_reduction <add>, %113, %cst_32 [1] : vector<8x4x4xf32> to vector<8x4xf32>
    %115 = vector.shape_cast %114 : vector<8x4xf32> to vector<8x1x4xf32>
    %116 = math.log %115 : vector<8x1x4xf32>
    %117 = arith.addf %110, %116 : vector<8x1x4xf32>
    %118 = vector.broadcast %117 : vector<8x1x4xf32> to vector<8x4x4xf32>
    %119 = arith.subf %108, %118 : vector<8x4x4xf32>
    %cst_33 = arith.constant dense<0xFF800000> : vector<8x4xf32>
    %120 = vector.multi_reduction <maximumf>, %119, %cst_33 [2] : vector<8x4x4xf32> to vector<8x4xf32>
    %121 = vector.shape_cast %120 : vector<8x4xf32> to vector<8x4x1xf32>
    %122 = vector.broadcast %121 : vector<8x4x1xf32> to vector<8x4x4xf32>
    %123 = arith.subf %119, %122 : vector<8x4x4xf32>
    %124 = math.exp %123 : vector<8x4x4xf32>
    %cst_34 = arith.constant dense<0.000000e+00> : vector<8x4xf32>
    %125 = vector.multi_reduction <add>, %124, %cst_34 [2] : vector<8x4x4xf32> to vector<8x4xf32>
    %126 = vector.shape_cast %125 : vector<8x4xf32> to vector<8x4x1xf32>
    %127 = math.log %126 : vector<8x4x1xf32>
    %128 = arith.addf %121, %127 : vector<8x4x1xf32>
    %129 = vector.broadcast %128 : vector<8x4x1xf32> to vector<8x4x4xf32>
    %130 = arith.subf %119, %129 : vector<8x4x4xf32>
    %cst_35 = arith.constant dense<0xFF800000> : vector<8x4xf32>
    %131 = vector.multi_reduction <maximumf>, %130, %cst_35 [1] : vector<8x4x4xf32> to vector<8x4xf32>
    %132 = vector.shape_cast %131 : vector<8x4xf32> to vector<8x1x4xf32>
    %133 = vector.broadcast %132 : vector<8x1x4xf32> to vector<8x4x4xf32>
    %134 = arith.subf %130, %133 : vector<8x4x4xf32>
    %135 = math.exp %134 : vector<8x4x4xf32>
    %cst_36 = arith.constant dense<0.000000e+00> : vector<8x4xf32>
    %136 = vector.multi_reduction <add>, %135, %cst_36 [1] : vector<8x4x4xf32> to vector<8x4xf32>
    %137 = vector.shape_cast %136 : vector<8x4xf32> to vector<8x1x4xf32>
    %138 = math.log %137 : vector<8x1x4xf32>
    %139 = arith.addf %132, %138 : vector<8x1x4xf32>
    %140 = vector.broadcast %139 : vector<8x1x4xf32> to vector<8x4x4xf32>
    %141 = arith.subf %130, %140 : vector<8x4x4xf32>
    %cst_37 = arith.constant dense<0xFF800000> : vector<8x4xf32>
    %142 = vector.multi_reduction <maximumf>, %141, %cst_37 [2] : vector<8x4x4xf32> to vector<8x4xf32>
    %143 = vector.shape_cast %142 : vector<8x4xf32> to vector<8x4x1xf32>
    %144 = vector.broadcast %143 : vector<8x4x1xf32> to vector<8x4x4xf32>
    %145 = arith.subf %141, %144 : vector<8x4x4xf32>
    %146 = math.exp %145 : vector<8x4x4xf32>
    %cst_38 = arith.constant dense<0.000000e+00> : vector<8x4xf32>
    %147 = vector.multi_reduction <add>, %146, %cst_38 [2] : vector<8x4x4xf32> to vector<8x4xf32>
    %148 = vector.shape_cast %147 : vector<8x4xf32> to vector<8x4x1xf32>
    %149 = math.log %148 : vector<8x4x1xf32>
    %150 = arith.addf %143, %149 : vector<8x4x1xf32>
    %151 = vector.broadcast %150 : vector<8x4x1xf32> to vector<8x4x4xf32>
    %152 = arith.subf %141, %151 : vector<8x4x4xf32>
    %cst_39 = arith.constant dense<0xFF800000> : vector<8x4xf32>
    %153 = vector.multi_reduction <maximumf>, %152, %cst_39 [1] : vector<8x4x4xf32> to vector<8x4xf32>
    %154 = vector.shape_cast %153 : vector<8x4xf32> to vector<8x1x4xf32>
    %155 = vector.broadcast %154 : vector<8x1x4xf32> to vector<8x4x4xf32>
    %156 = arith.subf %152, %155 : vector<8x4x4xf32>
    %157 = math.exp %156 : vector<8x4x4xf32>
    %cst_40 = arith.constant dense<0.000000e+00> : vector<8x4xf32>
    %158 = vector.multi_reduction <add>, %157, %cst_40 [1] : vector<8x4x4xf32> to vector<8x4xf32>
    %159 = vector.shape_cast %158 : vector<8x4xf32> to vector<8x1x4xf32>
    %160 = math.log %159 : vector<8x1x4xf32>
    %161 = arith.addf %154, %160 : vector<8x1x4xf32>
    %162 = vector.broadcast %161 : vector<8x1x4xf32> to vector<8x4x4xf32>
    %163 = arith.subf %152, %162 : vector<8x4x4xf32>
    %cst_41 = arith.constant dense<0xFF800000> : vector<8x4xf32>
    %164 = vector.multi_reduction <maximumf>, %163, %cst_41 [2] : vector<8x4x4xf32> to vector<8x4xf32>
    %165 = vector.shape_cast %164 : vector<8x4xf32> to vector<8x4x1xf32>
    %166 = vector.broadcast %165 : vector<8x4x1xf32> to vector<8x4x4xf32>
    %167 = arith.subf %163, %166 : vector<8x4x4xf32>
    %168 = math.exp %167 : vector<8x4x4xf32>
    %cst_42 = arith.constant dense<0.000000e+00> : vector<8x4xf32>
    %169 = vector.multi_reduction <add>, %168, %cst_42 [2] : vector<8x4x4xf32> to vector<8x4xf32>
    %170 = vector.shape_cast %169 : vector<8x4xf32> to vector<8x4x1xf32>
    %171 = math.log %170 : vector<8x4x1xf32>
    %172 = arith.addf %165, %171 : vector<8x4x1xf32>
    %173 = vector.broadcast %172 : vector<8x4x1xf32> to vector<8x4x4xf32>
    %174 = arith.subf %163, %173 : vector<8x4x4xf32>
    %cst_43 = arith.constant dense<0xFF800000> : vector<8x4xf32>
    %175 = vector.multi_reduction <maximumf>, %174, %cst_43 [1] : vector<8x4x4xf32> to vector<8x4xf32>
    %176 = vector.shape_cast %175 : vector<8x4xf32> to vector<8x1x4xf32>
    %177 = vector.broadcast %176 : vector<8x1x4xf32> to vector<8x4x4xf32>
    %178 = arith.subf %174, %177 : vector<8x4x4xf32>
    %179 = math.exp %178 : vector<8x4x4xf32>
    %cst_44 = arith.constant dense<0.000000e+00> : vector<8x4xf32>
    %180 = vector.multi_reduction <add>, %179, %cst_44 [1] : vector<8x4x4xf32> to vector<8x4xf32>
    %181 = vector.shape_cast %180 : vector<8x4xf32> to vector<8x1x4xf32>
    %182 = math.log %181 : vector<8x1x4xf32>
    %183 = arith.addf %176, %182 : vector<8x1x4xf32>
    %184 = vector.broadcast %183 : vector<8x1x4xf32> to vector<8x4x4xf32>
    %185 = arith.subf %174, %184 : vector<8x4x4xf32>
    %cst_45 = arith.constant dense<0xFF800000> : vector<8x4xf32>
    %186 = vector.multi_reduction <maximumf>, %185, %cst_45 [2] : vector<8x4x4xf32> to vector<8x4xf32>
    %187 = vector.shape_cast %186 : vector<8x4xf32> to vector<8x4x1xf32>
    %188 = vector.broadcast %187 : vector<8x4x1xf32> to vector<8x4x4xf32>
    %189 = arith.subf %185, %188 : vector<8x4x4xf32>
    %190 = math.exp %189 : vector<8x4x4xf32>
    %cst_46 = arith.constant dense<0.000000e+00> : vector<8x4xf32>
    %191 = vector.multi_reduction <add>, %190, %cst_46 [2] : vector<8x4x4xf32> to vector<8x4xf32>
    %192 = vector.shape_cast %191 : vector<8x4xf32> to vector<8x4x1xf32>
    %193 = math.log %192 : vector<8x4x1xf32>
    %194 = arith.addf %187, %193 : vector<8x4x1xf32>
    %195 = vector.broadcast %194 : vector<8x4x1xf32> to vector<8x4x4xf32>
    %196 = arith.subf %185, %195 : vector<8x4x4xf32>
    %cst_47 = arith.constant dense<0xFF800000> : vector<8x4xf32>
    %197 = vector.multi_reduction <maximumf>, %196, %cst_47 [1] : vector<8x4x4xf32> to vector<8x4xf32>
    %198 = vector.shape_cast %197 : vector<8x4xf32> to vector<8x1x4xf32>
    %199 = vector.broadcast %198 : vector<8x1x4xf32> to vector<8x4x4xf32>
    %200 = arith.subf %196, %199 : vector<8x4x4xf32>
    %201 = math.exp %200 : vector<8x4x4xf32>
    %cst_48 = arith.constant dense<0.000000e+00> : vector<8x4xf32>
    %202 = vector.multi_reduction <add>, %201, %cst_48 [1] : vector<8x4x4xf32> to vector<8x4xf32>
    %203 = vector.shape_cast %202 : vector<8x4xf32> to vector<8x1x4xf32>
    %204 = math.log %203 : vector<8x1x4xf32>
    %205 = arith.addf %198, %204 : vector<8x1x4xf32>
    %206 = vector.broadcast %205 : vector<8x1x4xf32> to vector<8x4x4xf32>
    %207 = arith.subf %196, %206 : vector<8x4x4xf32>
    %cst_49 = arith.constant dense<0xFF800000> : vector<8x4xf32>
    %208 = vector.multi_reduction <maximumf>, %207, %cst_49 [2] : vector<8x4x4xf32> to vector<8x4xf32>
    %209 = vector.shape_cast %208 : vector<8x4xf32> to vector<8x4x1xf32>
    %210 = vector.broadcast %209 : vector<8x4x1xf32> to vector<8x4x4xf32>
    %211 = arith.subf %207, %210 : vector<8x4x4xf32>
    %212 = math.exp %211 : vector<8x4x4xf32>
    %cst_50 = arith.constant dense<0.000000e+00> : vector<8x4xf32>
    %213 = vector.multi_reduction <add>, %212, %cst_50 [2] : vector<8x4x4xf32> to vector<8x4xf32>
    %214 = vector.shape_cast %213 : vector<8x4xf32> to vector<8x4x1xf32>
    %215 = math.log %214 : vector<8x4x1xf32>
    %216 = arith.addf %209, %215 : vector<8x4x1xf32>
    %217 = vector.broadcast %216 : vector<8x4x1xf32> to vector<8x4x4xf32>
    %218 = arith.subf %207, %217 : vector<8x4x4xf32>
    %cst_51 = arith.constant dense<0xFF800000> : vector<8x4xf32>
    %219 = vector.multi_reduction <maximumf>, %218, %cst_51 [1] : vector<8x4x4xf32> to vector<8x4xf32>
    %220 = vector.shape_cast %219 : vector<8x4xf32> to vector<8x1x4xf32>
    %221 = vector.broadcast %220 : vector<8x1x4xf32> to vector<8x4x4xf32>
    %222 = arith.subf %218, %221 : vector<8x4x4xf32>
    %223 = math.exp %222 : vector<8x4x4xf32>
    %cst_52 = arith.constant dense<0.000000e+00> : vector<8x4xf32>
    %224 = vector.multi_reduction <add>, %223, %cst_52 [1] : vector<8x4x4xf32> to vector<8x4xf32>
    %225 = vector.shape_cast %224 : vector<8x4xf32> to vector<8x1x4xf32>
    %226 = math.log %225 : vector<8x1x4xf32>
    %227 = arith.addf %220, %226 : vector<8x1x4xf32>
    %228 = vector.broadcast %227 : vector<8x1x4xf32> to vector<8x4x4xf32>
    %229 = arith.subf %218, %228 : vector<8x4x4xf32>
    %230 = math.exp %229 : vector<8x4x4xf32>
    %c0_53 = arith.constant 0 : index
    %c0_54 = arith.constant 0 : index
    %c0_55 = arith.constant 0 : index
    %231 = vector.load %arg4[%c0_53, %c0_54, %c0_55] : memref<8x4x4xf32, #tpu.memory_space<vmem>>, vector<8x4x4xf32>
    tpu.vector_store %arg4[%c0_53, %c0_54, %c0_55], %230 {strides = array<i32>} : memref<8x4x4xf32, #tpu.memory_space<vmem>>, vector<8x4x4xf32>,
    return
  }
  func.func @transform_0(%arg0: i32) -> (i32, i32, i32) {
    %c0_i32 = arith.constant 0 : i32
    %c0_i32_0 = arith.constant 0 : i32
    %c0_i32_1 = arith.constant 0 : i32
    return %arg0, %c0_i32, %c0_i32_0 : i32, i32, i32
  }
  func.func @transform_1(%arg0: i32) -> (i32, i32, i32) {
    %c0_i32 = arith.constant 0 : i32
    %c0_i32_0 = arith.constant 0 : i32
    %c0_i32_1 = arith.constant 0 : i32
    return %arg0, %c0_i32, %c0_i32_0 : i32, i32, i32
  }
  func.func @transform_2(%arg0: i32) -> (i32, i32, i32) {
    %c0_i32 = arith.constant 0 : i32
    %c0_i32_0 = arith.constant 0 : i32
    %c0_i32_1 = arith.constant 0 : i32
    return %arg0, %c0_i32, %c0_i32_0 : i32, i32, i32
  }
  func.func @transform_3(%arg0: i32) -> (i32, i32, i32) {
    %c0_i32 = arith.constant 0 : i32
    %c0_i32_0 = arith.constant 0 : i32
    %c0_i32_1 = arith.constant 0 : i32
    return %arg0, %c0_i32, %c0_i32_0 : i32, i32, i32
  }
}

module attributes {stable_mosaic.version = 11 : i64} {
  func.func @_attention_sort_kernel_vpu(%arg0: i32, %arg1: memref<8x16x32xf32, #tpu.memory_space<vmem>>, %arg2: memref<8x16x32xf32, #tpu.memory_space<vmem>>, %arg3: memref<8x4x4xf32, #tpu.memory_space<vmem>>, %arg4: memref<8x4x4xf32, #tpu.memory_space<vmem>>) attributes {dimension_semantics = [#tpu.dimension_semantics<parallel>], iteration_bounds = array<i64: 1>, scalar_prefetch = 0 : i64, scratch_operands = 0 : i64, tpu.core_type = #tpu.core_type<tc>, window_params = [{transform_indices = @transform_0, window_bounds = array<i64: 8, 16, 32>}, {transform_indices = @transform_1, window_bounds = array<i64: 8, 16, 32>}, {transform_indices = @transform_2, window_bounds = array<i64: 8, 4, 4>}, {transform_indices = @transform_3, window_bounds = array<i64: 8, 4, 4>}]} {
    %c0 = arith.constant 0 : index
    %c0_0 = arith.constant 0 : index
    %c0_1 = arith.constant 0 : index
    %0 = vector.load %arg1[%c0, %c0_0, %c0_1] : memref<8x16x32xf32, #tpu.memory_space<vmem>>, vector<8x16x32xf32>
    %c0_2 = arith.constant 0 : index
    %c0_3 = arith.constant 0 : index
    %c0_4 = arith.constant 0 : index
    %1 = vector.load %arg2[%c0_2, %c0_3, %c0_4] : memref<8x16x32xf32, #tpu.memory_space<vmem>>, vector<8x16x32xf32>
    %2 = vector.shape_cast %0 : vector<8x16x32xf32> to vector<8x4x4x32xf32>
    %cst = arith.constant dense<0.000000e+00> : vector<8x4x32xf32>
    %3 = vector.multi_reduction <add>, %2, %cst [2] : vector<8x4x4x32xf32> to vector<8x4x32xf32>
    %4 = vector.shape_cast %1 : vector<8x16x32xf32> to vector<8x4x4x32xf32>
    %cst_5 = arith.constant dense<0.000000e+00> : vector<8x4x32xf32>
    %5 = vector.multi_reduction <add>, %4, %cst_5 [2] : vector<8x4x4x32xf32> to vector<8x4x32xf32>
    "tpu.trace_start"() <{level = 10 : i32, message = "bqd,bkd->bqk"}> : () -> ()
    %cst_6 = arith.constant dense<0.000000e+00> : vector<8x4x4xf32>
    %6 = tpu.matmul %3, %5, %cst_6 {dimension_numbers = #tpu.dot_dimension_numbers<[2], [2], [1], [1], [0, 0, 0, 1, 1, 1], [0], [0]>} : vector<8x4x32xf32>, vector<8x4x32xf32>, vector<8x4x4xf32> -> vector<8x4x4xf32>
    "tpu.trace_stop"() : () -> ()
    %cst_7 = arith.constant 0.0110485433 : f32
    %7 = vector.broadcast %cst_7 : f32 to vector<8x4x4xf32>
    %8 = arith.mulf %6, %7 : vector<8x4x4xf32>
    %cst_8 = arith.constant 0.000000e+00 : f32
    %9 = vector.broadcast %cst_8 : f32 to vector<8x4x4xf32>
    %10 = arith.maximumf %8, %9 : vector<8x4x4xf32>
    %c0_9 = arith.constant 0 : index
    %c0_10 = arith.constant 0 : index
    %c0_11 = arith.constant 0 : index
    %11 = vector.load %arg3[%c0_9, %c0_10, %c0_11] : memref<8x4x4xf32, #tpu.memory_space<vmem>>, vector<8x4x4xf32>
    %cst_12 = arith.constant 9.99999997E-7 : f32
    %12 = vector.broadcast %cst_12 : f32 to vector<8x4x4xf32>
    %13 = arith.addf %11, %12 : vector<8x4x4xf32>
    %14 = math.log %13 : vector<8x4x4xf32>
    %cst_13 = arith.constant 0.000000e+00 : f32
    %15 = vector.broadcast %cst_13 : f32 to vector<8x4x4xf32>
    %16 = arith.subf %15, %14 : vector<8x4x4xf32>
    %cst_14 = arith.constant 9.99999997E-7 : f32
    %17 = vector.broadcast %cst_14 : f32 to vector<8x4x4xf32>
    %18 = arith.addf %16, %17 : vector<8x4x4xf32>
    %19 = math.log %18 : vector<8x4x4xf32>
    %cst_15 = arith.constant 0.000000e+00 : f32
    %20 = vector.broadcast %cst_15 : f32 to vector<8x4x4xf32>
    %21 = arith.subf %20, %19 : vector<8x4x4xf32>
    %cst_16 = arith.constant 9.99999997E-7 : f32
    %22 = vector.broadcast %cst_16 : f32 to vector<8x4x4xf32>
    %23 = arith.addf %10, %22 : vector<8x4x4xf32>
    %24 = math.log %23 : vector<8x4x4xf32>
    %25 = arith.addf %24, %21 : vector<8x4x4xf32>
    %cst_17 = arith.constant 1.42857146 : f32
    %26 = vector.broadcast %cst_17 : f32 to vector<8x4x4xf32>
    %27 = arith.mulf %25, %26 : vector<8x4x4xf32>
    %cst_18 = arith.constant dense<0xFF800000> : vector<8x4xf32>
    %28 = vector.multi_reduction <maximumf>, %27, %cst_18 [2] : vector<8x4x4xf32> to vector<8x4xf32>
    %29 = vector.shape_cast %28 : vector<8x4xf32> to vector<8x4x1xf32>
    %30 = vector.broadcast %29 : vector<8x4x1xf32> to vector<8x4x4xf32>
    %31 = arith.subf %27, %30 : vector<8x4x4xf32>
    %32 = math.exp %31 : vector<8x4x4xf32>
    %cst_19 = arith.constant dense<0.000000e+00> : vector<8x4xf32>
    %33 = vector.multi_reduction <add>, %32, %cst_19 [2] : vector<8x4x4xf32> to vector<8x4xf32>
    %34 = vector.shape_cast %33 : vector<8x4xf32> to vector<8x4x1xf32>
    %35 = math.log %34 : vector<8x4x1xf32>
    %36 = arith.addf %29, %35 : vector<8x4x1xf32>
    %37 = vector.broadcast %36 : vector<8x4x1xf32> to vector<8x4x4xf32>
    %38 = arith.subf %27, %37 : vector<8x4x4xf32>
    %cst_20 = arith.constant dense<0xFF800000> : vector<8x4xf32>
    %39 = vector.multi_reduction <maximumf>, %38, %cst_20 [1] : vector<8x4x4xf32> to vector<8x4xf32>
    %40 = vector.shape_cast %39 : vector<8x4xf32> to vector<8x1x4xf32>
    %41 = vector.broadcast %40 : vector<8x1x4xf32> to vector<8x4x4xf32>
    %42 = arith.subf %38, %41 : vector<8x4x4xf32>
    %43 = math.exp %42 : vector<8x4x4xf32>
    %cst_21 = arith.constant dense<0.000000e+00> : vector<8x4xf32>
    %44 = vector.multi_reduction <add>, %43, %cst_21 [1] : vector<8x4x4xf32> to vector<8x4xf32>
    %45 = vector.shape_cast %44 : vector<8x4xf32> to vector<8x1x4xf32>
    %46 = math.log %45 : vector<8x1x4xf32>
    %47 = arith.addf %40, %46 : vector<8x1x4xf32>
    %48 = vector.broadcast %47 : vector<8x1x4xf32> to vector<8x4x4xf32>
    %49 = arith.subf %38, %48 : vector<8x4x4xf32>
    %cst_22 = arith.constant dense<0xFF800000> : vector<8x4xf32>
    %50 = vector.multi_reduction <maximumf>, %49, %cst_22 [2] : vector<8x4x4xf32> to vector<8x4xf32>
    %51 = vector.shape_cast %50 : vector<8x4xf32> to vector<8x4x1xf32>
    %52 = vector.broadcast %51 : vector<8x4x1xf32> to vector<8x4x4xf32>
    %53 = arith.subf %49, %52 : vector<8x4x4xf32>
    %54 = math.exp %53 : vector<8x4x4xf32>
    %cst_23 = arith.constant dense<0.000000e+00> : vector<8x4xf32>
    %55 = vector.multi_reduction <add>, %54, %cst_23 [2] : vector<8x4x4xf32> to vector<8x4xf32>
    %56 = vector.shape_cast %55 : vector<8x4xf32> to vector<8x4x1xf32>
    %57 = math.log %56 : vector<8x4x1xf32>
    %58 = arith.addf %51, %57 : vector<8x4x1xf32>
    %59 = vector.broadcast %58 : vector<8x4x1xf32> to vector<8x4x4xf32>
    %60 = arith.subf %49, %59 : vector<8x4x4xf32>
    %cst_24 = arith.constant dense<0xFF800000> : vector<8x4xf32>
    %61 = vector.multi_reduction <maximumf>, %60, %cst_24 [1] : vector<8x4x4xf32> to vector<8x4xf32>
    %62 = vector.shape_cast %61 : vector<8x4xf32> to vector<8x1x4xf32>
    %63 = vector.broadcast %62 : vector<8x1x4xf32> to vector<8x4x4xf32>
    %64 = arith.subf %60, %63 : vector<8x4x4xf32>
    %65 = math.exp %64 : vector<8x4x4xf32>
    %cst_25 = arith.constant dense<0.000000e+00> : vector<8x4xf32>
    %66 = vector.multi_reduction <add>, %65, %cst_25 [1] : vector<8x4x4xf32> to vector<8x4xf32>
    %67 = vector.shape_cast %66 : vector<8x4xf32> to vector<8x1x4xf32>
    %68 = math.log %67 : vector<8x1x4xf32>
    %69 = arith.addf %62, %68 : vector<8x1x4xf32>
    %70 = vector.broadcast %69 : vector<8x1x4xf32> to vector<8x4x4xf32>
    %71 = arith.subf %60, %70 : vector<8x4x4xf32>
    %cst_26 = arith.constant dense<0xFF800000> : vector<8x4xf32>
    %72 = vector.multi_reduction <maximumf>, %71, %cst_26 [2] : vector<8x4x4xf32> to vector<8x4xf32>
    %73 = vector.shape_cast %72 : vector<8x4xf32> to vector<8x4x1xf32>
    %74 = vector.broadcast %73 : vector<8x4x1xf32> to vector<8x4x4xf32>
    %75 = arith.subf %71, %74 : vector<8x4x4xf32>
    %76 = math.exp %75 : vector<8x4x4xf32>
    %cst_27 = arith.constant dense<0.000000e+00> : vector<8x4xf32>
    %77 = vector.multi_reduction <add>, %76, %cst_27 [2] : vector<8x4x4xf32> to vector<8x4xf32>
    %78 = vector.shape_cast %77 : vector<8x4xf32> to vector<8x4x1xf32>
    %79 = math.log %78 : vector<8x4x1xf32>
    %80 = arith.addf %73, %79 : vector<8x4x1xf32>
    %81 = vector.broadcast %80 : vector<8x4x1xf32> to vector<8x4x4xf32>
    %82 = arith.subf %71, %81 : vector<8x4x4xf32>
    %cst_28 = arith.constant dense<0xFF800000> : vector<8x4xf32>
    %83 = vector.multi_reduction <maximumf>, %82, %cst_28 [1] : vector<8x4x4xf32> to vector<8x4xf32>
    %84 = vector.shape_cast %83 : vector<8x4xf32> to vector<8x1x4xf32>
    %85 = vector.broadcast %84 : vector<8x1x4xf32> to vector<8x4x4xf32>
    %86 = arith.subf %82, %85 : vector<8x4x4xf32>
    %87 = math.exp %86 : vector<8x4x4xf32>
    %cst_29 = arith.constant dense<0.000000e+00> : vector<8x4xf32>
    %88 = vector.multi_reduction <add>, %87, %cst_29 [1] : vector<8x4x4xf32> to vector<8x4xf32>
    %89 = vector.shape_cast %88 : vector<8x4xf32> to vector<8x1x4xf32>
    %90 = math.log %89 : vector<8x1x4xf32>
    %91 = arith.addf %84, %90 : vector<8x1x4xf32>
    %92 = vector.broadcast %91 : vector<8x1x4xf32> to vector<8x4x4xf32>
    %93 = arith.subf %82, %92 : vector<8x4x4xf32>
    %cst_30 = arith.constant dense<0xFF800000> : vector<8x4xf32>
    %94 = vector.multi_reduction <maximumf>, %93, %cst_30 [2] : vector<8x4x4xf32> to vector<8x4xf32>
    %95 = vector.shape_cast %94 : vector<8x4xf32> to vector<8x4x1xf32>
    %96 = vector.broadcast %95 : vector<8x4x1xf32> to vector<8x4x4xf32>
    %97 = arith.subf %93, %96 : vector<8x4x4xf32>
    %98 = math.exp %97 : vector<8x4x4xf32>
    %cst_31 = arith.constant dense<0.000000e+00> : vector<8x4xf32>
    %99 = vector.multi_reduction <add>, %98, %cst_31 [2] : vector<8x4x4xf32> to vector<8x4xf32>
    %100 = vector.shape_cast %99 : vector<8x4xf32> to vector<8x4x1xf32>
    %101 = math.log %100 : vector<8x4x1xf32>
    %102 = arith.addf %95, %101 : vector<8x4x1xf32>
    %103 = vector.broadcast %102 : vector<8x4x1xf32> to vector<8x4x4xf32>
    %104 = arith.subf %93, %103 : vector<8x4x4xf32>
    %cst_32 = arith.constant dense<0xFF800000> : vector<8x4xf32>
    %105 = vector.multi_reduction <maximumf>, %104, %cst_32 [1] : vector<8x4x4xf32> to vector<8x4xf32>
    %106 = vector.shape_cast %105 : vector<8x4xf32> to vector<8x1x4xf32>
    %107 = vector.broadcast %106 : vector<8x1x4xf32> to vector<8x4x4xf32>
    %108 = arith.subf %104, %107 : vector<8x4x4xf32>
    %109 = math.exp %108 : vector<8x4x4xf32>
    %cst_33 = arith.constant dense<0.000000e+00> : vector<8x4xf32>
    %110 = vector.multi_reduction <add>, %109, %cst_33 [1] : vector<8x4x4xf32> to vector<8x4xf32>
    %111 = vector.shape_cast %110 : vector<8x4xf32> to vector<8x1x4xf32>
    %112 = math.log %111 : vector<8x1x4xf32>
    %113 = arith.addf %106, %112 : vector<8x1x4xf32>
    %114 = vector.broadcast %113 : vector<8x1x4xf32> to vector<8x4x4xf32>
    %115 = arith.subf %104, %114 : vector<8x4x4xf32>
    %cst_34 = arith.constant dense<0xFF800000> : vector<8x4xf32>
    %116 = vector.multi_reduction <maximumf>, %115, %cst_34 [2] : vector<8x4x4xf32> to vector<8x4xf32>
    %117 = vector.shape_cast %116 : vector<8x4xf32> to vector<8x4x1xf32>
    %118 = vector.broadcast %117 : vector<8x4x1xf32> to vector<8x4x4xf32>
    %119 = arith.subf %115, %118 : vector<8x4x4xf32>
    %120 = math.exp %119 : vector<8x4x4xf32>
    %cst_35 = arith.constant dense<0.000000e+00> : vector<8x4xf32>
    %121 = vector.multi_reduction <add>, %120, %cst_35 [2] : vector<8x4x4xf32> to vector<8x4xf32>
    %122 = vector.shape_cast %121 : vector<8x4xf32> to vector<8x4x1xf32>
    %123 = math.log %122 : vector<8x4x1xf32>
    %124 = arith.addf %117, %123 : vector<8x4x1xf32>
    %125 = vector.broadcast %124 : vector<8x4x1xf32> to vector<8x4x4xf32>
    %126 = arith.subf %115, %125 : vector<8x4x4xf32>
    %cst_36 = arith.constant dense<0xFF800000> : vector<8x4xf32>
    %127 = vector.multi_reduction <maximumf>, %126, %cst_36 [1] : vector<8x4x4xf32> to vector<8x4xf32>
    %128 = vector.shape_cast %127 : vector<8x4xf32> to vector<8x1x4xf32>
    %129 = vector.broadcast %128 : vector<8x1x4xf32> to vector<8x4x4xf32>
    %130 = arith.subf %126, %129 : vector<8x4x4xf32>
    %131 = math.exp %130 : vector<8x4x4xf32>
    %cst_37 = arith.constant dense<0.000000e+00> : vector<8x4xf32>
    %132 = vector.multi_reduction <add>, %131, %cst_37 [1] : vector<8x4x4xf32> to vector<8x4xf32>
    %133 = vector.shape_cast %132 : vector<8x4xf32> to vector<8x1x4xf32>
    %134 = math.log %133 : vector<8x1x4xf32>
    %135 = arith.addf %128, %134 : vector<8x1x4xf32>
    %136 = vector.broadcast %135 : vector<8x1x4xf32> to vector<8x4x4xf32>
    %137 = arith.subf %126, %136 : vector<8x4x4xf32>
    %cst_38 = arith.constant dense<0xFF800000> : vector<8x4xf32>
    %138 = vector.multi_reduction <maximumf>, %137, %cst_38 [2] : vector<8x4x4xf32> to vector<8x4xf32>
    %139 = vector.shape_cast %138 : vector<8x4xf32> to vector<8x4x1xf32>
    %140 = vector.broadcast %139 : vector<8x4x1xf32> to vector<8x4x4xf32>
    %141 = arith.subf %137, %140 : vector<8x4x4xf32>
    %142 = math.exp %141 : vector<8x4x4xf32>
    %cst_39 = arith.constant dense<0.000000e+00> : vector<8x4xf32>
    %143 = vector.multi_reduction <add>, %142, %cst_39 [2] : vector<8x4x4xf32> to vector<8x4xf32>
    %144 = vector.shape_cast %143 : vector<8x4xf32> to vector<8x4x1xf32>
    %145 = math.log %144 : vector<8x4x1xf32>
    %146 = arith.addf %139, %145 : vector<8x4x1xf32>
    %147 = vector.broadcast %146 : vector<8x4x1xf32> to vector<8x4x4xf32>
    %148 = arith.subf %137, %147 : vector<8x4x4xf32>
    %cst_40 = arith.constant dense<0xFF800000> : vector<8x4xf32>
    %149 = vector.multi_reduction <maximumf>, %148, %cst_40 [1] : vector<8x4x4xf32> to vector<8x4xf32>
    %150 = vector.shape_cast %149 : vector<8x4xf32> to vector<8x1x4xf32>
    %151 = vector.broadcast %150 : vector<8x1x4xf32> to vector<8x4x4xf32>
    %152 = arith.subf %148, %151 : vector<8x4x4xf32>
    %153 = math.exp %152 : vector<8x4x4xf32>
    %cst_41 = arith.constant dense<0.000000e+00> : vector<8x4xf32>
    %154 = vector.multi_reduction <add>, %153, %cst_41 [1] : vector<8x4x4xf32> to vector<8x4xf32>
    %155 = vector.shape_cast %154 : vector<8x4xf32> to vector<8x1x4xf32>
    %156 = math.log %155 : vector<8x1x4xf32>
    %157 = arith.addf %150, %156 : vector<8x1x4xf32>
    %158 = vector.broadcast %157 : vector<8x1x4xf32> to vector<8x4x4xf32>
    %159 = arith.subf %148, %158 : vector<8x4x4xf32>
    %cst_42 = arith.constant dense<0xFF800000> : vector<8x4xf32>
    %160 = vector.multi_reduction <maximumf>, %159, %cst_42 [2] : vector<8x4x4xf32> to vector<8x4xf32>
    %161 = vector.shape_cast %160 : vector<8x4xf32> to vector<8x4x1xf32>
    %162 = vector.broadcast %161 : vector<8x4x1xf32> to vector<8x4x4xf32>
    %163 = arith.subf %159, %162 : vector<8x4x4xf32>
    %164 = math.exp %163 : vector<8x4x4xf32>
    %cst_43 = arith.constant dense<0.000000e+00> : vector<8x4xf32>
    %165 = vector.multi_reduction <add>, %164, %cst_43 [2] : vector<8x4x4xf32> to vector<8x4xf32>
    %166 = vector.shape_cast %165 : vector<8x4xf32> to vector<8x4x1xf32>
    %167 = math.log %166 : vector<8x4x1xf32>
    %168 = arith.addf %161, %167 : vector<8x4x1xf32>
    %169 = vector.broadcast %168 : vector<8x4x1xf32> to vector<8x4x4xf32>
    %170 = arith.subf %159, %169 : vector<8x4x4xf32>
    %cst_44 = arith.constant dense<0xFF800000> : vector<8x4xf32>
    %171 = vector.multi_reduction <maximumf>, %170, %cst_44 [1] : vector<8x4x4xf32> to vector<8x4xf32>
    %172 = vector.shape_cast %171 : vector<8x4xf32> to vector<8x1x4xf32>
    %173 = vector.broadcast %172 : vector<8x1x4xf32> to vector<8x4x4xf32>
    %174 = arith.subf %170, %173 : vector<8x4x4xf32>
    %175 = math.exp %174 : vector<8x4x4xf32>
    %cst_45 = arith.constant dense<0.000000e+00> : vector<8x4xf32>
    %176 = vector.multi_reduction <add>, %175, %cst_45 [1] : vector<8x4x4xf32> to vector<8x4xf32>
    %177 = vector.shape_cast %176 : vector<8x4xf32> to vector<8x1x4xf32>
    %178 = math.log %177 : vector<8x1x4xf32>
    %179 = arith.addf %172, %178 : vector<8x1x4xf32>
    %180 = vector.broadcast %179 : vector<8x1x4xf32> to vector<8x4x4xf32>
    %181 = arith.subf %170, %180 : vector<8x4x4xf32>
    %cst_46 = arith.constant dense<0xFF800000> : vector<8x4xf32>
    %182 = vector.multi_reduction <maximumf>, %181, %cst_46 [2] : vector<8x4x4xf32> to vector<8x4xf32>
    %183 = vector.shape_cast %182 : vector<8x4xf32> to vector<8x4x1xf32>
    %184 = vector.broadcast %183 : vector<8x4x1xf32> to vector<8x4x4xf32>
    %185 = arith.subf %181, %184 : vector<8x4x4xf32>
    %186 = math.exp %185 : vector<8x4x4xf32>
    %cst_47 = arith.constant dense<0.000000e+00> : vector<8x4xf32>
    %187 = vector.multi_reduction <add>, %186, %cst_47 [2] : vector<8x4x4xf32> to vector<8x4xf32>
    %188 = vector.shape_cast %187 : vector<8x4xf32> to vector<8x4x1xf32>
    %189 = math.log %188 : vector<8x4x1xf32>
    %190 = arith.addf %183, %189 : vector<8x4x1xf32>
    %191 = vector.broadcast %190 : vector<8x4x1xf32> to vector<8x4x4xf32>
    %192 = arith.subf %181, %191 : vector<8x4x4xf32>
    %cst_48 = arith.constant dense<0xFF800000> : vector<8x4xf32>
    %193 = vector.multi_reduction <maximumf>, %192, %cst_48 [1] : vector<8x4x4xf32> to vector<8x4xf32>
    %194 = vector.shape_cast %193 : vector<8x4xf32> to vector<8x1x4xf32>
    %195 = vector.broadcast %194 : vector<8x1x4xf32> to vector<8x4x4xf32>
    %196 = arith.subf %192, %195 : vector<8x4x4xf32>
    %197 = math.exp %196 : vector<8x4x4xf32>
    %cst_49 = arith.constant dense<0.000000e+00> : vector<8x4xf32>
    %198 = vector.multi_reduction <add>, %197, %cst_49 [1] : vector<8x4x4xf32> to vector<8x4xf32>
    %199 = vector.shape_cast %198 : vector<8x4xf32> to vector<8x1x4xf32>
    %200 = math.log %199 : vector<8x1x4xf32>
    %201 = arith.addf %194, %200 : vector<8x1x4xf32>
    %202 = vector.broadcast %201 : vector<8x1x4xf32> to vector<8x4x4xf32>
    %203 = arith.subf %192, %202 : vector<8x4x4xf32>
    %204 = math.exp %203 : vector<8x4x4xf32>
    %c0_50 = arith.constant 0 : index
    %c0_51 = arith.constant 0 : index
    %c0_52 = arith.constant 0 : index
    %205 = vector.load %arg4[%c0_50, %c0_51, %c0_52] : memref<8x4x4xf32, #tpu.memory_space<vmem>>, vector<8x4x4xf32>
    tpu.vector_store %arg4[%c0_50, %c0_51, %c0_52], %204 {strides = array<i32>} : memref<8x4x4xf32, #tpu.memory_space<vmem>>, vector<8x4x4xf32>,
    return
  }
  func.func @transform_0(%arg0: i32) -> (i32, i32, i32) {
    %c0_i32 = arith.constant 0 : i32
    %c0_i32_0 = arith.constant 0 : i32
    %c0_i32_1 = arith.constant 0 : i32
    return %arg0, %c0_i32, %c0_i32_0 : i32, i32, i32
  }
  func.func @transform_1(%arg0: i32) -> (i32, i32, i32) {
    %c0_i32 = arith.constant 0 : i32
    %c0_i32_0 = arith.constant 0 : i32
    %c0_i32_1 = arith.constant 0 : i32
    return %arg0, %c0_i32, %c0_i32_0 : i32, i32, i32
  }
  func.func @transform_2(%arg0: i32) -> (i32, i32, i32) {
    %c0_i32 = arith.constant 0 : i32
    %c0_i32_0 = arith.constant 0 : i32
    %c0_i32_1 = arith.constant 0 : i32
    return %arg0, %c0_i32, %c0_i32_0 : i32, i32, i32
  }
  func.func @transform_3(%arg0: i32) -> (i32, i32, i32) {
    %c0_i32 = arith.constant 0 : i32
    %c0_i32_0 = arith.constant 0 : i32
    %c0_i32_1 = arith.constant 0 : i32
    return %arg0, %c0_i32, %c0_i32_0 : i32, i32, i32
  }
}

</mosaic_0001>

<llo_original>
// kernel: tpu_custom_call.1
$region0: #{tpu_custom_call.1}
  #allocation0 [shape = 'u32[]', space=smem, size = 0x4, offset = 0x4, fixed_abs, tag = 'smem constant byte address 0x4 - core index']
  #allocation1 [shape = 'u32[144,128]{1,0:T(1,128)}', space=vmem, size = 0x12000, scoped, tag = 'internal scratch']
  %s0 = inlined_call_operand.hbm [shape: f32[8,16,32], index: 0, kind: input, shape index: {}]
  %s1 = inlined_call_operand.hbm [shape: f32[8,16,32], index: 1, kind: input, shape index: {}]
  %s2 = inlined_call_operand.hbm [shape: f32[8,4,4], index: 2, kind: input, shape index: {}]
  %s3 = inlined_call_operand.hbm [shape: f32[8,4,4], index: 3, kind: output, shape index: {}]
  %s4 = sld [smem:[#allocation0]]
  $region34: #{tpu_custom_call.1} parent=0
    _
  %s6 = ssub.s32 1, %s4
  %s7 = scalar_select 0, %s6, %s4
  $region1: #{tpu_custom_call.1} parent=0
    #allocation2 [shape = 'u8[65536]{0}', space=vmem, size = 0x10000, scoped, tag = 'input window, operand 0, single buffered']
    #allocation3 [shape = 's32[1]{0}', space=sflag, size = 0x4, scoped, tag = 'scoped memory for tpu_custom_call.1']
    #allocation4 [shape = 's32[1]{0}', space=sflag, size = 0x4, scoped, tag = 'scoped memory for tpu_custom_call.1']
    #allocation5 [shape = 'u8[65536]{0}', space=vmem, size = 0x10000, scoped, tag = 'input window, operand 1, single buffered']
    #allocation6 [shape = 's32[1]{0}', space=sflag, size = 0x4, scoped, tag = 'scoped memory for tpu_custom_call.1']
    #allocation7 [shape = 'u8[16384]{0}', space=vmem, size = 0x4000, scoped, tag = 'input window, operand 2, single buffered']
    #allocation8 [shape = 'u8[16384]{0}', space=vmem, size = 0x4000, scoped, tag = 'output window, operand 0, single buffered']
    %8 = vsyncpa [#allocation3], 0
    %9 = vsyncpa [#allocation6], 0
    %10 = vsyncpa [#allocation4], 0
    // Predicated region
    $region2: #{tpu_custom_call.1} parent=1 // pred_check
      _
    $region3: #{tpu_custom_call.1} parent=1 // pred_check_branch
      %12 = sbr.rel (0) target = $region5
    $region4: #{tpu_custom_call.1} parent=1 // pred_region
      %s14 = ssub.s32 2048, 2048
      %15 = vsyncadd [#allocation3], %s14
      %s16 = sshll.u32 [#allocation2], 4
      %s17 = int_to_ptr.vmem [resolvable:$true] %s16
      %22 = dma.hbm_to_vmem [thread:$0]  %s0, 2048, %s17, [#allocation3], 128, 128, 8
    $region5: #{tpu_custom_call.1} parent=1 // pred_fallthru
      _
    // Predicated region
    $region6: #{tpu_custom_call.1} parent=1 // pred_check
      _
    $region7: #{tpu_custom_call.1} parent=1 // pred_check_branch
      %24 = sbr.rel (0) target = $region9
    $region8: #{tpu_custom_call.1} parent=1 // pred_region
      %s26 = ssub.s32 2048, 2048
      %27 = vsyncadd [#allocation6], %s26
      %s28 = sshll.u32 [#allocation5], 4
      %s29 = int_to_ptr.vmem [resolvable:$true] %s28
      %34 = dma.hbm_to_vmem [thread:$0]  %s1, 2048, %s29, [#allocation6], 128, 128, 8
    $region9: #{tpu_custom_call.1} parent=1 // pred_fallthru
      _
    // Predicated region
    $region10: #{tpu_custom_call.1} parent=1 // pred_check
      _
    $region11: #{tpu_custom_call.1} parent=1 // pred_check_branch
      %36 = sbr.rel (0) target = $region13
    $region12: #{tpu_custom_call.1} parent=1 // pred_region
      %s38 = ssub.s32 512, 512
      %39 = vsyncadd [#allocation6], %s38
      %s40 = sshll.u32 [#allocation7], 4
      %s41 = int_to_ptr.vmem [resolvable:$true] %s40
      %46 = dma.hbm_to_vmem [thread:$0]  %s2, 512, %s41, [#allocation6], 64, 64, 4
    $region13: #{tpu_custom_call.1} parent=1 // pred_fallthru
      _
    // Predicated region
    $region14: #{tpu_custom_call.1} parent=1 // pred_check
      _
    $region15: #{tpu_custom_call.1} parent=1 // pred_check_branch
      %48 = sbr.rel (0) target = $region17
    $region16: #{tpu_custom_call.1} parent=1 // pred_region
      %49 = dma.done [#allocation3], 2048
    $region17: #{tpu_custom_call.1} parent=1 // pred_fallthru
      _
    // Predicated region
    $region18: #{tpu_custom_call.1} parent=1 // pred_check
      _
    $region19: #{tpu_custom_call.1} parent=1 // pred_check_branch
      %51 = sbr.rel (0) target = $region21
    $region20: #{tpu_custom_call.1} parent=1 // pred_region
      %52 = dma.done [#allocation6], 2048
    $region21: #{tpu_custom_call.1} parent=1 // pred_fallthru
      _
    // Predicated region
    $region22: #{tpu_custom_call.1} parent=1 // pred_check
      _
    $region23: #{tpu_custom_call.1} parent=1 // pred_check_branch
      %54 = sbr.rel (0) target = $region25
    $region24: #{tpu_custom_call.1} parent=1 // pred_region
      %55 = dma.done [#allocation6], 512
    $region25: #{tpu_custom_call.1} parent=1 // pred_fallthru
      _
    %v56 = vlaneseq
    %v57 = vshrl.u32 %v56, 7
    %v58 = vlaneseq
    %v59 = vand.u32 %v58, 127
    %v60 = vmul.u32 %v57, 4
    %vm61 = vcmp.ge.s32.totalorder %v59, %v60
    %v62 = vadd.s32 %v60, 4
    %vm63 = vcmp.lt.s32.totalorder %v59, %v62
    %vm64 = vmand %vm61, %vm63
    %v65 = vsel %vm64, 1, 0
    %v66 = vcvt.s32.f32 %v65
    %v67 = vld [vmem:[#allocation2] sm:$0xff]
    %v68 = vld [vmem:[#allocation2 + $0x8] sm:$0xff]
    %v69 = vld [vmem:[#allocation2 + $0x10] sm:$0xff]
    %v70 = vld [vmem:[#allocation2 + $0x18] sm:$0xff]
    %v71 = vld [vmem:[#allocation2 + $0x20] sm:$0xff]
    %v72 = vld [vmem:[#allocation2 + $0x28] sm:$0xff]
    %v73 = vld [vmem:[#allocation2 + $0x30] sm:$0xff]
    %v74 = vld [vmem:[#allocation2 + $0x38] sm:$0xff]
    %v75 = vld [vmem:[#allocation2 + $0x40] sm:$0xff]
    %v76 = vld [vmem:[#allocation2 + $0x48] sm:$0xff]
    %v77 = vld [vmem:[#allocation2 + $0x50] sm:$0xff]
    %v78 = vld [vmem:[#allocation2 + $0x58] sm:$0xff]
    %v79 = vld [vmem:[#allocation2 + $0x60] sm:$0xff]
    %v80 = vld [vmem:[#allocation2 + $0x68] sm:$0xff]
    %v81 = vld [vmem:[#allocation2 + $0x70] sm:$0xff]
    %v82 = vld [vmem:[#allocation2 + $0x78] sm:$0xff]
    %vm83 = vcmask 130048
    %v85 = vsel %vm83, %v66, 0
    %87 = vmatprep.subr.mxu0 0.0
    %88 = vmatpush1.msra.mxu0 %v67
    %89 = vmatprep.subr.mxu0 0.0
    %90 = vmatpush1.msra.mxu0 %v68
    %91 = vmatprep.subr.mxu0 0.0
    %92 = vmatpush1.msra.mxu0 0.0
    %93 = vmatprep.subr.mxu0 0.0
    %94 = vmatpush1.msra.mxu0 0.0
    %95 = vmatprep.subr.mxu0 0.0
    %96 = vmatpush1.msra.mxu0 0.0
    %97 = vmatprep.subr.mxu0 0.0
    %98 = vmatpush1.msra.mxu0 0.0
    %99 = vmatprep.subr.mxu0 0.0
    %100 = vmatpush1.msra.mxu0 0.0
    %101 = vmatprep.subr.mxu0 0.0
    %102 = vmatpush1.msra.mxu0 0.0
    %103 = vmatprep.subr.mxu0 0.0
    %104 = vmatpush1.msra.mxu0 0.0
    %105 = vmatprep.subr.mxu0 0.0
    %106 = vmatpush1.msra.mxu0 0.0
    %107 = vmatprep.subr.mxu0 0.0
    %108 = vmatpush1.msra.mxu0 0.0
    %109 = vmatprep.subr.mxu0 0.0
    %110 = vmatpush1.msra.mxu0 0.0
    %111 = vmatprep.subr.mxu0 0.0
    %112 = vmatpush1.msra.mxu0 0.0
    %113 = vmatprep.subr.mxu0 0.0
    %114 = vmatpush1.msra.mxu0 0.0
    %115 = vmatprep.subr.mxu0 0.0
    %116 = vmatpush1.msra.mxu0 0.0
    %117 = vmatprep.subr.mxu0 0.0
    %118 = vmatpush1.msra.mxu0 0.0
    %119 = vmatprep.subr.mxu0 0.0
    %120 = vmatpush1.msra.mxu0 0.0
    %121 = vmatprep.subr.mxu0 0.0
    %122 = vmatpush1.msra.mxu0 0.0
    %123 = vmatprep.subr.mxu0 0.0
    %124 = vmatpush1.msra.mxu0 0.0
    %125 = vmatprep.subr.mxu0 0.0
    %126 = vmatpush1.msra.mxu0 0.0
    %127 = vmatprep.subr.mxu0 0.0
    %128 = vmatpush1.msra.mxu0 0.0
    %129 = vmatprep.subr.mxu0 0.0
    %130 = vmatpush1.msra.mxu0 0.0
    %131 = vmatprep.subr.mxu0 0.0
    %132 = vmatpush1.msra.mxu0 0.0
    %133 = vmatprep.subr.mxu0 0.0
    %134 = vmatpush1.msra.mxu0 0.0
    %135 = vmatprep.subr.mxu0 0.0
    %136 = vmatpush1.msra.mxu0 0.0
    %137 = vmatprep.subr.mxu0 0.0
    %138 = vmatpush1.msra.mxu0 0.0
    %139 = vmatprep.subr.mxu0 0.0
    %140 = vmatpush1.msra.mxu0 0.0
    %141 = vmatprep.subr.mxu0 0.0
    %142 = vmatpush1.msra.mxu0 0.0
    %143 = vmatprep.subr.mxu0 0.0
    %144 = vmatpush1.msra.mxu0 0.0
    %145 = vmatprep.subr.mxu0 0.0
    %146 = vmatpush1.msra.mxu0 0.0
    %147 = vmatprep.subr.mxu0 0.0
    %148 = vmatpush1.msra.mxu0 0.0
    %149 = vmatprep.subr.mxu0 0.0
    %150 = vmatpush1.msra.mxu0 0.0
    %151 = vmatprep.mubr.f32.mxu0 0.0
    %152 = vmatmul.mubr.f32.gmra.mrb[0].mxu0 %v85
    %v153 = vpop.f32.mrb[0].mxu0
    %v154 = vadd.f32 0.0, %v153
    %v155 = vpop.f32.mrb[0].mxu0
    %156 = vdwg.mxu0
    %157 = vmatprep.subr.mxu0 0.0
    %158 = vmatpush1.msra.mxu0 %v69
    %159 = vmatprep.subr.mxu0 0.0
    %160 = vmatpush1.msra.mxu0 %v70
    %161 = vmatprep.subr.mxu0 0.0
    %162 = vmatpush1.msra.mxu0 0.0
    %163 = vmatprep.subr.mxu0 0.0
    %164 = vmatpush1.msra.mxu0 0.0
    %165 = vmatprep.subr.mxu0 0.0
    %166 = vmatpush1.msra.mxu0 0.0
    %167 = vmatprep.subr.mxu0 0.0
    %168 = vmatpush1.msra.mxu0 0.0
    %169 = vmatprep.subr.mxu0 0.0
    %170 = vmatpush1.msra.mxu0 0.0
    %171 = vmatprep.subr.mxu0 0.0
    %172 = vmatpush1.msra.mxu0 0.0
    %173 = vmatprep.subr.mxu0 0.0
    %174 = vmatpush1.msra.mxu0 0.0
    %175 = vmatprep.subr.mxu0 0.0
    %176 = vmatpush1.msra.mxu0 0.0
    %177 = vmatprep.subr.mxu0 0.0
    %178 = vmatpush1.msra.mxu0 0.0
    %179 = vmatprep.subr.mxu0 0.0
    %180 = vmatpush1.msra.mxu0 0.0
    %181 = vmatprep.subr.mxu0 0.0
    %182 = vmatpush1.msra.mxu0 0.0
    %183 = vmatprep.subr.mxu0 0.0
    %184 = vmatpush1.msra.mxu0 0.0
    %185 = vmatprep.subr.mxu0 0.0
    %186 = vmatpush1.msra.mxu0 0.0
    %187 = vmatprep.subr.mxu0 0.0
    %188 = vmatpush1.msra.mxu0 0.0
    %189 = vmatprep.subr.mxu0 0.0
    %190 = vmatpush1.msra.mxu0 0.0
    %191 = vmatprep.subr.mxu0 0.0
    %192 = vmatpush1.msra.mxu0 0.0
    %193 = vmatprep.subr.mxu0 0.0
    %194 = vmatpush1.msra.mxu0 0.0
    %195 = vmatprep.subr.mxu0 0.0
    %196 = vmatpush1.msra.mxu0 0.0
    %197 = vmatprep.subr.mxu0 0.0
    %198 = vmatpush1.msra.mxu0 0.0
    %199 = vmatprep.subr.mxu0 0.0
    %200 = vmatpush1.msra.mxu0 0.0
    %201 = vmatprep.subr.mxu0 0.0
    %202 = vmatpush1.msra.mxu0 0.0
    %203 = vmatprep.subr.mxu0 0.0
    %204 = vmatpush1.msra.mxu0 0.0
    %205 = vmatprep.subr.mxu0 0.0
    %206 = vmatpush1.msra.mxu0 0.0
    %207 = vmatprep.subr.mxu0 0.0
    %208 = vmatpush1.msra.mxu0 0.0
    %209 = vmatprep.subr.mxu0 0.0
    %210 = vmatpush1.msra.mxu0 0.0
    %211 = vmatprep.subr.mxu0 0.0
    %212 = vmatpush1.msra.mxu0 0.0
    %213 = vmatprep.subr.mxu0 0.0
    %214 = vmatpush1.msra.mxu0 0.0
    %215 = vmatprep.subr.mxu0 0.0
    %216 = vmatpush1.msra.mxu0 0.0
    %217 = vmatprep.subr.mxu0 0.0
    %218 = vmatpush1.msra.mxu0 0.0
    %219 = vmatprep.subr.mxu0 0.0
    %220 = vmatpush1.msra.mxu0 0.0
    %221 = vmatprep.mubr.f32.mxu0 0.0
    %222 = vmatmul.mubr.f32.gmra.mrb[0].mxu0 %v85
    %v223 = vpop.f32.mrb[0].mxu0
    %v224 = vadd.f32 0.0, %v223
    %v225 = vpop.f32.mrb[0].mxu0
    %226 = vdwg.mxu0
    %227 = vmatprep.subr.mxu0 0.0
    %228 = vmatpush1.msra.mxu0 %v71
    %229 = vmatprep.subr.mxu0 0.0
    %230 = vmatpush1.msra.mxu0 %v72
    %231 = vmatprep.subr.mxu0 0.0
    %232 = vmatpush1.msra.mxu0 0.0
    %233 = vmatprep.subr.mxu0 0.0
    %234 = vmatpush1.msra.mxu0 0.0
    %235 = vmatprep.subr.mxu0 0.0
    %236 = vmatpush1.msra.mxu0 0.0
    %237 = vmatprep.subr.mxu0 0.0
    %238 = vmatpush1.msra.mxu0 0.0
    %239 = vmatprep.subr.mxu0 0.0
    %240 = vmatpush1.msra.mxu0 0.0
    %241 = vmatprep.subr.mxu0 0.0
    %242 = vmatpush1.msra.mxu0 0.0
    %243 = vmatprep.subr.mxu0 0.0
    %244 = vmatpush1.msra.mxu0 0.0
    %245 = vmatprep.subr.mxu0 0.0
    %246 = vmatpush1.msra.mxu0 0.0
    %247 = vmatprep.subr.mxu0 0.0
    %248 = vmatpush1.msra.mxu0 0.0
    %249 = vmatprep.subr.mxu0 0.0
    %250 = vmatpush1.msra.mxu0 0.0
    %251 = vmatprep.subr.mxu0 0.0
    %252 = vmatpush1.msra.mxu0 0.0
    %253 = vmatprep.subr.mxu0 0.0
    %254 = vmatpush1.msra.mxu0 0.0
    %255 = vmatprep.subr.mxu0 0.0
    %256 = vmatpush1.msra.mxu0 0.0
    %257 = vmatprep.subr.mxu0 0.0
    %258 = vmatpush1.msra.mxu0 0.0
    %259 = vmatprep.subr.mxu0 0.0
    %260 = vmatpush1.msra.mxu0 0.0
    %261 = vmatprep.subr.mxu0 0.0
    %262 = vmatpush1.msra.mxu0 0.0
    %263 = vmatprep.subr.mxu0 0.0
    %264 = vmatpush1.msra.mxu0 0.0
    %265 = vmatprep.subr.mxu0 0.0
    %266 = vmatpush1.msra.mxu0 0.0
    %267 = vmatprep.subr.mxu0 0.0
    %268 = vmatpush1.msra.mxu0 0.0
    %269 = vmatprep.subr.mxu0 0.0
    %270 = vmatpush1.msra.mxu0 0.0
    %271 = vmatprep.subr.mxu0 0.0
    %272 = vmatpush1.msra.mxu0 0.0
    %273 = vmatprep.subr.mxu0 0.0
    %274 = vmatpush1.msra.mxu0 0.0
    %275 = vmatprep.subr.mxu0 0.0
    %276 = vmatpush1.msra.mxu0 0.0
    %277 = vmatprep.subr.mxu0 0.0
    %278 = vmatpush1.msra.mxu0 0.0
    %279 = vmatprep.subr.mxu0 0.0
    %280 = vmatpush1.msra.mxu0 0.0
    %281 = vmatprep.subr.mxu0 0.0
    %282 = vmatpush1.msra.mxu0 0.0
    %283 = vmatprep.subr.mxu0 0.0
    %284 = vmatpush1.msra.mxu0 0.0
    %285 = vmatprep.subr.mxu0 0.0
    %286 = vmatpush1.msra.mxu0 0.0
    %287 = vmatprep.subr.mxu0 0.0
    %288 = vmatpush1.msra.mxu0 0.0
    %289 = vmatprep.subr.mxu0 0.0
    %290 = vmatpush1.msra.mxu0 0.0
    %291 = vmatprep.mubr.f32.mxu0 0.0
    %292 = vmatmul.mubr.f32.gmra.mrb[0].mxu0 %v85
    %v293 = vpop.f32.mrb[0].mxu0
    %v294 = vadd.f32 0.0, %v293
    %v295 = vpop.f32.mrb[0].mxu0
    %296 = vdwg.mxu0
    %297 = vmatprep.subr.mxu0 0.0
    %298 = vmatpush1.msra.mxu0 %v73
    %299 = vmatprep.subr.mxu0 0.0
    %300 = vmatpush1.msra.mxu0 %v74
    %301 = vmatprep.subr.mxu0 0.0
    %302 = vmatpush1.msra.mxu0 0.0
    %303 = vmatprep.subr.mxu0 0.0
    %304 = vmatpush1.msra.mxu0 0.0
    %305 = vmatprep.subr.mxu0 0.0
    %306 = vmatpush1.msra.mxu0 0.0
    %307 = vmatprep.subr.mxu0 0.0
    %308 = vmatpush1.msra.mxu0 0.0
    %309 = vmatprep.subr.mxu0 0.0
    %310 = vmatpush1.msra.mxu0 0.0
    %311 = vmatprep.subr.mxu0 0.0
    %312 = vmatpush1.msra.mxu0 0.0
    %313 = vmatprep.subr.mxu0 0.0
    %314 = vmatpush1.msra.mxu0 0.0
    %315 = vmatprep.subr.mxu0 0.0
    %316 = vmatpush1.msra.mxu0 0.0
    %317 = vmatprep.subr.mxu0 0.0
    %318 = vmatpush1.msra.mxu0 0.0
    %319 = vmatprep.subr.mxu0 0.0
    %320 = vmatpush1.msra.mxu0 0.0
    %321 = vmatprep.subr.mxu0 0.0
    %322 = vmatpush1.msra.mxu0 0.0
    %323 = vmatprep.subr.mxu0 0.0
    %324 = vmatpush1.msra.mxu0 0.0
    %325 = vmatprep.subr.mxu0 0.0
    %326 = vmatpush1.msra.mxu0 0.0
    %327 = vmatprep.subr.mxu0 0.0
    %328 = vmatpush1.msra.mxu0 0.0
    %329 = vmatprep.subr.mxu0 0.0
    %330 = vmatpush1.msra.mxu0 0.0
    %331 = vmatprep.subr.mxu0 0.0
    %332 = vmatpush1.msra.mxu0 0.0
    %333 = vmatprep.subr.mxu0 0.0
    %334 = vmatpush1.msra.mxu0 0.0
    %335 = vmatprep.subr.mxu0 0.0
    %336 = vmatpush1.msra.mxu0 0.0
    %337 = vmatprep.subr.mxu0 0.0
    %338 = vmatpush1.msra.mxu0 0.0
    %339 = vmatprep.subr.mxu0 0.0
    %340 = vmatpush1.msra.mxu0 0.0
    %341 = vmatprep.subr.mxu0 0.0
    %342 = vmatpush1.msra.mxu0 0.0
    %343 = vmatprep.subr.mxu0 0.0
    %344 = vmatpush1.msra.mxu0 0.0
    %345 = vmatprep.subr.mxu0 0.0
    %346 = vmatpush1.msra.mxu0 0.0
    %347 = vmatprep.subr.mxu0 0.0
    %348 = vmatpush1.msra.mxu0 0.0
    %349 = vmatprep.subr.mxu0 0.0
    %350 = vmatpush1.msra.mxu0 0.0
    %351 = vmatprep.subr.mxu0 0.0
    %352 = vmatpush1.msra.mxu0 0.0
    %353 = vmatprep.subr.mxu0 0.0
    %354 = vmatpush1.msra.mxu0 0.0
    %355 = vmatprep.subr.mxu0 0.0
    %356 = vmatpush1.msra.mxu0 0.0
    %357 = vmatprep.subr.mxu0 0.0
    %358 = vmatpush1.msra.mxu0 0.0
    %359 = vmatprep.subr.mxu0 0.0
    %360 = vmatpush1.msra.mxu0 0.0
    %361 = vmatprep.mubr.f32.mxu0 0.0
    %362 = vmatmul.mubr.f32.gmra.mrb[0].mxu0 %v85
    %v363 = vpop.f32.mrb[0].mxu0
    %v364 = vadd.f32 0.0, %v363
    %v365 = vpop.f32.mrb[0].mxu0
    %366 = vdwg.mxu0
    %367 = vmatprep.subr.mxu0 0.0
    %368 = vmatpush1.msra.mxu0 %v75
    %369 = vmatprep.subr.mxu0 0.0
    %370 = vmatpush1.msra.mxu0 %v76
    %371 = vmatprep.subr.mxu0 0.0
    %372 = vmatpush1.msra.mxu0 0.0
    %373 = vmatprep.subr.mxu0 0.0
    %374 = vmatpush1.msra.mxu0 0.0
    %375 = vmatprep.subr.mxu0 0.0
    %376 = vmatpush1.msra.mxu0 0.0
    %377 = vmatprep.subr.mxu0 0.0
    %378 = vmatpush1.msra.mxu0 0.0
    %379 = vmatprep.subr.mxu0 0.0
    %380 = vmatpush1.msra.mxu0 0.0
    %381 = vmatprep.subr.mxu0 0.0
    %382 = vmatpush1.msra.mxu0 0.0
    %383 = vmatprep.subr.mxu0 0.0
    %384 = vmatpush1.msra.mxu0 0.0
    %385 = vmatprep.subr.mxu0 0.0
    %386 = vmatpush1.msra.mxu0 0.0
    %387 = vmatprep.subr.mxu0 0.0
    %388 = vmatpush1.msra.mxu0 0.0
    %389 = vmatprep.subr.mxu0 0.0
    %390 = vmatpush1.msra.mxu0 0.0
    %391 = vmatprep.subr.mxu0 0.0
    %392 = vmatpush1.msra.mxu0 0.0
    %393 = vmatprep.subr.mxu0 0.0
    %394 = vmatpush1.msra.mxu0 0.0
    %395 = vmatprep.subr.mxu0 0.0
    %396 = vmatpush1.msra.mxu0 0.0
    %397 = vmatprep.subr.mxu0 0.0
    %398 = vmatpush1.msra.mxu0 0.0
    %399 = vmatprep.subr.mxu0 0.0
    %400 = vmatpush1.msra.mxu0 0.0
    %401 = vmatprep.subr.mxu0 0.0
    %402 = vmatpush1.msra.mxu0 0.0
    %403 = vmatprep.subr.mxu0 0.0
    %404 = vmatpush1.msra.mxu0 0.0
    %405 = vmatprep.subr.mxu0 0.0
    %406 = vmatpush1.msra.mxu0 0.0
    %407 = vmatprep.subr.mxu0 0.0
    %408 = vmatpush1.msra.mxu0 0.0
    %409 = vmatprep.subr.mxu0 0.0
    %410 = vmatpush1.msra.mxu0 0.0
    %411 = vmatprep.subr.mxu0 0.0
    %412 = vmatpush1.msra.mxu0 0.0
    %413 = vmatprep.subr.mxu0 0.0
    %414 = vmatpush1.msra.mxu0 0.0
    %415 = vmatprep.subr.mxu0 0.0
    %416 = vmatpush1.msra.mxu0 0.0
    %417 = vmatprep.subr.mxu0 0.0
    %418 = vmatpush1.msra.mxu0 0.0
    %419 = vmatprep.subr.mxu0 0.0
    %420 = vmatpush1.msra.mxu0 0.0
    %421 = vmatprep.subr.mxu0 0.0
    %422 = vmatpush1.msra.mxu0 0.0
    %423 = vmatprep.subr.mxu0 0.0
    %424 = vmatpush1.msra.mxu0 0.0
    %425 = vmatprep.subr.mxu0 0.0
    %426 = vmatpush1.msra.mxu0 0.0
    %427 = vmatprep.subr.mxu0 0.0
    %428 = vmatpush1.msra.mxu0 0.0
    %429 = vmatprep.subr.mxu0 0.0
    %430 = vmatpush1.msra.mxu0 0.0
    %431 = vmatprep.mubr.f32.mxu0 0.0
    %432 = vmatmul.mubr.f32.gmra.mrb[0].mxu0 %v85
    %v433 = vpop.f32.mrb[0].mxu0
    %v434 = vadd.f32 0.0, %v433
    %v435 = vpop.f32.mrb[0].mxu0
    %436 = vdwg.mxu0
    %437 = vmatprep.subr.mxu0 0.0
    %438 = vmatpush1.msra.mxu0 %v77
    %439 = vmatprep.subr.mxu0 0.0
    %440 = vmatpush1.msra.mxu0 %v78
    %441 = vmatprep.subr.mxu0 0.0
    %442 = vmatpush1.msra.mxu0 0.0
    %443 = vmatprep.subr.mxu0 0.0
    %444 = vmatpush1.msra.mxu0 0.0
    %445 = vmatprep.subr.mxu0 0.0
    %446 = vmatpush1.msra.mxu0 0.0
    %447 = vmatprep.subr.mxu0 0.0
    %448 = vmatpush1.msra.mxu0 0.0
    %449 = vmatprep.subr.mxu0 0.0
    %450 = vmatpush1.msra.mxu0 0.0
    %451 = vmatprep.subr.mxu0 0.0
    %452 = vmatpush1.msra.mxu0 0.0
    %453 = vmatprep.subr.mxu0 0.0
    %454 = vmatpush1.msra.mxu0 0.0
    %455 = vmatprep.subr.mxu0 0.0
    %456 = vmatpush1.msra.mxu0 0.0
    %457 = vmatprep.subr.mxu0 0.0
    %458 = vmatpush1.msra.mxu0 0.0
    %459 = vmatprep.subr.mxu0 0.0
    %460 = vmatpush1.msra.mxu0 0.0
    %461 = vmatprep.subr.mxu0 0.0
    %462 = vmatpush1.msra.mxu0 0.0
    %463 = vmatprep.subr.mxu0 0.0
    %464 = vmatpush1.msra.mxu0 0.0
    %465 = vmatprep.subr.mxu0 0.0
    %466 = vmatpush1.msra.mxu0 0.0
    %467 = vmatprep.subr.mxu0 0.0
    %468 = vmatpush1.msra.mxu0 0.0
    %469 = vmatprep.subr.mxu0 0.0
    %470 = vmatpush1.msra.mxu0 0.0
    %471 = vmatprep.subr.mxu0 0.0
    %472 = vmatpush1.msra.mxu0 0.0
    %473 = vmatprep.subr.mxu0 0.0
    %474 = vmatpush1.msra.mxu0 0.0
    %475 = vmatprep.subr.mxu0 0.0
    %476 = vmatpush1.msra.mxu0 0.0
    %477 = vmatprep.subr.mxu0 0.0
    %478 = vmatpush1.msra.mxu0 0.0
    %479 = vmatprep.subr.mxu0 0.0
    %480 = vmatpush1.msra.mxu0 0.0
    %481 = vmatprep.subr.mxu0 0.0
    %482 = vmatpush1.msra.mxu0 0.0
    %483 = vmatprep.subr.mxu0 0.0
    %484 = vmatpush1.msra.mxu0 0.0
    %485 = vmatprep.subr.mxu0 0.0
    %486 = vmatpush1.msra.mxu0 0.0
    %487 = vmatprep.subr.mxu0 0.0
    %488 = vmatpush1.msra.mxu0 0.0
    %489 = vmatprep.subr.mxu0 0.0
    %490 = vmatpush1.msra.mxu0 0.0
    %491 = vmatprep.subr.mxu0 0.0
    %492 = vmatpush1.msra.mxu0 0.0
    %493 = vmatprep.subr.mxu0 0.0
    %494 = vmatpush1.msra.mxu0 0.0
    %495 = vmatprep.subr.mxu0 0.0
    %496 = vmatpush1.msra.mxu0 0.0
    %497 = vmatprep.subr.mxu0 0.0
    %498 = vmatpush1.msra.mxu0 0.0
    %499 = vmatprep.subr.mxu0 0.0
    %500 = vmatpush1.msra.mxu0 0.0
    %501 = vmatprep.mubr.f32.mxu0 0.0
    %502 = vmatmul.mubr.f32.gmra.mrb[0].mxu0 %v85
    %v503 = vpop.f32.mrb[0].mxu0
    %v504 = vadd.f32 0.0, %v503
    %v505 = vpop.f32.mrb[0].mxu0
    %506 = vdwg.mxu0
    %507 = vmatprep.subr.mxu0 0.0
    %508 = vmatpush1.msra.mxu0 %v79
    %509 = vmatprep.subr.mxu0 0.0
    %510 = vmatpush1.msra.mxu0 %v80
    %511 = vmatprep.subr.mxu0 0.0
    %512 = vmatpush1.msra.mxu0 0.0
    %513 = vmatprep.subr.mxu0 0.0
    %514 = vmatpush1.msra.mxu0 0.0
    %515 = vmatprep.subr.mxu0 0.0
    %516 = vmatpush1.msra.mxu0 0.0
    %517 = vmatprep.subr.mxu0 0.0
    %518 = vmatpush1.msra.mxu0 0.0
    %519 = vmatprep.subr.mxu0 0.0
    %520 = vmatpush1.msra.mxu0 0.0
    %521 = vmatprep.subr.mxu0 0.0
    %522 = vmatpush1.msra.mxu0 0.0
    %523 = vmatprep.subr.mxu0 0.0
    %524 = vmatpush1.msra.mxu0 0.0
    %525 = vmatprep.subr.mxu0 0.0
    %526 = vmatpush1.msra.mxu0 0.0
    %527 = vmatprep.subr.mxu0 0.0
    %528 = vmatpush1.msra.mxu0 0.0
    %529 = vmatprep.subr.mxu0 0.0
    %530 = vmatpush1.msra.mxu0 0.0
    %531 = vmatprep.subr.mxu0 0.0
    %532 = vmatpush1.msra.mxu0 0.0
    %533 = vmatprep.subr.mxu0 0.0
    %534 = vmatpush1.msra.mxu0 0.0
    %535 = vmatprep.subr.mxu0 0.0
    %536 = vmatpush1.msra.mxu0 0.0
    %537 = vmatprep.subr.mxu0 0.0
    %538 = vmatpush1.msra.mxu0 0.0
    %539 = vmatprep.subr.mxu0 0.0
    %540 = vmatpush1.msra.mxu0 0.0
    %541 = vmatprep.subr.mxu0 0.0
    %542 = vmatpush1.msra.mxu0 0.0
    %543 = vmatprep.subr.mxu0 0.0
    %544 = vmatpush1.msra.mxu0 0.0
    %545 = vmatprep.subr.mxu0 0.0
    %546 = vmatpush1.msra.mxu0 0.0
    %547 = vmatprep.subr.mxu0 0.0
    %548 = vmatpush1.msra.mxu0 0.0
    %549 = vmatprep.subr.mxu0 0.0
    %550 = vmatpush1.msra.mxu0 0.0
    %551 = vmatprep.subr.mxu0 0.0
    %552 = vmatpush1.msra.mxu0 0.0
    %553 = vmatprep.subr.mxu0 0.0
    %554 = vmatpush1.msra.mxu0 0.0
    %555 = vmatprep.subr.mxu0 0.0
    %556 = vmatpush1.msra.mxu0 0.0
    %557 = vmatprep.subr.mxu0 0.0
    %558 = vmatpush1.msra.mxu0 0.0
    %559 = vmatprep.subr.mxu0 0.0
    %560 = vmatpush1.msra.mxu0 0.0
    %561 = vmatprep.subr.mxu0 0.0
    %562 = vmatpush1.msra.mxu0 0.0
    %563 = vmatprep.subr.mxu0 0.0
    %564 = vmatpush1.msra.mxu0 0.0
    %565 = vmatprep.subr.mxu0 0.0
    %566 = vmatpush1.msra.mxu0 0.0
    %567 = vmatprep.subr.mxu0 0.0
    %568 = vmatpush1.msra.mxu0 0.0
    %569 = vmatprep.subr.mxu0 0.0
    %570 = vmatpush1.msra.mxu0 0.0
    %571 = vmatprep.mubr.f32.mxu0 0.0
    %572 = vmatmul.mubr.f32.gmra.mrb[0].mxu0 %v85
    %v573 = vpop.f32.mrb[0].mxu0
    %v574 = vadd.f32 0.0, %v573
    %v575 = vpop.f32.mrb[0].mxu0
    %576 = vdwg.mxu0
    %577 = vmatprep.subr.mxu0 0.0
    %578 = vmatpush1.msra.mxu0 %v81
    %579 = vmatprep.subr.mxu0 0.0
    %580 = vmatpush1.msra.mxu0 %v82
    %581 = vmatprep.subr.mxu0 0.0
    %582 = vmatpush1.msra.mxu0 0.0
    %583 = vmatprep.subr.mxu0 0.0
    %584 = vmatpush1.msra.mxu0 0.0
    %585 = vmatprep.subr.mxu0 0.0
    %586 = vmatpush1.msra.mxu0 0.0
    %587 = vmatprep.subr.mxu0 0.0
    %588 = vmatpush1.msra.mxu0 0.0
    %589 = vmatprep.subr.mxu0 0.0
    %590 = vmatpush1.msra.mxu0 0.0
    %591 = vmatprep.subr.mxu0 0.0
    %592 = vmatpush1.msra.mxu0 0.0
    %593 = vmatprep.subr.mxu0 0.0
    %594 = vmatpush1.msra.mxu0 0.0
    %595 = vmatprep.subr.mxu0 0.0
    %596 = vmatpush1.msra.mxu0 0.0
    %597 = vmatprep.subr.mxu0 0.0
    %598 = vmatpush1.msra.mxu0 0.0
    %599 = vmatprep.subr.mxu0 0.0
    %600 = vmatpush1.msra.mxu0 0.0
    %601 = vmatprep.subr.mxu0 0.0
    %602 = vmatpush1.msra.mxu0 0.0
    %603 = vmatprep.subr.mxu0 0.0
    %604 = vmatpush1.msra.mxu0 0.0
    %605 = vmatprep.subr.mxu0 0.0
    %606 = vmatpush1.msra.mxu0 0.0
    %607 = vmatprep.subr.mxu0 0.0
    %608 = vmatpush1.msra.mxu0 0.0
    %609 = vmatprep.subr.mxu0 0.0
    %610 = vmatpush1.msra.mxu0 0.0
    %611 = vmatprep.subr.mxu0 0.0
    %612 = vmatpush1.msra.mxu0 0.0
    %613 = vmatprep.subr.mxu0 0.0
    %614 = vmatpush1.msra.mxu0 0.0
    %615 = vmatprep.subr.mxu0 0.0
    %616 = vmatpush1.msra.mxu0 0.0
    %617 = vmatprep.subr.mxu0 0.0
    %618 = vmatpush1.msra.mxu0 0.0
    %619 = vmatprep.subr.mxu0 0.0
    %620 = vmatpush1.msra.mxu0 0.0
    %621 = vmatprep.subr.mxu0 0.0
    %622 = vmatpush1.msra.mxu0 0.0
    %623 = vmatprep.subr.mxu0 0.0
    %624 = vmatpush1.msra.mxu0 0.0
    %625 = vmatprep.subr.mxu0 0.0
    %626 = vmatpush1.msra.mxu0 0.0
    %627 = vmatprep.subr.mxu0 0.0
    %628 = vmatpush1.msra.mxu0 0.0
    %629 = vmatprep.subr.mxu0 0.0
    %630 = vmatpush1.msra.mxu0 0.0
    %631 = vmatprep.subr.mxu0 0.0
    %632 = vmatpush1.msra.mxu0 0.0
    %633 = vmatprep.subr.mxu0 0.0
    %634 = vmatpush1.msra.mxu0 0.0
    %635 = vmatprep.subr.mxu0 0.0
    %636 = vmatpush1.msra.mxu0 0.0
    %637 = vmatprep.subr.mxu0 0.0
    %638 = vmatpush1.msra.mxu0 0.0
    %639 = vmatprep.subr.mxu0 0.0
    %640 = vmatpush1.msra.mxu0 0.0
    %641 = vmatprep.mubr.f32.mxu0 0.0
    %642 = vmatmul.mubr.f32.gmra.mrb[0].mxu0 %v85
    %v643 = vpop.f32.mrb[0].mxu0
    %v644 = vadd.f32 0.0, %v643
    %v645 = vpop.f32.mrb[0].mxu0
    %646 = vdwg.mxu0
    %v647 = vld [vmem:[#allocation5] sm:$0xff]
    %v648 = vld [vmem:[#allocation5 + $0x8] sm:$0xff]
    %v649 = vld [vmem:[#allocation5 + $0x10] sm:$0xff]
    %v650 = vld [vmem:[#allocation5 + $0x18] sm:$0xff]
    %v651 = vld [vmem:[#allocation5 + $0x20] sm:$0xff]
    %v652 = vld [vmem:[#allocation5 + $0x28] sm:$0xff]
    %v653 = vld [vmem:[#allocation5 + $0x30] sm:$0xff]
    %v654 = vld [vmem:[#allocation5 + $0x38] sm:$0xff]
    %v655 = vld [vmem:[#allocation5 + $0x40] sm:$0xff]
    %v656 = vld [vmem:[#allocation5 + $0x48] sm:$0xff]
    %v657 = vld [vmem:[#allocation5 + $0x50] sm:$0xff]
    %v658 = vld [vmem:[#allocation5 + $0x58] sm:$0xff]
    %v659 = vld [vmem:[#allocation5 + $0x60] sm:$0xff]
    %v660 = vld [vmem:[#allocation5 + $0x68] sm:$0xff]
    %v661 = vld [vmem:[#allocation5 + $0x70] sm:$0xff]
    %v662 = vld [vmem:[#allocation5 + $0x78] sm:$0xff]
    %663 = vmatprep.subr.mxu0 0.0
    %664 = vmatpush1.msra.mxu0 %v647
    %665 = vmatprep.subr.mxu0 0.0
    %666 = vmatpush1.msra.mxu0 %v648
    %667 = vmatprep.subr.mxu0 0.0
    %668 = vmatpush1.msra.mxu0 0.0
    %669 = vmatprep.subr.mxu0 0.0
    %670 = vmatpush1.msra.mxu0 0.0
    %671 = vmatprep.subr.mxu0 0.0
    %672 = vmatpush1.msra.mxu0 0.0
    %673 = vmatprep.subr.mxu0 0.0
    %674 = vmatpush1.msra.mxu0 0.0
    %675 = vmatprep.subr.mxu0 0.0
    %676 = vmatpush1.msra.mxu0 0.0
    %677 = vmatprep.subr.mxu0 0.0
    %678 = vmatpush1.msra.mxu0 0.0
    %679 = vmatprep.subr.mxu0 0.0
    %680 = vmatpush1.msra.mxu0 0.0
    %681 = vmatprep.subr.mxu0 0.0
    %682 = vmatpush1.msra.mxu0 0.0
    %683 = vmatprep.subr.mxu0 0.0
    %684 = vmatpush1.msra.mxu0 0.0
    %685 = vmatprep.subr.mxu0 0.0
    %686 = vmatpush1.msra.mxu0 0.0
    %687 = vmatprep.subr.mxu0 0.0
    %688 = vmatpush1.msra.mxu0 0.0
    %689 = vmatprep.subr.mxu0 0.0
    %690 = vmatpush1.msra.mxu0 0.0
    %691 = vmatprep.subr.mxu0 0.0
    %692 = vmatpush1.msra.mxu0 0.0
    %693 = vmatprep.subr.mxu0 0.0
    %694 = vmatpush1.msra.mxu0 0.0
    %695 = vmatprep.subr.mxu0 0.0
    %696 = vmatpush1.msra.mxu0 0.0
    %697 = vmatprep.subr.mxu0 0.0
    %698 = vmatpush1.msra.mxu0 0.0
    %699 = vmatprep.subr.mxu0 0.0
    %700 = vmatpush1.msra.mxu0 0.0
    %701 = vmatprep.subr.mxu0 0.0
    %702 = vmatpush1.msra.mxu0 0.0
    %703 = vmatprep.subr.mxu0 0.0
    %704 = vmatpush1.msra.mxu0 0.0
    %705 = vmatprep.subr.mxu0 0.0
    %706 = vmatpush1.msra.mxu0 0.0
    %707 = vmatprep.subr.mxu0 0.0
    %708 = vmatpush1.msra.mxu0 0.0
    %709 = vmatprep.subr.mxu0 0.0
    %710 = vmatpush1.msra.mxu0 0.0
    %711 = vmatprep.subr.mxu0 0.0
    %712 = vmatpush1.msra.mxu0 0.0
    %713 = vmatprep.subr.mxu0 0.0
    %714 = vmatpush1.msra.mxu0 0.0
    %715 = vmatprep.subr.mxu0 0.0
    %716 = vmatpush1.msra.mxu0 0.0
    %717 = vmatprep.subr.mxu0 0.0
    %718 = vmatpush1.msra.mxu0 0.0
    %719 = vmatprep.subr.mxu0 0.0
    %720 = vmatpush1.msra.mxu0 0.0
    %721 = vmatprep.subr.mxu0 0.0
    %722 = vmatpush1.msra.mxu0 0.0
    %723 = vmatprep.subr.mxu0 0.0
    %724 = vmatpush1.msra.mxu0 0.0
    %725 = vmatprep.subr.mxu0 0.0
    %726 = vmatpush1.msra.mxu0 0.0
    %727 = vmatprep.mubr.f32.mxu0 0.0
    %728 = vmatmul.mubr.f32.gmra.mrb[0].mxu0 %v85
    %v729 = vpop.f32.mrb[0].mxu0
    %v730 = vadd.f32 0.0, %v729
    %v731 = vpop.f32.mrb[0].mxu0
    %732 = vdwg.mxu0
    %733 = vmatprep.subr.mxu0 0.0
    %734 = vmatpush1.msra.mxu0 %v649
    %735 = vmatprep.subr.mxu0 0.0
    %736 = vmatpush1.msra.mxu0 %v650
    %737 = vmatprep.subr.mxu0 0.0
    %738 = vmatpush1.msra.mxu0 0.0
    %739 = vmatprep.subr.mxu0 0.0
    %740 = vmatpush1.msra.mxu0 0.0
    %741 = vmatprep.subr.mxu0 0.0
    %742 = vmatpush1.msra.mxu0 0.0
    %743 = vmatprep.subr.mxu0 0.0
    %744 = vmatpush1.msra.mxu0 0.0
    %745 = vmatprep.subr.mxu0 0.0
    %746 = vmatpush1.msra.mxu0 0.0
    %747 = vmatprep.subr.mxu0 0.0
    %748 = vmatpush1.msra.mxu0 0.0
    %749 = vmatprep.subr.mxu0 0.0
    %750 = vmatpush1.msra.mxu0 0.0
    %751 = vmatprep.subr.mxu0 0.0
    %752 = vmatpush1.msra.mxu0 0.0
    %753 = vmatprep.subr.mxu0 0.0
    %754 = vmatpush1.msra.mxu0 0.0
    %755 = vmatprep.subr.mxu0 0.0
    %756 = vmatpush1.msra.mxu0 0.0
    %757 = vmatprep.subr.mxu0 0.0
    %758 = vmatpush1.msra.mxu0 0.0
    %759 = vmatprep.subr.mxu0 0.0
    %760 = vmatpush1.msra.mxu0 0.0
    %761 = vmatprep.subr.mxu0 0.0
    %762 = vmatpush1.msra.mxu0 0.0
    %763 = vmatprep.subr.mxu0 0.0
    %764 = vmatpush1.msra.mxu0 0.0
    %765 = vmatprep.subr.mxu0 0.0
    %766 = vmatpush1.msra.mxu0 0.0
    %767 = vmatprep.subr.mxu0 0.0
    %768 = vmatpush1.msra.mxu0 0.0
    %769 = vmatprep.subr.mxu0 0.0
    %770 = vmatpush1.msra.mxu0 0.0
    %771 = vmatprep.subr.mxu0 0.0
    %772 = vmatpush1.msra.mxu0 0.0
    %773 = vmatprep.subr.mxu0 0.0
    %774 = vmatpush1.msra.mxu0 0.0
    %775 = vmatprep.subr.mxu0 0.0
    %776 = vmatpush1.msra.mxu0 0.0
    %777 = vmatprep.subr.mxu0 0.0
    %778 = vmatpush1.msra.mxu0 0.0
    %779 = vmatprep.subr.mxu0 0.0
    %780 = vmatpush1.msra.mxu0 0.0
    %781 = vmatprep.subr.mxu0 0.0
    %782 = vmatpush1.msra.mxu0 0.0
    %783 = vmatprep.subr.mxu0 0.0
    %784 = vmatpush1.msra.mxu0 0.0
    %785 = vmatprep.subr.mxu0 0.0
    %786 = vmatpush1.msra.mxu0 0.0
    %787 = vmatprep.subr.mxu0 0.0
    %788 = vmatpush1.msra.mxu0 0.0
    %789 = vmatprep.subr.mxu0 0.0
    %790 = vmatpush1.msra.mxu0 0.0
    %791 = vmatprep.subr.mxu0 0.0
    %792 = vmatpush1.msra.mxu0 0.0
    %793 = vmatprep.subr.mxu0 0.0
    %794 = vmatpush1.msra.mxu0 0.0
    %795 = vmatprep.subr.mxu0 0.0
    %796 = vmatpush1.msra.mxu0 0.0
    %797 = vmatprep.mubr.f32.mxu0 0.0
    %798 = vmatmul.mubr.f32.gmra.mrb[0].mxu0 %v85
    %v799 = vpop.f32.mrb[0].mxu0
    %v800 = vadd.f32 0.0, %v799
    %v801 = vpop.f32.mrb[0].mxu0
    %802 = vdwg.mxu0
    %803 = vmatprep.subr.mxu0 0.0
    %804 = vmatpush1.msra.mxu0 %v651
    %805 = vmatprep.subr.mxu0 0.0
    %806 = vmatpush1.msra.mxu0 %v652
    %807 = vmatprep.subr.mxu0 0.0
    %808 = vmatpush1.msra.mxu0 0.0
    %809 = vmatprep.subr.mxu0 0.0
    %810 = vmatpush1.msra.mxu0 0.0
    %811 = vmatprep.subr.mxu0 0.0
    %812 = vmatpush1.msra.mxu0 0.0
    %813 = vmatprep.subr.mxu0 0.0
    %814 = vmatpush1.msra.mxu0 0.0
    %815 = vmatprep.subr.mxu0 0.0
    %816 = vmatpush1.msra.mxu0 0.0
    %817 = vmatprep.subr.mxu0 0.0
    %818 = vmatpush1.msra.mxu0 0.0
    %819 = vmatprep.subr.mxu0 0.0
    %820 = vmatpush1.msra.mxu0 0.0
    %821 = vmatprep.subr.mxu0 0.0
    %822 = vmatpush1.msra.mxu0 0.0
    %823 = vmatprep.subr.mxu0 0.0
    %824 = vmatpush1.msra.mxu0 0.0
    %825 = vmatprep.subr.mxu0 0.0
    %826 = vmatpush1.msra.mxu0 0.0
    %827 = vmatprep.subr.mxu0 0.0
    %828 = vmatpush1.msra.mxu0 0.0
    %829 = vmatprep.subr.mxu0 0.0
    %830 = vmatpush1.msra.mxu0 0.0
    %831 = vmatprep.subr.mxu0 0.0
    %832 = vmatpush1.msra.mxu0 0.0
    %833 = vmatprep.subr.mxu0 0.0
    %834 = vmatpush1.msra.mxu0 0.0
    %835 = vmatprep.subr.mxu0 0.0
    %836 = vmatpush1.msra.mxu0 0.0
    %837 = vmatprep.subr.mxu0 0.0
    %838 = vmatpush1.msra.mxu0 0.0
    %839 = vmatprep.subr.mxu0 0.0
    %840 = vmatpush1.msra.mxu0 0.0
    %841 = vmatprep.subr.mxu0 0.0
    %842 = vmatpush1.msra.mxu0 0.0
    %843 = vmatprep.subr.mxu0 0.0
    %844 = vmatpush1.msra.mxu0 0.0
    %845 = vmatprep.subr.mxu0 0.0
    %846 = vmatpush1.msra.mxu0 0.0
    %847 = vmatprep.subr.mxu0 0.0
    %848 = vmatpush1.msra.mxu0 0.0
    %849 = vmatprep.subr.mxu0 0.0
    %850 = vmatpush1.msra.mxu0 0.0
    %851 = vmatprep.subr.mxu0 0.0
    %852 = vmatpush1.msra.mxu0 0.0
    %853 = vmatprep.subr.mxu0 0.0
    %854 = vmatpush1.msra.mxu0 0.0
    %855 = vmatprep.subr.mxu0 0.0
    %856 = vmatpush1.msra.mxu0 0.0
    %857 = vmatprep.subr.mxu0 0.0
    %858 = vmatpush1.msra.mxu0 0.0
    %859 = vmatprep.subr.mxu0 0.0
    %860 = vmatpush1.msra.mxu0 0.0
    %861 = vmatprep.subr.mxu0 0.0
    %862 = vmatpush1.msra.mxu0 0.0
    %863 = vmatprep.subr.mxu0 0.0
    %864 = vmatpush1.msra.mxu0 0.0
    %865 = vmatprep.subr.mxu0 0.0
    %866 = vmatpush1.msra.mxu0 0.0
    %867 = vmatprep.mubr.f32.mxu0 0.0
    %868 = vmatmul.mubr.f32.gmra.mrb[0].mxu0 %v85
    %v869 = vpop.f32.mrb[0].mxu0
    %v870 = vadd.f32 0.0, %v869
    %v871 = vpop.f32.mrb[0].mxu0
    %872 = vdwg.mxu0
    %873 = vmatprep.subr.mxu0 0.0
    %874 = vmatpush1.msra.mxu0 %v653
    %875 = vmatprep.subr.mxu0 0.0
    %876 = vmatpush1.msra.mxu0 %v654
    %877 = vmatprep.subr.mxu0 0.0
    %878 = vmatpush1.msra.mxu0 0.0
    %879 = vmatprep.subr.mxu0 0.0
    %880 = vmatpush1.msra.mxu0 0.0
    %881 = vmatprep.subr.mxu0 0.0
    %882 = vmatpush1.msra.mxu0 0.0
    %883 = vmatprep.subr.mxu0 0.0
    %884 = vmatpush1.msra.mxu0 0.0
    %885 = vmatprep.subr.mxu0 0.0
    %886 = vmatpush1.msra.mxu0 0.0
    %887 = vmatprep.subr.mxu0 0.0
    %888 = vmatpush1.msra.mxu0 0.0
    %889 = vmatprep.subr.mxu0 0.0
    %890 = vmatpush1.msra.mxu0 0.0
    %891 = vmatprep.subr.mxu0 0.0
    %892 = vmatpush1.msra.mxu0 0.0
    %893 = vmatprep.subr.mxu0 0.0
    %894 = vmatpush1.msra.mxu0 0.0
    %895 = vmatprep.subr.mxu0 0.0
    %896 = vmatpush1.msra.mxu0 0.0
    %897 = vmatprep.subr.mxu0 0.0
    %898 = vmatpush1.msra.mxu0 0.0
    %899 = vmatprep.subr.mxu0 0.0
    %900 = vmatpush1.msra.mxu0 0.0
    %901 = vmatprep.subr.mxu0 0.0
    %902 = vmatpush1.msra.mxu0 0.0
    %903 = vmatprep.subr.mxu0 0.0
    %904 = vmatpush1.msra.mxu0 0.0
    %905 = vmatprep.subr.mxu0 0.0
    %906 = vmatpush1.msra.mxu0 0.0
    %907 = vmatprep.subr.mxu0 0.0
    %908 = vmatpush1.msra.mxu0 0.0
    %909 = vmatprep.subr.mxu0 0.0
    %910 = vmatpush1.msra.mxu0 0.0
    %911 = vmatprep.subr.mxu0 0.0
    %912 = vmatpush1.msra.mxu0 0.0
    %913 = vmatprep.subr.mxu0 0.0
    %914 = vmatpush1.msra.mxu0 0.0
    %915 = vmatprep.subr.mxu0 0.0
    %916 = vmatpush1.msra.mxu0 0.0
    %917 = vmatprep.subr.mxu0 0.0
    %918 = vmatpush1.msra.mxu0 0.0
    %919 = vmatprep.subr.mxu0 0.0
    %920 = vmatpush1.msra.mxu0 0.0
    %921 = vmatprep.subr.mxu0 0.0
    %922 = vmatpush1.msra.mxu0 0.0
    %923 = vmatprep.subr.mxu0 0.0
    %924 = vmatpush1.msra.mxu0 0.0
    %925 = vmatprep.subr.mxu0 0.0
    %926 = vmatpush1.msra.mxu0 0.0
    %927 = vmatprep.subr.mxu0 0.0
    %928 = vmatpush1.msra.mxu0 0.0
    %929 = vmatprep.subr.mxu0 0.0
    %930 = vmatpush1.msra.mxu0 0.0
    %931 = vmatprep.subr.mxu0 0.0
    %932 = vmatpush1.msra.mxu0 0.0
    %933 = vmatprep.subr.mxu0 0.0
    %934 = vmatpush1.msra.mxu0 0.0
    %935 = vmatprep.subr.mxu0 0.0
    %936 = vmatpush1.msra.mxu0 0.0
    %937 = vmatprep.mubr.f32.mxu0 0.0
    %938 = vmatmul.mubr.f32.gmra.mrb[0].mxu0 %v85
    %v939 = vpop.f32.mrb[0].mxu0
    %v940 = vadd.f32 0.0, %v939
    %v941 = vpop.f32.mrb[0].mxu0
    %942 = vdwg.mxu0
    %943 = vmatprep.subr.mxu0 0.0
    %944 = vmatpush1.msra.mxu0 %v655
    %945 = vmatprep.subr.mxu0 0.0
    %946 = vmatpush1.msra.mxu0 %v656
    %947 = vmatprep.subr.mxu0 0.0
    %948 = vmatpush1.msra.mxu0 0.0
    %949 = vmatprep.subr.mxu0 0.0
    %950 = vmatpush1.msra.mxu0 0.0
    %951 = vmatprep.subr.mxu0 0.0
    %952 = vmatpush1.msra.mxu0 0.0
    %953 = vmatprep.subr.mxu0 0.0
    %954 = vmatpush1.msra.mxu0 0.0
    %955 = vmatprep.subr.mxu0 0.0
    %956 = vmatpush1.msra.mxu0 0.0
    %957 = vmatprep.subr.mxu0 0.0
    %958 = vmatpush1.msra.mxu0 0.0
    %959 = vmatprep.subr.mxu0 0.0
    %960 = vmatpush1.msra.mxu0 0.0
    %961 = vmatprep.subr.mxu0 0.0
    %962 = vmatpush1.msra.mxu0 0.0
    %963 = vmatprep.subr.mxu0 0.0
    %964 = vmatpush1.msra.mxu0 0.0
    %965 = vmatprep.subr.mxu0 0.0
    %966 = vmatpush1.msra.mxu0 0.0
    %967 = vmatprep.subr.mxu0 0.0
    %968 = vmatpush1.msra.mxu0 0.0
    %969 = vmatprep.subr.mxu0 0.0
    %970 = vmatpush1.msra.mxu0 0.0
    %971 = vmatprep.subr.mxu0 0.0
    %972 = vmatpush1.msra.mxu0 0.0
    %973 = vmatprep.subr.mxu0 0.0
    %974 = vmatpush1.msra.mxu0 0.0
    %975 = vmatprep.subr.mxu0 0.0
    %976 = vmatpush1.msra.mxu0 0.0
    %977 = vmatprep.subr.mxu0 0.0
    %978 = vmatpush1.msra.mxu0 0.0
    %979 = vmatprep.subr.mxu0 0.0
    %980 = vmatpush1.msra.mxu0 0.0
    %981 = vmatprep.subr.mxu0 0.0
    %982 = vmatpush1.msra.mxu0 0.0
    %983 = vmatprep.subr.mxu0 0.0
    %984 = vmatpush1.msra.mxu0 0.0
    %985 = vmatprep.subr.mxu0 0.0
    %986 = vmatpush1.msra.mxu0 0.0
    %987 = vmatprep.subr.mxu0 0.0
    %988 = vmatpush1.msra.mxu0 0.0
    %989 = vmatprep.subr.mxu0 0.0
    %990 = vmatpush1.msra.mxu0 0.0
    %991 = vmatprep.subr.mxu0 0.0
    %992 = vmatpush1.msra.mxu0 0.0
    %993 = vmatprep.subr.mxu0 0.0
    %994 = vmatpush1.msra.mxu0 0.0
    %995 = vmatprep.subr.mxu0 0.0
    %996 = vmatpush1.msra.mxu0 0.0
    %997 = vmatprep.subr.mxu0 0.0
    %998 = vmatpush1.msra.mxu0 0.0
    %999 = vmatprep.subr.mxu0 0.0
    %1000 = vmatpush1.msra.mxu0 0.0
    %1001 = vmatprep.subr.mxu0 0.0
    %1002 = vmatpush1.msra.mxu0 0.0
    %1003 = vmatprep.subr.mxu0 0.0
    %1004 = vmatpush1.msra.mxu0 0.0
    %1005 = vmatprep.subr.mxu0 0.0
    %1006 = vmatpush1.msra.mxu0 0.0
    %1007 = vmatprep.mubr.f32.mxu0 0.0
    %1008 = vmatmul.mubr.f32.gmra.mrb[0].mxu0 %v85
    %v1009 = vpop.f32.mrb[0].mxu0
    %v1010 = vadd.f32 0.0, %v1009
    %v1011 = vpop.f32.mrb[0].mxu0
    %1012 = vdwg.mxu0
    %1013 = vmatprep.subr.mxu0 0.0
    %1014 = vmatpush1.msra.mxu0 %v657
    %1015 = vmatprep.subr.mxu0 0.0
    %1016 = vmatpush1.msra.mxu0 %v658
    %1017 = vmatprep.subr.mxu0 0.0
    %1018 = vmatpush1.msra.mxu0 0.0
    %1019 = vmatprep.subr.mxu0 0.0
    %1020 = vmatpush1.msra.mxu0 0.0
    %1021 = vmatprep.subr.mxu0 0.0
    %1022 = vmatpush1.msra.mxu0 0.0
    %1023 = vmatprep.subr.mxu0 0.0
    %1024 = vmatpush1.msra.mxu0 0.0
    %1025 = vmatprep.subr.mxu0 0.0
    %1026 = vmatpush1.msra.mxu0 0.0
    %1027 = vmatprep.subr.mxu0 0.0
    %1028 = vmatpush1.msra.mxu0 0.0
    %1029 = vmatprep.subr.mxu0 0.0
    %1030 = vmatpush1.msra.mxu0 0.0
    %1031 = vmatprep.subr.mxu0 0.0
    %1032 = vmatpush1.msra.mxu0 0.0
    %1033 = vmatprep.subr.mxu0 0.0
    %1034 = vmatpush1.msra.mxu0 0.0
    %1035 = vmatprep.subr.mxu0 0.0
    %1036 = vmatpush1.msra.mxu0 0.0
    %1037 = vmatprep.subr.mxu0 0.0
    %1038 = vmatpush1.msra.mxu0 0.0
    %1039 = vmatprep.subr.mxu0 0.0
    %1040 = vmatpush1.msra.mxu0 0.0
    %1041 = vmatprep.subr.mxu0 0.0
    %1042 = vmatpush1.msra.mxu0 0.0
    %1043 = vmatprep.subr.mxu0 0.0
    %1044 = vmatpush1.msra.mxu0 0.0
    %1045 = vmatprep.subr.mxu0 0.0
    %1046 = vmatpush1.msra.mxu0 0.0
    %1047 = vmatprep.subr.mxu0 0.0
    %1048 = vmatpush1.msra.mxu0 0.0
    %1049 = vmatprep.subr.mxu0 0.0
    %1050 = vmatpush1.msra.mxu0 0.0
    %1051 = vmatprep.subr.mxu0 0.0
    %1052 = vmatpush1.msra.mxu0 0.0
    %1053 = vmatprep.subr.mxu0 0.0
    %1054 = vmatpush1.msra.mxu0 0.0
    %1055 = vmatprep.subr.mxu0 0.0
    %1056 = vmatpush1.msra.mxu0 0.0
    %1057 = vmatprep.subr.mxu0 0.0
    %1058 = vmatpush1.msra.mxu0 0.0
    %1059 = vmatprep.subr.mxu0 0.0
    %1060 = vmatpush1.msra.mxu0 0.0
    %1061 = vmatprep.subr.mxu0 0.0
    %1062 = vmatpush1.msra.mxu0 0.0
    %1063 = vmatprep.subr.mxu0 0.0
    %1064 = vmatpush1.msra.mxu0 0.0
    %1065 = vmatprep.subr.mxu0 0.0
    %1066 = vmatpush1.msra.mxu0 0.0
    %1067 = vmatprep.subr.mxu0 0.0
    %1068 = vmatpush1.msra.mxu0 0.0
    %1069 = vmatprep.subr.mxu0 0.0
    %1070 = vmatpush1.msra.mxu0 0.0
    %1071 = vmatprep.subr.mxu0 0.0
    %1072 = vmatpush1.msra.mxu0 0.0
    %1073 = vmatprep.subr.mxu0 0.0
    %1074 = vmatpush1.msra.mxu0 0.0
    %1075 = vmatprep.subr.mxu0 0.0
    %1076 = vmatpush1.msra.mxu0 0.0
    %1077 = vmatprep.mubr.f32.mxu0 0.0
    %1078 = vmatmul.mubr.f32.gmra.mrb[0].mxu0 %v85
    %v1079 = vpop.f32.mrb[0].mxu0
    %v1080 = vadd.f32 0.0, %v1079
    %v1081 = vpop.f32.mrb[0].mxu0
    %1082 = vdwg.mxu0
    %1083 = vmatprep.subr.mxu0 0.0
    %1084 = vmatpush1.msra.mxu0 %v659
    %1085 = vmatprep.subr.mxu0 0.0
    %1086 = vmatpush1.msra.mxu0 %v660
    %1087 = vmatprep.subr.mxu0 0.0
    %1088 = vmatpush1.msra.mxu0 0.0
    %1089 = vmatprep.subr.mxu0 0.0
    %1090 = vmatpush1.msra.mxu0 0.0
    %1091 = vmatprep.subr.mxu0 0.0
    %1092 = vmatpush1.msra.mxu0 0.0
    %1093 = vmatprep.subr.mxu0 0.0
    %1094 = vmatpush1.msra.mxu0 0.0
    %1095 = vmatprep.subr.mxu0 0.0
    %1096 = vmatpush1.msra.mxu0 0.0
    %1097 = vmatprep.subr.mxu0 0.0
    %1098 = vmatpush1.msra.mxu0 0.0
    %1099 = vmatprep.subr.mxu0 0.0
    %1100 = vmatpush1.msra.mxu0 0.0
    %1101 = vmatprep.subr.mxu0 0.0
    %1102 = vmatpush1.msra.mxu0 0.0
    %1103 = vmatprep.subr.mxu0 0.0
    %1104 = vmatpush1.msra.mxu0 0.0
    %1105 = vmatprep.subr.mxu0 0.0
    %1106 = vmatpush1.msra.mxu0 0.0
    %1107 = vmatprep.subr.mxu0 0.0
    %1108 = vmatpush1.msra.mxu0 0.0
    %1109 = vmatprep.subr.mxu0 0.0
    %1110 = vmatpush1.msra.mxu0 0.0
    %1111 = vmatprep.subr.mxu0 0.0
    %1112 = vmatpush1.msra.mxu0 0.0
    %1113 = vmatprep.subr.mxu0 0.0
    %1114 = vmatpush1.msra.mxu0 0.0
    %1115 = vmatprep.subr.mxu0 0.0
    %1116 = vmatpush1.msra.mxu0 0.0
    %1117 = vmatprep.subr.mxu0 0.0
    %1118 = vmatpush1.msra.mxu0 0.0
    %1119 = vmatprep.subr.mxu0 0.0
    %1120 = vmatpush1.msra.mxu0 0.0
    %1121 = vmatprep.subr.mxu0 0.0
    %1122 = vmatpush1.msra.mxu0 0.0
    %1123 = vmatprep.subr.mxu0 0.0
    %1124 = vmatpush1.msra.mxu0 0.0
    %1125 = vmatprep.subr.mxu0 0.0
    %1126 = vmatpush1.msra.mxu0 0.0
    %1127 = vmatprep.subr.mxu0 0.0
    %1128 = vmatpush1.msra.mxu0 0.0
    %1129 = vmatprep.subr.mxu0 0.0
    %1130 = vmatpush1.msra.mxu0 0.0
    %1131 = vmatprep.subr.mxu0 0.0
    %1132 = vmatpush1.msra.mxu0 0.0
    %1133 = vmatprep.subr.mxu0 0.0
    %1134 = vmatpush1.msra.mxu0 0.0
    %1135 = vmatprep.subr.mxu0 0.0
    %1136 = vmatpush1.msra.mxu0 0.0
    %1137 = vmatprep.subr.mxu0 0.0
    %1138 = vmatpush1.msra.mxu0 0.0
    %1139 = vmatprep.subr.mxu0 0.0
    %1140 = vmatpush1.msra.mxu0 0.0
    %1141 = vmatprep.subr.mxu0 0.0
    %1142 = vmatpush1.msra.mxu0 0.0
    %1143 = vmatprep.subr.mxu0 0.0
    %1144 = vmatpush1.msra.mxu0 0.0
    %1145 = vmatprep.subr.mxu0 0.0
    %1146 = vmatpush1.msra.mxu0 0.0
    %1147 = vmatprep.mubr.f32.mxu0 0.0
    %1148 = vmatmul.mubr.f32.gmra.mrb[0].mxu0 %v85
    %v1149 = vpop.f32.mrb[0].mxu0
    %v1150 = vadd.f32 0.0, %v1149
    %v1151 = vpop.f32.mrb[0].mxu0
    %1152 = vdwg.mxu0
    %1153 = vmatprep.subr.mxu0 0.0
    %1154 = vmatpush1.msra.mxu0 %v661
    %1155 = vmatprep.subr.mxu0 0.0
    %1156 = vmatpush1.msra.mxu0 %v662
    %1157 = vmatprep.subr.mxu0 0.0
    %1158 = vmatpush1.msra.mxu0 0.0
    %1159 = vmatprep.subr.mxu0 0.0
    %1160 = vmatpush1.msra.mxu0 0.0
    %1161 = vmatprep.subr.mxu0 0.0
    %1162 = vmatpush1.msra.mxu0 0.0
    %1163 = vmatprep.subr.mxu0 0.0
    %1164 = vmatpush1.msra.mxu0 0.0
    %1165 = vmatprep.subr.mxu0 0.0
    %1166 = vmatpush1.msra.mxu0 0.0
    %1167 = vmatprep.subr.mxu0 0.0
    %1168 = vmatpush1.msra.mxu0 0.0
    %1169 = vmatprep.subr.mxu0 0.0
    %1170 = vmatpush1.msra.mxu0 0.0
    %1171 = vmatprep.subr.mxu0 0.0
    %1172 = vmatpush1.msra.mxu0 0.0
    %1173 = vmatprep.subr.mxu0 0.0
    %1174 = vmatpush1.msra.mxu0 0.0
    %1175 = vmatprep.subr.mxu0 0.0
    %1176 = vmatpush1.msra.mxu0 0.0
    %1177 = vmatprep.subr.mxu0 0.0
    %1178 = vmatpush1.msra.mxu0 0.0
    %1179 = vmatprep.subr.mxu0 0.0
    %1180 = vmatpush1.msra.mxu0 0.0
    %1181 = vmatprep.subr.mxu0 0.0
    %1182 = vmatpush1.msra.mxu0 0.0
    %1183 = vmatprep.subr.mxu0 0.0
    %1184 = vmatpush1.msra.mxu0 0.0
    %1185 = vmatprep.subr.mxu0 0.0
    %1186 = vmatpush1.msra.mxu0 0.0
    %1187 = vmatprep.subr.mxu0 0.0
    %1188 = vmatpush1.msra.mxu0 0.0
    %1189 = vmatprep.subr.mxu0 0.0
    %1190 = vmatpush1.msra.mxu0 0.0
    %1191 = vmatprep.subr.mxu0 0.0
    %1192 = vmatpush1.msra.mxu0 0.0
    %1193 = vmatprep.subr.mxu0 0.0
    %1194 = vmatpush1.msra.mxu0 0.0
    %1195 = vmatprep.subr.mxu0 0.0
    %1196 = vmatpush1.msra.mxu0 0.0
    %1197 = vmatprep.subr.mxu0 0.0
    %1198 = vmatpush1.msra.mxu0 0.0
    %1199 = vmatprep.subr.mxu0 0.0
    %1200 = vmatpush1.msra.mxu0 0.0
    %1201 = vmatprep.subr.mxu0 0.0
    %1202 = vmatpush1.msra.mxu0 0.0
    %1203 = vmatprep.subr.mxu0 0.0
    %1204 = vmatpush1.msra.mxu0 0.0
    %1205 = vmatprep.subr.mxu0 0.0
    %1206 = vmatpush1.msra.mxu0 0.0
    %1207 = vmatprep.subr.mxu0 0.0
    %1208 = vmatpush1.msra.mxu0 0.0
    %1209 = vmatprep.subr.mxu0 0.0
    %1210 = vmatpush1.msra.mxu0 0.0
    %1211 = vmatprep.subr.mxu0 0.0
    %1212 = vmatpush1.msra.mxu0 0.0
    %1213 = vmatprep.subr.mxu0 0.0
    %1214 = vmatpush1.msra.mxu0 0.0
    %1215 = vmatprep.subr.mxu0 0.0
    %1216 = vmatpush1.msra.mxu0 0.0
    %1217 = vmatprep.mubr.f32.mxu0 0.0
    %1218 = vmatmul.mubr.f32.gmra.mrb[0].mxu0 %v85
    %v1219 = vpop.f32.mrb[0].mxu0
    %v1220 = vadd.f32 0.0, %v1219
    %v1221 = vpop.f32.mrb[0].mxu0
    %1222 = vdwg.mxu0
    %vm1223 = vcmask 261120
    %v1225 = vsel %vm1223, %v154, 0
    %v1228 = vsel %vm1223, %v730, 0
    %1230 = vmatprep.subr.mxu0 0.0
    %1231 = vmatpush1.xpose.msra.mxu0 %v1228
    %1232 = vmatprep.subr.mxu0 0.0
    %1233 = vmatpush1.xpose.msra.mxu0 0.0
    %1234 = vmatprep.subr.mxu0 0.0
    %1235 = vmatpush1.xpose.msra.mxu0 0.0
    %1236 = vmatprep.subr.mxu0 0.0
    %1237 = vmatpush1.xpose.msra.mxu0 0.0
    %1238 = vmatprep.subr.mxu0 0.0
    %1239 = vmatpush1.xpose.msra.mxu0 0.0
    %1240 = vmatprep.subr.mxu0 0.0
    %1241 = vmatpush1.xpose.msra.mxu0 0.0
    %1242 = vmatprep.subr.mxu0 0.0
    %1243 = vmatpush1.xpose.msra.mxu0 0.0
    %1244 = vmatprep.subr.mxu0 0.0
    %1245 = vmatpush1.xpose.msra.mxu0 0.0
    %1246 = vmatprep.subr.mxu0 0.0
    %1247 = vmatpush1.xpose.msra.mxu0 0.0
    %1248 = vmatprep.subr.mxu0 0.0
    %1249 = vmatpush1.xpose.msra.mxu0 0.0
    %1250 = vmatprep.subr.mxu0 0.0
    %1251 = vmatpush1.xpose.msra.mxu0 0.0
    %1252 = vmatprep.subr.mxu0 0.0
    %1253 = vmatpush1.xpose.msra.mxu0 0.0
    %1254 = vmatprep.subr.mxu0 0.0
    %1255 = vmatpush1.xpose.msra.mxu0 0.0
    %1256 = vmatprep.subr.mxu0 0.0
    %1257 = vmatpush1.xpose.msra.mxu0 0.0
    %1258 = vmatprep.subr.mxu0 0.0
    %1259 = vmatpush1.xpose.msra.mxu0 0.0
    %1260 = vmatprep.subr.mxu0 0.0
    %1261 = vmatpush1.xpose.msra.mxu0 0.0
    %1262 = vmatprep.subr.mxu0 0.0
    %1263 = vmatpush1.xpose.msra.mxu0 0.0
    %1264 = vmatprep.subr.mxu0 0.0
    %1265 = vmatpush1.xpose.msra.mxu0 0.0
    %1266 = vmatprep.subr.mxu0 0.0
    %1267 = vmatpush1.xpose.msra.mxu0 0.0
    %1268 = vmatprep.subr.mxu0 0.0
    %1269 = vmatpush1.xpose.msra.mxu0 0.0
    %1270 = vmatprep.subr.mxu0 0.0
    %1271 = vmatpush1.xpose.msra.mxu0 0.0
    %1272 = vmatprep.subr.mxu0 0.0
    %1273 = vmatpush1.xpose.msra.mxu0 0.0
    %1274 = vmatprep.subr.mxu0 0.0
    %1275 = vmatpush1.xpose.msra.mxu0 0.0
    %1276 = vmatprep.subr.mxu0 0.0
    %1277 = vmatpush1.xpose.msra.mxu0 0.0
    %1278 = vmatprep.subr.mxu0 0.0
    %1279 = vmatpush1.xpose.msra.mxu0 0.0
    %1280 = vmatprep.subr.mxu0 0.0
    %1281 = vmatpush1.xpose.msra.mxu0 0.0
    %1282 = vmatprep.subr.mxu0 0.0
    %1283 = vmatpush1.xpose.msra.mxu0 0.0
    %1284 = vmatprep.subr.mxu0 0.0
    %1285 = vmatpush1.xpose.msra.mxu0 0.0
    %1286 = vmatprep.subr.mxu0 0.0
    %1287 = vmatpush1.xpose.msra.mxu0 0.0
    %1288 = vmatprep.subr.mxu0 0.0
    %1289 = vmatpush1.xpose.msra.mxu0 0.0
    %1290 = vmatprep.subr.mxu0 0.0
    %1291 = vmatpush1.xpose.msra.mxu0 0.0
    %1292 = vmatprep.subr.mxu0 0.0
    %1293 = vmatpush1.xpose.msra.mxu0 0.0
    %1294 = vmatprep.mubr.f32.mxu0 0.0
    %1295 = vmatmul.mubr.f32.gmra.mrb[0].mxu0 %v1225
    %v1296 = vpop.f32.mrb[0].mxu0
    %v1297 = vadd.f32 0.0, %v1296
    %v1298 = vpop.f32.mrb[0].mxu0
    %1299 = vdwg.mxu0
    %v1301 = vsel %vm1223, %v224, 0
    %v1304 = vsel %vm1223, %v800, 0
    %1306 = vmatprep.subr.mxu0 0.0
    %1307 = vmatpush1.xpose.msra.mxu0 %v1304
    %1308 = vmatprep.subr.mxu0 0.0
    %1309 = vmatpush1.xpose.msra.mxu0 0.0
    %1310 = vmatprep.subr.mxu0 0.0
    %1311 = vmatpush1.xpose.msra.mxu0 0.0
    %1312 = vmatprep.subr.mxu0 0.0
    %1313 = vmatpush1.xpose.msra.mxu0 0.0
    %1314 = vmatprep.subr.mxu0 0.0
    %1315 = vmatpush1.xpose.msra.mxu0 0.0
    %1316 = vmatprep.subr.mxu0 0.0
    %1317 = vmatpush1.xpose.msra.mxu0 0.0
    %1318 = vmatprep.subr.mxu0 0.0
    %1319 = vmatpush1.xpose.msra.mxu0 0.0
    %1320 = vmatprep.subr.mxu0 0.0
    %1321 = vmatpush1.xpose.msra.mxu0 0.0
    %1322 = vmatprep.subr.mxu0 0.0
    %1323 = vmatpush1.xpose.msra.mxu0 0.0
    %1324 = vmatprep.subr.mxu0 0.0
    %1325 = vmatpush1.xpose.msra.mxu0 0.0
    %1326 = vmatprep.subr.mxu0 0.0
    %1327 = vmatpush1.xpose.msra.mxu0 0.0
    %1328 = vmatprep.subr.mxu0 0.0
    %1329 = vmatpush1.xpose.msra.mxu0 0.0
    %1330 = vmatprep.subr.mxu0 0.0
    %1331 = vmatpush1.xpose.msra.mxu0 0.0
    %1332 = vmatprep.subr.mxu0 0.0
    %1333 = vmatpush1.xpose.msra.mxu0 0.0
    %1334 = vmatprep.subr.mxu0 0.0
    %1335 = vmatpush1.xpose.msra.mxu0 0.0
    %1336 = vmatprep.subr.mxu0 0.0
    %1337 = vmatpush1.xpose.msra.mxu0 0.0
    %1338 = vmatprep.subr.mxu0 0.0
    %1339 = vmatpush1.xpose.msra.mxu0 0.0
    %1340 = vmatprep.subr.mxu0 0.0
    %1341 = vmatpush1.xpose.msra.mxu0 0.0
    %1342 = vmatprep.subr.mxu0 0.0
    %1343 = vmatpush1.xpose.msra.mxu0 0.0
    %1344 = vmatprep.subr.mxu0 0.0
    %1345 = vmatpush1.xpose.msra.mxu0 0.0
    %1346 = vmatprep.subr.mxu0 0.0
    %1347 = vmatpush1.xpose.msra.mxu0 0.0
    %1348 = vmatprep.subr.mxu0 0.0
    %1349 = vmatpush1.xpose.msra.mxu0 0.0
    %1350 = vmatprep.subr.mxu0 0.0
    %1351 = vmatpush1.xpose.msra.mxu0 0.0
    %1352 = vmatprep.subr.mxu0 0.0
    %1353 = vmatpush1.xpose.msra.mxu0 0.0
    %1354 = vmatprep.subr.mxu0 0.0
    %1355 = vmatpush1.xpose.msra.mxu0 0.0
    %1356 = vmatprep.subr.mxu0 0.0
    %1357 = vmatpush1.xpose.msra.mxu0 0.0
    %1358 = vmatprep.subr.mxu0 0.0
    %1359 = vmatpush1.xpose.msra.mxu0 0.0
    %1360 = vmatprep.subr.mxu0 0.0
    %1361 = vmatpush1.xpose.msra.mxu0 0.0
    %1362 = vmatprep.subr.mxu0 0.0
    %1363 = vmatpush1.xpose.msra.mxu0 0.0
    %1364 = vmatprep.subr.mxu0 0.0
    %1365 = vmatpush1.xpose.msra.mxu0 0.0
    %1366 = vmatprep.subr.mxu0 0.0
    %1367 = vmatpush1.xpose.msra.mxu0 0.0
    %1368 = vmatprep.subr.mxu0 0.0
    %1369 = vmatpush1.xpose.msra.mxu0 0.0
    %1370 = vmatprep.mubr.f32.mxu0 0.0
    %1371 = vmatmul.mubr.f32.gmra.mrb[0].mxu0 %v1301
    %v1372 = vpop.f32.mrb[0].mxu0
    %v1373 = vadd.f32 0.0, %v1372
    %v1374 = vpop.f32.mrb[0].mxu0
    %1375 = vdwg.mxu0
    %v1377 = vsel %vm1223, %v294, 0
    %v1380 = vsel %vm1223, %v870, 0
    %1382 = vmatprep.subr.mxu0 0.0
    %1383 = vmatpush1.xpose.msra.mxu0 %v1380
    %1384 = vmatprep.subr.mxu0 0.0
    %1385 = vmatpush1.xpose.msra.mxu0 0.0
    %1386 = vmatprep.subr.mxu0 0.0
    %1387 = vmatpush1.xpose.msra.mxu0 0.0
    %1388 = vmatprep.subr.mxu0 0.0
    %1389 = vmatpush1.xpose.msra.mxu0 0.0
    %1390 = vmatprep.subr.mxu0 0.0
    %1391 = vmatpush1.xpose.msra.mxu0 0.0
    %1392 = vmatprep.subr.mxu0 0.0
    %1393 = vmatpush1.xpose.msra.mxu0 0.0
    %1394 = vmatprep.subr.mxu0 0.0
    %1395 = vmatpush1.xpose.msra.mxu0 0.0
    %1396 = vmatprep.subr.mxu0 0.0
    %1397 = vmatpush1.xpose.msra.mxu0 0.0
    %1398 = vmatprep.subr.mxu0 0.0
    %1399 = vmatpush1.xpose.msra.mxu0 0.0
    %1400 = vmatprep.subr.mxu0 0.0
    %1401 = vmatpush1.xpose.msra.mxu0 0.0
    %1402 = vmatprep.subr.mxu0 0.0
    %1403 = vmatpush1.xpose.msra.mxu0 0.0
    %1404 = vmatprep.subr.mxu0 0.0
    %1405 = vmatpush1.xpose.msra.mxu0 0.0
    %1406 = vmatprep.subr.mxu0 0.0
    %1407 = vmatpush1.xpose.msra.mxu0 0.0
    %1408 = vmatprep.subr.mxu0 0.0
    %1409 = vmatpush1.xpose.msra.mxu0 0.0
    %1410 = vmatprep.subr.mxu0 0.0
    %1411 = vmatpush1.xpose.msra.mxu0 0.0
    %1412 = vmatprep.subr.mxu0 0.0
    %1413 = vmatpush1.xpose.msra.mxu0 0.0
    %1414 = vmatprep.subr.mxu0 0.0
    %1415 = vmatpush1.xpose.msra.mxu0 0.0
    %1416 = vmatprep.subr.mxu0 0.0
    %1417 = vmatpush1.xpose.msra.mxu0 0.0
    %1418 = vmatprep.subr.mxu0 0.0
    %1419 = vmatpush1.xpose.msra.mxu0 0.0
    %1420 = vmatprep.subr.mxu0 0.0
    %1421 = vmatpush1.xpose.msra.mxu0 0.0
    %1422 = vmatprep.subr.mxu0 0.0
    %1423 = vmatpush1.xpose.msra.mxu0 0.0
    %1424 = vmatprep.subr.mxu0 0.0
    %1425 = vmatpush1.xpose.msra.mxu0 0.0
    %1426 = vmatprep.subr.mxu0 0.0
    %1427 = vmatpush1.xpose.msra.mxu0 0.0
    %1428 = vmatprep.subr.mxu0 0.0
    %1429 = vmatpush1.xpose.msra.mxu0 0.0
    %1430 = vmatprep.subr.mxu0 0.0
    %1431 = vmatpush1.xpose.msra.mxu0 0.0
    %1432 = vmatprep.subr.mxu0 0.0
    %1433 = vmatpush1.xpose.msra.mxu0 0.0
    %1434 = vmatprep.subr.mxu0 0.0
    %1435 = vmatpush1.xpose.msra.mxu0 0.0
    %1436 = vmatprep.subr.mxu0 0.0
    %1437 = vmatpush1.xpose.msra.mxu0 0.0
    %1438 = vmatprep.subr.mxu0 0.0
    %1439 = vmatpush1.xpose.msra.mxu0 0.0
    %1440 = vmatprep.subr.mxu0 0.0
    %1441 = vmatpush1.xpose.msra.mxu0 0.0
    %1442 = vmatprep.subr.mxu0 0.0
    %1443 = vmatpush1.xpose.msra.mxu0 0.0
    %1444 = vmatprep.subr.mxu0 0.0
    %1445 = vmatpush1.xpose.msra.mxu0 0.0
    %1446 = vmatprep.mubr.f32.mxu0 0.0
    %1447 = vmatmul.mubr.f32.gmra.mrb[0].mxu0 %v1377
    %v1448 = vpop.f32.mrb[0].mxu0
    %v1449 = vadd.f32 0.0, %v1448
    %v1450 = vpop.f32.mrb[0].mxu0
    %1451 = vdwg.mxu0
    %v1453 = vsel %vm1223, %v364, 0
    %v1456 = vsel %vm1223, %v940, 0
    %1458 = vmatprep.subr.mxu0 0.0
    %1459 = vmatpush1.xpose.msra.mxu0 %v1456
    %1460 = vmatprep.subr.mxu0 0.0
    %1461 = vmatpush1.xpose.msra.mxu0 0.0
    %1462 = vmatprep.subr.mxu0 0.0
    %1463 = vmatpush1.xpose.msra.mxu0 0.0
    %1464 = vmatprep.subr.mxu0 0.0
    %1465 = vmatpush1.xpose.msra.mxu0 0.0
    %1466 = vmatprep.subr.mxu0 0.0
    %1467 = vmatpush1.xpose.msra.mxu0 0.0
    %1468 = vmatprep.subr.mxu0 0.0
    %1469 = vmatpush1.xpose.msra.mxu0 0.0
    %1470 = vmatprep.subr.mxu0 0.0
    %1471 = vmatpush1.xpose.msra.mxu0 0.0
    %1472 = vmatprep.subr.mxu0 0.0
    %1473 = vmatpush1.xpose.msra.mxu0 0.0
    %1474 = vmatprep.subr.mxu0 0.0
    %1475 = vmatpush1.xpose.msra.mxu0 0.0
    %1476 = vmatprep.subr.mxu0 0.0
    %1477 = vmatpush1.xpose.msra.mxu0 0.0
    %1478 = vmatprep.subr.mxu0 0.0
    %1479 = vmatpush1.xpose.msra.mxu0 0.0
    %1480 = vmatprep.subr.mxu0 0.0
    %1481 = vmatpush1.xpose.msra.mxu0 0.0
    %1482 = vmatprep.subr.mxu0 0.0
    %1483 = vmatpush1.xpose.msra.mxu0 0.0
    %1484 = vmatprep.subr.mxu0 0.0
    %1485 = vmatpush1.xpose.msra.mxu0 0.0
    %1486 = vmatprep.subr.mxu0 0.0
    %1487 = vmatpush1.xpose.msra.mxu0 0.0
    %1488 = vmatprep.subr.mxu0 0.0
    %1489 = vmatpush1.xpose.msra.mxu0 0.0
    %1490 = vmatprep.subr.mxu0 0.0
    %1491 = vmatpush1.xpose.msra.mxu0 0.0
    %1492 = vmatprep.subr.mxu0 0.0
    %1493 = vmatpush1.xpose.msra.mxu0 0.0
    %1494 = vmatprep.subr.mxu0 0.0
    %1495 = vmatpush1.xpose.msra.mxu0 0.0
    %1496 = vmatprep.subr.mxu0 0.0
    %1497 = vmatpush1.xpose.msra.mxu0 0.0
    %1498 = vmatprep.subr.mxu0 0.0
    %1499 = vmatpush1.xpose.msra.mxu0 0.0
    %1500 = vmatprep.subr.mxu0 0.0
    %1501 = vmatpush1.xpose.msra.mxu0 0.0
    %1502 = vmatprep.subr.mxu0 0.0
    %1503 = vmatpush1.xpose.msra.mxu0 0.0
    %1504 = vmatprep.subr.mxu0 0.0
    %1505 = vmatpush1.xpose.msra.mxu0 0.0
    %1506 = vmatprep.subr.mxu0 0.0
    %1507 = vmatpush1.xpose.msra.mxu0 0.0
    %1508 = vmatprep.subr.mxu0 0.0
    %1509 = vmatpush1.xpose.msra.mxu0 0.0
    %1510 = vmatprep.subr.mxu0 0.0
    %1511 = vmatpush1.xpose.msra.mxu0 0.0
    %1512 = vmatprep.subr.mxu0 0.0
    %1513 = vmatpush1.xpose.msra.mxu0 0.0
    %1514 = vmatprep.subr.mxu0 0.0
    %1515 = vmatpush1.xpose.msra.mxu0 0.0
    %1516 = vmatprep.subr.mxu0 0.0
    %1517 = vmatpush1.xpose.msra.mxu0 0.0
    %1518 = vmatprep.subr.mxu0 0.0
    %1519 = vmatpush1.xpose.msra.mxu0 0.0
    %1520 = vmatprep.subr.mxu0 0.0
    %1521 = vmatpush1.xpose.msra.mxu0 0.0
    %1522 = vmatprep.mubr.f32.mxu0 0.0
    %1523 = vmatmul.mubr.f32.gmra.mrb[0].mxu0 %v1453
    %v1524 = vpop.f32.mrb[0].mxu0
    %v1525 = vadd.f32 0.0, %v1524
    %v1526 = vpop.f32.mrb[0].mxu0
    %1527 = vdwg.mxu0
    %v1529 = vsel %vm1223, %v434, 0
    %v1532 = vsel %vm1223, %v1010, 0
    %1534 = vmatprep.subr.mxu0 0.0
    %1535 = vmatpush1.xpose.msra.mxu0 %v1532
    %1536 = vmatprep.subr.mxu0 0.0
    %1537 = vmatpush1.xpose.msra.mxu0 0.0
    %1538 = vmatprep.subr.mxu0 0.0
    %1539 = vmatpush1.xpose.msra.mxu0 0.0
    %1540 = vmatprep.subr.mxu0 0.0
    %1541 = vmatpush1.xpose.msra.mxu0 0.0
    %1542 = vmatprep.subr.mxu0 0.0
    %1543 = vmatpush1.xpose.msra.mxu0 0.0
    %1544 = vmatprep.subr.mxu0 0.0
    %1545 = vmatpush1.xpose.msra.mxu0 0.0
    %1546 = vmatprep.subr.mxu0 0.0
    %1547 = vmatpush1.xpose.msra.mxu0 0.0
    %1548 = vmatprep.subr.mxu0 0.0
    %1549 = vmatpush1.xpose.msra.mxu0 0.0
    %1550 = vmatprep.subr.mxu0 0.0
    %1551 = vmatpush1.xpose.msra.mxu0 0.0
    %1552 = vmatprep.subr.mxu0 0.0
    %1553 = vmatpush1.xpose.msra.mxu0 0.0
    %1554 = vmatprep.subr.mxu0 0.0
    %1555 = vmatpush1.xpose.msra.mxu0 0.0
    %1556 = vmatprep.subr.mxu0 0.0
    %1557 = vmatpush1.xpose.msra.mxu0 0.0
    %1558 = vmatprep.subr.mxu0 0.0
    %1559 = vmatpush1.xpose.msra.mxu0 0.0
    %1560 = vmatprep.subr.mxu0 0.0
    %1561 = vmatpush1.xpose.msra.mxu0 0.0
    %1562 = vmatprep.subr.mxu0 0.0
    %1563 = vmatpush1.xpose.msra.mxu0 0.0
    %1564 = vmatprep.subr.mxu0 0.0
    %1565 = vmatpush1.xpose.msra.mxu0 0.0
    %1566 = vmatprep.subr.mxu0 0.0
    %1567 = vmatpush1.xpose.msra.mxu0 0.0
    %1568 = vmatprep.subr.mxu0 0.0
    %1569 = vmatpush1.xpose.msra.mxu0 0.0
    %1570 = vmatprep.subr.mxu0 0.0
    %1571 = vmatpush1.xpose.msra.mxu0 0.0
    %1572 = vmatprep.subr.mxu0 0.0
    %1573 = vmatpush1.xpose.msra.mxu0 0.0
    %1574 = vmatprep.subr.mxu0 0.0
    %1575 = vmatpush1.xpose.msra.mxu0 0.0
    %1576 = vmatprep.subr.mxu0 0.0
    %1577 = vmatpush1.xpose.msra.mxu0 0.0
    %1578 = vmatprep.subr.mxu0 0.0
    %1579 = vmatpush1.xpose.msra.mxu0 0.0
    %1580 = vmatprep.subr.mxu0 0.0
    %1581 = vmatpush1.xpose.msra.mxu0 0.0
    %1582 = vmatprep.subr.mxu0 0.0
    %1583 = vmatpush1.xpose.msra.mxu0 0.0
    %1584 = vmatprep.subr.mxu0 0.0
    %1585 = vmatpush1.xpose.msra.mxu0 0.0
    %1586 = vmatprep.subr.mxu0 0.0
    %1587 = vmatpush1.xpose.msra.mxu0 0.0
    %1588 = vmatprep.subr.mxu0 0.0
    %1589 = vmatpush1.xpose.msra.mxu0 0.0
    %1590 = vmatprep.subr.mxu0 0.0
    %1591 = vmatpush1.xpose.msra.mxu0 0.0
    %1592 = vmatprep.subr.mxu0 0.0
    %1593 = vmatpush1.xpose.msra.mxu0 0.0
    %1594 = vmatprep.subr.mxu0 0.0
    %1595 = vmatpush1.xpose.msra.mxu0 0.0
    %1596 = vmatprep.subr.mxu0 0.0
    %1597 = vmatpush1.xpose.msra.mxu0 0.0
    %1598 = vmatprep.mubr.f32.mxu0 0.0
    %1599 = vmatmul.mubr.f32.gmra.mrb[0].mxu0 %v1529
    %v1600 = vpop.f32.mrb[0].mxu0
    %v1601 = vadd.f32 0.0, %v1600
    %v1602 = vpop.f32.mrb[0].mxu0
    %1603 = vdwg.mxu0
    %v1605 = vsel %vm1223, %v504, 0
    %v1608 = vsel %vm1223, %v1080, 0
    %1610 = vmatprep.subr.mxu0 0.0
    %1611 = vmatpush1.xpose.msra.mxu0 %v1608
    %1612 = vmatprep.subr.mxu0 0.0
    %1613 = vmatpush1.xpose.msra.mxu0 0.0
    %1614 = vmatprep.subr.mxu0 0.0
    %1615 = vmatpush1.xpose.msra.mxu0 0.0
    %1616 = vmatprep.subr.mxu0 0.0
    %1617 = vmatpush1.xpose.msra.mxu0 0.0
    %1618 = vmatprep.subr.mxu0 0.0
    %1619 = vmatpush1.xpose.msra.mxu0 0.0
    %1620 = vmatprep.subr.mxu0 0.0
    %1621 = vmatpush1.xpose.msra.mxu0 0.0
    %1622 = vmatprep.subr.mxu0 0.0
    %1623 = vmatpush1.xpose.msra.mxu0 0.0
    %1624 = vmatprep.subr.mxu0 0.0
    %1625 = vmatpush1.xpose.msra.mxu0 0.0
    %1626 = vmatprep.subr.mxu0 0.0
    %1627 = vmatpush1.xpose.msra.mxu0 0.0
    %1628 = vmatprep.subr.mxu0 0.0
    %1629 = vmatpush1.xpose.msra.mxu0 0.0
    %1630 = vmatprep.subr.mxu0 0.0
    %1631 = vmatpush1.xpose.msra.mxu0 0.0
    %1632 = vmatprep.subr.mxu0 0.0
    %1633 = vmatpush1.xpose.msra.mxu0 0.0
    %1634 = vmatprep.subr.mxu0 0.0
    %1635 = vmatpush1.xpose.msra.mxu0 0.0
    %1636 = vmatprep.subr.mxu0 0.0
    %1637 = vmatpush1.xpose.msra.mxu0 0.0
    %1638 = vmatprep.subr.mxu0 0.0
    %1639 = vmatpush1.xpose.msra.mxu0 0.0
    %1640 = vmatprep.subr.mxu0 0.0
    %1641 = vmatpush1.xpose.msra.mxu0 0.0
    %1642 = vmatprep.subr.mxu0 0.0
    %1643 = vmatpush1.xpose.msra.mxu0 0.0
    %1644 = vmatprep.subr.mxu0 0.0
    %1645 = vmatpush1.xpose.msra.mxu0 0.0
    %1646 = vmatprep.subr.mxu0 0.0
    %1647 = vmatpush1.xpose.msra.mxu0 0.0
    %1648 = vmatprep.subr.mxu0 0.0
    %1649 = vmatpush1.xpose.msra.mxu0 0.0
    %1650 = vmatprep.subr.mxu0 0.0
    %1651 = vmatpush1.xpose.msra.mxu0 0.0
    %1652 = vmatprep.subr.mxu0 0.0
    %1653 = vmatpush1.xpose.msra.mxu0 0.0
    %1654 = vmatprep.subr.mxu0 0.0
    %1655 = vmatpush1.xpose.msra.mxu0 0.0
    %1656 = vmatprep.subr.mxu0 0.0
    %1657 = vmatpush1.xpose.msra.mxu0 0.0
    %1658 = vmatprep.subr.mxu0 0.0
    %1659 = vmatpush1.xpose.msra.mxu0 0.0
    %1660 = vmatprep.subr.mxu0 0.0
    %1661 = vmatpush1.xpose.msra.mxu0 0.0
    %1662 = vmatprep.subr.mxu0 0.0
    %1663 = vmatpush1.xpose.msra.mxu0 0.0
    %1664 = vmatprep.subr.mxu0 0.0
    %1665 = vmatpush1.xpose.msra.mxu0 0.0
    %1666 = vmatprep.subr.mxu0 0.0
    %1667 = vmatpush1.xpose.msra.mxu0 0.0
    %1668 = vmatprep.subr.mxu0 0.0
    %1669 = vmatpush1.xpose.msra.mxu0 0.0
    %1670 = vmatprep.subr.mxu0 0.0
    %1671 = vmatpush1.xpose.msra.mxu0 0.0
    %1672 = vmatprep.subr.mxu0 0.0
    %1673 = vmatpush1.xpose.msra.mxu0 0.0
    %1674 = vmatprep.mubr.f32.mxu0 0.0
    %1675 = vmatmul.mubr.f32.gmra.mrb[0].mxu0 %v1605
    %v1676 = vpop.f32.mrb[0].mxu0
    %v1677 = vadd.f32 0.0, %v1676
    %v1678 = vpop.f32.mrb[0].mxu0
    %1679 = vdwg.mxu0
    %v1681 = vsel %vm1223, %v574, 0
    %v1684 = vsel %vm1223, %v1150, 0
    %1686 = vmatprep.subr.mxu0 0.0
    %1687 = vmatpush1.xpose.msra.mxu0 %v1684
    %1688 = vmatprep.subr.mxu0 0.0
    %1689 = vmatpush1.xpose.msra.mxu0 0.0
    %1690 = vmatprep.subr.mxu0 0.0
    %1691 = vmatpush1.xpose.msra.mxu0 0.0
    %1692 = vmatprep.subr.mxu0 0.0
    %1693 = vmatpush1.xpose.msra.mxu0 0.0
    %1694 = vmatprep.subr.mxu0 0.0
    %1695 = vmatpush1.xpose.msra.mxu0 0.0
    %1696 = vmatprep.subr.mxu0 0.0
    %1697 = vmatpush1.xpose.msra.mxu0 0.0
    %1698 = vmatprep.subr.mxu0 0.0
    %1699 = vmatpush1.xpose.msra.mxu0 0.0
    %1700 = vmatprep.subr.mxu0 0.0
    %1701 = vmatpush1.xpose.msra.mxu0 0.0
    %1702 = vmatprep.subr.mxu0 0.0
    %1703 = vmatpush1.xpose.msra.mxu0 0.0
    %1704 = vmatprep.subr.mxu0 0.0
    %1705 = vmatpush1.xpose.msra.mxu0 0.0
    %1706 = vmatprep.subr.mxu0 0.0
    %1707 = vmatpush1.xpose.msra.mxu0 0.0
    %1708 = vmatprep.subr.mxu0 0.0
    %1709 = vmatpush1.xpose.msra.mxu0 0.0
    %1710 = vmatprep.subr.mxu0 0.0
    %1711 = vmatpush1.xpose.msra.mxu0 0.0
    %1712 = vmatprep.subr.mxu0 0.0
    %1713 = vmatpush1.xpose.msra.mxu0 0.0
    %1714 = vmatprep.subr.mxu0 0.0
    %1715 = vmatpush1.xpose.msra.mxu0 0.0
    %1716 = vmatprep.subr.mxu0 0.0
    %1717 = vmatpush1.xpose.msra.mxu0 0.0
    %1718 = vmatprep.subr.mxu0 0.0
    %1719 = vmatpush1.xpose.msra.mxu0 0.0
    %1720 = vmatprep.subr.mxu0 0.0
    %1721 = vmatpush1.xpose.msra.mxu0 0.0
    %1722 = vmatprep.subr.mxu0 0.0
    %1723 = vmatpush1.xpose.msra.mxu0 0.0
    %1724 = vmatprep.subr.mxu0 0.0
    %1725 = vmatpush1.xpose.msra.mxu0 0.0
    %1726 = vmatprep.subr.mxu0 0.0
    %1727 = vmatpush1.xpose.msra.mxu0 0.0
    %1728 = vmatprep.subr.mxu0 0.0
    %1729 = vmatpush1.xpose.msra.mxu0 0.0
    %1730 = vmatprep.subr.mxu0 0.0
    %1731 = vmatpush1.xpose.msra.mxu0 0.0
    %1732 = vmatprep.subr.mxu0 0.0
    %1733 = vmatpush1.xpose.msra.mxu0 0.0
    %1734 = vmatprep.subr.mxu0 0.0
    %1735 = vmatpush1.xpose.msra.mxu0 0.0
    %1736 = vmatprep.subr.mxu0 0.0
    %1737 = vmatpush1.xpose.msra.mxu0 0.0
    %1738 = vmatprep.subr.mxu0 0.0
    %1739 = vmatpush1.xpose.msra.mxu0 0.0
    %1740 = vmatprep.subr.mxu0 0.0
    %1741 = vmatpush1.xpose.msra.mxu0 0.0
    %1742 = vmatprep.subr.mxu0 0.0
    %1743 = vmatpush1.xpose.msra.mxu0 0.0
    %1744 = vmatprep.subr.mxu0 0.0
    %1745 = vmatpush1.xpose.msra.mxu0 0.0
    %1746 = vmatprep.subr.mxu0 0.0
    %1747 = vmatpush1.xpose.msra.mxu0 0.0
    %1748 = vmatprep.subr.mxu0 0.0
    %1749 = vmatpush1.xpose.msra.mxu0 0.0
    %1750 = vmatprep.mubr.f32.mxu0 0.0
    %1751 = vmatmul.mubr.f32.gmra.mrb[0].mxu0 %v1681
    %v1752 = vpop.f32.mrb[0].mxu0
    %v1753 = vadd.f32 0.0, %v1752
    %v1754 = vpop.f32.mrb[0].mxu0
    %1755 = vdwg.mxu0
    %v1757 = vsel %vm1223, %v644, 0
    %v1760 = vsel %vm1223, %v1220, 0
    %1762 = vmatprep.subr.mxu0 0.0
    %1763 = vmatpush1.xpose.msra.mxu0 %v1760
    %1764 = vmatprep.subr.mxu0 0.0
    %1765 = vmatpush1.xpose.msra.mxu0 0.0
    %1766 = vmatprep.subr.mxu0 0.0
    %1767 = vmatpush1.xpose.msra.mxu0 0.0
    %1768 = vmatprep.subr.mxu0 0.0
    %1769 = vmatpush1.xpose.msra.mxu0 0.0
    %1770 = vmatprep.subr.mxu0 0.0
    %1771 = vmatpush1.xpose.msra.mxu0 0.0
    %1772 = vmatprep.subr.mxu0 0.0
    %1773 = vmatpush1.xpose.msra.mxu0 0.0
    %1774 = vmatprep.subr.mxu0 0.0
    %1775 = vmatpush1.xpose.msra.mxu0 0.0
    %1776 = vmatprep.subr.mxu0 0.0
    %1777 = vmatpush1.xpose.msra.mxu0 0.0
    %1778 = vmatprep.subr.mxu0 0.0
    %1779 = vmatpush1.xpose.msra.mxu0 0.0
    %1780 = vmatprep.subr.mxu0 0.0
    %1781 = vmatpush1.xpose.msra.mxu0 0.0
    %1782 = vmatprep.subr.mxu0 0.0
    %1783 = vmatpush1.xpose.msra.mxu0 0.0
    %1784 = vmatprep.subr.mxu0 0.0
    %1785 = vmatpush1.xpose.msra.mxu0 0.0
    %1786 = vmatprep.subr.mxu0 0.0
    %1787 = vmatpush1.xpose.msra.mxu0 0.0
    %1788 = vmatprep.subr.mxu0 0.0
    %1789 = vmatpush1.xpose.msra.mxu0 0.0
    %1790 = vmatprep.subr.mxu0 0.0
    %1791 = vmatpush1.xpose.msra.mxu0 0.0
    %1792 = vmatprep.subr.mxu0 0.0
    %1793 = vmatpush1.xpose.msra.mxu0 0.0
    %1794 = vmatprep.subr.mxu0 0.0
    %1795 = vmatpush1.xpose.msra.mxu0 0.0
    %1796 = vmatprep.subr.mxu0 0.0
    %1797 = vmatpush1.xpose.msra.mxu0 0.0
    %1798 = vmatprep.subr.mxu0 0.0
    %1799 = vmatpush1.xpose.msra.mxu0 0.0
    %1800 = vmatprep.subr.mxu0 0.0
    %1801 = vmatpush1.xpose.msra.mxu0 0.0
    %1802 = vmatprep.subr.mxu0 0.0
    %1803 = vmatpush1.xpose.msra.mxu0 0.0
    %1804 = vmatprep.subr.mxu0 0.0
    %1805 = vmatpush1.xpose.msra.mxu0 0.0
    %1806 = vmatprep.subr.mxu0 0.0
    %1807 = vmatpush1.xpose.msra.mxu0 0.0
    %1808 = vmatprep.subr.mxu0 0.0
    %1809 = vmatpush1.xpose.msra.mxu0 0.0
    %1810 = vmatprep.subr.mxu0 0.0
    %1811 = vmatpush1.xpose.msra.mxu0 0.0
    %1812 = vmatprep.subr.mxu0 0.0
    %1813 = vmatpush1.xpose.msra.mxu0 0.0
    %1814 = vmatprep.subr.mxu0 0.0
    %1815 = vmatpush1.xpose.msra.mxu0 0.0
    %1816 = vmatprep.subr.mxu0 0.0
    %1817 = vmatpush1.xpose.msra.mxu0 0.0
    %1818 = vmatprep.subr.mxu0 0.0
    %1819 = vmatpush1.xpose.msra.mxu0 0.0
    %1820 = vmatprep.subr.mxu0 0.0
    %1821 = vmatpush1.xpose.msra.mxu0 0.0
    %1822 = vmatprep.subr.mxu0 0.0
    %1823 = vmatpush1.xpose.msra.mxu0 0.0
    %1824 = vmatprep.subr.mxu0 0.0
    %1825 = vmatpush1.xpose.msra.mxu0 0.0
    %1826 = vmatprep.mubr.f32.mxu0 0.0
    %1827 = vmatmul.mubr.f32.gmra.mrb[0].mxu0 %v1757
    %v1828 = vpop.f32.mrb[0].mxu0
    %v1829 = vadd.f32 0.0, %v1828
    %v1830 = vpop.f32.mrb[0].mxu0
    %1831 = vdwg.mxu0
    %v1832 = vmul.f32 %v1297, 0.011048543
    %v1833 = vmul.f32 %v1373, 0.011048543
    %v1834 = vmul.f32 %v1449, 0.011048543
    %v1835 = vmul.f32 %v1525, 0.011048543
    %v1836 = vmul.f32 %v1601, 0.011048543
    %v1837 = vmul.f32 %v1677, 0.011048543
    %v1838 = vmul.f32 %v1753, 0.011048543
    %v1839 = vmul.f32 %v1829, 0.011048543
    %v1840 = vmax.f32 %v1832, 0.0
    %v1841 = vmax.f32 %v1833, 0.0
    %v1842 = vmax.f32 %v1834, 0.0
    %v1843 = vmax.f32 %v1835, 0.0
    %v1844 = vmax.f32 %v1836, 0.0
    %v1845 = vmax.f32 %v1837, 0.0
    %v1846 = vmax.f32 %v1838, 0.0
    %v1847 = vmax.f32 %v1839, 0.0
    %v1848 = vld [vmem:[#allocation7] sm:$0xf]
    %v1849 = vld [vmem:[#allocation7 + $0x4] sm:$0xf]
    %v1850 = vld [vmem:[#allocation7 + $0x8] sm:$0xf]
    %v1851 = vld [vmem:[#allocation7 + $0xc] sm:$0xf]
    %v1852 = vld [vmem:[#allocation7 + $0x10] sm:$0xf]
    %v1853 = vld [vmem:[#allocation7 + $0x14] sm:$0xf]
    %v1854 = vld [vmem:[#allocation7 + $0x18] sm:$0xf]
    %v1855 = vld [vmem:[#allocation7 + $0x1c] sm:$0xf]
    %v1856 = vadd.f32 %v1848, 1e-06
    %v1857 = vadd.f32 %v1849, 1e-06
    %v1858 = vadd.f32 %v1850, 1e-06
    %v1859 = vadd.f32 %v1851, 1e-06
    %v1860 = vadd.f32 %v1852, 1e-06
    %v1861 = vadd.f32 %v1853, 1e-06
    %v1862 = vadd.f32 %v1854, 1e-06
    %v1863 = vadd.f32 %v1855, 1e-06
    %v1864 = vlog2.pop %v1856
    %v1865 = vmul.f32 %v1864, 0.6931472
    %v1866 = vlog2.pop %v1857
    %v1867 = vmul.f32 %v1866, 0.6931472
    %v1868 = vlog2.pop %v1858
    %v1869 = vmul.f32 %v1868, 0.6931472
    %v1870 = vlog2.pop %v1859
    %v1871 = vmul.f32 %v1870, 0.6931472
    %v1872 = vlog2.pop %v1860
    %v1873 = vmul.f32 %v1872, 0.6931472
    %v1874 = vlog2.pop %v1861
    %v1875 = vmul.f32 %v1874, 0.6931472
    %v1876 = vlog2.pop %v1862
    %v1877 = vmul.f32 %v1876, 0.6931472
    %v1878 = vlog2.pop %v1863
    %v1879 = vmul.f32 %v1878, 0.6931472
    %v1880 = vsub.f32 0.0, %v1865
    %v1881 = vsub.f32 0.0, %v1867
    %v1882 = vsub.f32 0.0, %v1869
    %v1883 = vsub.f32 0.0, %v1871
    %v1884 = vsub.f32 0.0, %v1873
    %v1885 = vsub.f32 0.0, %v1875
    %v1886 = vsub.f32 0.0, %v1877
    %v1887 = vsub.f32 0.0, %v1879
    %v1888 = vadd.f32 %v1880, 1e-06
    %v1889 = vadd.f32 %v1881, 1e-06
    %v1890 = vadd.f32 %v1882, 1e-06
    %v1891 = vadd.f32 %v1883, 1e-06
    %v1892 = vadd.f32 %v1884, 1e-06
    %v1893 = vadd.f32 %v1885, 1e-06
    %v1894 = vadd.f32 %v1886, 1e-06
    %v1895 = vadd.f32 %v1887, 1e-06
    %v1896 = vlog2.pop %v1888
    %v1897 = vmul.f32 %v1896, 0.6931472
    %v1898 = vlog2.pop %v1889
    %v1899 = vmul.f32 %v1898, 0.6931472
    %v1900 = vlog2.pop %v1890
    %v1901 = vmul.f32 %v1900, 0.6931472
    %v1902 = vlog2.pop %v1891
    %v1903 = vmul.f32 %v1902, 0.6931472
    %v1904 = vlog2.pop %v1892
    %v1905 = vmul.f32 %v1904, 0.6931472
    %v1906 = vlog2.pop %v1893
    %v1907 = vmul.f32 %v1906, 0.6931472
    %v1908 = vlog2.pop %v1894
    %v1909 = vmul.f32 %v1908, 0.6931472
    %v1910 = vlog2.pop %v1895
    %v1911 = vmul.f32 %v1910, 0.6931472
    %v1912 = vsub.f32 0.0, %v1897
    %v1913 = vsub.f32 0.0, %v1899
    %v1914 = vsub.f32 0.0, %v1901
    %v1915 = vsub.f32 0.0, %v1903
    %v1916 = vsub.f32 0.0, %v1905
    %v1917 = vsub.f32 0.0, %v1907
    %v1918 = vsub.f32 0.0, %v1909
    %v1919 = vsub.f32 0.0, %v1911
    %v1920 = vadd.f32 %v1840, 1e-06
    %v1921 = vadd.f32 %v1841, 1e-06
    %v1922 = vadd.f32 %v1842, 1e-06
    %v1923 = vadd.f32 %v1843, 1e-06
    %v1924 = vadd.f32 %v1844, 1e-06
    %v1925 = vadd.f32 %v1845, 1e-06
    %v1926 = vadd.f32 %v1846, 1e-06
    %v1927 = vadd.f32 %v1847, 1e-06
    %v1928 = vlog2.pop %v1920
    %v1929 = vmul.f32 %v1928, 0.6931472
    %v1930 = vlog2.pop %v1921
    %v1931 = vmul.f32 %v1930, 0.6931472
    %v1932 = vlog2.pop %v1922
    %v1933 = vmul.f32 %v1932, 0.6931472
    %v1934 = vlog2.pop %v1923
    %v1935 = vmul.f32 %v1934, 0.6931472
    %v1936 = vlog2.pop %v1924
    %v1937 = vmul.f32 %v1936, 0.6931472
    %v1938 = vlog2.pop %v1925
    %v1939 = vmul.f32 %v1938, 0.6931472
    %v1940 = vlog2.pop %v1926
    %v1941 = vmul.f32 %v1940, 0.6931472
    %v1942 = vlog2.pop %v1927
    %v1943 = vmul.f32 %v1942, 0.6931472
    %v1944 = vadd.f32 %v1929, %v1912
    %v1945 = vadd.f32 %v1931, %v1913
    %v1946 = vadd.f32 %v1933, %v1914
    %v1947 = vadd.f32 %v1935, %v1915
    %v1948 = vadd.f32 %v1937, %v1916
    %v1949 = vadd.f32 %v1939, %v1917
    %v1950 = vadd.f32 %v1941, %v1918
    %v1951 = vadd.f32 %v1943, %v1919
    %v1952 = vmul.f32 %v1944, 1.4285715
    %v1953 = vmul.f32 %v1945, 1.4285715
    %v1954 = vmul.f32 %v1946, 1.4285715
    %v1955 = vmul.f32 %v1947, 1.4285715
    %v1956 = vmul.f32 %v1948, 1.4285715
    %v1957 = vmul.f32 %v1949, 1.4285715
    %v1958 = vmul.f32 %v1950, 1.4285715
    %v1959 = vmul.f32 %v1951, 1.4285715
    %vm1960 = vcmask 27648
    %v1961 = vsel %vm1960, %v1952, -inf
    %1962 = vmax.xlane.f32.xlu0 %v1961
    %v1963 = vpop.xlane.xlu0 %1962
    %v1964 = vsel %vm1960, %v1953, -inf
    %1965 = vmax.xlane.f32.xlu0 %v1964
    %v1966 = vpop.xlane.xlu0 %1965
    %v1967 = vsel %vm1960, %v1954, -inf
    %1968 = vmax.xlane.f32.xlu0 %v1967
    %v1969 = vpop.xlane.xlu0 %1968
    %v1970 = vsel %vm1960, %v1955, -inf
    %1971 = vmax.xlane.f32.xlu0 %v1970
    %v1972 = vpop.xlane.xlu0 %1971
    %v1973 = vsel %vm1960, %v1956, -inf
    %1974 = vmax.xlane.f32.xlu0 %v1973
    %v1975 = vpop.xlane.xlu0 %1974
    %v1976 = vsel %vm1960, %v1957, -inf
    %1977 = vmax.xlane.f32.xlu0 %v1976
    %v1978 = vpop.xlane.xlu0 %1977
    %v1979 = vsel %vm1960, %v1958, -inf
    %1980 = vmax.xlane.f32.xlu0 %v1979
    %v1981 = vpop.xlane.xlu0 %1980
    %v1982 = vsel %vm1960, %v1959, -inf
    %1983 = vmax.xlane.f32.xlu0 %v1982
    %v1984 = vpop.xlane.xlu0 %1983
    %v1985 = vsub.f32 %v1952, %v1963
    %v1986 = vsub.f32 %v1953, %v1966
    %v1987 = vsub.f32 %v1954, %v1969
    %v1988 = vsub.f32 %v1955, %v1972
    %v1989 = vsub.f32 %v1956, %v1975
    %v1990 = vsub.f32 %v1957, %v1978
    %v1991 = vsub.f32 %v1958, %v1981
    %v1992 = vsub.f32 %v1959, %v1984
    %v1993 = vmul.f32 %v1985, 1.442695
    %v1994 = vpow.pop %v1993
    %v1995 = vmul.f32 %v1986, 1.442695
    %v1996 = vpow.pop %v1995
    %v1997 = vmul.f32 %v1987, 1.442695
    %v1998 = vpow.pop %v1997
    %v1999 = vmul.f32 %v1988, 1.442695
    %v2000 = vpow.pop %v1999
    %v2001 = vmul.f32 %v1989, 1.442695
    %v2002 = vpow.pop %v2001
    %v2003 = vmul.f32 %v1990, 1.442695
    %v2004 = vpow.pop %v2003
    %v2005 = vmul.f32 %v1991, 1.442695
    %v2006 = vpow.pop %v2005
    %v2007 = vmul.f32 %v1992, 1.442695
    %v2008 = vpow.pop %v2007
    %v2009 = vsel %vm1960, %v1994, 0.0
    %2010 = vadd.xlane.f32.xlu0 %v2009
    %v2011 = vpop.xlane.xlu0 %2010
    %v2012 = vsel %vm1960, %v1996, 0.0
    %2013 = vadd.xlane.f32.xlu0 %v2012
    %v2014 = vpop.xlane.xlu0 %2013
    %v2015 = vsel %vm1960, %v1998, 0.0
    %2016 = vadd.xlane.f32.xlu0 %v2015
    %v2017 = vpop.xlane.xlu0 %2016
    %v2018 = vsel %vm1960, %v2000, 0.0
    %2019 = vadd.xlane.f32.xlu0 %v2018
    %v2020 = vpop.xlane.xlu0 %2019
    %v2021 = vsel %vm1960, %v2002, 0.0
    %2022 = vadd.xlane.f32.xlu0 %v2021
    %v2023 = vpop.xlane.xlu0 %2022
    %v2024 = vsel %vm1960, %v2004, 0.0
    %2025 = vadd.xlane.f32.xlu0 %v2024
    %v2026 = vpop.xlane.xlu0 %2025
    %v2027 = vsel %vm1960, %v2006, 0.0
    %2028 = vadd.xlane.f32.xlu0 %v2027
    %v2029 = vpop.xlane.xlu0 %2028
    %v2030 = vsel %vm1960, %v2008, 0.0
    %2031 = vadd.xlane.f32.xlu0 %v2030
    %v2032 = vpop.xlane.xlu0 %2031
    %v2033 = vlog2.pop %v2011
    %v2034 = vmul.f32 %v2033, 0.6931472
    %v2035 = vlog2.pop %v2014
    %v2036 = vmul.f32 %v2035, 0.6931472
    %v2037 = vlog2.pop %v2017
    %v2038 = vmul.f32 %v2037, 0.6931472
    %v2039 = vlog2.pop %v2020
    %v2040 = vmul.f32 %v2039, 0.6931472
    %v2041 = vlog2.pop %v2023
    %v2042 = vmul.f32 %v2041, 0.6931472
    %v2043 = vlog2.pop %v2026
    %v2044 = vmul.f32 %v2043, 0.6931472
    %v2045 = vlog2.pop %v2029
    %v2046 = vmul.f32 %v2045, 0.6931472
    %v2047 = vlog2.pop %v2032
    %v2048 = vmul.f32 %v2047, 0.6931472
    %v2049 = vadd.f32 %v1963, %v2034
    %v2050 = vadd.f32 %v1966, %v2036
    %v2051 = vadd.f32 %v1969, %v2038
    %v2052 = vadd.f32 %v1972, %v2040
    %v2053 = vadd.f32 %v1975, %v2042
    %v2054 = vadd.f32 %v1978, %v2044
    %v2055 = vadd.f32 %v1981, %v2046
    %v2056 = vadd.f32 %v1984, %v2048
    %v2057 = vsub.f32 %v1952, %v2049
    %v2058 = vsub.f32 %v1953, %v2050
    %v2059 = vsub.f32 %v1954, %v2051
    %v2060 = vsub.f32 %v1955, %v2052
    %v2061 = vsub.f32 %v1956, %v2053
    %v2062 = vsub.f32 %v1957, %v2054
    %v2063 = vsub.f32 %v1958, %v2055
    %v2064 = vsub.f32 %v1959, %v2056
    %v2065 = vsel %vm1960, %v2057, -inf
    %v2066 = vrot.slane %v2065, 4
    %v2067 = vmax.f32 %v2065, %v2066
    %v2068 = vrot.slane %v2067, 2
    %v2069 = vmax.f32 %v2067, %v2068
    %v2070 = vrot.slane %v2069, 1
    %v2071 = vmax.f32 %v2069, %v2070
    %v2072 = vsel %vm1960, %v2058, -inf
    %v2073 = vrot.slane %v2072, 4
    %v2074 = vmax.f32 %v2072, %v2073
    %v2075 = vrot.slane %v2074, 2
    %v2076 = vmax.f32 %v2074, %v2075
    %v2077 = vrot.slane %v2076, 1
    %v2078 = vmax.f32 %v2076, %v2077
    %v2079 = vsel %vm1960, %v2059, -inf
    %v2080 = vrot.slane %v2079, 4
    %v2081 = vmax.f32 %v2079, %v2080
    %v2082 = vrot.slane %v2081, 2
    %v2083 = vmax.f32 %v2081, %v2082
    %v2084 = vrot.slane %v2083, 1
    %v2085 = vmax.f32 %v2083, %v2084
    %v2086 = vsel %vm1960, %v2060, -inf
    %v2087 = vrot.slane %v2086, 4
    %v2088 = vmax.f32 %v2086, %v2087
    %v2089 = vrot.slane %v2088, 2
    %v2090 = vmax.f32 %v2088, %v2089
    %v2091 = vrot.slane %v2090, 1
    %v2092 = vmax.f32 %v2090, %v2091
    %v2093 = vsel %vm1960, %v2061, -inf
    %v2094 = vrot.slane %v2093, 4
    %v2095 = vmax.f32 %v2093, %v2094
    %v2096 = vrot.slane %v2095, 2
    %v2097 = vmax.f32 %v2095, %v2096
    %v2098 = vrot.slane %v2097, 1
    %v2099 = vmax.f32 %v2097, %v2098
    %v2100 = vsel %vm1960, %v2062, -inf
    %v2101 = vrot.slane %v2100, 4
    %v2102 = vmax.f32 %v2100, %v2101
    %v2103 = vrot.slane %v2102, 2
    %v2104 = vmax.f32 %v2102, %v2103
    %v2105 = vrot.slane %v2104, 1
    %v2106 = vmax.f32 %v2104, %v2105
    %v2107 = vsel %vm1960, %v2063, -inf
    %v2108 = vrot.slane %v2107, 4
    %v2109 = vmax.f32 %v2107, %v2108
    %v2110 = vrot.slane %v2109, 2
    %v2111 = vmax.f32 %v2109, %v2110
    %v2112 = vrot.slane %v2111, 1
    %v2113 = vmax.f32 %v2111, %v2112
    %v2114 = vsel %vm1960, %v2064, -inf
    %v2115 = vrot.slane %v2114, 4
    %v2116 = vmax.f32 %v2114, %v2115
    %v2117 = vrot.slane %v2116, 2
    %v2118 = vmax.f32 %v2116, %v2117
    %v2119 = vrot.slane %v2118, 1
    %v2120 = vmax.f32 %v2118, %v2119
    %v2121 = vsub.f32 %v2057, %v2071
    %v2122 = vsub.f32 %v2058, %v2078
    %v2123 = vsub.f32 %v2059, %v2085
    %v2124 = vsub.f32 %v2060, %v2092
    %v2125 = vsub.f32 %v2061, %v2099
    %v2126 = vsub.f32 %v2062, %v2106
    %v2127 = vsub.f32 %v2063, %v2113
    %v2128 = vsub.f32 %v2064, %v2120
    %v2129 = vmul.f32 %v2121, 1.442695
    %v2130 = vpow.pop %v2129
    %v2131 = vmul.f32 %v2122, 1.442695
    %v2132 = vpow.pop %v2131
    %v2133 = vmul.f32 %v2123, 1.442695
    %v2134 = vpow.pop %v2133
    %v2135 = vmul.f32 %v2124, 1.442695
    %v2136 = vpow.pop %v2135
    %v2137 = vmul.f32 %v2125, 1.442695
    %v2138 = vpow.pop %v2137
    %v2139 = vmul.f32 %v2126, 1.442695
    %v2140 = vpow.pop %v2139
    %v2141 = vmul.f32 %v2127, 1.442695
    %v2142 = vpow.pop %v2141
    %v2143 = vmul.f32 %v2128, 1.442695
    %v2144 = vpow.pop %v2143
    %v2145 = vsel %vm1960, %v2130, 0.0
    %v2146 = vrot.slane %v2145, 4
    %v2147 = vadd.f32 %v2145, %v2146
    %v2148 = vrot.slane %v2147, 2
    %v2149 = vadd.f32 %v2147, %v2148
    %v2150 = vrot.slane %v2149, 1
    %v2151 = vadd.f32 %v2149, %v2150
    %v2152 = vsel %vm1960, %v2132, 0.0
    %v2153 = vrot.slane %v2152, 4
    %v2154 = vadd.f32 %v2152, %v2153
    %v2155 = vrot.slane %v2154, 2
    %v2156 = vadd.f32 %v2154, %v2155
    %v2157 = vrot.slane %v2156, 1
    %v2158 = vadd.f32 %v2156, %v2157
    %v2159 = vsel %vm1960, %v2134, 0.0
    %v2160 = vrot.slane %v2159, 4
    %v2161 = vadd.f32 %v2159, %v2160
    %v2162 = vrot.slane %v2161, 2
    %v2163 = vadd.f32 %v2161, %v2162
    %v2164 = vrot.slane %v2163, 1
    %v2165 = vadd.f32 %v2163, %v2164
    %v2166 = vsel %vm1960, %v2136, 0.0
    %v2167 = vrot.slane %v2166, 4
    %v2168 = vadd.f32 %v2166, %v2167
    %v2169 = vrot.slane %v2168, 2
    %v2170 = vadd.f32 %v2168, %v2169
    %v2171 = vrot.slane %v2170, 1
    %v2172 = vadd.f32 %v2170, %v2171
    %v2173 = vsel %vm1960, %v2138, 0.0
    %v2174 = vrot.slane %v2173, 4
    %v2175 = vadd.f32 %v2173, %v2174
    %v2176 = vrot.slane %v2175, 2
    %v2177 = vadd.f32 %v2175, %v2176
    %v2178 = vrot.slane %v2177, 1
    %v2179 = vadd.f32 %v2177, %v2178
    %v2180 = vsel %vm1960, %v2140, 0.0
    %v2181 = vrot.slane %v2180, 4
    %v2182 = vadd.f32 %v2180, %v2181
    %v2183 = vrot.slane %v2182, 2
    %v2184 = vadd.f32 %v2182, %v2183
    %v2185 = vrot.slane %v2184, 1
    %v2186 = vadd.f32 %v2184, %v2185
    %v2187 = vsel %vm1960, %v2142, 0.0
    %v2188 = vrot.slane %v2187, 4
    %v2189 = vadd.f32 %v2187, %v2188
    %v2190 = vrot.slane %v2189, 2
    %v2191 = vadd.f32 %v2189, %v2190
    %v2192 = vrot.slane %v2191, 1
    %v2193 = vadd.f32 %v2191, %v2192
    %v2194 = vsel %vm1960, %v2144, 0.0
    %v2195 = vrot.slane %v2194, 4
    %v2196 = vadd.f32 %v2194, %v2195
    %v2197 = vrot.slane %v2196, 2
    %v2198 = vadd.f32 %v2196, %v2197
    %v2199 = vrot.slane %v2198, 1
    %v2200 = vadd.f32 %v2198, %v2199
    %v2201 = vlog2.pop %v2151
    %v2202 = vmul.f32 %v2201, 0.6931472
    %v2203 = vlog2.pop %v2158
    %v2204 = vmul.f32 %v2203, 0.6931472
    %v2205 = vlog2.pop %v2165
    %v2206 = vmul.f32 %v2205, 0.6931472
    %v2207 = vlog2.pop %v2172
    %v2208 = vmul.f32 %v2207, 0.6931472
    %v2209 = vlog2.pop %v2179
    %v2210 = vmul.f32 %v2209, 0.6931472
    %v2211 = vlog2.pop %v2186
    %v2212 = vmul.f32 %v2211, 0.6931472
    %v2213 = vlog2.pop %v2193
    %v2214 = vmul.f32 %v2213, 0.6931472
    %v2215 = vlog2.pop %v2200
    %v2216 = vmul.f32 %v2215, 0.6931472
    %v2217 = vadd.f32 %v2071, %v2202
    %v2218 = vadd.f32 %v2078, %v2204
    %v2219 = vadd.f32 %v2085, %v2206
    %v2220 = vadd.f32 %v2092, %v2208
    %v2221 = vadd.f32 %v2099, %v2210
    %v2222 = vadd.f32 %v2106, %v2212
    %v2223 = vadd.f32 %v2113, %v2214
    %v2224 = vadd.f32 %v2120, %v2216
    %v2225 = vsub.f32 %v2057, %v2217
    %v2226 = vsub.f32 %v2058, %v2218
    %v2227 = vsub.f32 %v2059, %v2219
    %v2228 = vsub.f32 %v2060, %v2220
    %v2229 = vsub.f32 %v2061, %v2221
    %v2230 = vsub.f32 %v2062, %v2222
    %v2231 = vsub.f32 %v2063, %v2223
    %v2232 = vsub.f32 %v2064, %v2224
    %v2233 = vsel %vm1960, %v2225, -inf
    %2234 = vmax.xlane.f32.xlu0 %v2233
    %v2235 = vpop.xlane.xlu0 %2234
    %v2236 = vsel %vm1960, %v2226, -inf
    %2237 = vmax.xlane.f32.xlu0 %v2236
    %v2238 = vpop.xlane.xlu0 %2237
    %v2239 = vsel %vm1960, %v2227, -inf
    %2240 = vmax.xlane.f32.xlu0 %v2239
    %v2241 = vpop.xlane.xlu0 %2240
    %v2242 = vsel %vm1960, %v2228, -inf
    %2243 = vmax.xlane.f32.xlu0 %v2242
    %v2244 = vpop.xlane.xlu0 %2243
    %v2245 = vsel %vm1960, %v2229, -inf
    %2246 = vmax.xlane.f32.xlu0 %v2245
    %v2247 = vpop.xlane.xlu0 %2246
    %v2248 = vsel %vm1960, %v2230, -inf
    %2249 = vmax.xlane.f32.xlu0 %v2248
    %v2250 = vpop.xlane.xlu0 %2249
    %v2251 = vsel %vm1960, %v2231, -inf
    %2252 = vmax.xlane.f32.xlu0 %v2251
    %v2253 = vpop.xlane.xlu0 %2252
    %v2254 = vsel %vm1960, %v2232, -inf
    %2255 = vmax.xlane.f32.xlu0 %v2254
    %v2256 = vpop.xlane.xlu0 %2255
    %v2257 = vsub.f32 %v2225, %v2235
    %v2258 = vsub.f32 %v2226, %v2238
    %v2259 = vsub.f32 %v2227, %v2241
    %v2260 = vsub.f32 %v2228, %v2244
    %v2261 = vsub.f32 %v2229, %v2247
    %v2262 = vsub.f32 %v2230, %v2250
    %v2263 = vsub.f32 %v2231, %v2253
    %v2264 = vsub.f32 %v2232, %v2256
    %v2265 = vmul.f32 %v2257, 1.442695
    %v2266 = vpow.pop %v2265
    %v2267 = vmul.f32 %v2258, 1.442695
    %v2268 = vpow.pop %v2267
    %v2269 = vmul.f32 %v2259, 1.442695
    %v2270 = vpow.pop %v2269
    %v2271 = vmul.f32 %v2260, 1.442695
    %v2272 = vpow.pop %v2271
    %v2273 = vmul.f32 %v2261, 1.442695
    %v2274 = vpow.pop %v2273
    %v2275 = vmul.f32 %v2262, 1.442695
    %v2276 = vpow.pop %v2275
    %v2277 = vmul.f32 %v2263, 1.442695
    %v2278 = vpow.pop %v2277
    %v2279 = vmul.f32 %v2264, 1.442695
    %v2280 = vpow.pop %v2279
    %v2281 = vsel %vm1960, %v2266, 0.0
    %2282 = vadd.xlane.f32.xlu0 %v2281
    %v2283 = vpop.xlane.xlu0 %2282
    %v2284 = vsel %vm1960, %v2268, 0.0
    %2285 = vadd.xlane.f32.xlu0 %v2284
    %v2286 = vpop.xlane.xlu0 %2285
    %v2287 = vsel %vm1960, %v2270, 0.0
    %2288 = vadd.xlane.f32.xlu0 %v2287
    %v2289 = vpop.xlane.xlu0 %2288
    %v2290 = vsel %vm1960, %v2272, 0.0
    %2291 = vadd.xlane.f32.xlu0 %v2290
    %v2292 = vpop.xlane.xlu0 %2291
    %v2293 = vsel %vm1960, %v2274, 0.0
    %2294 = vadd.xlane.f32.xlu0 %v2293
    %v2295 = vpop.xlane.xlu0 %2294
    %v2296 = vsel %vm1960, %v2276, 0.0
    %2297 = vadd.xlane.f32.xlu0 %v2296
    %v2298 = vpop.xlane.xlu0 %2297
    %v2299 = vsel %vm1960, %v2278, 0.0
    %2300 = vadd.xlane.f32.xlu0 %v2299
    %v2301 = vpop.xlane.xlu0 %2300
    %v2302 = vsel %vm1960, %v2280, 0.0
    %2303 = vadd.xlane.f32.xlu0 %v2302
    %v2304 = vpop.xlane.xlu0 %2303
    %v2305 = vlog2.pop %v2283
    %v2306 = vmul.f32 %v2305, 0.6931472
    %v2307 = vlog2.pop %v2286
    %v2308 = vmul.f32 %v2307, 0.6931472
    %v2309 = vlog2.pop %v2289
    %v2310 = vmul.f32 %v2309, 0.6931472
    %v2311 = vlog2.pop %v2292
    %v2312 = vmul.f32 %v2311, 0.6931472
    %v2313 = vlog2.pop %v2295
    %v2314 = vmul.f32 %v2313, 0.6931472
    %v2315 = vlog2.pop %v2298
    %v2316 = vmul.f32 %v2315, 0.6931472
    %v2317 = vlog2.pop %v2301
    %v2318 = vmul.f32 %v2317, 0.6931472
    %v2319 = vlog2.pop %v2304
    %v2320 = vmul.f32 %v2319, 0.6931472
    %v2321 = vadd.f32 %v2235, %v2306
    %v2322 = vadd.f32 %v2238, %v2308
    %v2323 = vadd.f32 %v2241, %v2310
    %v2324 = vadd.f32 %v2244, %v2312
    %v2325 = vadd.f32 %v2247, %v2314
    %v2326 = vadd.f32 %v2250, %v2316
    %v2327 = vadd.f32 %v2253, %v2318
    %v2328 = vadd.f32 %v2256, %v2320
    %v2329 = vsub.f32 %v2225, %v2321
    %v2330 = vsub.f32 %v2226, %v2322
    %v2331 = vsub.f32 %v2227, %v2323
    %v2332 = vsub.f32 %v2228, %v2324
    %v2333 = vsub.f32 %v2229, %v2325
    %v2334 = vsub.f32 %v2230, %v2326
    %v2335 = vsub.f32 %v2231, %v2327
    %v2336 = vsub.f32 %v2232, %v2328
    %v2337 = vsel %vm1960, %v2329, -inf
    %v2338 = vrot.slane %v2337, 4
    %v2339 = vmax.f32 %v2337, %v2338
    %v2340 = vrot.slane %v2339, 2
    %v2341 = vmax.f32 %v2339, %v2340
    %v2342 = vrot.slane %v2341, 1
    %v2343 = vmax.f32 %v2341, %v2342
    %v2344 = vsel %vm1960, %v2330, -inf
    %v2345 = vrot.slane %v2344, 4
    %v2346 = vmax.f32 %v2344, %v2345
    %v2347 = vrot.slane %v2346, 2
    %v2348 = vmax.f32 %v2346, %v2347
    %v2349 = vrot.slane %v2348, 1
    %v2350 = vmax.f32 %v2348, %v2349
    %v2351 = vsel %vm1960, %v2331, -inf
    %v2352 = vrot.slane %v2351, 4
    %v2353 = vmax.f32 %v2351, %v2352
    %v2354 = vrot.slane %v2353, 2
    %v2355 = vmax.f32 %v2353, %v2354
    %v2356 = vrot.slane %v2355, 1
    %v2357 = vmax.f32 %v2355, %v2356
    %v2358 = vsel %vm1960, %v2332, -inf
    %v2359 = vrot.slane %v2358, 4
    %v2360 = vmax.f32 %v2358, %v2359
    %v2361 = vrot.slane %v2360, 2
    %v2362 = vmax.f32 %v2360, %v2361
    %v2363 = vrot.slane %v2362, 1
    %v2364 = vmax.f32 %v2362, %v2363
    %v2365 = vsel %vm1960, %v2333, -inf
    %v2366 = vrot.slane %v2365, 4
    %v2367 = vmax.f32 %v2365, %v2366
    %v2368 = vrot.slane %v2367, 2
    %v2369 = vmax.f32 %v2367, %v2368
    %v2370 = vrot.slane %v2369, 1
    %v2371 = vmax.f32 %v2369, %v2370
    %v2372 = vsel %vm1960, %v2334, -inf
    %v2373 = vrot.slane %v2372, 4
    %v2374 = vmax.f32 %v2372, %v2373
    %v2375 = vrot.slane %v2374, 2
    %v2376 = vmax.f32 %v2374, %v2375
    %v2377 = vrot.slane %v2376, 1
    %v2378 = vmax.f32 %v2376, %v2377
    %v2379 = vsel %vm1960, %v2335, -inf
    %v2380 = vrot.slane %v2379, 4
    %v2381 = vmax.f32 %v2379, %v2380
    %v2382 = vrot.slane %v2381, 2
    %v2383 = vmax.f32 %v2381, %v2382
    %v2384 = vrot.slane %v2383, 1
    %v2385 = vmax.f32 %v2383, %v2384
    %v2386 = vsel %vm1960, %v2336, -inf
    %v2387 = vrot.slane %v2386, 4
    %v2388 = vmax.f32 %v2386, %v2387
    %v2389 = vrot.slane %v2388, 2
    %v2390 = vmax.f32 %v2388, %v2389
    %v2391 = vrot.slane %v2390, 1
    %v2392 = vmax.f32 %v2390, %v2391
    %v2393 = vsub.f32 %v2329, %v2343
    %v2394 = vsub.f32 %v2330, %v2350
    %v2395 = vsub.f32 %v2331, %v2357
    %v2396 = vsub.f32 %v2332, %v2364
    %v2397 = vsub.f32 %v2333, %v2371
    %v2398 = vsub.f32 %v2334, %v2378
    %v2399 = vsub.f32 %v2335, %v2385
    %v2400 = vsub.f32 %v2336, %v2392
    %v2401 = vmul.f32 %v2393, 1.442695
    %v2402 = vpow.pop %v2401
    %v2403 = vmul.f32 %v2394, 1.442695
    %v2404 = vpow.pop %v2403
    %v2405 = vmul.f32 %v2395, 1.442695
    %v2406 = vpow.pop %v2405
    %v2407 = vmul.f32 %v2396, 1.442695
    %v2408 = vpow.pop %v2407
    %v2409 = vmul.f32 %v2397, 1.442695
    %v2410 = vpow.pop %v2409
    %v2411 = vmul.f32 %v2398, 1.442695
    %v2412 = vpow.pop %v2411
    %v2413 = vmul.f32 %v2399, 1.442695
    %v2414 = vpow.pop %v2413
    %v2415 = vmul.f32 %v2400, 1.442695
    %v2416 = vpow.pop %v2415
    %v2417 = vsel %vm1960, %v2402, 0.0
    %v2418 = vrot.slane %v2417, 4
    %v2419 = vadd.f32 %v2417, %v2418
    %v2420 = vrot.slane %v2419, 2
    %v2421 = vadd.f32 %v2419, %v2420
    %v2422 = vrot.slane %v2421, 1
    %v2423 = vadd.f32 %v2421, %v2422
    %v2424 = vsel %vm1960, %v2404, 0.0
    %v2425 = vrot.slane %v2424, 4
    %v2426 = vadd.f32 %v2424, %v2425
    %v2427 = vrot.slane %v2426, 2
    %v2428 = vadd.f32 %v2426, %v2427
    %v2429 = vrot.slane %v2428, 1
    %v2430 = vadd.f32 %v2428, %v2429
    %v2431 = vsel %vm1960, %v2406, 0.0
    %v2432 = vrot.slane %v2431, 4
    %v2433 = vadd.f32 %v2431, %v2432
    %v2434 = vrot.slane %v2433, 2
    %v2435 = vadd.f32 %v2433, %v2434
    %v2436 = vrot.slane %v2435, 1
    %v2437 = vadd.f32 %v2435, %v2436
    %v2438 = vsel %vm1960, %v2408, 0.0
    %v2439 = vrot.slane %v2438, 4
    %v2440 = vadd.f32 %v2438, %v2439
    %v2441 = vrot.slane %v2440, 2
    %v2442 = vadd.f32 %v2440, %v2441
    %v2443 = vrot.slane %v2442, 1
    %v2444 = vadd.f32 %v2442, %v2443
    %v2445 = vsel %vm1960, %v2410, 0.0
    %v2446 = vrot.slane %v2445, 4
    %v2447 = vadd.f32 %v2445, %v2446
    %v2448 = vrot.slane %v2447, 2
    %v2449 = vadd.f32 %v2447, %v2448
    %v2450 = vrot.slane %v2449, 1
    %v2451 = vadd.f32 %v2449, %v2450
    %v2452 = vsel %vm1960, %v2412, 0.0
    %v2453 = vrot.slane %v2452, 4
    %v2454 = vadd.f32 %v2452, %v2453
    %v2455 = vrot.slane %v2454, 2
    %v2456 = vadd.f32 %v2454, %v2455
    %v2457 = vrot.slane %v2456, 1
    %v2458 = vadd.f32 %v2456, %v2457
    %v2459 = vsel %vm1960, %v2414, 0.0
    %v2460 = vrot.slane %v2459, 4
    %v2461 = vadd.f32 %v2459, %v2460
    %v2462 = vrot.slane %v2461, 2
    %v2463 = vadd.f32 %v2461, %v2462
    %v2464 = vrot.slane %v2463, 1
    %v2465 = vadd.f32 %v2463, %v2464
    %v2466 = vsel %vm1960, %v2416, 0.0
    %v2467 = vrot.slane %v2466, 4
    %v2468 = vadd.f32 %v2466, %v2467
    %v2469 = vrot.slane %v2468, 2
    %v2470 = vadd.f32 %v2468, %v2469
    %v2471 = vrot.slane %v2470, 1
    %v2472 = vadd.f32 %v2470, %v2471
    %v2473 = vlog2.pop %v2423
    %v2474 = vmul.f32 %v2473, 0.6931472
    %v2475 = vlog2.pop %v2430
    %v2476 = vmul.f32 %v2475, 0.6931472
    %v2477 = vlog2.pop %v2437
    %v2478 = vmul.f32 %v2477, 0.6931472
    %v2479 = vlog2.pop %v2444
    %v2480 = vmul.f32 %v2479, 0.6931472
    %v2481 = vlog2.pop %v2451
    %v2482 = vmul.f32 %v2481, 0.6931472
    %v2483 = vlog2.pop %v2458
    %v2484 = vmul.f32 %v2483, 0.6931472
    %v2485 = vlog2.pop %v2465
    %v2486 = vmul.f32 %v2485, 0.6931472
    %v2487 = vlog2.pop %v2472
    %v2488 = vmul.f32 %v2487, 0.6931472
    %v2489 = vadd.f32 %v2343, %v2474
    %v2490 = vadd.f32 %v2350, %v2476
    %v2491 = vadd.f32 %v2357, %v2478
    %v2492 = vadd.f32 %v2364, %v2480
    %v2493 = vadd.f32 %v2371, %v2482
    %v2494 = vadd.f32 %v2378, %v2484
    %v2495 = vadd.f32 %v2385, %v2486
    %v2496 = vadd.f32 %v2392, %v2488
    %v2497 = vsub.f32 %v2329, %v2489
    %v2498 = vsub.f32 %v2330, %v2490
    %v2499 = vsub.f32 %v2331, %v2491
    %v2500 = vsub.f32 %v2332, %v2492
    %v2501 = vsub.f32 %v2333, %v2493
    %v2502 = vsub.f32 %v2334, %v2494
    %v2503 = vsub.f32 %v2335, %v2495
    %v2504 = vsub.f32 %v2336, %v2496
    %v2505 = vsel %vm1960, %v2497, -inf
    %2506 = vmax.xlane.f32.xlu0 %v2505
    %v2507 = vpop.xlane.xlu0 %2506
    %v2508 = vsel %vm1960, %v2498, -inf
    %2509 = vmax.xlane.f32.xlu0 %v2508
    %v2510 = vpop.xlane.xlu0 %2509
    %v2511 = vsel %vm1960, %v2499, -inf
    %2512 = vmax.xlane.f32.xlu0 %v2511
    %v2513 = vpop.xlane.xlu0 %2512
    %v2514 = vsel %vm1960, %v2500, -inf
    %2515 = vmax.xlane.f32.xlu0 %v2514
    %v2516 = vpop.xlane.xlu0 %2515
    %v2517 = vsel %vm1960, %v2501, -inf
    %2518 = vmax.xlane.f32.xlu0 %v2517
    %v2519 = vpop.xlane.xlu0 %2518
    %v2520 = vsel %vm1960, %v2502, -inf
    %2521 = vmax.xlane.f32.xlu0 %v2520
    %v2522 = vpop.xlane.xlu0 %2521
    %v2523 = vsel %vm1960, %v2503, -inf
    %2524 = vmax.xlane.f32.xlu0 %v2523
    %v2525 = vpop.xlane.xlu0 %2524
    %v2526 = vsel %vm1960, %v2504, -inf
    %2527 = vmax.xlane.f32.xlu0 %v2526
    %v2528 = vpop.xlane.xlu0 %2527
    %v2529 = vsub.f32 %v2497, %v2507
    %v2530 = vsub.f32 %v2498, %v2510
    %v2531 = vsub.f32 %v2499, %v2513
    %v2532 = vsub.f32 %v2500, %v2516
    %v2533 = vsub.f32 %v2501, %v2519
    %v2534 = vsub.f32 %v2502, %v2522
    %v2535 = vsub.f32 %v2503, %v2525
    %v2536 = vsub.f32 %v2504, %v2528
    %v2537 = vmul.f32 %v2529, 1.442695
    %v2538 = vpow.pop %v2537
    %v2539 = vmul.f32 %v2530, 1.442695
    %v2540 = vpow.pop %v2539
    %v2541 = vmul.f32 %v2531, 1.442695
    %v2542 = vpow.pop %v2541
    %v2543 = vmul.f32 %v2532, 1.442695
    %v2544 = vpow.pop %v2543
    %v2545 = vmul.f32 %v2533, 1.442695
    %v2546 = vpow.pop %v2545
    %v2547 = vmul.f32 %v2534, 1.442695
    %v2548 = vpow.pop %v2547
    %v2549 = vmul.f32 %v2535, 1.442695
    %v2550 = vpow.pop %v2549
    %v2551 = vmul.f32 %v2536, 1.442695
    %v2552 = vpow.pop %v2551
    %v2553 = vsel %vm1960, %v2538, 0.0
    %2554 = vadd.xlane.f32.xlu0 %v2553
    %v2555 = vpop.xlane.xlu0 %2554
    %v2556 = vsel %vm1960, %v2540, 0.0
    %2557 = vadd.xlane.f32.xlu0 %v2556
    %v2558 = vpop.xlane.xlu0 %2557
    %v2559 = vsel %vm1960, %v2542, 0.0
    %2560 = vadd.xlane.f32.xlu0 %v2559
    %v2561 = vpop.xlane.xlu0 %2560
    %v2562 = vsel %vm1960, %v2544, 0.0
    %2563 = vadd.xlane.f32.xlu0 %v2562
    %v2564 = vpop.xlane.xlu0 %2563
    %v2565 = vsel %vm1960, %v2546, 0.0
    %2566 = vadd.xlane.f32.xlu0 %v2565
    %v2567 = vpop.xlane.xlu0 %2566
    %v2568 = vsel %vm1960, %v2548, 0.0
    %2569 = vadd.xlane.f32.xlu0 %v2568
    %v2570 = vpop.xlane.xlu0 %2569
    %v2571 = vsel %vm1960, %v2550, 0.0
    %2572 = vadd.xlane.f32.xlu0 %v2571
    %v2573 = vpop.xlane.xlu0 %2572
    %v2574 = vsel %vm1960, %v2552, 0.0
    %2575 = vadd.xlane.f32.xlu0 %v2574
    %v2576 = vpop.xlane.xlu0 %2575
    %v2577 = vlog2.pop %v2555
    %v2578 = vmul.f32 %v2577, 0.6931472
    %v2579 = vlog2.pop %v2558
    %v2580 = vmul.f32 %v2579, 0.6931472
    %v2581 = vlog2.pop %v2561
    %v2582 = vmul.f32 %v2581, 0.6931472
    %v2583 = vlog2.pop %v2564
    %v2584 = vmul.f32 %v2583, 0.6931472
    %v2585 = vlog2.pop %v2567
    %v2586 = vmul.f32 %v2585, 0.6931472
    %v2587 = vlog2.pop %v2570
    %v2588 = vmul.f32 %v2587, 0.6931472
    %v2589 = vlog2.pop %v2573
    %v2590 = vmul.f32 %v2589, 0.6931472
    %v2591 = vlog2.pop %v2576
    %v2592 = vmul.f32 %v2591, 0.6931472
    %v2593 = vadd.f32 %v2507, %v2578
    %v2594 = vadd.f32 %v2510, %v2580
    %v2595 = vadd.f32 %v2513, %v2582
    %v2596 = vadd.f32 %v2516, %v2584
    %v2597 = vadd.f32 %v2519, %v2586
    %v2598 = vadd.f32 %v2522, %v2588
    %v2599 = vadd.f32 %v2525, %v2590
    %v2600 = vadd.f32 %v2528, %v2592
    %v2601 = vsub.f32 %v2497, %v2593
    %v2602 = vsub.f32 %v2498, %v2594
    %v2603 = vsub.f32 %v2499, %v2595
    %v2604 = vsub.f32 %v2500, %v2596
    %v2605 = vsub.f32 %v2501, %v2597
    %v2606 = vsub.f32 %v2502, %v2598
    %v2607 = vsub.f32 %v2503, %v2599
    %v2608 = vsub.f32 %v2504, %v2600
    %v2609 = vsel %vm1960, %v2601, -inf
    %v2610 = vrot.slane %v2609, 4
    %v2611 = vmax.f32 %v2609, %v2610
    %v2612 = vrot.slane %v2611, 2
    %v2613 = vmax.f32 %v2611, %v2612
    %v2614 = vrot.slane %v2613, 1
    %v2615 = vmax.f32 %v2613, %v2614
    %v2616 = vsel %vm1960, %v2602, -inf
    %v2617 = vrot.slane %v2616, 4
    %v2618 = vmax.f32 %v2616, %v2617
    %v2619 = vrot.slane %v2618, 2
    %v2620 = vmax.f32 %v2618, %v2619
    %v2621 = vrot.slane %v2620, 1
    %v2622 = vmax.f32 %v2620, %v2621
    %v2623 = vsel %vm1960, %v2603, -inf
    %v2624 = vrot.slane %v2623, 4
    %v2625 = vmax.f32 %v2623, %v2624
    %v2626 = vrot.slane %v2625, 2
    %v2627 = vmax.f32 %v2625, %v2626
    %v2628 = vrot.slane %v2627, 1
    %v2629 = vmax.f32 %v2627, %v2628
    %v2630 = vsel %vm1960, %v2604, -inf
    %v2631 = vrot.slane %v2630, 4
    %v2632 = vmax.f32 %v2630, %v2631
    %v2633 = vrot.slane %v2632, 2
    %v2634 = vmax.f32 %v2632, %v2633
    %v2635 = vrot.slane %v2634, 1
    %v2636 = vmax.f32 %v2634, %v2635
    %v2637 = vsel %vm1960, %v2605, -inf
    %v2638 = vrot.slane %v2637, 4
    %v2639 = vmax.f32 %v2637, %v2638
    %v2640 = vrot.slane %v2639, 2
    %v2641 = vmax.f32 %v2639, %v2640
    %v2642 = vrot.slane %v2641, 1
    %v2643 = vmax.f32 %v2641, %v2642
    %v2644 = vsel %vm1960, %v2606, -inf
    %v2645 = vrot.slane %v2644, 4
    %v2646 = vmax.f32 %v2644, %v2645
    %v2647 = vrot.slane %v2646, 2
    %v2648 = vmax.f32 %v2646, %v2647
    %v2649 = vrot.slane %v2648, 1
    %v2650 = vmax.f32 %v2648, %v2649
    %v2651 = vsel %vm1960, %v2607, -inf
    %v2652 = vrot.slane %v2651, 4
    %v2653 = vmax.f32 %v2651, %v2652
    %v2654 = vrot.slane %v2653, 2
    %v2655 = vmax.f32 %v2653, %v2654
    %v2656 = vrot.slane %v2655, 1
    %v2657 = vmax.f32 %v2655, %v2656
    %v2658 = vsel %vm1960, %v2608, -inf
    %v2659 = vrot.slane %v2658, 4
    %v2660 = vmax.f32 %v2658, %v2659
    %v2661 = vrot.slane %v2660, 2
    %v2662 = vmax.f32 %v2660, %v2661
    %v2663 = vrot.slane %v2662, 1
    %v2664 = vmax.f32 %v2662, %v2663
    %v2665 = vsub.f32 %v2601, %v2615
    %v2666 = vsub.f32 %v2602, %v2622
    %v2667 = vsub.f32 %v2603, %v2629
    %v2668 = vsub.f32 %v2604, %v2636
    %v2669 = vsub.f32 %v2605, %v2643
    %v2670 = vsub.f32 %v2606, %v2650
    %v2671 = vsub.f32 %v2607, %v2657
    %v2672 = vsub.f32 %v2608, %v2664
    %v2673 = vmul.f32 %v2665, 1.442695
    %v2674 = vpow.pop %v2673
    %v2675 = vmul.f32 %v2666, 1.442695
    %v2676 = vpow.pop %v2675
    %v2677 = vmul.f32 %v2667, 1.442695
    %v2678 = vpow.pop %v2677
    %v2679 = vmul.f32 %v2668, 1.442695
    %v2680 = vpow.pop %v2679
    %v2681 = vmul.f32 %v2669, 1.442695
    %v2682 = vpow.pop %v2681
    %v2683 = vmul.f32 %v2670, 1.442695
    %v2684 = vpow.pop %v2683
    %v2685 = vmul.f32 %v2671, 1.442695
    %v2686 = vpow.pop %v2685
    %v2687 = vmul.f32 %v2672, 1.442695
    %v2688 = vpow.pop %v2687
    %v2689 = vsel %vm1960, %v2674, 0.0
    %v2690 = vrot.slane %v2689, 4
    %v2691 = vadd.f32 %v2689, %v2690
    %v2692 = vrot.slane %v2691, 2
    %v2693 = vadd.f32 %v2691, %v2692
    %v2694 = vrot.slane %v2693, 1
    %v2695 = vadd.f32 %v2693, %v2694
    %v2696 = vsel %vm1960, %v2676, 0.0
    %v2697 = vrot.slane %v2696, 4
    %v2698 = vadd.f32 %v2696, %v2697
    %v2699 = vrot.slane %v2698, 2
    %v2700 = vadd.f32 %v2698, %v2699
    %v2701 = vrot.slane %v2700, 1
    %v2702 = vadd.f32 %v2700, %v2701
    %v2703 = vsel %vm1960, %v2678, 0.0
    %v2704 = vrot.slane %v2703, 4
    %v2705 = vadd.f32 %v2703, %v2704
    %v2706 = vrot.slane %v2705, 2
    %v2707 = vadd.f32 %v2705, %v2706
    %v2708 = vrot.slane %v2707, 1
    %v2709 = vadd.f32 %v2707, %v2708
    %v2710 = vsel %vm1960, %v2680, 0.0
    %v2711 = vrot.slane %v2710, 4
    %v2712 = vadd.f32 %v2710, %v2711
    %v2713 = vrot.slane %v2712, 2
    %v2714 = vadd.f32 %v2712, %v2713
    %v2715 = vrot.slane %v2714, 1
    %v2716 = vadd.f32 %v2714, %v2715
    %v2717 = vsel %vm1960, %v2682, 0.0
    %v2718 = vrot.slane %v2717, 4
    %v2719 = vadd.f32 %v2717, %v2718
    %v2720 = vrot.slane %v2719, 2
    %v2721 = vadd.f32 %v2719, %v2720
    %v2722 = vrot.slane %v2721, 1
    %v2723 = vadd.f32 %v2721, %v2722
    %v2724 = vsel %vm1960, %v2684, 0.0
    %v2725 = vrot.slane %v2724, 4
    %v2726 = vadd.f32 %v2724, %v2725
    %v2727 = vrot.slane %v2726, 2
    %v2728 = vadd.f32 %v2726, %v2727
    %v2729 = vrot.slane %v2728, 1
    %v2730 = vadd.f32 %v2728, %v2729
    %v2731 = vsel %vm1960, %v2686, 0.0
    %v2732 = vrot.slane %v2731, 4
    %v2733 = vadd.f32 %v2731, %v2732
    %v2734 = vrot.slane %v2733, 2
    %v2735 = vadd.f32 %v2733, %v2734
    %v2736 = vrot.slane %v2735, 1
    %v2737 = vadd.f32 %v2735, %v2736
    %v2738 = vsel %vm1960, %v2688, 0.0
    %v2739 = vrot.slane %v2738, 4
    %v2740 = vadd.f32 %v2738, %v2739
    %v2741 = vrot.slane %v2740, 2
    %v2742 = vadd.f32 %v2740, %v2741
    %v2743 = vrot.slane %v2742, 1
    %v2744 = vadd.f32 %v2742, %v2743
    %v2745 = vlog2.pop %v2695
    %v2746 = vmul.f32 %v2745, 0.6931472
    %v2747 = vlog2.pop %v2702
    %v2748 = vmul.f32 %v2747, 0.6931472
    %v2749 = vlog2.pop %v2709
    %v2750 = vmul.f32 %v2749, 0.6931472
    %v2751 = vlog2.pop %v2716
    %v2752 = vmul.f32 %v2751, 0.6931472
    %v2753 = vlog2.pop %v2723
    %v2754 = vmul.f32 %v2753, 0.6931472
    %v2755 = vlog2.pop %v2730
    %v2756 = vmul.f32 %v2755, 0.6931472
    %v2757 = vlog2.pop %v2737
    %v2758 = vmul.f32 %v2757, 0.6931472
    %v2759 = vlog2.pop %v2744
    %v2760 = vmul.f32 %v2759, 0.6931472
    %v2761 = vadd.f32 %v2615, %v2746
    %v2762 = vadd.f32 %v2622, %v2748
    %v2763 = vadd.f32 %v2629, %v2750
    %v2764 = vadd.f32 %v2636, %v2752
    %v2765 = vadd.f32 %v2643, %v2754
    %v2766 = vadd.f32 %v2650, %v2756
    %v2767 = vadd.f32 %v2657, %v2758
    %v2768 = vadd.f32 %v2664, %v2760
    %v2769 = vsub.f32 %v2601, %v2761
    %v2770 = vsub.f32 %v2602, %v2762
    %v2771 = vsub.f32 %v2603, %v2763
    %v2772 = vsub.f32 %v2604, %v2764
    %v2773 = vsub.f32 %v2605, %v2765
    %v2774 = vsub.f32 %v2606, %v2766
    %v2775 = vsub.f32 %v2607, %v2767
    %v2776 = vsub.f32 %v2608, %v2768
    %v2777 = vsel %vm1960, %v2769, -inf
    %2778 = vmax.xlane.f32.xlu0 %v2777
    %v2779 = vpop.xlane.xlu0 %2778
    %v2780 = vsel %vm1960, %v2770, -inf
    %2781 = vmax.xlane.f32.xlu0 %v2780
    %v2782 = vpop.xlane.xlu0 %2781
    %v2783 = vsel %vm1960, %v2771, -inf
    %2784 = vmax.xlane.f32.xlu0 %v2783
    %v2785 = vpop.xlane.xlu0 %2784
    %v2786 = vsel %vm1960, %v2772, -inf
    %2787 = vmax.xlane.f32.xlu0 %v2786
    %v2788 = vpop.xlane.xlu0 %2787
    %v2789 = vsel %vm1960, %v2773, -inf
    %2790 = vmax.xlane.f32.xlu0 %v2789
    %v2791 = vpop.xlane.xlu0 %2790
    %v2792 = vsel %vm1960, %v2774, -inf
    %2793 = vmax.xlane.f32.xlu0 %v2792
    %v2794 = vpop.xlane.xlu0 %2793
    %v2795 = vsel %vm1960, %v2775, -inf
    %2796 = vmax.xlane.f32.xlu0 %v2795
    %v2797 = vpop.xlane.xlu0 %2796
    %v2798 = vsel %vm1960, %v2776, -inf
    %2799 = vmax.xlane.f32.xlu0 %v2798
    %v2800 = vpop.xlane.xlu0 %2799
    %v2801 = vsub.f32 %v2769, %v2779
    %v2802 = vsub.f32 %v2770, %v2782
    %v2803 = vsub.f32 %v2771, %v2785
    %v2804 = vsub.f32 %v2772, %v2788
    %v2805 = vsub.f32 %v2773, %v2791
    %v2806 = vsub.f32 %v2774, %v2794
    %v2807 = vsub.f32 %v2775, %v2797
    %v2808 = vsub.f32 %v2776, %v2800
    %v2809 = vmul.f32 %v2801, 1.442695
    %v2810 = vpow.pop %v2809
    %v2811 = vmul.f32 %v2802, 1.442695
    %v2812 = vpow.pop %v2811
    %v2813 = vmul.f32 %v2803, 1.442695
    %v2814 = vpow.pop %v2813
    %v2815 = vmul.f32 %v2804, 1.442695
    %v2816 = vpow.pop %v2815
    %v2817 = vmul.f32 %v2805, 1.442695
    %v2818 = vpow.pop %v2817
    %v2819 = vmul.f32 %v2806, 1.442695
    %v2820 = vpow.pop %v2819
    %v2821 = vmul.f32 %v2807, 1.442695
    %v2822 = vpow.pop %v2821
    %v2823 = vmul.f32 %v2808, 1.442695
    %v2824 = vpow.pop %v2823
    %v2825 = vsel %vm1960, %v2810, 0.0
    %2826 = vadd.xlane.f32.xlu0 %v2825
    %v2827 = vpop.xlane.xlu0 %2826
    %v2828 = vsel %vm1960, %v2812, 0.0
    %2829 = vadd.xlane.f32.xlu0 %v2828
    %v2830 = vpop.xlane.xlu0 %2829
    %v2831 = vsel %vm1960, %v2814, 0.0
    %2832 = vadd.xlane.f32.xlu0 %v2831
    %v2833 = vpop.xlane.xlu0 %2832
    %v2834 = vsel %vm1960, %v2816, 0.0
    %2835 = vadd.xlane.f32.xlu0 %v2834
    %v2836 = vpop.xlane.xlu0 %2835
    %v2837 = vsel %vm1960, %v2818, 0.0
    %2838 = vadd.xlane.f32.xlu0 %v2837
    %v2839 = vpop.xlane.xlu0 %2838
    %v2840 = vsel %vm1960, %v2820, 0.0
    %2841 = vadd.xlane.f32.xlu0 %v2840
    %v2842 = vpop.xlane.xlu0 %2841
    %v2843 = vsel %vm1960, %v2822, 0.0
    %2844 = vadd.xlane.f32.xlu0 %v2843
    %v2845 = vpop.xlane.xlu0 %2844
    %v2846 = vsel %vm1960, %v2824, 0.0
    %2847 = vadd.xlane.f32.xlu0 %v2846
    %v2848 = vpop.xlane.xlu0 %2847
    %v2849 = vlog2.pop %v2827
    %v2850 = vmul.f32 %v2849, 0.6931472
    %v2851 = vlog2.pop %v2830
    %v2852 = vmul.f32 %v2851, 0.6931472
    %v2853 = vlog2.pop %v2833
    %v2854 = vmul.f32 %v2853, 0.6931472
    %v2855 = vlog2.pop %v2836
    %v2856 = vmul.f32 %v2855, 0.6931472
    %v2857 = vlog2.pop %v2839
    %v2858 = vmul.f32 %v2857, 0.6931472
    %v2859 = vlog2.pop %v2842
    %v2860 = vmul.f32 %v2859, 0.6931472
    %v2861 = vlog2.pop %v2845
    %v2862 = vmul.f32 %v2861, 0.6931472
    %v2863 = vlog2.pop %v2848
    %v2864 = vmul.f32 %v2863, 0.6931472
    %v2865 = vadd.f32 %v2779, %v2850
    %v2866 = vadd.f32 %v2782, %v2852
    %v2867 = vadd.f32 %v2785, %v2854
    %v2868 = vadd.f32 %v2788, %v2856
    %v2869 = vadd.f32 %v2791, %v2858
    %v2870 = vadd.f32 %v2794, %v2860
    %v2871 = vadd.f32 %v2797, %v2862
    %v2872 = vadd.f32 %v2800, %v2864
    %v2873 = vsub.f32 %v2769, %v2865
    %v2874 = vsub.f32 %v2770, %v2866
    %v2875 = vsub.f32 %v2771, %v2867
    %v2876 = vsub.f32 %v2772, %v2868
    %v2877 = vsub.f32 %v2773, %v2869
    %v2878 = vsub.f32 %v2774, %v2870
    %v2879 = vsub.f32 %v2775, %v2871
    %v2880 = vsub.f32 %v2776, %v2872
    %v2881 = vsel %vm1960, %v2873, -inf
    %v2882 = vrot.slane %v2881, 4
    %v2883 = vmax.f32 %v2881, %v2882
    %v2884 = vrot.slane %v2883, 2
    %v2885 = vmax.f32 %v2883, %v2884
    %v2886 = vrot.slane %v2885, 1
    %v2887 = vmax.f32 %v2885, %v2886
    %v2888 = vsel %vm1960, %v2874, -inf
    %v2889 = vrot.slane %v2888, 4
    %v2890 = vmax.f32 %v2888, %v2889
    %v2891 = vrot.slane %v2890, 2
    %v2892 = vmax.f32 %v2890, %v2891
    %v2893 = vrot.slane %v2892, 1
    %v2894 = vmax.f32 %v2892, %v2893
    %v2895 = vsel %vm1960, %v2875, -inf
    %v2896 = vrot.slane %v2895, 4
    %v2897 = vmax.f32 %v2895, %v2896
    %v2898 = vrot.slane %v2897, 2
    %v2899 = vmax.f32 %v2897, %v2898
    %v2900 = vrot.slane %v2899, 1
    %v2901 = vmax.f32 %v2899, %v2900
    %v2902 = vsel %vm1960, %v2876, -inf
    %v2903 = vrot.slane %v2902, 4
    %v2904 = vmax.f32 %v2902, %v2903
    %v2905 = vrot.slane %v2904, 2
    %v2906 = vmax.f32 %v2904, %v2905
    %v2907 = vrot.slane %v2906, 1
    %v2908 = vmax.f32 %v2906, %v2907
    %v2909 = vsel %vm1960, %v2877, -inf
    %v2910 = vrot.slane %v2909, 4
    %v2911 = vmax.f32 %v2909, %v2910
    %v2912 = vrot.slane %v2911, 2
    %v2913 = vmax.f32 %v2911, %v2912
    %v2914 = vrot.slane %v2913, 1
    %v2915 = vmax.f32 %v2913, %v2914
    %v2916 = vsel %vm1960, %v2878, -inf
    %v2917 = vrot.slane %v2916, 4
    %v2918 = vmax.f32 %v2916, %v2917
    %v2919 = vrot.slane %v2918, 2
    %v2920 = vmax.f32 %v2918, %v2919
    %v2921 = vrot.slane %v2920, 1
    %v2922 = vmax.f32 %v2920, %v2921
    %v2923 = vsel %vm1960, %v2879, -inf
    %v2924 = vrot.slane %v2923, 4
    %v2925 = vmax.f32 %v2923, %v2924
    %v2926 = vrot.slane %v2925, 2
    %v2927 = vmax.f32 %v2925, %v2926
    %v2928 = vrot.slane %v2927, 1
    %v2929 = vmax.f32 %v2927, %v2928
    %v2930 = vsel %vm1960, %v2880, -inf
    %v2931 = vrot.slane %v2930, 4
    %v2932 = vmax.f32 %v2930, %v2931
    %v2933 = vrot.slane %v2932, 2
    %v2934 = vmax.f32 %v2932, %v2933
    %v2935 = vrot.slane %v2934, 1
    %v2936 = vmax.f32 %v2934, %v2935
    %v2937 = vsub.f32 %v2873, %v2887
    %v2938 = vsub.f32 %v2874, %v2894
    %v2939 = vsub.f32 %v2875, %v2901
    %v2940 = vsub.f32 %v2876, %v2908
    %v2941 = vsub.f32 %v2877, %v2915
    %v2942 = vsub.f32 %v2878, %v2922
    %v2943 = vsub.f32 %v2879, %v2929
    %v2944 = vsub.f32 %v2880, %v2936
    %v2945 = vmul.f32 %v2937, 1.442695
    %v2946 = vpow.pop %v2945
    %v2947 = vmul.f32 %v2938, 1.442695
    %v2948 = vpow.pop %v2947
    %v2949 = vmul.f32 %v2939, 1.442695
    %v2950 = vpow.pop %v2949
    %v2951 = vmul.f32 %v2940, 1.442695
    %v2952 = vpow.pop %v2951
    %v2953 = vmul.f32 %v2941, 1.442695
    %v2954 = vpow.pop %v2953
    %v2955 = vmul.f32 %v2942, 1.442695
    %v2956 = vpow.pop %v2955
    %v2957 = vmul.f32 %v2943, 1.442695
    %v2958 = vpow.pop %v2957
    %v2959 = vmul.f32 %v2944, 1.442695
    %v2960 = vpow.pop %v2959
    %v2961 = vsel %vm1960, %v2946, 0.0
    %v2962 = vrot.slane %v2961, 4
    %v2963 = vadd.f32 %v2961, %v2962
    %v2964 = vrot.slane %v2963, 2
    %v2965 = vadd.f32 %v2963, %v2964
    %v2966 = vrot.slane %v2965, 1
    %v2967 = vadd.f32 %v2965, %v2966
    %v2968 = vsel %vm1960, %v2948, 0.0
    %v2969 = vrot.slane %v2968, 4
    %v2970 = vadd.f32 %v2968, %v2969
    %v2971 = vrot.slane %v2970, 2
    %v2972 = vadd.f32 %v2970, %v2971
    %v2973 = vrot.slane %v2972, 1
    %v2974 = vadd.f32 %v2972, %v2973
    %v2975 = vsel %vm1960, %v2950, 0.0
    %v2976 = vrot.slane %v2975, 4
    %v2977 = vadd.f32 %v2975, %v2976
    %v2978 = vrot.slane %v2977, 2
    %v2979 = vadd.f32 %v2977, %v2978
    %v2980 = vrot.slane %v2979, 1
    %v2981 = vadd.f32 %v2979, %v2980
    %v2982 = vsel %vm1960, %v2952, 0.0
    %v2983 = vrot.slane %v2982, 4
    %v2984 = vadd.f32 %v2982, %v2983
    %v2985 = vrot.slane %v2984, 2
    %v2986 = vadd.f32 %v2984, %v2985
    %v2987 = vrot.slane %v2986, 1
    %v2988 = vadd.f32 %v2986, %v2987
    %v2989 = vsel %vm1960, %v2954, 0.0
    %v2990 = vrot.slane %v2989, 4
    %v2991 = vadd.f32 %v2989, %v2990
    %v2992 = vrot.slane %v2991, 2
    %v2993 = vadd.f32 %v2991, %v2992
    %v2994 = vrot.slane %v2993, 1
    %v2995 = vadd.f32 %v2993, %v2994
    %v2996 = vsel %vm1960, %v2956, 0.0
    %v2997 = vrot.slane %v2996, 4
    %v2998 = vadd.f32 %v2996, %v2997
    %v2999 = vrot.slane %v2998, 2
    %v3000 = vadd.f32 %v2998, %v2999
    %v3001 = vrot.slane %v3000, 1
    %v3002 = vadd.f32 %v3000, %v3001
    %v3003 = vsel %vm1960, %v2958, 0.0
    %v3004 = vrot.slane %v3003, 4
    %v3005 = vadd.f32 %v3003, %v3004
    %v3006 = vrot.slane %v3005, 2
    %v3007 = vadd.f32 %v3005, %v3006
    %v3008 = vrot.slane %v3007, 1
    %v3009 = vadd.f32 %v3007, %v3008
    %v3010 = vsel %vm1960, %v2960, 0.0
    %v3011 = vrot.slane %v3010, 4
    %v3012 = vadd.f32 %v3010, %v3011
    %v3013 = vrot.slane %v3012, 2
    %v3014 = vadd.f32 %v3012, %v3013
    %v3015 = vrot.slane %v3014, 1
    %v3016 = vadd.f32 %v3014, %v3015
    %v3017 = vlog2.pop %v2967
    %v3018 = vmul.f32 %v3017, 0.6931472
    %v3019 = vlog2.pop %v2974
    %v3020 = vmul.f32 %v3019, 0.6931472
    %v3021 = vlog2.pop %v2981
    %v3022 = vmul.f32 %v3021, 0.6931472
    %v3023 = vlog2.pop %v2988
    %v3024 = vmul.f32 %v3023, 0.6931472
    %v3025 = vlog2.pop %v2995
    %v3026 = vmul.f32 %v3025, 0.6931472
    %v3027 = vlog2.pop %v3002
    %v3028 = vmul.f32 %v3027, 0.6931472
    %v3029 = vlog2.pop %v3009
    %v3030 = vmul.f32 %v3029, 0.6931472
    %v3031 = vlog2.pop %v3016
    %v3032 = vmul.f32 %v3031, 0.6931472
    %v3033 = vadd.f32 %v2887, %v3018
    %v3034 = vadd.f32 %v2894, %v3020
    %v3035 = vadd.f32 %v2901, %v3022
    %v3036 = vadd.f32 %v2908, %v3024
    %v3037 = vadd.f32 %v2915, %v3026
    %v3038 = vadd.f32 %v2922, %v3028
    %v3039 = vadd.f32 %v2929, %v3030
    %v3040 = vadd.f32 %v2936, %v3032
    %v3041 = vsub.f32 %v2873, %v3033
    %v3042 = vsub.f32 %v2874, %v3034
    %v3043 = vsub.f32 %v2875, %v3035
    %v3044 = vsub.f32 %v2876, %v3036
    %v3045 = vsub.f32 %v2877, %v3037
    %v3046 = vsub.f32 %v2878, %v3038
    %v3047 = vsub.f32 %v2879, %v3039
    %v3048 = vsub.f32 %v2880, %v3040
    %v3049 = vsel %vm1960, %v3041, -inf
    %3050 = vmax.xlane.f32.xlu0 %v3049
    %v3051 = vpop.xlane.xlu0 %3050
    %v3052 = vsel %vm1960, %v3042, -inf
    %3053 = vmax.xlane.f32.xlu0 %v3052
    %v3054 = vpop.xlane.xlu0 %3053
    %v3055 = vsel %vm1960, %v3043, -inf
    %3056 = vmax.xlane.f32.xlu0 %v3055
    %v3057 = vpop.xlane.xlu0 %3056
    %v3058 = vsel %vm1960, %v3044, -inf
    %3059 = vmax.xlane.f32.xlu0 %v3058
    %v3060 = vpop.xlane.xlu0 %3059
    %v3061 = vsel %vm1960, %v3045, -inf
    %3062 = vmax.xlane.f32.xlu0 %v3061
    %v3063 = vpop.xlane.xlu0 %3062
    %v3064 = vsel %vm1960, %v3046, -inf
    %3065 = vmax.xlane.f32.xlu0 %v3064
    %v3066 = vpop.xlane.xlu0 %3065
    %v3067 = vsel %vm1960, %v3047, -inf
    %3068 = vmax.xlane.f32.xlu0 %v3067
    %v3069 = vpop.xlane.xlu0 %3068
    %v3070 = vsel %vm1960, %v3048, -inf
    %3071 = vmax.xlane.f32.xlu0 %v3070
    %v3072 = vpop.xlane.xlu0 %3071
    %v3073 = vsub.f32 %v3041, %v3051
    %v3074 = vsub.f32 %v3042, %v3054
    %v3075 = vsub.f32 %v3043, %v3057
    %v3076 = vsub.f32 %v3044, %v3060
    %v3077 = vsub.f32 %v3045, %v3063
    %v3078 = vsub.f32 %v3046, %v3066
    %v3079 = vsub.f32 %v3047, %v3069
    %v3080 = vsub.f32 %v3048, %v3072
    %v3081 = vmul.f32 %v3073, 1.442695
    %v3082 = vpow.pop %v3081
    %v3083 = vmul.f32 %v3074, 1.442695
    %v3084 = vpow.pop %v3083
    %v3085 = vmul.f32 %v3075, 1.442695
    %v3086 = vpow.pop %v3085
    %v3087 = vmul.f32 %v3076, 1.442695
    %v3088 = vpow.pop %v3087
    %v3089 = vmul.f32 %v3077, 1.442695
    %v3090 = vpow.pop %v3089
    %v3091 = vmul.f32 %v3078, 1.442695
    %v3092 = vpow.pop %v3091
    %v3093 = vmul.f32 %v3079, 1.442695
    %v3094 = vpow.pop %v3093
    %v3095 = vmul.f32 %v3080, 1.442695
    %v3096 = vpow.pop %v3095
    %v3097 = vsel %vm1960, %v3082, 0.0
    %3098 = vadd.xlane.f32.xlu0 %v3097
    %v3099 = vpop.xlane.xlu0 %3098
    %v3100 = vsel %vm1960, %v3084, 0.0
    %3101 = vadd.xlane.f32.xlu0 %v3100
    %v3102 = vpop.xlane.xlu0 %3101
    %v3103 = vsel %vm1960, %v3086, 0.0
    %3104 = vadd.xlane.f32.xlu0 %v3103
    %v3105 = vpop.xlane.xlu0 %3104
    %v3106 = vsel %vm1960, %v3088, 0.0
    %3107 = vadd.xlane.f32.xlu0 %v3106
    %v3108 = vpop.xlane.xlu0 %3107
    %v3109 = vsel %vm1960, %v3090, 0.0
    %3110 = vadd.xlane.f32.xlu0 %v3109
    %v3111 = vpop.xlane.xlu0 %3110
    %v3112 = vsel %vm1960, %v3092, 0.0
    %3113 = vadd.xlane.f32.xlu0 %v3112
    %v3114 = vpop.xlane.xlu0 %3113
    %v3115 = vsel %vm1960, %v3094, 0.0
    %3116 = vadd.xlane.f32.xlu0 %v3115
    %v3117 = vpop.xlane.xlu0 %3116
    %v3118 = vsel %vm1960, %v3096, 0.0
    %3119 = vadd.xlane.f32.xlu0 %v3118
    %v3120 = vpop.xlane.xlu0 %3119
    %v3121 = vlog2.pop %v3099
    %v3122 = vmul.f32 %v3121, 0.6931472
    %v3123 = vlog2.pop %v3102
    %v3124 = vmul.f32 %v3123, 0.6931472
    %v3125 = vlog2.pop %v3105
    %v3126 = vmul.f32 %v3125, 0.6931472
    %v3127 = vlog2.pop %v3108
    %v3128 = vmul.f32 %v3127, 0.6931472
    %v3129 = vlog2.pop %v3111
    %v3130 = vmul.f32 %v3129, 0.6931472
    %v3131 = vlog2.pop %v3114
    %v3132 = vmul.f32 %v3131, 0.6931472
    %v3133 = vlog2.pop %v3117
    %v3134 = vmul.f32 %v3133, 0.6931472
    %v3135 = vlog2.pop %v3120
    %v3136 = vmul.f32 %v3135, 0.6931472
    %v3137 = vadd.f32 %v3051, %v3122
    %v3138 = vadd.f32 %v3054, %v3124
    %v3139 = vadd.f32 %v3057, %v3126
    %v3140 = vadd.f32 %v3060, %v3128
    %v3141 = vadd.f32 %v3063, %v3130
    %v3142 = vadd.f32 %v3066, %v3132
    %v3143 = vadd.f32 %v3069, %v3134
    %v3144 = vadd.f32 %v3072, %v3136
    %v3145 = vsub.f32 %v3041, %v3137
    %v3146 = vsub.f32 %v3042, %v3138
    %v3147 = vsub.f32 %v3043, %v3139
    %v3148 = vsub.f32 %v3044, %v3140
    %v3149 = vsub.f32 %v3045, %v3141
    %v3150 = vsub.f32 %v3046, %v3142
    %v3151 = vsub.f32 %v3047, %v3143
    %v3152 = vsub.f32 %v3048, %v3144
    %v3153 = vsel %vm1960, %v3145, -inf
    %v3154 = vrot.slane %v3153, 4
    %v3155 = vmax.f32 %v3153, %v3154
    %v3156 = vrot.slane %v3155, 2
    %v3157 = vmax.f32 %v3155, %v3156
    %v3158 = vrot.slane %v3157, 1
    %v3159 = vmax.f32 %v3157, %v3158
    %v3160 = vsel %vm1960, %v3146, -inf
    %v3161 = vrot.slane %v3160, 4
    %v3162 = vmax.f32 %v3160, %v3161
    %v3163 = vrot.slane %v3162, 2
    %v3164 = vmax.f32 %v3162, %v3163
    %v3165 = vrot.slane %v3164, 1
    %v3166 = vmax.f32 %v3164, %v3165
    %v3167 = vsel %vm1960, %v3147, -inf
    %v3168 = vrot.slane %v3167, 4
    %v3169 = vmax.f32 %v3167, %v3168
    %v3170 = vrot.slane %v3169, 2
    %v3171 = vmax.f32 %v3169, %v3170
    %v3172 = vrot.slane %v3171, 1
    %v3173 = vmax.f32 %v3171, %v3172
    %v3174 = vsel %vm1960, %v3148, -inf
    %v3175 = vrot.slane %v3174, 4
    %v3176 = vmax.f32 %v3174, %v3175
    %v3177 = vrot.slane %v3176, 2
    %v3178 = vmax.f32 %v3176, %v3177
    %v3179 = vrot.slane %v3178, 1
    %v3180 = vmax.f32 %v3178, %v3179
    %v3181 = vsel %vm1960, %v3149, -inf
    %v3182 = vrot.slane %v3181, 4
    %v3183 = vmax.f32 %v3181, %v3182
    %v3184 = vrot.slane %v3183, 2
    %v3185 = vmax.f32 %v3183, %v3184
    %v3186 = vrot.slane %v3185, 1
    %v3187 = vmax.f32 %v3185, %v3186
    %v3188 = vsel %vm1960, %v3150, -inf
    %v3189 = vrot.slane %v3188, 4
    %v3190 = vmax.f32 %v3188, %v3189
    %v3191 = vrot.slane %v3190, 2
    %v3192 = vmax.f32 %v3190, %v3191
    %v3193 = vrot.slane %v3192, 1
    %v3194 = vmax.f32 %v3192, %v3193
    %v3195 = vsel %vm1960, %v3151, -inf
    %v3196 = vrot.slane %v3195, 4
    %v3197 = vmax.f32 %v3195, %v3196
    %v3198 = vrot.slane %v3197, 2
    %v3199 = vmax.f32 %v3197, %v3198
    %v3200 = vrot.slane %v3199, 1
    %v3201 = vmax.f32 %v3199, %v3200
    %v3202 = vsel %vm1960, %v3152, -inf
    %v3203 = vrot.slane %v3202, 4
    %v3204 = vmax.f32 %v3202, %v3203
    %v3205 = vrot.slane %v3204, 2
    %v3206 = vmax.f32 %v3204, %v3205
    %v3207 = vrot.slane %v3206, 1
    %v3208 = vmax.f32 %v3206, %v3207
    %v3209 = vsub.f32 %v3145, %v3159
    %v3210 = vsub.f32 %v3146, %v3166
    %v3211 = vsub.f32 %v3147, %v3173
    %v3212 = vsub.f32 %v3148, %v3180
    %v3213 = vsub.f32 %v3149, %v3187
    %v3214 = vsub.f32 %v3150, %v3194
    %v3215 = vsub.f32 %v3151, %v3201
    %v3216 = vsub.f32 %v3152, %v3208
    %v3217 = vmul.f32 %v3209, 1.442695
    %v3218 = vpow.pop %v3217
    %v3219 = vmul.f32 %v3210, 1.442695
    %v3220 = vpow.pop %v3219
    %v3221 = vmul.f32 %v3211, 1.442695
    %v3222 = vpow.pop %v3221
    %v3223 = vmul.f32 %v3212, 1.442695
    %v3224 = vpow.pop %v3223
    %v3225 = vmul.f32 %v3213, 1.442695
    %v3226 = vpow.pop %v3225
    %v3227 = vmul.f32 %v3214, 1.442695
    %v3228 = vpow.pop %v3227
    %v3229 = vmul.f32 %v3215, 1.442695
    %v3230 = vpow.pop %v3229
    %v3231 = vmul.f32 %v3216, 1.442695
    %v3232 = vpow.pop %v3231
    %v3233 = vsel %vm1960, %v3218, 0.0
    %v3234 = vrot.slane %v3233, 4
    %v3235 = vadd.f32 %v3233, %v3234
    %v3236 = vrot.slane %v3235, 2
    %v3237 = vadd.f32 %v3235, %v3236
    %v3238 = vrot.slane %v3237, 1
    %v3239 = vadd.f32 %v3237, %v3238
    %v3240 = vsel %vm1960, %v3220, 0.0
    %v3241 = vrot.slane %v3240, 4
    %v3242 = vadd.f32 %v3240, %v3241
    %v3243 = vrot.slane %v3242, 2
    %v3244 = vadd.f32 %v3242, %v3243
    %v3245 = vrot.slane %v3244, 1
    %v3246 = vadd.f32 %v3244, %v3245
    %v3247 = vsel %vm1960, %v3222, 0.0
    %v3248 = vrot.slane %v3247, 4
    %v3249 = vadd.f32 %v3247, %v3248
    %v3250 = vrot.slane %v3249, 2
    %v3251 = vadd.f32 %v3249, %v3250
    %v3252 = vrot.slane %v3251, 1
    %v3253 = vadd.f32 %v3251, %v3252
    %v3254 = vsel %vm1960, %v3224, 0.0
    %v3255 = vrot.slane %v3254, 4
    %v3256 = vadd.f32 %v3254, %v3255
    %v3257 = vrot.slane %v3256, 2
    %v3258 = vadd.f32 %v3256, %v3257
    %v3259 = vrot.slane %v3258, 1
    %v3260 = vadd.f32 %v3258, %v3259
    %v3261 = vsel %vm1960, %v3226, 0.0
    %v3262 = vrot.slane %v3261, 4
    %v3263 = vadd.f32 %v3261, %v3262
    %v3264 = vrot.slane %v3263, 2
    %v3265 = vadd.f32 %v3263, %v3264
    %v3266 = vrot.slane %v3265, 1
    %v3267 = vadd.f32 %v3265, %v3266
    %v3268 = vsel %vm1960, %v3228, 0.0
    %v3269 = vrot.slane %v3268, 4
    %v3270 = vadd.f32 %v3268, %v3269
    %v3271 = vrot.slane %v3270, 2
    %v3272 = vadd.f32 %v3270, %v3271
    %v3273 = vrot.slane %v3272, 1
    %v3274 = vadd.f32 %v3272, %v3273
    %v3275 = vsel %vm1960, %v3230, 0.0
    %v3276 = vrot.slane %v3275, 4
    %v3277 = vadd.f32 %v3275, %v3276
    %v3278 = vrot.slane %v3277, 2
    %v3279 = vadd.f32 %v3277, %v3278
    %v3280 = vrot.slane %v3279, 1
    %v3281 = vadd.f32 %v3279, %v3280
    %v3282 = vsel %vm1960, %v3232, 0.0
    %v3283 = vrot.slane %v3282, 4
    %v3284 = vadd.f32 %v3282, %v3283
    %v3285 = vrot.slane %v3284, 2
    %v3286 = vadd.f32 %v3284, %v3285
    %v3287 = vrot.slane %v3286, 1
    %v3288 = vadd.f32 %v3286, %v3287
    %v3289 = vlog2.pop %v3239
    %v3290 = vmul.f32 %v3289, 0.6931472
    %v3291 = vlog2.pop %v3246
    %v3292 = vmul.f32 %v3291, 0.6931472
    %v3293 = vlog2.pop %v3253
    %v3294 = vmul.f32 %v3293, 0.6931472
    %v3295 = vlog2.pop %v3260
    %v3296 = vmul.f32 %v3295, 0.6931472
    %v3297 = vlog2.pop %v3267
    %v3298 = vmul.f32 %v3297, 0.6931472
    %v3299 = vlog2.pop %v3274
    %v3300 = vmul.f32 %v3299, 0.6931472
    %v3301 = vlog2.pop %v3281
    %v3302 = vmul.f32 %v3301, 0.6931472
    %v3303 = vlog2.pop %v3288
    %v3304 = vmul.f32 %v3303, 0.6931472
    %v3305 = vadd.f32 %v3159, %v3290
    %v3306 = vadd.f32 %v3166, %v3292
    %v3307 = vadd.f32 %v3173, %v3294
    %v3308 = vadd.f32 %v3180, %v3296
    %v3309 = vadd.f32 %v3187, %v3298
    %v3310 = vadd.f32 %v3194, %v3300
    %v3311 = vadd.f32 %v3201, %v3302
    %v3312 = vadd.f32 %v3208, %v3304
    %v3313 = vsub.f32 %v3145, %v3305
    %v3314 = vsub.f32 %v3146, %v3306
    %v3315 = vsub.f32 %v3147, %v3307
    %v3316 = vsub.f32 %v3148, %v3308
    %v3317 = vsub.f32 %v3149, %v3309
    %v3318 = vsub.f32 %v3150, %v3310
    %v3319 = vsub.f32 %v3151, %v3311
    %v3320 = vsub.f32 %v3152, %v3312
    %v3321 = vsel %vm1960, %v3313, -inf
    %3322 = vmax.xlane.f32.xlu0 %v3321
    %v3323 = vpop.xlane.xlu0 %3322
    %v3324 = vsel %vm1960, %v3314, -inf
    %3325 = vmax.xlane.f32.xlu0 %v3324
    %v3326 = vpop.xlane.xlu0 %3325
    %v3327 = vsel %vm1960, %v3315, -inf
    %3328 = vmax.xlane.f32.xlu0 %v3327
    %v3329 = vpop.xlane.xlu0 %3328
    %v3330 = vsel %vm1960, %v3316, -inf
    %3331 = vmax.xlane.f32.xlu0 %v3330
    %v3332 = vpop.xlane.xlu0 %3331
    %v3333 = vsel %vm1960, %v3317, -inf
    %3334 = vmax.xlane.f32.xlu0 %v3333
    %v3335 = vpop.xlane.xlu0 %3334
    %v3336 = vsel %vm1960, %v3318, -inf
    %3337 = vmax.xlane.f32.xlu0 %v3336
    %v3338 = vpop.xlane.xlu0 %3337
    %v3339 = vsel %vm1960, %v3319, -inf
    %3340 = vmax.xlane.f32.xlu0 %v3339
    %v3341 = vpop.xlane.xlu0 %3340
    %v3342 = vsel %vm1960, %v3320, -inf
    %3343 = vmax.xlane.f32.xlu0 %v3342
    %v3344 = vpop.xlane.xlu0 %3343
    %v3345 = vsub.f32 %v3313, %v3323
    %v3346 = vsub.f32 %v3314, %v3326
    %v3347 = vsub.f32 %v3315, %v3329
    %v3348 = vsub.f32 %v3316, %v3332
    %v3349 = vsub.f32 %v3317, %v3335
    %v3350 = vsub.f32 %v3318, %v3338
    %v3351 = vsub.f32 %v3319, %v3341
    %v3352 = vsub.f32 %v3320, %v3344
    %v3353 = vmul.f32 %v3345, 1.442695
    %v3354 = vpow.pop %v3353
    %v3355 = vmul.f32 %v3346, 1.442695
    %v3356 = vpow.pop %v3355
    %v3357 = vmul.f32 %v3347, 1.442695
    %v3358 = vpow.pop %v3357
    %v3359 = vmul.f32 %v3348, 1.442695
    %v3360 = vpow.pop %v3359
    %v3361 = vmul.f32 %v3349, 1.442695
    %v3362 = vpow.pop %v3361
    %v3363 = vmul.f32 %v3350, 1.442695
    %v3364 = vpow.pop %v3363
    %v3365 = vmul.f32 %v3351, 1.442695
    %v3366 = vpow.pop %v3365
    %v3367 = vmul.f32 %v3352, 1.442695
    %v3368 = vpow.pop %v3367
    %v3369 = vsel %vm1960, %v3354, 0.0
    %3370 = vadd.xlane.f32.xlu0 %v3369
    %v3371 = vpop.xlane.xlu0 %3370
    %v3372 = vsel %vm1960, %v3356, 0.0
    %3373 = vadd.xlane.f32.xlu0 %v3372
    %v3374 = vpop.xlane.xlu0 %3373
    %v3375 = vsel %vm1960, %v3358, 0.0
    %3376 = vadd.xlane.f32.xlu0 %v3375
    %v3377 = vpop.xlane.xlu0 %3376
    %v3378 = vsel %vm1960, %v3360, 0.0
    %3379 = vadd.xlane.f32.xlu0 %v3378
    %v3380 = vpop.xlane.xlu0 %3379
    %v3381 = vsel %vm1960, %v3362, 0.0
    %3382 = vadd.xlane.f32.xlu0 %v3381
    %v3383 = vpop.xlane.xlu0 %3382
    %v3384 = vsel %vm1960, %v3364, 0.0
    %3385 = vadd.xlane.f32.xlu0 %v3384
    %v3386 = vpop.xlane.xlu0 %3385
    %v3387 = vsel %vm1960, %v3366, 0.0
    %3388 = vadd.xlane.f32.xlu0 %v3387
    %v3389 = vpop.xlane.xlu0 %3388
    %v3390 = vsel %vm1960, %v3368, 0.0
    %3391 = vadd.xlane.f32.xlu0 %v3390
    %v3392 = vpop.xlane.xlu0 %3391
    %v3393 = vlog2.pop %v3371
    %v3394 = vmul.f32 %v3393, 0.6931472
    %v3395 = vlog2.pop %v3374
    %v3396 = vmul.f32 %v3395, 0.6931472
    %v3397 = vlog2.pop %v3377
    %v3398 = vmul.f32 %v3397, 0.6931472
    %v3399 = vlog2.pop %v3380
    %v3400 = vmul.f32 %v3399, 0.6931472
    %v3401 = vlog2.pop %v3383
    %v3402 = vmul.f32 %v3401, 0.6931472
    %v3403 = vlog2.pop %v3386
    %v3404 = vmul.f32 %v3403, 0.6931472
    %v3405 = vlog2.pop %v3389
    %v3406 = vmul.f32 %v3405, 0.6931472
    %v3407 = vlog2.pop %v3392
    %v3408 = vmul.f32 %v3407, 0.6931472
    %v3409 = vadd.f32 %v3323, %v3394
    %v3410 = vadd.f32 %v3326, %v3396
    %v3411 = vadd.f32 %v3329, %v3398
    %v3412 = vadd.f32 %v3332, %v3400
    %v3413 = vadd.f32 %v3335, %v3402
    %v3414 = vadd.f32 %v3338, %v3404
    %v3415 = vadd.f32 %v3341, %v3406
    %v3416 = vadd.f32 %v3344, %v3408
    %v3417 = vsub.f32 %v3313, %v3409
    %v3418 = vsub.f32 %v3314, %v3410
    %v3419 = vsub.f32 %v3315, %v3411
    %v3420 = vsub.f32 %v3316, %v3412
    %v3421 = vsub.f32 %v3317, %v3413
    %v3422 = vsub.f32 %v3318, %v3414
    %v3423 = vsub.f32 %v3319, %v3415
    %v3424 = vsub.f32 %v3320, %v3416
    %v3425 = vsel %vm1960, %v3417, -inf
    %v3426 = vrot.slane %v3425, 4
    %v3427 = vmax.f32 %v3425, %v3426
    %v3428 = vrot.slane %v3427, 2
    %v3429 = vmax.f32 %v3427, %v3428
    %v3430 = vrot.slane %v3429, 1
    %v3431 = vmax.f32 %v3429, %v3430
    %v3432 = vsel %vm1960, %v3418, -inf
    %v3433 = vrot.slane %v3432, 4
    %v3434 = vmax.f32 %v3432, %v3433
    %v3435 = vrot.slane %v3434, 2
    %v3436 = vmax.f32 %v3434, %v3435
    %v3437 = vrot.slane %v3436, 1
    %v3438 = vmax.f32 %v3436, %v3437
    %v3439 = vsel %vm1960, %v3419, -inf
    %v3440 = vrot.slane %v3439, 4
    %v3441 = vmax.f32 %v3439, %v3440
    %v3442 = vrot.slane %v3441, 2
    %v3443 = vmax.f32 %v3441, %v3442
    %v3444 = vrot.slane %v3443, 1
    %v3445 = vmax.f32 %v3443, %v3444
    %v3446 = vsel %vm1960, %v3420, -inf
    %v3447 = vrot.slane %v3446, 4
    %v3448 = vmax.f32 %v3446, %v3447
    %v3449 = vrot.slane %v3448, 2
    %v3450 = vmax.f32 %v3448, %v3449
    %v3451 = vrot.slane %v3450, 1
    %v3452 = vmax.f32 %v3450, %v3451
    %v3453 = vsel %vm1960, %v3421, -inf
    %v3454 = vrot.slane %v3453, 4
    %v3455 = vmax.f32 %v3453, %v3454
    %v3456 = vrot.slane %v3455, 2
    %v3457 = vmax.f32 %v3455, %v3456
    %v3458 = vrot.slane %v3457, 1
    %v3459 = vmax.f32 %v3457, %v3458
    %v3460 = vsel %vm1960, %v3422, -inf
    %v3461 = vrot.slane %v3460, 4
    %v3462 = vmax.f32 %v3460, %v3461
    %v3463 = vrot.slane %v3462, 2
    %v3464 = vmax.f32 %v3462, %v3463
    %v3465 = vrot.slane %v3464, 1
    %v3466 = vmax.f32 %v3464, %v3465
    %v3467 = vsel %vm1960, %v3423, -inf
    %v3468 = vrot.slane %v3467, 4
    %v3469 = vmax.f32 %v3467, %v3468
    %v3470 = vrot.slane %v3469, 2
    %v3471 = vmax.f32 %v3469, %v3470
    %v3472 = vrot.slane %v3471, 1
    %v3473 = vmax.f32 %v3471, %v3472
    %v3474 = vsel %vm1960, %v3424, -inf
    %v3475 = vrot.slane %v3474, 4
    %v3476 = vmax.f32 %v3474, %v3475
    %v3477 = vrot.slane %v3476, 2
    %v3478 = vmax.f32 %v3476, %v3477
    %v3479 = vrot.slane %v3478, 1
    %v3480 = vmax.f32 %v3478, %v3479
    %v3481 = vsub.f32 %v3417, %v3431
    %v3482 = vsub.f32 %v3418, %v3438
    %v3483 = vsub.f32 %v3419, %v3445
    %v3484 = vsub.f32 %v3420, %v3452
    %v3485 = vsub.f32 %v3421, %v3459
    %v3486 = vsub.f32 %v3422, %v3466
    %v3487 = vsub.f32 %v3423, %v3473
    %v3488 = vsub.f32 %v3424, %v3480
    %v3489 = vmul.f32 %v3481, 1.442695
    %v3490 = vpow.pop %v3489
    %v3491 = vmul.f32 %v3482, 1.442695
    %v3492 = vpow.pop %v3491
    %v3493 = vmul.f32 %v3483, 1.442695
    %v3494 = vpow.pop %v3493
    %v3495 = vmul.f32 %v3484, 1.442695
    %v3496 = vpow.pop %v3495
    %v3497 = vmul.f32 %v3485, 1.442695
    %v3498 = vpow.pop %v3497
    %v3499 = vmul.f32 %v3486, 1.442695
    %v3500 = vpow.pop %v3499
    %v3501 = vmul.f32 %v3487, 1.442695
    %v3502 = vpow.pop %v3501
    %v3503 = vmul.f32 %v3488, 1.442695
    %v3504 = vpow.pop %v3503
    %v3505 = vsel %vm1960, %v3490, 0.0
    %v3506 = vrot.slane %v3505, 4
    %v3507 = vadd.f32 %v3505, %v3506
    %v3508 = vrot.slane %v3507, 2
    %v3509 = vadd.f32 %v3507, %v3508
    %v3510 = vrot.slane %v3509, 1
    %v3511 = vadd.f32 %v3509, %v3510
    %v3512 = vsel %vm1960, %v3492, 0.0
    %v3513 = vrot.slane %v3512, 4
    %v3514 = vadd.f32 %v3512, %v3513
    %v3515 = vrot.slane %v3514, 2
    %v3516 = vadd.f32 %v3514, %v3515
    %v3517 = vrot.slane %v3516, 1
    %v3518 = vadd.f32 %v3516, %v3517
    %v3519 = vsel %vm1960, %v3494, 0.0
    %v3520 = vrot.slane %v3519, 4
    %v3521 = vadd.f32 %v3519, %v3520
    %v3522 = vrot.slane %v3521, 2
    %v3523 = vadd.f32 %v3521, %v3522
    %v3524 = vrot.slane %v3523, 1
    %v3525 = vadd.f32 %v3523, %v3524
    %v3526 = vsel %vm1960, %v3496, 0.0
    %v3527 = vrot.slane %v3526, 4
    %v3528 = vadd.f32 %v3526, %v3527
    %v3529 = vrot.slane %v3528, 2
    %v3530 = vadd.f32 %v3528, %v3529
    %v3531 = vrot.slane %v3530, 1
    %v3532 = vadd.f32 %v3530, %v3531
    %v3533 = vsel %vm1960, %v3498, 0.0
    %v3534 = vrot.slane %v3533, 4
    %v3535 = vadd.f32 %v3533, %v3534
    %v3536 = vrot.slane %v3535, 2
    %v3537 = vadd.f32 %v3535, %v3536
    %v3538 = vrot.slane %v3537, 1
    %v3539 = vadd.f32 %v3537, %v3538
    %v3540 = vsel %vm1960, %v3500, 0.0
    %v3541 = vrot.slane %v3540, 4
    %v3542 = vadd.f32 %v3540, %v3541
    %v3543 = vrot.slane %v3542, 2
    %v3544 = vadd.f32 %v3542, %v3543
    %v3545 = vrot.slane %v3544, 1
    %v3546 = vadd.f32 %v3544, %v3545
    %v3547 = vsel %vm1960, %v3502, 0.0
    %v3548 = vrot.slane %v3547, 4
    %v3549 = vadd.f32 %v3547, %v3548
    %v3550 = vrot.slane %v3549, 2
    %v3551 = vadd.f32 %v3549, %v3550
    %v3552 = vrot.slane %v3551, 1
    %v3553 = vadd.f32 %v3551, %v3552
    %v3554 = vsel %vm1960, %v3504, 0.0
    %v3555 = vrot.slane %v3554, 4
    %v3556 = vadd.f32 %v3554, %v3555
    %v3557 = vrot.slane %v3556, 2
    %v3558 = vadd.f32 %v3556, %v3557
    %v3559 = vrot.slane %v3558, 1
    %v3560 = vadd.f32 %v3558, %v3559
    %v3561 = vlog2.pop %v3511
    %v3562 = vmul.f32 %v3561, 0.6931472
    %v3563 = vlog2.pop %v3518
    %v3564 = vmul.f32 %v3563, 0.6931472
    %v3565 = vlog2.pop %v3525
    %v3566 = vmul.f32 %v3565, 0.6931472
    %v3567 = vlog2.pop %v3532
    %v3568 = vmul.f32 %v3567, 0.6931472
    %v3569 = vlog2.pop %v3539
    %v3570 = vmul.f32 %v3569, 0.6931472
    %v3571 = vlog2.pop %v3546
    %v3572 = vmul.f32 %v3571, 0.6931472
    %v3573 = vlog2.pop %v3553
    %v3574 = vmul.f32 %v3573, 0.6931472
    %v3575 = vlog2.pop %v3560
    %v3576 = vmul.f32 %v3575, 0.6931472
    %v3577 = vadd.f32 %v3431, %v3562
    %v3578 = vadd.f32 %v3438, %v3564
    %v3579 = vadd.f32 %v3445, %v3566
    %v3580 = vadd.f32 %v3452, %v3568
    %v3581 = vadd.f32 %v3459, %v3570
    %v3582 = vadd.f32 %v3466, %v3572
    %v3583 = vadd.f32 %v3473, %v3574
    %v3584 = vadd.f32 %v3480, %v3576
    %v3585 = vsub.f32 %v3417, %v3577
    %v3586 = vsub.f32 %v3418, %v3578
    %v3587 = vsub.f32 %v3419, %v3579
    %v3588 = vsub.f32 %v3420, %v3580
    %v3589 = vsub.f32 %v3421, %v3581
    %v3590 = vsub.f32 %v3422, %v3582
    %v3591 = vsub.f32 %v3423, %v3583
    %v3592 = vsub.f32 %v3424, %v3584
    %v3593 = vsel %vm1960, %v3585, -inf
    %3594 = vmax.xlane.f32.xlu0 %v3593
    %v3595 = vpop.xlane.xlu0 %3594
    %v3596 = vsel %vm1960, %v3586, -inf
    %3597 = vmax.xlane.f32.xlu0 %v3596
    %v3598 = vpop.xlane.xlu0 %3597
    %v3599 = vsel %vm1960, %v3587, -inf
    %3600 = vmax.xlane.f32.xlu0 %v3599
    %v3601 = vpop.xlane.xlu0 %3600
    %v3602 = vsel %vm1960, %v3588, -inf
    %3603 = vmax.xlane.f32.xlu0 %v3602
    %v3604 = vpop.xlane.xlu0 %3603
    %v3605 = vsel %vm1960, %v3589, -inf
    %3606 = vmax.xlane.f32.xlu0 %v3605
    %v3607 = vpop.xlane.xlu0 %3606
    %v3608 = vsel %vm1960, %v3590, -inf
    %3609 = vmax.xlane.f32.xlu0 %v3608
    %v3610 = vpop.xlane.xlu0 %3609
    %v3611 = vsel %vm1960, %v3591, -inf
    %3612 = vmax.xlane.f32.xlu0 %v3611
    %v3613 = vpop.xlane.xlu0 %3612
    %v3614 = vsel %vm1960, %v3592, -inf
    %3615 = vmax.xlane.f32.xlu0 %v3614
    %v3616 = vpop.xlane.xlu0 %3615
    %v3617 = vsub.f32 %v3585, %v3595
    %v3618 = vsub.f32 %v3586, %v3598
    %v3619 = vsub.f32 %v3587, %v3601
    %v3620 = vsub.f32 %v3588, %v3604
    %v3621 = vsub.f32 %v3589, %v3607
    %v3622 = vsub.f32 %v3590, %v3610
    %v3623 = vsub.f32 %v3591, %v3613
    %v3624 = vsub.f32 %v3592, %v3616
    %v3625 = vmul.f32 %v3617, 1.442695
    %v3626 = vpow.pop %v3625
    %v3627 = vmul.f32 %v3618, 1.442695
    %v3628 = vpow.pop %v3627
    %v3629 = vmul.f32 %v3619, 1.442695
    %v3630 = vpow.pop %v3629
    %v3631 = vmul.f32 %v3620, 1.442695
    %v3632 = vpow.pop %v3631
    %v3633 = vmul.f32 %v3621, 1.442695
    %v3634 = vpow.pop %v3633
    %v3635 = vmul.f32 %v3622, 1.442695
    %v3636 = vpow.pop %v3635
    %v3637 = vmul.f32 %v3623, 1.442695
    %v3638 = vpow.pop %v3637
    %v3639 = vmul.f32 %v3624, 1.442695
    %v3640 = vpow.pop %v3639
    %v3641 = vsel %vm1960, %v3626, 0.0
    %3642 = vadd.xlane.f32.xlu0 %v3641
    %v3643 = vpop.xlane.xlu0 %3642
    %v3644 = vsel %vm1960, %v3628, 0.0
    %3645 = vadd.xlane.f32.xlu0 %v3644
    %v3646 = vpop.xlane.xlu0 %3645
    %v3647 = vsel %vm1960, %v3630, 0.0
    %3648 = vadd.xlane.f32.xlu0 %v3647
    %v3649 = vpop.xlane.xlu0 %3648
    %v3650 = vsel %vm1960, %v3632, 0.0
    %3651 = vadd.xlane.f32.xlu0 %v3650
    %v3652 = vpop.xlane.xlu0 %3651
    %v3653 = vsel %vm1960, %v3634, 0.0
    %3654 = vadd.xlane.f32.xlu0 %v3653
    %v3655 = vpop.xlane.xlu0 %3654
    %v3656 = vsel %vm1960, %v3636, 0.0
    %3657 = vadd.xlane.f32.xlu0 %v3656
    %v3658 = vpop.xlane.xlu0 %3657
    %v3659 = vsel %vm1960, %v3638, 0.0
    %3660 = vadd.xlane.f32.xlu0 %v3659
    %v3661 = vpop.xlane.xlu0 %3660
    %v3662 = vsel %vm1960, %v3640, 0.0
    %3663 = vadd.xlane.f32.xlu0 %v3662
    %v3664 = vpop.xlane.xlu0 %3663
    %v3665 = vlog2.pop %v3643
    %v3666 = vmul.f32 %v3665, 0.6931472
    %v3667 = vlog2.pop %v3646
    %v3668 = vmul.f32 %v3667, 0.6931472
    %v3669 = vlog2.pop %v3649
    %v3670 = vmul.f32 %v3669, 0.6931472
    %v3671 = vlog2.pop %v3652
    %v3672 = vmul.f32 %v3671, 0.6931472
    %v3673 = vlog2.pop %v3655
    %v3674 = vmul.f32 %v3673, 0.6931472
    %v3675 = vlog2.pop %v3658
    %v3676 = vmul.f32 %v3675, 0.6931472
    %v3677 = vlog2.pop %v3661
    %v3678 = vmul.f32 %v3677, 0.6931472
    %v3679 = vlog2.pop %v3664
    %v3680 = vmul.f32 %v3679, 0.6931472
    %v3681 = vadd.f32 %v3595, %v3666
    %v3682 = vadd.f32 %v3598, %v3668
    %v3683 = vadd.f32 %v3601, %v3670
    %v3684 = vadd.f32 %v3604, %v3672
    %v3685 = vadd.f32 %v3607, %v3674
    %v3686 = vadd.f32 %v3610, %v3676
    %v3687 = vadd.f32 %v3613, %v3678
    %v3688 = vadd.f32 %v3616, %v3680
    %v3689 = vsub.f32 %v3585, %v3681
    %v3690 = vsub.f32 %v3586, %v3682
    %v3691 = vsub.f32 %v3587, %v3683
    %v3692 = vsub.f32 %v3588, %v3684
    %v3693 = vsub.f32 %v3589, %v3685
    %v3694 = vsub.f32 %v3590, %v3686
    %v3695 = vsub.f32 %v3591, %v3687
    %v3696 = vsub.f32 %v3592, %v3688
    %v3697 = vsel %vm1960, %v3689, -inf
    %v3698 = vrot.slane %v3697, 4
    %v3699 = vmax.f32 %v3697, %v3698
    %v3700 = vrot.slane %v3699, 2
    %v3701 = vmax.f32 %v3699, %v3700
    %v3702 = vrot.slane %v3701, 1
    %v3703 = vmax.f32 %v3701, %v3702
    %v3704 = vsel %vm1960, %v3690, -inf
    %v3705 = vrot.slane %v3704, 4
    %v3706 = vmax.f32 %v3704, %v3705
    %v3707 = vrot.slane %v3706, 2
    %v3708 = vmax.f32 %v3706, %v3707
    %v3709 = vrot.slane %v3708, 1
    %v3710 = vmax.f32 %v3708, %v3709
    %v3711 = vsel %vm1960, %v3691, -inf
    %v3712 = vrot.slane %v3711, 4
    %v3713 = vmax.f32 %v3711, %v3712
    %v3714 = vrot.slane %v3713, 2
    %v3715 = vmax.f32 %v3713, %v3714
    %v3716 = vrot.slane %v3715, 1
    %v3717 = vmax.f32 %v3715, %v3716
    %v3718 = vsel %vm1960, %v3692, -inf
    %v3719 = vrot.slane %v3718, 4
    %v3720 = vmax.f32 %v3718, %v3719
    %v3721 = vrot.slane %v3720, 2
    %v3722 = vmax.f32 %v3720, %v3721
    %v3723 = vrot.slane %v3722, 1
    %v3724 = vmax.f32 %v3722, %v3723
    %v3725 = vsel %vm1960, %v3693, -inf
    %v3726 = vrot.slane %v3725, 4
    %v3727 = vmax.f32 %v3725, %v3726
    %v3728 = vrot.slane %v3727, 2
    %v3729 = vmax.f32 %v3727, %v3728
    %v3730 = vrot.slane %v3729, 1
    %v3731 = vmax.f32 %v3729, %v3730
    %v3732 = vsel %vm1960, %v3694, -inf
    %v3733 = vrot.slane %v3732, 4
    %v3734 = vmax.f32 %v3732, %v3733
    %v3735 = vrot.slane %v3734, 2
    %v3736 = vmax.f32 %v3734, %v3735
    %v3737 = vrot.slane %v3736, 1
    %v3738 = vmax.f32 %v3736, %v3737
    %v3739 = vsel %vm1960, %v3695, -inf
    %v3740 = vrot.slane %v3739, 4
    %v3741 = vmax.f32 %v3739, %v3740
    %v3742 = vrot.slane %v3741, 2
    %v3743 = vmax.f32 %v3741, %v3742
    %v3744 = vrot.slane %v3743, 1
    %v3745 = vmax.f32 %v3743, %v3744
    %v3746 = vsel %vm1960, %v3696, -inf
    %v3747 = vrot.slane %v3746, 4
    %v3748 = vmax.f32 %v3746, %v3747
    %v3749 = vrot.slane %v3748, 2
    %v3750 = vmax.f32 %v3748, %v3749
    %v3751 = vrot.slane %v3750, 1
    %v3752 = vmax.f32 %v3750, %v3751
    %v3753 = vsub.f32 %v3689, %v3703
    %v3754 = vsub.f32 %v3690, %v3710
    %v3755 = vsub.f32 %v3691, %v3717
    %v3756 = vsub.f32 %v3692, %v3724
    %v3757 = vsub.f32 %v3693, %v3731
    %v3758 = vsub.f32 %v3694, %v3738
    %v3759 = vsub.f32 %v3695, %v3745
    %v3760 = vsub.f32 %v3696, %v3752
    %v3761 = vmul.f32 %v3753, 1.442695
    %v3762 = vpow.pop %v3761
    %v3763 = vmul.f32 %v3754, 1.442695
    %v3764 = vpow.pop %v3763
    %v3765 = vmul.f32 %v3755, 1.442695
    %v3766 = vpow.pop %v3765
    %v3767 = vmul.f32 %v3756, 1.442695
    %v3768 = vpow.pop %v3767
    %v3769 = vmul.f32 %v3757, 1.442695
    %v3770 = vpow.pop %v3769
    %v3771 = vmul.f32 %v3758, 1.442695
    %v3772 = vpow.pop %v3771
    %v3773 = vmul.f32 %v3759, 1.442695
    %v3774 = vpow.pop %v3773
    %v3775 = vmul.f32 %v3760, 1.442695
    %v3776 = vpow.pop %v3775
    %v3777 = vsel %vm1960, %v3762, 0.0
    %v3778 = vrot.slane %v3777, 4
    %v3779 = vadd.f32 %v3777, %v3778
    %v3780 = vrot.slane %v3779, 2
    %v3781 = vadd.f32 %v3779, %v3780
    %v3782 = vrot.slane %v3781, 1
    %v3783 = vadd.f32 %v3781, %v3782
    %v3784 = vsel %vm1960, %v3764, 0.0
    %v3785 = vrot.slane %v3784, 4
    %v3786 = vadd.f32 %v3784, %v3785
    %v3787 = vrot.slane %v3786, 2
    %v3788 = vadd.f32 %v3786, %v3787
    %v3789 = vrot.slane %v3788, 1
    %v3790 = vadd.f32 %v3788, %v3789
    %v3791 = vsel %vm1960, %v3766, 0.0
    %v3792 = vrot.slane %v3791, 4
    %v3793 = vadd.f32 %v3791, %v3792
    %v3794 = vrot.slane %v3793, 2
    %v3795 = vadd.f32 %v3793, %v3794
    %v3796 = vrot.slane %v3795, 1
    %v3797 = vadd.f32 %v3795, %v3796
    %v3798 = vsel %vm1960, %v3768, 0.0
    %v3799 = vrot.slane %v3798, 4
    %v3800 = vadd.f32 %v3798, %v3799
    %v3801 = vrot.slane %v3800, 2
    %v3802 = vadd.f32 %v3800, %v3801
    %v3803 = vrot.slane %v3802, 1
    %v3804 = vadd.f32 %v3802, %v3803
    %v3805 = vsel %vm1960, %v3770, 0.0
    %v3806 = vrot.slane %v3805, 4
    %v3807 = vadd.f32 %v3805, %v3806
    %v3808 = vrot.slane %v3807, 2
    %v3809 = vadd.f32 %v3807, %v3808
    %v3810 = vrot.slane %v3809, 1
    %v3811 = vadd.f32 %v3809, %v3810
    %v3812 = vsel %vm1960, %v3772, 0.0
    %v3813 = vrot.slane %v3812, 4
    %v3814 = vadd.f32 %v3812, %v3813
    %v3815 = vrot.slane %v3814, 2
    %v3816 = vadd.f32 %v3814, %v3815
    %v3817 = vrot.slane %v3816, 1
    %v3818 = vadd.f32 %v3816, %v3817
    %v3819 = vsel %vm1960, %v3774, 0.0
    %v3820 = vrot.slane %v3819, 4
    %v3821 = vadd.f32 %v3819, %v3820
    %v3822 = vrot.slane %v3821, 2
    %v3823 = vadd.f32 %v3821, %v3822
    %v3824 = vrot.slane %v3823, 1
    %v3825 = vadd.f32 %v3823, %v3824
    %v3826 = vsel %vm1960, %v3776, 0.0
    %v3827 = vrot.slane %v3826, 4
    %v3828 = vadd.f32 %v3826, %v3827
    %v3829 = vrot.slane %v3828, 2
    %v3830 = vadd.f32 %v3828, %v3829
    %v3831 = vrot.slane %v3830, 1
    %v3832 = vadd.f32 %v3830, %v3831
    %v3833 = vlog2.pop %v3783
    %v3834 = vmul.f32 %v3833, 0.6931472
    %v3835 = vlog2.pop %v3790
    %v3836 = vmul.f32 %v3835, 0.6931472
    %v3837 = vlog2.pop %v3797
    %v3838 = vmul.f32 %v3837, 0.6931472
    %v3839 = vlog2.pop %v3804
    %v3840 = vmul.f32 %v3839, 0.6931472
    %v3841 = vlog2.pop %v3811
    %v3842 = vmul.f32 %v3841, 0.6931472
    %v3843 = vlog2.pop %v3818
    %v3844 = vmul.f32 %v3843, 0.6931472
    %v3845 = vlog2.pop %v3825
    %v3846 = vmul.f32 %v3845, 0.6931472
    %v3847 = vlog2.pop %v3832
    %v3848 = vmul.f32 %v3847, 0.6931472
    %v3849 = vadd.f32 %v3703, %v3834
    %v3850 = vadd.f32 %v3710, %v3836
    %v3851 = vadd.f32 %v3717, %v3838
    %v3852 = vadd.f32 %v3724, %v3840
    %v3853 = vadd.f32 %v3731, %v3842
    %v3854 = vadd.f32 %v3738, %v3844
    %v3855 = vadd.f32 %v3745, %v3846
    %v3856 = vadd.f32 %v3752, %v3848
    %v3857 = vsub.f32 %v3689, %v3849
    %v3858 = vsub.f32 %v3690, %v3850
    %v3859 = vsub.f32 %v3691, %v3851
    %v3860 = vsub.f32 %v3692, %v3852
    %v3861 = vsub.f32 %v3693, %v3853
    %v3862 = vsub.f32 %v3694, %v3854
    %v3863 = vsub.f32 %v3695, %v3855
    %v3864 = vsub.f32 %v3696, %v3856
    %v3865 = vsel %vm1960, %v3857, -inf
    %3866 = vmax.xlane.f32.xlu0 %v3865
    %v3867 = vpop.xlane.xlu0 %3866
    %v3868 = vsel %vm1960, %v3858, -inf
    %3869 = vmax.xlane.f32.xlu0 %v3868
    %v3870 = vpop.xlane.xlu0 %3869
    %v3871 = vsel %vm1960, %v3859, -inf
    %3872 = vmax.xlane.f32.xlu0 %v3871
    %v3873 = vpop.xlane.xlu0 %3872
    %v3874 = vsel %vm1960, %v3860, -inf
    %3875 = vmax.xlane.f32.xlu0 %v3874
    %v3876 = vpop.xlane.xlu0 %3875
    %v3877 = vsel %vm1960, %v3861, -inf
    %3878 = vmax.xlane.f32.xlu0 %v3877
    %v3879 = vpop.xlane.xlu0 %3878
    %v3880 = vsel %vm1960, %v3862, -inf
    %3881 = vmax.xlane.f32.xlu0 %v3880
    %v3882 = vpop.xlane.xlu0 %3881
    %v3883 = vsel %vm1960, %v3863, -inf
    %3884 = vmax.xlane.f32.xlu0 %v3883
    %v3885 = vpop.xlane.xlu0 %3884
    %v3886 = vsel %vm1960, %v3864, -inf
    %3887 = vmax.xlane.f32.xlu0 %v3886
    %v3888 = vpop.xlane.xlu0 %3887
    %v3889 = vsub.f32 %v3857, %v3867
    %v3890 = vsub.f32 %v3858, %v3870
    %v3891 = vsub.f32 %v3859, %v3873
    %v3892 = vsub.f32 %v3860, %v3876
    %v3893 = vsub.f32 %v3861, %v3879
    %v3894 = vsub.f32 %v3862, %v3882
    %v3895 = vsub.f32 %v3863, %v3885
    %v3896 = vsub.f32 %v3864, %v3888
    %v3897 = vmul.f32 %v3889, 1.442695
    %v3898 = vpow.pop %v3897
    %v3899 = vmul.f32 %v3890, 1.442695
    %v3900 = vpow.pop %v3899
    %v3901 = vmul.f32 %v3891, 1.442695
    %v3902 = vpow.pop %v3901
    %v3903 = vmul.f32 %v3892, 1.442695
    %v3904 = vpow.pop %v3903
    %v3905 = vmul.f32 %v3893, 1.442695
    %v3906 = vpow.pop %v3905
    %v3907 = vmul.f32 %v3894, 1.442695
    %v3908 = vpow.pop %v3907
    %v3909 = vmul.f32 %v3895, 1.442695
    %v3910 = vpow.pop %v3909
    %v3911 = vmul.f32 %v3896, 1.442695
    %v3912 = vpow.pop %v3911
    %v3913 = vsel %vm1960, %v3898, 0.0
    %3914 = vadd.xlane.f32.xlu0 %v3913
    %v3915 = vpop.xlane.xlu0 %3914
    %v3916 = vsel %vm1960, %v3900, 0.0
    %3917 = vadd.xlane.f32.xlu0 %v3916
    %v3918 = vpop.xlane.xlu0 %3917
    %v3919 = vsel %vm1960, %v3902, 0.0
    %3920 = vadd.xlane.f32.xlu0 %v3919
    %v3921 = vpop.xlane.xlu0 %3920
    %v3922 = vsel %vm1960, %v3904, 0.0
    %3923 = vadd.xlane.f32.xlu0 %v3922
    %v3924 = vpop.xlane.xlu0 %3923
    %v3925 = vsel %vm1960, %v3906, 0.0
    %3926 = vadd.xlane.f32.xlu0 %v3925
    %v3927 = vpop.xlane.xlu0 %3926
    %v3928 = vsel %vm1960, %v3908, 0.0
    %3929 = vadd.xlane.f32.xlu0 %v3928
    %v3930 = vpop.xlane.xlu0 %3929
    %v3931 = vsel %vm1960, %v3910, 0.0
    %3932 = vadd.xlane.f32.xlu0 %v3931
    %v3933 = vpop.xlane.xlu0 %3932
    %v3934 = vsel %vm1960, %v3912, 0.0
    %3935 = vadd.xlane.f32.xlu0 %v3934
    %v3936 = vpop.xlane.xlu0 %3935
    %v3937 = vlog2.pop %v3915
    %v3938 = vmul.f32 %v3937, 0.6931472
    %v3939 = vlog2.pop %v3918
    %v3940 = vmul.f32 %v3939, 0.6931472
    %v3941 = vlog2.pop %v3921
    %v3942 = vmul.f32 %v3941, 0.6931472
    %v3943 = vlog2.pop %v3924
    %v3944 = vmul.f32 %v3943, 0.6931472
    %v3945 = vlog2.pop %v3927
    %v3946 = vmul.f32 %v3945, 0.6931472
    %v3947 = vlog2.pop %v3930
    %v3948 = vmul.f32 %v3947, 0.6931472
    %v3949 = vlog2.pop %v3933
    %v3950 = vmul.f32 %v3949, 0.6931472
    %v3951 = vlog2.pop %v3936
    %v3952 = vmul.f32 %v3951, 0.6931472
    %v3953 = vadd.f32 %v3867, %v3938
    %v3954 = vadd.f32 %v3870, %v3940
    %v3955 = vadd.f32 %v3873, %v3942
    %v3956 = vadd.f32 %v3876, %v3944
    %v3957 = vadd.f32 %v3879, %v3946
    %v3958 = vadd.f32 %v3882, %v3948
    %v3959 = vadd.f32 %v3885, %v3950
    %v3960 = vadd.f32 %v3888, %v3952
    %v3961 = vsub.f32 %v3857, %v3953
    %v3962 = vsub.f32 %v3858, %v3954
    %v3963 = vsub.f32 %v3859, %v3955
    %v3964 = vsub.f32 %v3860, %v3956
    %v3965 = vsub.f32 %v3861, %v3957
    %v3966 = vsub.f32 %v3862, %v3958
    %v3967 = vsub.f32 %v3863, %v3959
    %v3968 = vsub.f32 %v3864, %v3960
    %v3969 = vsel %vm1960, %v3961, -inf
    %v3970 = vrot.slane %v3969, 4
    %v3971 = vmax.f32 %v3969, %v3970
    %v3972 = vrot.slane %v3971, 2
    %v3973 = vmax.f32 %v3971, %v3972
    %v3974 = vrot.slane %v3973, 1
    %v3975 = vmax.f32 %v3973, %v3974
    %v3976 = vsel %vm1960, %v3962, -inf
    %v3977 = vrot.slane %v3976, 4
    %v3978 = vmax.f32 %v3976, %v3977
    %v3979 = vrot.slane %v3978, 2
    %v3980 = vmax.f32 %v3978, %v3979
    %v3981 = vrot.slane %v3980, 1
    %v3982 = vmax.f32 %v3980, %v3981
    %v3983 = vsel %vm1960, %v3963, -inf
    %v3984 = vrot.slane %v3983, 4
    %v3985 = vmax.f32 %v3983, %v3984
    %v3986 = vrot.slane %v3985, 2
    %v3987 = vmax.f32 %v3985, %v3986
    %v3988 = vrot.slane %v3987, 1
    %v3989 = vmax.f32 %v3987, %v3988
    %v3990 = vsel %vm1960, %v3964, -inf
    %v3991 = vrot.slane %v3990, 4
    %v3992 = vmax.f32 %v3990, %v3991
    %v3993 = vrot.slane %v3992, 2
    %v3994 = vmax.f32 %v3992, %v3993
    %v3995 = vrot.slane %v3994, 1
    %v3996 = vmax.f32 %v3994, %v3995
    %v3997 = vsel %vm1960, %v3965, -inf
    %v3998 = vrot.slane %v3997, 4
    %v3999 = vmax.f32 %v3997, %v3998
    %v4000 = vrot.slane %v3999, 2
    %v4001 = vmax.f32 %v3999, %v4000
    %v4002 = vrot.slane %v4001, 1
    %v4003 = vmax.f32 %v4001, %v4002
    %v4004 = vsel %vm1960, %v3966, -inf
    %v4005 = vrot.slane %v4004, 4
    %v4006 = vmax.f32 %v4004, %v4005
    %v4007 = vrot.slane %v4006, 2
    %v4008 = vmax.f32 %v4006, %v4007
    %v4009 = vrot.slane %v4008, 1
    %v4010 = vmax.f32 %v4008, %v4009
    %v4011 = vsel %vm1960, %v3967, -inf
    %v4012 = vrot.slane %v4011, 4
    %v4013 = vmax.f32 %v4011, %v4012
    %v4014 = vrot.slane %v4013, 2
    %v4015 = vmax.f32 %v4013, %v4014
    %v4016 = vrot.slane %v4015, 1
    %v4017 = vmax.f32 %v4015, %v4016
    %v4018 = vsel %vm1960, %v3968, -inf
    %v4019 = vrot.slane %v4018, 4
    %v4020 = vmax.f32 %v4018, %v4019
    %v4021 = vrot.slane %v4020, 2
    %v4022 = vmax.f32 %v4020, %v4021
    %v4023 = vrot.slane %v4022, 1
    %v4024 = vmax.f32 %v4022, %v4023
    %v4025 = vsub.f32 %v3961, %v3975
    %v4026 = vsub.f32 %v3962, %v3982
    %v4027 = vsub.f32 %v3963, %v3989
    %v4028 = vsub.f32 %v3964, %v3996
    %v4029 = vsub.f32 %v3965, %v4003
    %v4030 = vsub.f32 %v3966, %v4010
    %v4031 = vsub.f32 %v3967, %v4017
    %v4032 = vsub.f32 %v3968, %v4024
    %v4033 = vmul.f32 %v4025, 1.442695
    %v4034 = vpow.pop %v4033
    %v4035 = vmul.f32 %v4026, 1.442695
    %v4036 = vpow.pop %v4035
    %v4037 = vmul.f32 %v4027, 1.442695
    %v4038 = vpow.pop %v4037
    %v4039 = vmul.f32 %v4028, 1.442695
    %v4040 = vpow.pop %v4039
    %v4041 = vmul.f32 %v4029, 1.442695
    %v4042 = vpow.pop %v4041
    %v4043 = vmul.f32 %v4030, 1.442695
    %v4044 = vpow.pop %v4043
    %v4045 = vmul.f32 %v4031, 1.442695
    %v4046 = vpow.pop %v4045
    %v4047 = vmul.f32 %v4032, 1.442695
    %v4048 = vpow.pop %v4047
    %v4049 = vsel %vm1960, %v4034, 0.0
    %v4050 = vrot.slane %v4049, 4
    %v4051 = vadd.f32 %v4049, %v4050
    %v4052 = vrot.slane %v4051, 2
    %v4053 = vadd.f32 %v4051, %v4052
    %v4054 = vrot.slane %v4053, 1
    %v4055 = vadd.f32 %v4053, %v4054
    %v4056 = vsel %vm1960, %v4036, 0.0
    %v4057 = vrot.slane %v4056, 4
    %v4058 = vadd.f32 %v4056, %v4057
    %v4059 = vrot.slane %v4058, 2
    %v4060 = vadd.f32 %v4058, %v4059
    %v4061 = vrot.slane %v4060, 1
    %v4062 = vadd.f32 %v4060, %v4061
    %v4063 = vsel %vm1960, %v4038, 0.0
    %v4064 = vrot.slane %v4063, 4
    %v4065 = vadd.f32 %v4063, %v4064
    %v4066 = vrot.slane %v4065, 2
    %v4067 = vadd.f32 %v4065, %v4066
    %v4068 = vrot.slane %v4067, 1
    %v4069 = vadd.f32 %v4067, %v4068
    %v4070 = vsel %vm1960, %v4040, 0.0
    %v4071 = vrot.slane %v4070, 4
    %v4072 = vadd.f32 %v4070, %v4071
    %v4073 = vrot.slane %v4072, 2
    %v4074 = vadd.f32 %v4072, %v4073
    %v4075 = vrot.slane %v4074, 1
    %v4076 = vadd.f32 %v4074, %v4075
    %v4077 = vsel %vm1960, %v4042, 0.0
    %v4078 = vrot.slane %v4077, 4
    %v4079 = vadd.f32 %v4077, %v4078
    %v4080 = vrot.slane %v4079, 2
    %v4081 = vadd.f32 %v4079, %v4080
    %v4082 = vrot.slane %v4081, 1
    %v4083 = vadd.f32 %v4081, %v4082
    %v4084 = vsel %vm1960, %v4044, 0.0
    %v4085 = vrot.slane %v4084, 4
    %v4086 = vadd.f32 %v4084, %v4085
    %v4087 = vrot.slane %v4086, 2
    %v4088 = vadd.f32 %v4086, %v4087
    %v4089 = vrot.slane %v4088, 1
    %v4090 = vadd.f32 %v4088, %v4089
    %v4091 = vsel %vm1960, %v4046, 0.0
    %v4092 = vrot.slane %v4091, 4
    %v4093 = vadd.f32 %v4091, %v4092
    %v4094 = vrot.slane %v4093, 2
    %v4095 = vadd.f32 %v4093, %v4094
    %v4096 = vrot.slane %v4095, 1
    %v4097 = vadd.f32 %v4095, %v4096
    %v4098 = vsel %vm1960, %v4048, 0.0
    %v4099 = vrot.slane %v4098, 4
    %v4100 = vadd.f32 %v4098, %v4099
    %v4101 = vrot.slane %v4100, 2
    %v4102 = vadd.f32 %v4100, %v4101
    %v4103 = vrot.slane %v4102, 1
    %v4104 = vadd.f32 %v4102, %v4103
    %v4105 = vlog2.pop %v4055
    %v4106 = vmul.f32 %v4105, 0.6931472
    %v4107 = vlog2.pop %v4062
    %v4108 = vmul.f32 %v4107, 0.6931472
    %v4109 = vlog2.pop %v4069
    %v4110 = vmul.f32 %v4109, 0.6931472
    %v4111 = vlog2.pop %v4076
    %v4112 = vmul.f32 %v4111, 0.6931472
    %v4113 = vlog2.pop %v4083
    %v4114 = vmul.f32 %v4113, 0.6931472
    %v4115 = vlog2.pop %v4090
    %v4116 = vmul.f32 %v4115, 0.6931472
    %v4117 = vlog2.pop %v4097
    %v4118 = vmul.f32 %v4117, 0.6931472
    %v4119 = vlog2.pop %v4104
    %v4120 = vmul.f32 %v4119, 0.6931472
    %v4121 = vadd.f32 %v3975, %v4106
    %v4122 = vadd.f32 %v3982, %v4108
    %v4123 = vadd.f32 %v3989, %v4110
    %v4124 = vadd.f32 %v3996, %v4112
    %v4125 = vadd.f32 %v4003, %v4114
    %v4126 = vadd.f32 %v4010, %v4116
    %v4127 = vadd.f32 %v4017, %v4118
    %v4128 = vadd.f32 %v4024, %v4120
    %v4129 = vsub.f32 %v3961, %v4121
    %v4130 = vsub.f32 %v3962, %v4122
    %v4131 = vsub.f32 %v3963, %v4123
    %v4132 = vsub.f32 %v3964, %v4124
    %v4133 = vsub.f32 %v3965, %v4125
    %v4134 = vsub.f32 %v3966, %v4126
    %v4135 = vsub.f32 %v3967, %v4127
    %v4136 = vsub.f32 %v3968, %v4128
    %v4137 = vmul.f32 %v4129, 1.442695
    %v4138 = vpow.pop %v4137
    %v4139 = vmul.f32 %v4130, 1.442695
    %v4140 = vpow.pop %v4139
    %v4141 = vmul.f32 %v4131, 1.442695
    %v4142 = vpow.pop %v4141
    %v4143 = vmul.f32 %v4132, 1.442695
    %v4144 = vpow.pop %v4143
    %v4145 = vmul.f32 %v4133, 1.442695
    %v4146 = vpow.pop %v4145
    %v4147 = vmul.f32 %v4134, 1.442695
    %v4148 = vpow.pop %v4147
    %v4149 = vmul.f32 %v4135, 1.442695
    %v4150 = vpow.pop %v4149
    %v4151 = vmul.f32 %v4136, 1.442695
    %v4152 = vpow.pop %v4151
    %4153 = vst.msk [vmem:[#allocation8] sm:$0xf] %vm1960, %v4138
    %4154 = vst.msk [vmem:[#allocation8 + $0x4] sm:$0xf] %vm1960, %v4140
    %4155 = vst.msk [vmem:[#allocation8 + $0x8] sm:$0xf] %vm1960, %v4142
    %4156 = vst.msk [vmem:[#allocation8 + $0xc] sm:$0xf] %vm1960, %v4144
    %4157 = vst.msk [vmem:[#allocation8 + $0x10] sm:$0xf] %vm1960, %v4146
    %4158 = vst.msk [vmem:[#allocation8 + $0x14] sm:$0xf] %vm1960, %v4148
    %4159 = vst.msk [vmem:[#allocation8 + $0x18] sm:$0xf] %vm1960, %v4150
    %4160 = vst.msk [vmem:[#allocation8 + $0x1c] sm:$0xf] %vm1960, %v4152
    // Predicated region
    $region26: #{tpu_custom_call.1} parent=1 // pred_check
      _
    $region27: #{tpu_custom_call.1} parent=1 // pred_check_branch
      %4162 = sbr.rel (0) target = $region29
    $region28: #{tpu_custom_call.1} parent=1 // pred_region
      %s4164 = ssub.s32 512, 512
      %4165 = vsyncadd [#allocation4], %s4164
      %s4166 = sshll.u32 [#allocation8], 4
      %s4167 = int_to_ptr.vmem [resolvable:$true] %s4166
      %4172 = dma.vmem_to_hbm [thread:$0]  %s4167, 512, %s3, [#allocation4], 64, 64, 4
    $region29: #{tpu_custom_call.1} parent=1 // pred_fallthru
      _
    // Predicated region
    $region30: #{tpu_custom_call.1} parent=1 // pred_check
      _
    $region31: #{tpu_custom_call.1} parent=1 // pred_check_branch
      %4174 = sbr.rel (0) target = $region33
    $region32: #{tpu_custom_call.1} parent=1 // pred_region
      %4175 = dma.done [#allocation4], 512
    $region33: #{tpu_custom_call.1} parent=1 // pred_fallthru
      _
    %4176 = vsyncpa [#allocation3], 1
    %4177 = vsyncpa [#allocation6], 1
    %4178 = vsyncpa [#allocation4], 1

// kernel: tpu_custom_call.1
$region0: #{tpu_custom_call.1}
  #allocation0 [shape = 'u32[]', space=smem, size = 0x4, offset = 0x4, fixed_abs, tag = 'smem constant byte address 0x4 - core index']
  #allocation1 [shape = 'u32[144,128]{1,0:T(1,128)}', space=vmem, size = 0x12000, scoped, tag = 'internal scratch']
  %s0 = inlined_call_operand.hbm [shape: f32[8,16,32], index: 0, kind: input, shape index: {}]
  %s1 = inlined_call_operand.hbm [shape: f32[8,16,32], index: 1, kind: input, shape index: {}]
  %s2 = inlined_call_operand.hbm [shape: f32[8,4,4], index: 2, kind: input, shape index: {}]
  %s3 = inlined_call_operand.hbm [shape: f32[8,4,4], index: 3, kind: output, shape index: {}]
  %s4 = sld [smem:[#allocation0]]
  $region34: #{tpu_custom_call.1} parent=0
    _
  %s6 = ssub.s32 1, %s4
  %s7 = scalar_select 0, %s6, %s4
  $region1: #{tpu_custom_call.1} parent=0
    #allocation2 [shape = 'u8[65536]{0}', space=vmem, size = 0x10000, scoped, tag = 'input window, operand 0, single buffered']
    #allocation3 [shape = 's32[1]{0}', space=sflag, size = 0x4, scoped, tag = 'scoped memory for tpu_custom_call.1']
    #allocation4 [shape = 's32[1]{0}', space=sflag, size = 0x4, scoped, tag = 'scoped memory for tpu_custom_call.1']
    #allocation5 [shape = 'u8[65536]{0}', space=vmem, size = 0x10000, scoped, tag = 'input window, operand 1, single buffered']
    #allocation6 [shape = 's32[1]{0}', space=sflag, size = 0x4, scoped, tag = 'scoped memory for tpu_custom_call.1']
    #allocation7 [shape = 'u8[16384]{0}', space=vmem, size = 0x4000, scoped, tag = 'input window, operand 2, single buffered']
    #allocation8 [shape = 'u8[16384]{0}', space=vmem, size = 0x4000, scoped, tag = 'output window, operand 0, single buffered']
    %8 = vsyncpa [#allocation3], 0
    %9 = vsyncpa [#allocation6], 0
    %10 = vsyncpa [#allocation4], 0
    // Predicated region
    $region2: #{tpu_custom_call.1} parent=1 // pred_check
      _
    $region3: #{tpu_custom_call.1} parent=1 // pred_check_branch
      %12 = sbr.rel (0) target = $region5
    $region4: #{tpu_custom_call.1} parent=1 // pred_region
      %s14 = ssub.s32 2048, 2048
      %15 = vsyncadd [#allocation3], %s14
      %s16 = sshll.u32 [#allocation2], 4
      %s17 = int_to_ptr.vmem [resolvable:$true] %s16
      %22 = dma.hbm_to_vmem [thread:$0]  %s0, 2048, %s17, [#allocation3], 128, 128, 8
    $region5: #{tpu_custom_call.1} parent=1 // pred_fallthru
      _
    // Predicated region
    $region6: #{tpu_custom_call.1} parent=1 // pred_check
      _
    $region7: #{tpu_custom_call.1} parent=1 // pred_check_branch
      %24 = sbr.rel (0) target = $region9
    $region8: #{tpu_custom_call.1} parent=1 // pred_region
      %s26 = ssub.s32 2048, 2048
      %27 = vsyncadd [#allocation6], %s26
      %s28 = sshll.u32 [#allocation5], 4
      %s29 = int_to_ptr.vmem [resolvable:$true] %s28
      %34 = dma.hbm_to_vmem [thread:$0]  %s1, 2048, %s29, [#allocation6], 128, 128, 8
    $region9: #{tpu_custom_call.1} parent=1 // pred_fallthru
      _
    // Predicated region
    $region10: #{tpu_custom_call.1} parent=1 // pred_check
      _
    $region11: #{tpu_custom_call.1} parent=1 // pred_check_branch
      %36 = sbr.rel (0) target = $region13
    $region12: #{tpu_custom_call.1} parent=1 // pred_region
      %s38 = ssub.s32 512, 512
      %39 = vsyncadd [#allocation6], %s38
      %s40 = sshll.u32 [#allocation7], 4
      %s41 = int_to_ptr.vmem [resolvable:$true] %s40
      %46 = dma.hbm_to_vmem [thread:$0]  %s2, 512, %s41, [#allocation6], 64, 64, 4
    $region13: #{tpu_custom_call.1} parent=1 // pred_fallthru
      _
    // Predicated region
    $region14: #{tpu_custom_call.1} parent=1 // pred_check
      _
    $region15: #{tpu_custom_call.1} parent=1 // pred_check_branch
      %48 = sbr.rel (0) target = $region17
    $region16: #{tpu_custom_call.1} parent=1 // pred_region
      %49 = dma.done [#allocation3], 2048
    $region17: #{tpu_custom_call.1} parent=1 // pred_fallthru
      _
    // Predicated region
    $region18: #{tpu_custom_call.1} parent=1 // pred_check
      _
    $region19: #{tpu_custom_call.1} parent=1 // pred_check_branch
      %51 = sbr.rel (0) target = $region21
    $region20: #{tpu_custom_call.1} parent=1 // pred_region
      %52 = dma.done [#allocation6], 2048
    $region21: #{tpu_custom_call.1} parent=1 // pred_fallthru
      _
    // Predicated region
    $region22: #{tpu_custom_call.1} parent=1 // pred_check
      _
    $region23: #{tpu_custom_call.1} parent=1 // pred_check_branch
      %54 = sbr.rel (0) target = $region25
    $region24: #{tpu_custom_call.1} parent=1 // pred_region
      %55 = dma.done [#allocation6], 512
    $region25: #{tpu_custom_call.1} parent=1 // pred_fallthru
      _
    %v56 = vld [vmem:[#allocation2] sm:$0xff]
    %v57 = vld [vmem:[#allocation2 + $0x8] sm:$0xff]
    %v58 = vld [vmem:[#allocation2 + $0x10] sm:$0xff]
    %v59 = vld [vmem:[#allocation2 + $0x18] sm:$0xff]
    %v60 = vld [vmem:[#allocation2 + $0x20] sm:$0xff]
    %v61 = vld [vmem:[#allocation2 + $0x28] sm:$0xff]
    %v62 = vld [vmem:[#allocation2 + $0x30] sm:$0xff]
    %v63 = vld [vmem:[#allocation2 + $0x38] sm:$0xff]
    %v64 = vld [vmem:[#allocation2 + $0x40] sm:$0xff]
    %v65 = vld [vmem:[#allocation2 + $0x48] sm:$0xff]
    %v66 = vld [vmem:[#allocation2 + $0x50] sm:$0xff]
    %v67 = vld [vmem:[#allocation2 + $0x58] sm:$0xff]
    %v68 = vld [vmem:[#allocation2 + $0x60] sm:$0xff]
    %v69 = vld [vmem:[#allocation2 + $0x68] sm:$0xff]
    %v70 = vld [vmem:[#allocation2 + $0x70] sm:$0xff]
    %v71 = vld [vmem:[#allocation2 + $0x78] sm:$0xff]
    %v72 = vld [vmem:[#allocation5] sm:$0xff]
    %v73 = vld [vmem:[#allocation5 + $0x8] sm:$0xff]
    %v74 = vld [vmem:[#allocation5 + $0x10] sm:$0xff]
    %v75 = vld [vmem:[#allocation5 + $0x18] sm:$0xff]
    %v76 = vld [vmem:[#allocation5 + $0x20] sm:$0xff]
    %v77 = vld [vmem:[#allocation5 + $0x28] sm:$0xff]
    %v78 = vld [vmem:[#allocation5 + $0x30] sm:$0xff]
    %v79 = vld [vmem:[#allocation5 + $0x38] sm:$0xff]
    %v80 = vld [vmem:[#allocation5 + $0x40] sm:$0xff]
    %v81 = vld [vmem:[#allocation5 + $0x48] sm:$0xff]
    %v82 = vld [vmem:[#allocation5 + $0x50] sm:$0xff]
    %v83 = vld [vmem:[#allocation5 + $0x58] sm:$0xff]
    %v84 = vld [vmem:[#allocation5 + $0x60] sm:$0xff]
    %v85 = vld [vmem:[#allocation5 + $0x68] sm:$0xff]
    %v86 = vld [vmem:[#allocation5 + $0x70] sm:$0xff]
    %v87 = vld [vmem:[#allocation5 + $0x78] sm:$0xff]
    %v104 = vcombine.high %v56, %v56
    %v105 = vcombine.high %v57, %v57
    %v106 = vcombine.high %v58, %v58
    %v107 = vcombine.high %v59, %v59
    %v108 = vcombine.high %v60, %v60
    %v109 = vcombine.high %v61, %v61
    %v110 = vcombine.high %v62, %v62
    %v111 = vcombine.high %v63, %v63
    %v112 = vcombine.high %v64, %v64
    %v113 = vcombine.high %v65, %v65
    %v114 = vcombine.high %v66, %v66
    %v115 = vcombine.high %v67, %v67
    %v116 = vcombine.high %v68, %v68
    %v117 = vcombine.high %v69, %v69
    %v118 = vcombine.high %v70, %v70
    %v119 = vcombine.high %v71, %v71
    %vm136 = vcmask 257024
    %v137 = vsel %vm136, %v56, 0.0
    %v138 = vrot.slane %v137, 4
    %v139 = vadd.f32 %v137, %v138
    %v140 = vrot.slane %v139, 2
    %v141 = vadd.f32 %v139, %v140
    %v142 = vrot.slane %v141, 1
    %v143 = vadd.f32 %v141, %v142
    %v144 = vsel %vm136, %v104, 0.0
    %v145 = vrot.slane %v144, 4
    %v146 = vadd.f32 %v144, %v145
    %v147 = vrot.slane %v146, 2
    %v148 = vadd.f32 %v146, %v147
    %v149 = vrot.slane %v148, 1
    %v150 = vadd.f32 %v148, %v149
    %v151 = vsel %vm136, %v57, 0.0
    %v152 = vrot.slane %v151, 4
    %v153 = vadd.f32 %v151, %v152
    %v154 = vrot.slane %v153, 2
    %v155 = vadd.f32 %v153, %v154
    %v156 = vrot.slane %v155, 1
    %v157 = vadd.f32 %v155, %v156
    %v158 = vsel %vm136, %v105, 0.0
    %v159 = vrot.slane %v158, 4
    %v160 = vadd.f32 %v158, %v159
    %v161 = vrot.slane %v160, 2
    %v162 = vadd.f32 %v160, %v161
    %v163 = vrot.slane %v162, 1
    %v164 = vadd.f32 %v162, %v163
    %v165 = vsel %vm136, %v58, 0.0
    %v166 = vrot.slane %v165, 4
    %v167 = vadd.f32 %v165, %v166
    %v168 = vrot.slane %v167, 2
    %v169 = vadd.f32 %v167, %v168
    %v170 = vrot.slane %v169, 1
    %v171 = vadd.f32 %v169, %v170
    %v172 = vsel %vm136, %v106, 0.0
    %v173 = vrot.slane %v172, 4
    %v174 = vadd.f32 %v172, %v173
    %v175 = vrot.slane %v174, 2
    %v176 = vadd.f32 %v174, %v175
    %v177 = vrot.slane %v176, 1
    %v178 = vadd.f32 %v176, %v177
    %v179 = vsel %vm136, %v59, 0.0
    %v180 = vrot.slane %v179, 4
    %v181 = vadd.f32 %v179, %v180
    %v182 = vrot.slane %v181, 2
    %v183 = vadd.f32 %v181, %v182
    %v184 = vrot.slane %v183, 1
    %v185 = vadd.f32 %v183, %v184
    %v186 = vsel %vm136, %v107, 0.0
    %v187 = vrot.slane %v186, 4
    %v188 = vadd.f32 %v186, %v187
    %v189 = vrot.slane %v188, 2
    %v190 = vadd.f32 %v188, %v189
    %v191 = vrot.slane %v190, 1
    %v192 = vadd.f32 %v190, %v191
    %v193 = vsel %vm136, %v60, 0.0
    %v194 = vrot.slane %v193, 4
    %v195 = vadd.f32 %v193, %v194
    %v196 = vrot.slane %v195, 2
    %v197 = vadd.f32 %v195, %v196
    %v198 = vrot.slane %v197, 1
    %v199 = vadd.f32 %v197, %v198
    %v200 = vsel %vm136, %v108, 0.0
    %v201 = vrot.slane %v200, 4
    %v202 = vadd.f32 %v200, %v201
    %v203 = vrot.slane %v202, 2
    %v204 = vadd.f32 %v202, %v203
    %v205 = vrot.slane %v204, 1
    %v206 = vadd.f32 %v204, %v205
    %v207 = vsel %vm136, %v61, 0.0
    %v208 = vrot.slane %v207, 4
    %v209 = vadd.f32 %v207, %v208
    %v210 = vrot.slane %v209, 2
    %v211 = vadd.f32 %v209, %v210
    %v212 = vrot.slane %v211, 1
    %v213 = vadd.f32 %v211, %v212
    %v214 = vsel %vm136, %v109, 0.0
    %v215 = vrot.slane %v214, 4
    %v216 = vadd.f32 %v214, %v215
    %v217 = vrot.slane %v216, 2
    %v218 = vadd.f32 %v216, %v217
    %v219 = vrot.slane %v218, 1
    %v220 = vadd.f32 %v218, %v219
    %v221 = vsel %vm136, %v62, 0.0
    %v222 = vrot.slane %v221, 4
    %v223 = vadd.f32 %v221, %v222
    %v224 = vrot.slane %v223, 2
    %v225 = vadd.f32 %v223, %v224
    %v226 = vrot.slane %v225, 1
    %v227 = vadd.f32 %v225, %v226
    %v228 = vsel %vm136, %v110, 0.0
    %v229 = vrot.slane %v228, 4
    %v230 = vadd.f32 %v228, %v229
    %v231 = vrot.slane %v230, 2
    %v232 = vadd.f32 %v230, %v231
    %v233 = vrot.slane %v232, 1
    %v234 = vadd.f32 %v232, %v233
    %v235 = vsel %vm136, %v63, 0.0
    %v236 = vrot.slane %v235, 4
    %v237 = vadd.f32 %v235, %v236
    %v238 = vrot.slane %v237, 2
    %v239 = vadd.f32 %v237, %v238
    %v240 = vrot.slane %v239, 1
    %v241 = vadd.f32 %v239, %v240
    %v242 = vsel %vm136, %v111, 0.0
    %v243 = vrot.slane %v242, 4
    %v244 = vadd.f32 %v242, %v243
    %v245 = vrot.slane %v244, 2
    %v246 = vadd.f32 %v244, %v245
    %v247 = vrot.slane %v246, 1
    %v248 = vadd.f32 %v246, %v247
    %v249 = vsel %vm136, %v64, 0.0
    %v250 = vrot.slane %v249, 4
    %v251 = vadd.f32 %v249, %v250
    %v252 = vrot.slane %v251, 2
    %v253 = vadd.f32 %v251, %v252
    %v254 = vrot.slane %v253, 1
    %v255 = vadd.f32 %v253, %v254
    %v256 = vsel %vm136, %v112, 0.0
    %v257 = vrot.slane %v256, 4
    %v258 = vadd.f32 %v256, %v257
    %v259 = vrot.slane %v258, 2
    %v260 = vadd.f32 %v258, %v259
    %v261 = vrot.slane %v260, 1
    %v262 = vadd.f32 %v260, %v261
    %v263 = vsel %vm136, %v65, 0.0
    %v264 = vrot.slane %v263, 4
    %v265 = vadd.f32 %v263, %v264
    %v266 = vrot.slane %v265, 2
    %v267 = vadd.f32 %v265, %v266
    %v268 = vrot.slane %v267, 1
    %v269 = vadd.f32 %v267, %v268
    %v270 = vsel %vm136, %v113, 0.0
    %v271 = vrot.slane %v270, 4
    %v272 = vadd.f32 %v270, %v271
    %v273 = vrot.slane %v272, 2
    %v274 = vadd.f32 %v272, %v273
    %v275 = vrot.slane %v274, 1
    %v276 = vadd.f32 %v274, %v275
    %v277 = vsel %vm136, %v66, 0.0
    %v278 = vrot.slane %v277, 4
    %v279 = vadd.f32 %v277, %v278
    %v280 = vrot.slane %v279, 2
    %v281 = vadd.f32 %v279, %v280
    %v282 = vrot.slane %v281, 1
    %v283 = vadd.f32 %v281, %v282
    %v284 = vsel %vm136, %v114, 0.0
    %v285 = vrot.slane %v284, 4
    %v286 = vadd.f32 %v284, %v285
    %v287 = vrot.slane %v286, 2
    %v288 = vadd.f32 %v286, %v287
    %v289 = vrot.slane %v288, 1
    %v290 = vadd.f32 %v288, %v289
    %v291 = vsel %vm136, %v67, 0.0
    %v292 = vrot.slane %v291, 4
    %v293 = vadd.f32 %v291, %v292
    %v294 = vrot.slane %v293, 2
    %v295 = vadd.f32 %v293, %v294
    %v296 = vrot.slane %v295, 1
    %v297 = vadd.f32 %v295, %v296
    %v298 = vsel %vm136, %v115, 0.0
    %v299 = vrot.slane %v298, 4
    %v300 = vadd.f32 %v298, %v299
    %v301 = vrot.slane %v300, 2
    %v302 = vadd.f32 %v300, %v301
    %v303 = vrot.slane %v302, 1
    %v304 = vadd.f32 %v302, %v303
    %v305 = vsel %vm136, %v68, 0.0
    %v306 = vrot.slane %v305, 4
    %v307 = vadd.f32 %v305, %v306
    %v308 = vrot.slane %v307, 2
    %v309 = vadd.f32 %v307, %v308
    %v310 = vrot.slane %v309, 1
    %v311 = vadd.f32 %v309, %v310
    %v312 = vsel %vm136, %v116, 0.0
    %v313 = vrot.slane %v312, 4
    %v314 = vadd.f32 %v312, %v313
    %v315 = vrot.slane %v314, 2
    %v316 = vadd.f32 %v314, %v315
    %v317 = vrot.slane %v316, 1
    %v318 = vadd.f32 %v316, %v317
    %v319 = vsel %vm136, %v69, 0.0
    %v320 = vrot.slane %v319, 4
    %v321 = vadd.f32 %v319, %v320
    %v322 = vrot.slane %v321, 2
    %v323 = vadd.f32 %v321, %v322
    %v324 = vrot.slane %v323, 1
    %v325 = vadd.f32 %v323, %v324
    %v326 = vsel %vm136, %v117, 0.0
    %v327 = vrot.slane %v326, 4
    %v328 = vadd.f32 %v326, %v327
    %v329 = vrot.slane %v328, 2
    %v330 = vadd.f32 %v328, %v329
    %v331 = vrot.slane %v330, 1
    %v332 = vadd.f32 %v330, %v331
    %v333 = vsel %vm136, %v70, 0.0
    %v334 = vrot.slane %v333, 4
    %v335 = vadd.f32 %v333, %v334
    %v336 = vrot.slane %v335, 2
    %v337 = vadd.f32 %v335, %v336
    %v338 = vrot.slane %v337, 1
    %v339 = vadd.f32 %v337, %v338
    %v340 = vsel %vm136, %v118, 0.0
    %v341 = vrot.slane %v340, 4
    %v342 = vadd.f32 %v340, %v341
    %v343 = vrot.slane %v342, 2
    %v344 = vadd.f32 %v342, %v343
    %v345 = vrot.slane %v344, 1
    %v346 = vadd.f32 %v344, %v345
    %v347 = vsel %vm136, %v71, 0.0
    %v348 = vrot.slane %v347, 4
    %v349 = vadd.f32 %v347, %v348
    %v350 = vrot.slane %v349, 2
    %v351 = vadd.f32 %v349, %v350
    %v352 = vrot.slane %v351, 1
    %v353 = vadd.f32 %v351, %v352
    %v354 = vsel %vm136, %v119, 0.0
    %v355 = vrot.slane %v354, 4
    %v356 = vadd.f32 %v354, %v355
    %v357 = vrot.slane %v356, 2
    %v358 = vadd.f32 %v356, %v357
    %v359 = vrot.slane %v358, 1
    %v360 = vadd.f32 %v358, %v359
    %v377 = vcombine.high %v72, %v72
    %v378 = vcombine.high %v73, %v73
    %v379 = vcombine.high %v74, %v74
    %v380 = vcombine.high %v75, %v75
    %v381 = vcombine.high %v76, %v76
    %v382 = vcombine.high %v77, %v77
    %v383 = vcombine.high %v78, %v78
    %v384 = vcombine.high %v79, %v79
    %v385 = vcombine.high %v80, %v80
    %v386 = vcombine.high %v81, %v81
    %v387 = vcombine.high %v82, %v82
    %v388 = vcombine.high %v83, %v83
    %v389 = vcombine.high %v84, %v84
    %v390 = vcombine.high %v85, %v85
    %v391 = vcombine.high %v86, %v86
    %v392 = vcombine.high %v87, %v87
    %v409 = vsel %vm136, %v72, 0.0
    %v410 = vrot.slane %v409, 4
    %v411 = vadd.f32 %v409, %v410
    %v412 = vrot.slane %v411, 2
    %v413 = vadd.f32 %v411, %v412
    %v414 = vrot.slane %v413, 1
    %v415 = vadd.f32 %v413, %v414
    %v416 = vsel %vm136, %v377, 0.0
    %v417 = vrot.slane %v416, 4
    %v418 = vadd.f32 %v416, %v417
    %v419 = vrot.slane %v418, 2
    %v420 = vadd.f32 %v418, %v419
    %v421 = vrot.slane %v420, 1
    %v422 = vadd.f32 %v420, %v421
    %v423 = vsel %vm136, %v73, 0.0
    %v424 = vrot.slane %v423, 4
    %v425 = vadd.f32 %v423, %v424
    %v426 = vrot.slane %v425, 2
    %v427 = vadd.f32 %v425, %v426
    %v428 = vrot.slane %v427, 1
    %v429 = vadd.f32 %v427, %v428
    %v430 = vsel %vm136, %v378, 0.0
    %v431 = vrot.slane %v430, 4
    %v432 = vadd.f32 %v430, %v431
    %v433 = vrot.slane %v432, 2
    %v434 = vadd.f32 %v432, %v433
    %v435 = vrot.slane %v434, 1
    %v436 = vadd.f32 %v434, %v435
    %v437 = vsel %vm136, %v74, 0.0
    %v438 = vrot.slane %v437, 4
    %v439 = vadd.f32 %v437, %v438
    %v440 = vrot.slane %v439, 2
    %v441 = vadd.f32 %v439, %v440
    %v442 = vrot.slane %v441, 1
    %v443 = vadd.f32 %v441, %v442
    %v444 = vsel %vm136, %v379, 0.0
    %v445 = vrot.slane %v444, 4
    %v446 = vadd.f32 %v444, %v445
    %v447 = vrot.slane %v446, 2
    %v448 = vadd.f32 %v446, %v447
    %v449 = vrot.slane %v448, 1
    %v450 = vadd.f32 %v448, %v449
    %v451 = vsel %vm136, %v75, 0.0
    %v452 = vrot.slane %v451, 4
    %v453 = vadd.f32 %v451, %v452
    %v454 = vrot.slane %v453, 2
    %v455 = vadd.f32 %v453, %v454
    %v456 = vrot.slane %v455, 1
    %v457 = vadd.f32 %v455, %v456
    %v458 = vsel %vm136, %v380, 0.0
    %v459 = vrot.slane %v458, 4
    %v460 = vadd.f32 %v458, %v459
    %v461 = vrot.slane %v460, 2
    %v462 = vadd.f32 %v460, %v461
    %v463 = vrot.slane %v462, 1
    %v464 = vadd.f32 %v462, %v463
    %v465 = vsel %vm136, %v76, 0.0
    %v466 = vrot.slane %v465, 4
    %v467 = vadd.f32 %v465, %v466
    %v468 = vrot.slane %v467, 2
    %v469 = vadd.f32 %v467, %v468
    %v470 = vrot.slane %v469, 1
    %v471 = vadd.f32 %v469, %v470
    %v472 = vsel %vm136, %v381, 0.0
    %v473 = vrot.slane %v472, 4
    %v474 = vadd.f32 %v472, %v473
    %v475 = vrot.slane %v474, 2
    %v476 = vadd.f32 %v474, %v475
    %v477 = vrot.slane %v476, 1
    %v478 = vadd.f32 %v476, %v477
    %v479 = vsel %vm136, %v77, 0.0
    %v480 = vrot.slane %v479, 4
    %v481 = vadd.f32 %v479, %v480
    %v482 = vrot.slane %v481, 2
    %v483 = vadd.f32 %v481, %v482
    %v484 = vrot.slane %v483, 1
    %v485 = vadd.f32 %v483, %v484
    %v486 = vsel %vm136, %v382, 0.0
    %v487 = vrot.slane %v486, 4
    %v488 = vadd.f32 %v486, %v487
    %v489 = vrot.slane %v488, 2
    %v490 = vadd.f32 %v488, %v489
    %v491 = vrot.slane %v490, 1
    %v492 = vadd.f32 %v490, %v491
    %v493 = vsel %vm136, %v78, 0.0
    %v494 = vrot.slane %v493, 4
    %v495 = vadd.f32 %v493, %v494
    %v496 = vrot.slane %v495, 2
    %v497 = vadd.f32 %v495, %v496
    %v498 = vrot.slane %v497, 1
    %v499 = vadd.f32 %v497, %v498
    %v500 = vsel %vm136, %v383, 0.0
    %v501 = vrot.slane %v500, 4
    %v502 = vadd.f32 %v500, %v501
    %v503 = vrot.slane %v502, 2
    %v504 = vadd.f32 %v502, %v503
    %v505 = vrot.slane %v504, 1
    %v506 = vadd.f32 %v504, %v505
    %v507 = vsel %vm136, %v79, 0.0
    %v508 = vrot.slane %v507, 4
    %v509 = vadd.f32 %v507, %v508
    %v510 = vrot.slane %v509, 2
    %v511 = vadd.f32 %v509, %v510
    %v512 = vrot.slane %v511, 1
    %v513 = vadd.f32 %v511, %v512
    %v514 = vsel %vm136, %v384, 0.0
    %v515 = vrot.slane %v514, 4
    %v516 = vadd.f32 %v514, %v515
    %v517 = vrot.slane %v516, 2
    %v518 = vadd.f32 %v516, %v517
    %v519 = vrot.slane %v518, 1
    %v520 = vadd.f32 %v518, %v519
    %v521 = vsel %vm136, %v80, 0.0
    %v522 = vrot.slane %v521, 4
    %v523 = vadd.f32 %v521, %v522
    %v524 = vrot.slane %v523, 2
    %v525 = vadd.f32 %v523, %v524
    %v526 = vrot.slane %v525, 1
    %v527 = vadd.f32 %v525, %v526
    %v528 = vsel %vm136, %v385, 0.0
    %v529 = vrot.slane %v528, 4
    %v530 = vadd.f32 %v528, %v529
    %v531 = vrot.slane %v530, 2
    %v532 = vadd.f32 %v530, %v531
    %v533 = vrot.slane %v532, 1
    %v534 = vadd.f32 %v532, %v533
    %v535 = vsel %vm136, %v81, 0.0
    %v536 = vrot.slane %v535, 4
    %v537 = vadd.f32 %v535, %v536
    %v538 = vrot.slane %v537, 2
    %v539 = vadd.f32 %v537, %v538
    %v540 = vrot.slane %v539, 1
    %v541 = vadd.f32 %v539, %v540
    %v542 = vsel %vm136, %v386, 0.0
    %v543 = vrot.slane %v542, 4
    %v544 = vadd.f32 %v542, %v543
    %v545 = vrot.slane %v544, 2
    %v546 = vadd.f32 %v544, %v545
    %v547 = vrot.slane %v546, 1
    %v548 = vadd.f32 %v546, %v547
    %v549 = vsel %vm136, %v82, 0.0
    %v550 = vrot.slane %v549, 4
    %v551 = vadd.f32 %v549, %v550
    %v552 = vrot.slane %v551, 2
    %v553 = vadd.f32 %v551, %v552
    %v554 = vrot.slane %v553, 1
    %v555 = vadd.f32 %v553, %v554
    %v556 = vsel %vm136, %v387, 0.0
    %v557 = vrot.slane %v556, 4
    %v558 = vadd.f32 %v556, %v557
    %v559 = vrot.slane %v558, 2
    %v560 = vadd.f32 %v558, %v559
    %v561 = vrot.slane %v560, 1
    %v562 = vadd.f32 %v560, %v561
    %v563 = vsel %vm136, %v83, 0.0
    %v564 = vrot.slane %v563, 4
    %v565 = vadd.f32 %v563, %v564
    %v566 = vrot.slane %v565, 2
    %v567 = vadd.f32 %v565, %v566
    %v568 = vrot.slane %v567, 1
    %v569 = vadd.f32 %v567, %v568
    %v570 = vsel %vm136, %v388, 0.0
    %v571 = vrot.slane %v570, 4
    %v572 = vadd.f32 %v570, %v571
    %v573 = vrot.slane %v572, 2
    %v574 = vadd.f32 %v572, %v573
    %v575 = vrot.slane %v574, 1
    %v576 = vadd.f32 %v574, %v575
    %v577 = vsel %vm136, %v84, 0.0
    %v578 = vrot.slane %v577, 4
    %v579 = vadd.f32 %v577, %v578
    %v580 = vrot.slane %v579, 2
    %v581 = vadd.f32 %v579, %v580
    %v582 = vrot.slane %v581, 1
    %v583 = vadd.f32 %v581, %v582
    %v584 = vsel %vm136, %v389, 0.0
    %v585 = vrot.slane %v584, 4
    %v586 = vadd.f32 %v584, %v585
    %v587 = vrot.slane %v586, 2
    %v588 = vadd.f32 %v586, %v587
    %v589 = vrot.slane %v588, 1
    %v590 = vadd.f32 %v588, %v589
    %v591 = vsel %vm136, %v85, 0.0
    %v592 = vrot.slane %v591, 4
    %v593 = vadd.f32 %v591, %v592
    %v594 = vrot.slane %v593, 2
    %v595 = vadd.f32 %v593, %v594
    %v596 = vrot.slane %v595, 1
    %v597 = vadd.f32 %v595, %v596
    %v598 = vsel %vm136, %v390, 0.0
    %v599 = vrot.slane %v598, 4
    %v600 = vadd.f32 %v598, %v599
    %v601 = vrot.slane %v600, 2
    %v602 = vadd.f32 %v600, %v601
    %v603 = vrot.slane %v602, 1
    %v604 = vadd.f32 %v602, %v603
    %v605 = vsel %vm136, %v86, 0.0
    %v606 = vrot.slane %v605, 4
    %v607 = vadd.f32 %v605, %v606
    %v608 = vrot.slane %v607, 2
    %v609 = vadd.f32 %v607, %v608
    %v610 = vrot.slane %v609, 1
    %v611 = vadd.f32 %v609, %v610
    %v612 = vsel %vm136, %v391, 0.0
    %v613 = vrot.slane %v612, 4
    %v614 = vadd.f32 %v612, %v613
    %v615 = vrot.slane %v614, 2
    %v616 = vadd.f32 %v614, %v615
    %v617 = vrot.slane %v616, 1
    %v618 = vadd.f32 %v616, %v617
    %v619 = vsel %vm136, %v87, 0.0
    %v620 = vrot.slane %v619, 4
    %v621 = vadd.f32 %v619, %v620
    %v622 = vrot.slane %v621, 2
    %v623 = vadd.f32 %v621, %v622
    %v624 = vrot.slane %v623, 1
    %v625 = vadd.f32 %v623, %v624
    %v626 = vsel %vm136, %v392, 0.0
    %v627 = vrot.slane %v626, 4
    %v628 = vadd.f32 %v626, %v627
    %v629 = vrot.slane %v628, 2
    %v630 = vadd.f32 %v628, %v629
    %v631 = vrot.slane %v630, 1
    %v632 = vadd.f32 %v630, %v631
    %vm637 = vcmask 1041409
    %v638 = vsel %vm637, %v150, %v143
    %vm639 = vcmask 1042434
    %v640 = vsel %vm639, %v157, %v638
    %vm641 = vcmask 1043459
    %v642 = vsel %vm641, %v164, %v640
    %v647 = vsel %vm637, %v422, %v415
    %v648 = vsel %vm639, %v429, %v647
    %v649 = vsel %vm641, %v436, %v648
    %vm650 = vcmask 261120
    %v651 = vsel %vm650, %v642, 0
    %v653 = vsel %vm650, %v649, 0
    %655 = vmatprep.subr.mxu0 0.0
    %656 = vmatpush1.xpose.msra.mxu0 %v653
    %657 = vmatprep.subr.mxu0 0.0
    %658 = vmatpush1.xpose.msra.mxu0 0.0
    %659 = vmatprep.subr.mxu0 0.0
    %660 = vmatpush1.xpose.msra.mxu0 0.0
    %661 = vmatprep.subr.mxu0 0.0
    %662 = vmatpush1.xpose.msra.mxu0 0.0
    %663 = vmatprep.subr.mxu0 0.0
    %664 = vmatpush1.xpose.msra.mxu0 0.0
    %665 = vmatprep.subr.mxu0 0.0
    %666 = vmatpush1.xpose.msra.mxu0 0.0
    %667 = vmatprep.subr.mxu0 0.0
    %668 = vmatpush1.xpose.msra.mxu0 0.0
    %669 = vmatprep.subr.mxu0 0.0
    %670 = vmatpush1.xpose.msra.mxu0 0.0
    %671 = vmatprep.subr.mxu0 0.0
    %672 = vmatpush1.xpose.msra.mxu0 0.0
    %673 = vmatprep.subr.mxu0 0.0
    %674 = vmatpush1.xpose.msra.mxu0 0.0
    %675 = vmatprep.subr.mxu0 0.0
    %676 = vmatpush1.xpose.msra.mxu0 0.0
    %677 = vmatprep.subr.mxu0 0.0
    %678 = vmatpush1.xpose.msra.mxu0 0.0
    %679 = vmatprep.subr.mxu0 0.0
    %680 = vmatpush1.xpose.msra.mxu0 0.0
    %681 = vmatprep.subr.mxu0 0.0
    %682 = vmatpush1.xpose.msra.mxu0 0.0
    %683 = vmatprep.subr.mxu0 0.0
    %684 = vmatpush1.xpose.msra.mxu0 0.0
    %685 = vmatprep.subr.mxu0 0.0
    %686 = vmatpush1.xpose.msra.mxu0 0.0
    %687 = vmatprep.subr.mxu0 0.0
    %688 = vmatpush1.xpose.msra.mxu0 0.0
    %689 = vmatprep.subr.mxu0 0.0
    %690 = vmatpush1.xpose.msra.mxu0 0.0
    %691 = vmatprep.subr.mxu0 0.0
    %692 = vmatpush1.xpose.msra.mxu0 0.0
    %693 = vmatprep.subr.mxu0 0.0
    %694 = vmatpush1.xpose.msra.mxu0 0.0
    %695 = vmatprep.subr.mxu0 0.0
    %696 = vmatpush1.xpose.msra.mxu0 0.0
    %697 = vmatprep.subr.mxu0 0.0
    %698 = vmatpush1.xpose.msra.mxu0 0.0
    %699 = vmatprep.subr.mxu0 0.0
    %700 = vmatpush1.xpose.msra.mxu0 0.0
    %701 = vmatprep.subr.mxu0 0.0
    %702 = vmatpush1.xpose.msra.mxu0 0.0
    %703 = vmatprep.subr.mxu0 0.0
    %704 = vmatpush1.xpose.msra.mxu0 0.0
    %705 = vmatprep.subr.mxu0 0.0
    %706 = vmatpush1.xpose.msra.mxu0 0.0
    %707 = vmatprep.subr.mxu0 0.0
    %708 = vmatpush1.xpose.msra.mxu0 0.0
    %709 = vmatprep.subr.mxu0 0.0
    %710 = vmatpush1.xpose.msra.mxu0 0.0
    %711 = vmatprep.subr.mxu0 0.0
    %712 = vmatpush1.xpose.msra.mxu0 0.0
    %713 = vmatprep.subr.mxu0 0.0
    %714 = vmatpush1.xpose.msra.mxu0 0.0
    %715 = vmatprep.subr.mxu0 0.0
    %716 = vmatpush1.xpose.msra.mxu0 0.0
    %717 = vmatprep.subr.mxu0 0.0
    %718 = vmatpush1.xpose.msra.mxu0 0.0
    %719 = vmatprep.mubr.f32.mxu0 0.0
    %720 = vmatmul.mubr.f32.gmra.mrb[0].mxu0 %v651
    %v721 = vpop.f32.mrb[0].mxu0
    %v722 = vadd.f32 0.0, %v721
    %v723 = vpop.f32.mrb[0].mxu0
    %724 = vdwg.mxu0
    %v729 = vsel %vm637, %v178, %v171
    %v730 = vsel %vm639, %v185, %v729
    %v731 = vsel %vm641, %v192, %v730
    %v736 = vsel %vm637, %v450, %v443
    %v737 = vsel %vm639, %v457, %v736
    %v738 = vsel %vm641, %v464, %v737
    %v739 = vsel %vm650, %v731, 0
    %v741 = vsel %vm650, %v738, 0
    %743 = vmatprep.subr.mxu0 0.0
    %744 = vmatpush1.xpose.msra.mxu0 %v741
    %745 = vmatprep.subr.mxu0 0.0
    %746 = vmatpush1.xpose.msra.mxu0 0.0
    %747 = vmatprep.subr.mxu0 0.0
    %748 = vmatpush1.xpose.msra.mxu0 0.0
    %749 = vmatprep.subr.mxu0 0.0
    %750 = vmatpush1.xpose.msra.mxu0 0.0
    %751 = vmatprep.subr.mxu0 0.0
    %752 = vmatpush1.xpose.msra.mxu0 0.0
    %753 = vmatprep.subr.mxu0 0.0
    %754 = vmatpush1.xpose.msra.mxu0 0.0
    %755 = vmatprep.subr.mxu0 0.0
    %756 = vmatpush1.xpose.msra.mxu0 0.0
    %757 = vmatprep.subr.mxu0 0.0
    %758 = vmatpush1.xpose.msra.mxu0 0.0
    %759 = vmatprep.subr.mxu0 0.0
    %760 = vmatpush1.xpose.msra.mxu0 0.0
    %761 = vmatprep.subr.mxu0 0.0
    %762 = vmatpush1.xpose.msra.mxu0 0.0
    %763 = vmatprep.subr.mxu0 0.0
    %764 = vmatpush1.xpose.msra.mxu0 0.0
    %765 = vmatprep.subr.mxu0 0.0
    %766 = vmatpush1.xpose.msra.mxu0 0.0
    %767 = vmatprep.subr.mxu0 0.0
    %768 = vmatpush1.xpose.msra.mxu0 0.0
    %769 = vmatprep.subr.mxu0 0.0
    %770 = vmatpush1.xpose.msra.mxu0 0.0
    %771 = vmatprep.subr.mxu0 0.0
    %772 = vmatpush1.xpose.msra.mxu0 0.0
    %773 = vmatprep.subr.mxu0 0.0
    %774 = vmatpush1.xpose.msra.mxu0 0.0
    %775 = vmatprep.subr.mxu0 0.0
    %776 = vmatpush1.xpose.msra.mxu0 0.0
    %777 = vmatprep.subr.mxu0 0.0
    %778 = vmatpush1.xpose.msra.mxu0 0.0
    %779 = vmatprep.subr.mxu0 0.0
    %780 = vmatpush1.xpose.msra.mxu0 0.0
    %781 = vmatprep.subr.mxu0 0.0
    %782 = vmatpush1.xpose.msra.mxu0 0.0
    %783 = vmatprep.subr.mxu0 0.0
    %784 = vmatpush1.xpose.msra.mxu0 0.0
    %785 = vmatprep.subr.mxu0 0.0
    %786 = vmatpush1.xpose.msra.mxu0 0.0
    %787 = vmatprep.subr.mxu0 0.0
    %788 = vmatpush1.xpose.msra.mxu0 0.0
    %789 = vmatprep.subr.mxu0 0.0
    %790 = vmatpush1.xpose.msra.mxu0 0.0
    %791 = vmatprep.subr.mxu0 0.0
    %792 = vmatpush1.xpose.msra.mxu0 0.0
    %793 = vmatprep.subr.mxu0 0.0
    %794 = vmatpush1.xpose.msra.mxu0 0.0
    %795 = vmatprep.subr.mxu0 0.0
    %796 = vmatpush1.xpose.msra.mxu0 0.0
    %797 = vmatprep.subr.mxu0 0.0
    %798 = vmatpush1.xpose.msra.mxu0 0.0
    %799 = vmatprep.subr.mxu0 0.0
    %800 = vmatpush1.xpose.msra.mxu0 0.0
    %801 = vmatprep.subr.mxu0 0.0
    %802 = vmatpush1.xpose.msra.mxu0 0.0
    %803 = vmatprep.subr.mxu0 0.0
    %804 = vmatpush1.xpose.msra.mxu0 0.0
    %805 = vmatprep.subr.mxu0 0.0
    %806 = vmatpush1.xpose.msra.mxu0 0.0
    %807 = vmatprep.mubr.f32.mxu0 0.0
    %808 = vmatmul.mubr.f32.gmra.mrb[0].mxu0 %v739
    %v809 = vpop.f32.mrb[0].mxu0
    %v810 = vadd.f32 0.0, %v809
    %v811 = vpop.f32.mrb[0].mxu0
    %812 = vdwg.mxu0
    %v817 = vsel %vm637, %v206, %v199
    %v818 = vsel %vm639, %v213, %v817
    %v819 = vsel %vm641, %v220, %v818
    %v824 = vsel %vm637, %v478, %v471
    %v825 = vsel %vm639, %v485, %v824
    %v826 = vsel %vm641, %v492, %v825
    %v827 = vsel %vm650, %v819, 0
    %v829 = vsel %vm650, %v826, 0
    %831 = vmatprep.subr.mxu0 0.0
    %832 = vmatpush1.xpose.msra.mxu0 %v829
    %833 = vmatprep.subr.mxu0 0.0
    %834 = vmatpush1.xpose.msra.mxu0 0.0
    %835 = vmatprep.subr.mxu0 0.0
    %836 = vmatpush1.xpose.msra.mxu0 0.0
    %837 = vmatprep.subr.mxu0 0.0
    %838 = vmatpush1.xpose.msra.mxu0 0.0
    %839 = vmatprep.subr.mxu0 0.0
    %840 = vmatpush1.xpose.msra.mxu0 0.0
    %841 = vmatprep.subr.mxu0 0.0
    %842 = vmatpush1.xpose.msra.mxu0 0.0
    %843 = vmatprep.subr.mxu0 0.0
    %844 = vmatpush1.xpose.msra.mxu0 0.0
    %845 = vmatprep.subr.mxu0 0.0
    %846 = vmatpush1.xpose.msra.mxu0 0.0
    %847 = vmatprep.subr.mxu0 0.0
    %848 = vmatpush1.xpose.msra.mxu0 0.0
    %849 = vmatprep.subr.mxu0 0.0
    %850 = vmatpush1.xpose.msra.mxu0 0.0
    %851 = vmatprep.subr.mxu0 0.0
    %852 = vmatpush1.xpose.msra.mxu0 0.0
    %853 = vmatprep.subr.mxu0 0.0
    %854 = vmatpush1.xpose.msra.mxu0 0.0
    %855 = vmatprep.subr.mxu0 0.0
    %856 = vmatpush1.xpose.msra.mxu0 0.0
    %857 = vmatprep.subr.mxu0 0.0
    %858 = vmatpush1.xpose.msra.mxu0 0.0
    %859 = vmatprep.subr.mxu0 0.0
    %860 = vmatpush1.xpose.msra.mxu0 0.0
    %861 = vmatprep.subr.mxu0 0.0
    %862 = vmatpush1.xpose.msra.mxu0 0.0
    %863 = vmatprep.subr.mxu0 0.0
    %864 = vmatpush1.xpose.msra.mxu0 0.0
    %865 = vmatprep.subr.mxu0 0.0
    %866 = vmatpush1.xpose.msra.mxu0 0.0
    %867 = vmatprep.subr.mxu0 0.0
    %868 = vmatpush1.xpose.msra.mxu0 0.0
    %869 = vmatprep.subr.mxu0 0.0
    %870 = vmatpush1.xpose.msra.mxu0 0.0
    %871 = vmatprep.subr.mxu0 0.0
    %872 = vmatpush1.xpose.msra.mxu0 0.0
    %873 = vmatprep.subr.mxu0 0.0
    %874 = vmatpush1.xpose.msra.mxu0 0.0
    %875 = vmatprep.subr.mxu0 0.0
    %876 = vmatpush1.xpose.msra.mxu0 0.0
    %877 = vmatprep.subr.mxu0 0.0
    %878 = vmatpush1.xpose.msra.mxu0 0.0
    %879 = vmatprep.subr.mxu0 0.0
    %880 = vmatpush1.xpose.msra.mxu0 0.0
    %881 = vmatprep.subr.mxu0 0.0
    %882 = vmatpush1.xpose.msra.mxu0 0.0
    %883 = vmatprep.subr.mxu0 0.0
    %884 = vmatpush1.xpose.msra.mxu0 0.0
    %885 = vmatprep.subr.mxu0 0.0
    %886 = vmatpush1.xpose.msra.mxu0 0.0
    %887 = vmatprep.subr.mxu0 0.0
    %888 = vmatpush1.xpose.msra.mxu0 0.0
    %889 = vmatprep.subr.mxu0 0.0
    %890 = vmatpush1.xpose.msra.mxu0 0.0
    %891 = vmatprep.subr.mxu0 0.0
    %892 = vmatpush1.xpose.msra.mxu0 0.0
    %893 = vmatprep.subr.mxu0 0.0
    %894 = vmatpush1.xpose.msra.mxu0 0.0
    %895 = vmatprep.mubr.f32.mxu0 0.0
    %896 = vmatmul.mubr.f32.gmra.mrb[0].mxu0 %v827
    %v897 = vpop.f32.mrb[0].mxu0
    %v898 = vadd.f32 0.0, %v897
    %v899 = vpop.f32.mrb[0].mxu0
    %900 = vdwg.mxu0
    %v905 = vsel %vm637, %v234, %v227
    %v906 = vsel %vm639, %v241, %v905
    %v907 = vsel %vm641, %v248, %v906
    %v912 = vsel %vm637, %v506, %v499
    %v913 = vsel %vm639, %v513, %v912
    %v914 = vsel %vm641, %v520, %v913
    %v915 = vsel %vm650, %v907, 0
    %v917 = vsel %vm650, %v914, 0
    %919 = vmatprep.subr.mxu0 0.0
    %920 = vmatpush1.xpose.msra.mxu0 %v917
    %921 = vmatprep.subr.mxu0 0.0
    %922 = vmatpush1.xpose.msra.mxu0 0.0
    %923 = vmatprep.subr.mxu0 0.0
    %924 = vmatpush1.xpose.msra.mxu0 0.0
    %925 = vmatprep.subr.mxu0 0.0
    %926 = vmatpush1.xpose.msra.mxu0 0.0
    %927 = vmatprep.subr.mxu0 0.0
    %928 = vmatpush1.xpose.msra.mxu0 0.0
    %929 = vmatprep.subr.mxu0 0.0
    %930 = vmatpush1.xpose.msra.mxu0 0.0
    %931 = vmatprep.subr.mxu0 0.0
    %932 = vmatpush1.xpose.msra.mxu0 0.0
    %933 = vmatprep.subr.mxu0 0.0
    %934 = vmatpush1.xpose.msra.mxu0 0.0
    %935 = vmatprep.subr.mxu0 0.0
    %936 = vmatpush1.xpose.msra.mxu0 0.0
    %937 = vmatprep.subr.mxu0 0.0
    %938 = vmatpush1.xpose.msra.mxu0 0.0
    %939 = vmatprep.subr.mxu0 0.0
    %940 = vmatpush1.xpose.msra.mxu0 0.0
    %941 = vmatprep.subr.mxu0 0.0
    %942 = vmatpush1.xpose.msra.mxu0 0.0
    %943 = vmatprep.subr.mxu0 0.0
    %944 = vmatpush1.xpose.msra.mxu0 0.0
    %945 = vmatprep.subr.mxu0 0.0
    %946 = vmatpush1.xpose.msra.mxu0 0.0
    %947 = vmatprep.subr.mxu0 0.0
    %948 = vmatpush1.xpose.msra.mxu0 0.0
    %949 = vmatprep.subr.mxu0 0.0
    %950 = vmatpush1.xpose.msra.mxu0 0.0
    %951 = vmatprep.subr.mxu0 0.0
    %952 = vmatpush1.xpose.msra.mxu0 0.0
    %953 = vmatprep.subr.mxu0 0.0
    %954 = vmatpush1.xpose.msra.mxu0 0.0
    %955 = vmatprep.subr.mxu0 0.0
    %956 = vmatpush1.xpose.msra.mxu0 0.0
    %957 = vmatprep.subr.mxu0 0.0
    %958 = vmatpush1.xpose.msra.mxu0 0.0
    %959 = vmatprep.subr.mxu0 0.0
    %960 = vmatpush1.xpose.msra.mxu0 0.0
    %961 = vmatprep.subr.mxu0 0.0
    %962 = vmatpush1.xpose.msra.mxu0 0.0
    %963 = vmatprep.subr.mxu0 0.0
    %964 = vmatpush1.xpose.msra.mxu0 0.0
    %965 = vmatprep.subr.mxu0 0.0
    %966 = vmatpush1.xpose.msra.mxu0 0.0
    %967 = vmatprep.subr.mxu0 0.0
    %968 = vmatpush1.xpose.msra.mxu0 0.0
    %969 = vmatprep.subr.mxu0 0.0
    %970 = vmatpush1.xpose.msra.mxu0 0.0
    %971 = vmatprep.subr.mxu0 0.0
    %972 = vmatpush1.xpose.msra.mxu0 0.0
    %973 = vmatprep.subr.mxu0 0.0
    %974 = vmatpush1.xpose.msra.mxu0 0.0
    %975 = vmatprep.subr.mxu0 0.0
    %976 = vmatpush1.xpose.msra.mxu0 0.0
    %977 = vmatprep.subr.mxu0 0.0
    %978 = vmatpush1.xpose.msra.mxu0 0.0
    %979 = vmatprep.subr.mxu0 0.0
    %980 = vmatpush1.xpose.msra.mxu0 0.0
    %981 = vmatprep.subr.mxu0 0.0
    %982 = vmatpush1.xpose.msra.mxu0 0.0
    %983 = vmatprep.mubr.f32.mxu0 0.0
    %984 = vmatmul.mubr.f32.gmra.mrb[0].mxu0 %v915
    %v985 = vpop.f32.mrb[0].mxu0
    %v986 = vadd.f32 0.0, %v985
    %v987 = vpop.f32.mrb[0].mxu0
    %988 = vdwg.mxu0
    %v993 = vsel %vm637, %v262, %v255
    %v994 = vsel %vm639, %v269, %v993
    %v995 = vsel %vm641, %v276, %v994
    %v1000 = vsel %vm637, %v534, %v527
    %v1001 = vsel %vm639, %v541, %v1000
    %v1002 = vsel %vm641, %v548, %v1001
    %v1003 = vsel %vm650, %v995, 0
    %v1005 = vsel %vm650, %v1002, 0
    %1007 = vmatprep.subr.mxu0 0.0
    %1008 = vmatpush1.xpose.msra.mxu0 %v1005
    %1009 = vmatprep.subr.mxu0 0.0
    %1010 = vmatpush1.xpose.msra.mxu0 0.0
    %1011 = vmatprep.subr.mxu0 0.0
    %1012 = vmatpush1.xpose.msra.mxu0 0.0
    %1013 = vmatprep.subr.mxu0 0.0
    %1014 = vmatpush1.xpose.msra.mxu0 0.0
    %1015 = vmatprep.subr.mxu0 0.0
    %1016 = vmatpush1.xpose.msra.mxu0 0.0
    %1017 = vmatprep.subr.mxu0 0.0
    %1018 = vmatpush1.xpose.msra.mxu0 0.0
    %1019 = vmatprep.subr.mxu0 0.0
    %1020 = vmatpush1.xpose.msra.mxu0 0.0
    %1021 = vmatprep.subr.mxu0 0.0
    %1022 = vmatpush1.xpose.msra.mxu0 0.0
    %1023 = vmatprep.subr.mxu0 0.0
    %1024 = vmatpush1.xpose.msra.mxu0 0.0
    %1025 = vmatprep.subr.mxu0 0.0
    %1026 = vmatpush1.xpose.msra.mxu0 0.0
    %1027 = vmatprep.subr.mxu0 0.0
    %1028 = vmatpush1.xpose.msra.mxu0 0.0
    %1029 = vmatprep.subr.mxu0 0.0
    %1030 = vmatpush1.xpose.msra.mxu0 0.0
    %1031 = vmatprep.subr.mxu0 0.0
    %1032 = vmatpush1.xpose.msra.mxu0 0.0
    %1033 = vmatprep.subr.mxu0 0.0
    %1034 = vmatpush1.xpose.msra.mxu0 0.0
    %1035 = vmatprep.subr.mxu0 0.0
    %1036 = vmatpush1.xpose.msra.mxu0 0.0
    %1037 = vmatprep.subr.mxu0 0.0
    %1038 = vmatpush1.xpose.msra.mxu0 0.0
    %1039 = vmatprep.subr.mxu0 0.0
    %1040 = vmatpush1.xpose.msra.mxu0 0.0
    %1041 = vmatprep.subr.mxu0 0.0
    %1042 = vmatpush1.xpose.msra.mxu0 0.0
    %1043 = vmatprep.subr.mxu0 0.0
    %1044 = vmatpush1.xpose.msra.mxu0 0.0
    %1045 = vmatprep.subr.mxu0 0.0
    %1046 = vmatpush1.xpose.msra.mxu0 0.0
    %1047 = vmatprep.subr.mxu0 0.0
    %1048 = vmatpush1.xpose.msra.mxu0 0.0
    %1049 = vmatprep.subr.mxu0 0.0
    %1050 = vmatpush1.xpose.msra.mxu0 0.0
    %1051 = vmatprep.subr.mxu0 0.0
    %1052 = vmatpush1.xpose.msra.mxu0 0.0
    %1053 = vmatprep.subr.mxu0 0.0
    %1054 = vmatpush1.xpose.msra.mxu0 0.0
    %1055 = vmatprep.subr.mxu0 0.0
    %1056 = vmatpush1.xpose.msra.mxu0 0.0
    %1057 = vmatprep.subr.mxu0 0.0
    %1058 = vmatpush1.xpose.msra.mxu0 0.0
    %1059 = vmatprep.subr.mxu0 0.0
    %1060 = vmatpush1.xpose.msra.mxu0 0.0
    %1061 = vmatprep.subr.mxu0 0.0
    %1062 = vmatpush1.xpose.msra.mxu0 0.0
    %1063 = vmatprep.subr.mxu0 0.0
    %1064 = vmatpush1.xpose.msra.mxu0 0.0
    %1065 = vmatprep.subr.mxu0 0.0
    %1066 = vmatpush1.xpose.msra.mxu0 0.0
    %1067 = vmatprep.subr.mxu0 0.0
    %1068 = vmatpush1.xpose.msra.mxu0 0.0
    %1069 = vmatprep.subr.mxu0 0.0
    %1070 = vmatpush1.xpose.msra.mxu0 0.0
    %1071 = vmatprep.mubr.f32.mxu0 0.0
    %1072 = vmatmul.mubr.f32.gmra.mrb[0].mxu0 %v1003
    %v1073 = vpop.f32.mrb[0].mxu0
    %v1074 = vadd.f32 0.0, %v1073
    %v1075 = vpop.f32.mrb[0].mxu0
    %1076 = vdwg.mxu0
    %v1081 = vsel %vm637, %v290, %v283
    %v1082 = vsel %vm639, %v297, %v1081
    %v1083 = vsel %vm641, %v304, %v1082
    %v1088 = vsel %vm637, %v562, %v555
    %v1089 = vsel %vm639, %v569, %v1088
    %v1090 = vsel %vm641, %v576, %v1089
    %v1091 = vsel %vm650, %v1083, 0
    %v1093 = vsel %vm650, %v1090, 0
    %1095 = vmatprep.subr.mxu0 0.0
    %1096 = vmatpush1.xpose.msra.mxu0 %v1093
    %1097 = vmatprep.subr.mxu0 0.0
    %1098 = vmatpush1.xpose.msra.mxu0 0.0
    %1099 = vmatprep.subr.mxu0 0.0
    %1100 = vmatpush1.xpose.msra.mxu0 0.0
    %1101 = vmatprep.subr.mxu0 0.0
    %1102 = vmatpush1.xpose.msra.mxu0 0.0
    %1103 = vmatprep.subr.mxu0 0.0
    %1104 = vmatpush1.xpose.msra.mxu0 0.0
    %1105 = vmatprep.subr.mxu0 0.0
    %1106 = vmatpush1.xpose.msra.mxu0 0.0
    %1107 = vmatprep.subr.mxu0 0.0
    %1108 = vmatpush1.xpose.msra.mxu0 0.0
    %1109 = vmatprep.subr.mxu0 0.0
    %1110 = vmatpush1.xpose.msra.mxu0 0.0
    %1111 = vmatprep.subr.mxu0 0.0
    %1112 = vmatpush1.xpose.msra.mxu0 0.0
    %1113 = vmatprep.subr.mxu0 0.0
    %1114 = vmatpush1.xpose.msra.mxu0 0.0
    %1115 = vmatprep.subr.mxu0 0.0
    %1116 = vmatpush1.xpose.msra.mxu0 0.0
    %1117 = vmatprep.subr.mxu0 0.0
    %1118 = vmatpush1.xpose.msra.mxu0 0.0
    %1119 = vmatprep.subr.mxu0 0.0
    %1120 = vmatpush1.xpose.msra.mxu0 0.0
    %1121 = vmatprep.subr.mxu0 0.0
    %1122 = vmatpush1.xpose.msra.mxu0 0.0
    %1123 = vmatprep.subr.mxu0 0.0
    %1124 = vmatpush1.xpose.msra.mxu0 0.0
    %1125 = vmatprep.subr.mxu0 0.0
    %1126 = vmatpush1.xpose.msra.mxu0 0.0
    %1127 = vmatprep.subr.mxu0 0.0
    %1128 = vmatpush1.xpose.msra.mxu0 0.0
    %1129 = vmatprep.subr.mxu0 0.0
    %1130 = vmatpush1.xpose.msra.mxu0 0.0
    %1131 = vmatprep.subr.mxu0 0.0
    %1132 = vmatpush1.xpose.msra.mxu0 0.0
    %1133 = vmatprep.subr.mxu0 0.0
    %1134 = vmatpush1.xpose.msra.mxu0 0.0
    %1135 = vmatprep.subr.mxu0 0.0
    %1136 = vmatpush1.xpose.msra.mxu0 0.0
    %1137 = vmatprep.subr.mxu0 0.0
    %1138 = vmatpush1.xpose.msra.mxu0 0.0
    %1139 = vmatprep.subr.mxu0 0.0
    %1140 = vmatpush1.xpose.msra.mxu0 0.0
    %1141 = vmatprep.subr.mxu0 0.0
    %1142 = vmatpush1.xpose.msra.mxu0 0.0
    %1143 = vmatprep.subr.mxu0 0.0
    %1144 = vmatpush1.xpose.msra.mxu0 0.0
    %1145 = vmatprep.subr.mxu0 0.0
    %1146 = vmatpush1.xpose.msra.mxu0 0.0
    %1147 = vmatprep.subr.mxu0 0.0
    %1148 = vmatpush1.xpose.msra.mxu0 0.0
    %1149 = vmatprep.subr.mxu0 0.0
    %1150 = vmatpush1.xpose.msra.mxu0 0.0
    %1151 = vmatprep.subr.mxu0 0.0
    %1152 = vmatpush1.xpose.msra.mxu0 0.0
    %1153 = vmatprep.subr.mxu0 0.0
    %1154 = vmatpush1.xpose.msra.mxu0 0.0
    %1155 = vmatprep.subr.mxu0 0.0
    %1156 = vmatpush1.xpose.msra.mxu0 0.0
    %1157 = vmatprep.subr.mxu0 0.0
    %1158 = vmatpush1.xpose.msra.mxu0 0.0
    %1159 = vmatprep.mubr.f32.mxu0 0.0
    %1160 = vmatmul.mubr.f32.gmra.mrb[0].mxu0 %v1091
    %v1161 = vpop.f32.mrb[0].mxu0
    %v1162 = vadd.f32 0.0, %v1161
    %v1163 = vpop.f32.mrb[0].mxu0
    %1164 = vdwg.mxu0
    %v1169 = vsel %vm637, %v318, %v311
    %v1170 = vsel %vm639, %v325, %v1169
    %v1171 = vsel %vm641, %v332, %v1170
    %v1176 = vsel %vm637, %v590, %v583
    %v1177 = vsel %vm639, %v597, %v1176
    %v1178 = vsel %vm641, %v604, %v1177
    %v1179 = vsel %vm650, %v1171, 0
    %v1181 = vsel %vm650, %v1178, 0
    %1183 = vmatprep.subr.mxu0 0.0
    %1184 = vmatpush1.xpose.msra.mxu0 %v1181
    %1185 = vmatprep.subr.mxu0 0.0
    %1186 = vmatpush1.xpose.msra.mxu0 0.0
    %1187 = vmatprep.subr.mxu0 0.0
    %1188 = vmatpush1.xpose.msra.mxu0 0.0
    %1189 = vmatprep.subr.mxu0 0.0
    %1190 = vmatpush1.xpose.msra.mxu0 0.0
    %1191 = vmatprep.subr.mxu0 0.0
    %1192 = vmatpush1.xpose.msra.mxu0 0.0
    %1193 = vmatprep.subr.mxu0 0.0
    %1194 = vmatpush1.xpose.msra.mxu0 0.0
    %1195 = vmatprep.subr.mxu0 0.0
    %1196 = vmatpush1.xpose.msra.mxu0 0.0
    %1197 = vmatprep.subr.mxu0 0.0
    %1198 = vmatpush1.xpose.msra.mxu0 0.0
    %1199 = vmatprep.subr.mxu0 0.0
    %1200 = vmatpush1.xpose.msra.mxu0 0.0
    %1201 = vmatprep.subr.mxu0 0.0
    %1202 = vmatpush1.xpose.msra.mxu0 0.0
    %1203 = vmatprep.subr.mxu0 0.0
    %1204 = vmatpush1.xpose.msra.mxu0 0.0
    %1205 = vmatprep.subr.mxu0 0.0
    %1206 = vmatpush1.xpose.msra.mxu0 0.0
    %1207 = vmatprep.subr.mxu0 0.0
    %1208 = vmatpush1.xpose.msra.mxu0 0.0
    %1209 = vmatprep.subr.mxu0 0.0
    %1210 = vmatpush1.xpose.msra.mxu0 0.0
    %1211 = vmatprep.subr.mxu0 0.0
    %1212 = vmatpush1.xpose.msra.mxu0 0.0
    %1213 = vmatprep.subr.mxu0 0.0
    %1214 = vmatpush1.xpose.msra.mxu0 0.0
    %1215 = vmatprep.subr.mxu0 0.0
    %1216 = vmatpush1.xpose.msra.mxu0 0.0
    %1217 = vmatprep.subr.mxu0 0.0
    %1218 = vmatpush1.xpose.msra.mxu0 0.0
    %1219 = vmatprep.subr.mxu0 0.0
    %1220 = vmatpush1.xpose.msra.mxu0 0.0
    %1221 = vmatprep.subr.mxu0 0.0
    %1222 = vmatpush1.xpose.msra.mxu0 0.0
    %1223 = vmatprep.subr.mxu0 0.0
    %1224 = vmatpush1.xpose.msra.mxu0 0.0
    %1225 = vmatprep.subr.mxu0 0.0
    %1226 = vmatpush1.xpose.msra.mxu0 0.0
    %1227 = vmatprep.subr.mxu0 0.0
    %1228 = vmatpush1.xpose.msra.mxu0 0.0
    %1229 = vmatprep.subr.mxu0 0.0
    %1230 = vmatpush1.xpose.msra.mxu0 0.0
    %1231 = vmatprep.subr.mxu0 0.0
    %1232 = vmatpush1.xpose.msra.mxu0 0.0
    %1233 = vmatprep.subr.mxu0 0.0
    %1234 = vmatpush1.xpose.msra.mxu0 0.0
    %1235 = vmatprep.subr.mxu0 0.0
    %1236 = vmatpush1.xpose.msra.mxu0 0.0
    %1237 = vmatprep.subr.mxu0 0.0
    %1238 = vmatpush1.xpose.msra.mxu0 0.0
    %1239 = vmatprep.subr.mxu0 0.0
    %1240 = vmatpush1.xpose.msra.mxu0 0.0
    %1241 = vmatprep.subr.mxu0 0.0
    %1242 = vmatpush1.xpose.msra.mxu0 0.0
    %1243 = vmatprep.subr.mxu0 0.0
    %1244 = vmatpush1.xpose.msra.mxu0 0.0
    %1245 = vmatprep.subr.mxu0 0.0
    %1246 = vmatpush1.xpose.msra.mxu0 0.0
    %1247 = vmatprep.mubr.f32.mxu0 0.0
    %1248 = vmatmul.mubr.f32.gmra.mrb[0].mxu0 %v1179
    %v1249 = vpop.f32.mrb[0].mxu0
    %v1250 = vadd.f32 0.0, %v1249
    %v1251 = vpop.f32.mrb[0].mxu0
    %1252 = vdwg.mxu0
    %v1257 = vsel %vm637, %v346, %v339
    %v1258 = vsel %vm639, %v353, %v1257
    %v1259 = vsel %vm641, %v360, %v1258
    %v1264 = vsel %vm637, %v618, %v611
    %v1265 = vsel %vm639, %v625, %v1264
    %v1266 = vsel %vm641, %v632, %v1265
    %v1267 = vsel %vm650, %v1259, 0
    %v1269 = vsel %vm650, %v1266, 0
    %1271 = vmatprep.subr.mxu0 0.0
    %1272 = vmatpush1.xpose.msra.mxu0 %v1269
    %1273 = vmatprep.subr.mxu0 0.0
    %1274 = vmatpush1.xpose.msra.mxu0 0.0
    %1275 = vmatprep.subr.mxu0 0.0
    %1276 = vmatpush1.xpose.msra.mxu0 0.0
    %1277 = vmatprep.subr.mxu0 0.0
    %1278 = vmatpush1.xpose.msra.mxu0 0.0
    %1279 = vmatprep.subr.mxu0 0.0
    %1280 = vmatpush1.xpose.msra.mxu0 0.0
    %1281 = vmatprep.subr.mxu0 0.0
    %1282 = vmatpush1.xpose.msra.mxu0 0.0
    %1283 = vmatprep.subr.mxu0 0.0
    %1284 = vmatpush1.xpose.msra.mxu0 0.0
    %1285 = vmatprep.subr.mxu0 0.0
    %1286 = vmatpush1.xpose.msra.mxu0 0.0
    %1287 = vmatprep.subr.mxu0 0.0
    %1288 = vmatpush1.xpose.msra.mxu0 0.0
    %1289 = vmatprep.subr.mxu0 0.0
    %1290 = vmatpush1.xpose.msra.mxu0 0.0
    %1291 = vmatprep.subr.mxu0 0.0
    %1292 = vmatpush1.xpose.msra.mxu0 0.0
    %1293 = vmatprep.subr.mxu0 0.0
    %1294 = vmatpush1.xpose.msra.mxu0 0.0
    %1295 = vmatprep.subr.mxu0 0.0
    %1296 = vmatpush1.xpose.msra.mxu0 0.0
    %1297 = vmatprep.subr.mxu0 0.0
    %1298 = vmatpush1.xpose.msra.mxu0 0.0
    %1299 = vmatprep.subr.mxu0 0.0
    %1300 = vmatpush1.xpose.msra.mxu0 0.0
    %1301 = vmatprep.subr.mxu0 0.0
    %1302 = vmatpush1.xpose.msra.mxu0 0.0
    %1303 = vmatprep.subr.mxu0 0.0
    %1304 = vmatpush1.xpose.msra.mxu0 0.0
    %1305 = vmatprep.subr.mxu0 0.0
    %1306 = vmatpush1.xpose.msra.mxu0 0.0
    %1307 = vmatprep.subr.mxu0 0.0
    %1308 = vmatpush1.xpose.msra.mxu0 0.0
    %1309 = vmatprep.subr.mxu0 0.0
    %1310 = vmatpush1.xpose.msra.mxu0 0.0
    %1311 = vmatprep.subr.mxu0 0.0
    %1312 = vmatpush1.xpose.msra.mxu0 0.0
    %1313 = vmatprep.subr.mxu0 0.0
    %1314 = vmatpush1.xpose.msra.mxu0 0.0
    %1315 = vmatprep.subr.mxu0 0.0
    %1316 = vmatpush1.xpose.msra.mxu0 0.0
    %1317 = vmatprep.subr.mxu0 0.0
    %1318 = vmatpush1.xpose.msra.mxu0 0.0
    %1319 = vmatprep.subr.mxu0 0.0
    %1320 = vmatpush1.xpose.msra.mxu0 0.0
    %1321 = vmatprep.subr.mxu0 0.0
    %1322 = vmatpush1.xpose.msra.mxu0 0.0
    %1323 = vmatprep.subr.mxu0 0.0
    %1324 = vmatpush1.xpose.msra.mxu0 0.0
    %1325 = vmatprep.subr.mxu0 0.0
    %1326 = vmatpush1.xpose.msra.mxu0 0.0
    %1327 = vmatprep.subr.mxu0 0.0
    %1328 = vmatpush1.xpose.msra.mxu0 0.0
    %1329 = vmatprep.subr.mxu0 0.0
    %1330 = vmatpush1.xpose.msra.mxu0 0.0
    %1331 = vmatprep.subr.mxu0 0.0
    %1332 = vmatpush1.xpose.msra.mxu0 0.0
    %1333 = vmatprep.subr.mxu0 0.0
    %1334 = vmatpush1.xpose.msra.mxu0 0.0
    %1335 = vmatprep.mubr.f32.mxu0 0.0
    %1336 = vmatmul.mubr.f32.gmra.mrb[0].mxu0 %v1267
    %v1337 = vpop.f32.mrb[0].mxu0
    %v1338 = vadd.f32 0.0, %v1337
    %v1339 = vpop.f32.mrb[0].mxu0
    %1340 = vdwg.mxu0
    %v1341 = vmul.f32 %v722, 0.011048543
    %v1342 = vmul.f32 %v810, 0.011048543
    %v1343 = vmul.f32 %v898, 0.011048543
    %v1344 = vmul.f32 %v986, 0.011048543
    %v1345 = vmul.f32 %v1074, 0.011048543
    %v1346 = vmul.f32 %v1162, 0.011048543
    %v1347 = vmul.f32 %v1250, 0.011048543
    %v1348 = vmul.f32 %v1338, 0.011048543
    %v1349 = vmax.f32 %v1341, 0.0
    %v1350 = vmax.f32 %v1342, 0.0
    %v1351 = vmax.f32 %v1343, 0.0
    %v1352 = vmax.f32 %v1344, 0.0
    %v1353 = vmax.f32 %v1345, 0.0
    %v1354 = vmax.f32 %v1346, 0.0
    %v1355 = vmax.f32 %v1347, 0.0
    %v1356 = vmax.f32 %v1348, 0.0
    %v1357 = vld [vmem:[#allocation7] sm:$0xf]
    %v1358 = vld [vmem:[#allocation7 + $0x4] sm:$0xf]
    %v1359 = vld [vmem:[#allocation7 + $0x8] sm:$0xf]
    %v1360 = vld [vmem:[#allocation7 + $0xc] sm:$0xf]
    %v1361 = vld [vmem:[#allocation7 + $0x10] sm:$0xf]
    %v1362 = vld [vmem:[#allocation7 + $0x14] sm:$0xf]
    %v1363 = vld [vmem:[#allocation7 + $0x18] sm:$0xf]
    %v1364 = vld [vmem:[#allocation7 + $0x1c] sm:$0xf]
    %v1365 = vadd.f32 %v1357, 1e-06
    %v1366 = vadd.f32 %v1358, 1e-06
    %v1367 = vadd.f32 %v1359, 1e-06
    %v1368 = vadd.f32 %v1360, 1e-06
    %v1369 = vadd.f32 %v1361, 1e-06
    %v1370 = vadd.f32 %v1362, 1e-06
    %v1371 = vadd.f32 %v1363, 1e-06
    %v1372 = vadd.f32 %v1364, 1e-06
    %v1373 = vlog2.pop %v1365
    %v1374 = vmul.f32 %v1373, 0.6931472
    %v1375 = vlog2.pop %v1366
    %v1376 = vmul.f32 %v1375, 0.6931472
    %v1377 = vlog2.pop %v1367
    %v1378 = vmul.f32 %v1377, 0.6931472
    %v1379 = vlog2.pop %v1368
    %v1380 = vmul.f32 %v1379, 0.6931472
    %v1381 = vlog2.pop %v1369
    %v1382 = vmul.f32 %v1381, 0.6931472
    %v1383 = vlog2.pop %v1370
    %v1384 = vmul.f32 %v1383, 0.6931472
    %v1385 = vlog2.pop %v1371
    %v1386 = vmul.f32 %v1385, 0.6931472
    %v1387 = vlog2.pop %v1372
    %v1388 = vmul.f32 %v1387, 0.6931472
    %v1389 = vsub.f32 0.0, %v1374
    %v1390 = vsub.f32 0.0, %v1376
    %v1391 = vsub.f32 0.0, %v1378
    %v1392 = vsub.f32 0.0, %v1380
    %v1393 = vsub.f32 0.0, %v1382
    %v1394 = vsub.f32 0.0, %v1384
    %v1395 = vsub.f32 0.0, %v1386
    %v1396 = vsub.f32 0.0, %v1388
    %v1397 = vadd.f32 %v1389, 1e-06
    %v1398 = vadd.f32 %v1390, 1e-06
    %v1399 = vadd.f32 %v1391, 1e-06
    %v1400 = vadd.f32 %v1392, 1e-06
    %v1401 = vadd.f32 %v1393, 1e-06
    %v1402 = vadd.f32 %v1394, 1e-06
    %v1403 = vadd.f32 %v1395, 1e-06
    %v1404 = vadd.f32 %v1396, 1e-06
    %v1405 = vlog2.pop %v1397
    %v1406 = vmul.f32 %v1405, 0.6931472
    %v1407 = vlog2.pop %v1398
    %v1408 = vmul.f32 %v1407, 0.6931472
    %v1409 = vlog2.pop %v1399
    %v1410 = vmul.f32 %v1409, 0.6931472
    %v1411 = vlog2.pop %v1400
    %v1412 = vmul.f32 %v1411, 0.6931472
    %v1413 = vlog2.pop %v1401
    %v1414 = vmul.f32 %v1413, 0.6931472
    %v1415 = vlog2.pop %v1402
    %v1416 = vmul.f32 %v1415, 0.6931472
    %v1417 = vlog2.pop %v1403
    %v1418 = vmul.f32 %v1417, 0.6931472
    %v1419 = vlog2.pop %v1404
    %v1420 = vmul.f32 %v1419, 0.6931472
    %v1421 = vsub.f32 0.0, %v1406
    %v1422 = vsub.f32 0.0, %v1408
    %v1423 = vsub.f32 0.0, %v1410
    %v1424 = vsub.f32 0.0, %v1412
    %v1425 = vsub.f32 0.0, %v1414
    %v1426 = vsub.f32 0.0, %v1416
    %v1427 = vsub.f32 0.0, %v1418
    %v1428 = vsub.f32 0.0, %v1420
    %v1429 = vadd.f32 %v1349, 1e-06
    %v1430 = vadd.f32 %v1350, 1e-06
    %v1431 = vadd.f32 %v1351, 1e-06
    %v1432 = vadd.f32 %v1352, 1e-06
    %v1433 = vadd.f32 %v1353, 1e-06
    %v1434 = vadd.f32 %v1354, 1e-06
    %v1435 = vadd.f32 %v1355, 1e-06
    %v1436 = vadd.f32 %v1356, 1e-06
    %v1437 = vlog2.pop %v1429
    %v1438 = vmul.f32 %v1437, 0.6931472
    %v1439 = vlog2.pop %v1430
    %v1440 = vmul.f32 %v1439, 0.6931472
    %v1441 = vlog2.pop %v1431
    %v1442 = vmul.f32 %v1441, 0.6931472
    %v1443 = vlog2.pop %v1432
    %v1444 = vmul.f32 %v1443, 0.6931472
    %v1445 = vlog2.pop %v1433
    %v1446 = vmul.f32 %v1445, 0.6931472
    %v1447 = vlog2.pop %v1434
    %v1448 = vmul.f32 %v1447, 0.6931472
    %v1449 = vlog2.pop %v1435
    %v1450 = vmul.f32 %v1449, 0.6931472
    %v1451 = vlog2.pop %v1436
    %v1452 = vmul.f32 %v1451, 0.6931472
    %v1453 = vadd.f32 %v1438, %v1421
    %v1454 = vadd.f32 %v1440, %v1422
    %v1455 = vadd.f32 %v1442, %v1423
    %v1456 = vadd.f32 %v1444, %v1424
    %v1457 = vadd.f32 %v1446, %v1425
    %v1458 = vadd.f32 %v1448, %v1426
    %v1459 = vadd.f32 %v1450, %v1427
    %v1460 = vadd.f32 %v1452, %v1428
    %v1461 = vmul.f32 %v1453, 1.4285715
    %v1462 = vmul.f32 %v1454, 1.4285715
    %v1463 = vmul.f32 %v1455, 1.4285715
    %v1464 = vmul.f32 %v1456, 1.4285715
    %v1465 = vmul.f32 %v1457, 1.4285715
    %v1466 = vmul.f32 %v1458, 1.4285715
    %v1467 = vmul.f32 %v1459, 1.4285715
    %v1468 = vmul.f32 %v1460, 1.4285715
    %vm1469 = vcmask 27648
    %v1470 = vsel %vm1469, %v1461, -inf
    %1471 = vmax.xlane.f32.xlu0 %v1470
    %v1472 = vpop.xlane.xlu0 %1471
    %v1473 = vsel %vm1469, %v1462, -inf
    %1474 = vmax.xlane.f32.xlu0 %v1473
    %v1475 = vpop.xlane.xlu0 %1474
    %v1476 = vsel %vm1469, %v1463, -inf
    %1477 = vmax.xlane.f32.xlu0 %v1476
    %v1478 = vpop.xlane.xlu0 %1477
    %v1479 = vsel %vm1469, %v1464, -inf
    %1480 = vmax.xlane.f32.xlu0 %v1479
    %v1481 = vpop.xlane.xlu0 %1480
    %v1482 = vsel %vm1469, %v1465, -inf
    %1483 = vmax.xlane.f32.xlu0 %v1482
    %v1484 = vpop.xlane.xlu0 %1483
    %v1485 = vsel %vm1469, %v1466, -inf
    %1486 = vmax.xlane.f32.xlu0 %v1485
    %v1487 = vpop.xlane.xlu0 %1486
    %v1488 = vsel %vm1469, %v1467, -inf
    %1489 = vmax.xlane.f32.xlu0 %v1488
    %v1490 = vpop.xlane.xlu0 %1489
    %v1491 = vsel %vm1469, %v1468, -inf
    %1492 = vmax.xlane.f32.xlu0 %v1491
    %v1493 = vpop.xlane.xlu0 %1492
    %v1494 = vsub.f32 %v1461, %v1472
    %v1495 = vsub.f32 %v1462, %v1475
    %v1496 = vsub.f32 %v1463, %v1478
    %v1497 = vsub.f32 %v1464, %v1481
    %v1498 = vsub.f32 %v1465, %v1484
    %v1499 = vsub.f32 %v1466, %v1487
    %v1500 = vsub.f32 %v1467, %v1490
    %v1501 = vsub.f32 %v1468, %v1493
    %v1502 = vmul.f32 %v1494, 1.442695
    %v1503 = vpow.pop %v1502
    %v1504 = vmul.f32 %v1495, 1.442695
    %v1505 = vpow.pop %v1504
    %v1506 = vmul.f32 %v1496, 1.442695
    %v1507 = vpow.pop %v1506
    %v1508 = vmul.f32 %v1497, 1.442695
    %v1509 = vpow.pop %v1508
    %v1510 = vmul.f32 %v1498, 1.442695
    %v1511 = vpow.pop %v1510
    %v1512 = vmul.f32 %v1499, 1.442695
    %v1513 = vpow.pop %v1512
    %v1514 = vmul.f32 %v1500, 1.442695
    %v1515 = vpow.pop %v1514
    %v1516 = vmul.f32 %v1501, 1.442695
    %v1517 = vpow.pop %v1516
    %v1518 = vsel %vm1469, %v1503, 0.0
    %1519 = vadd.xlane.f32.xlu0 %v1518
    %v1520 = vpop.xlane.xlu0 %1519
    %v1521 = vsel %vm1469, %v1505, 0.0
    %1522 = vadd.xlane.f32.xlu0 %v1521
    %v1523 = vpop.xlane.xlu0 %1522
    %v1524 = vsel %vm1469, %v1507, 0.0
    %1525 = vadd.xlane.f32.xlu0 %v1524
    %v1526 = vpop.xlane.xlu0 %1525
    %v1527 = vsel %vm1469, %v1509, 0.0
    %1528 = vadd.xlane.f32.xlu0 %v1527
    %v1529 = vpop.xlane.xlu0 %1528
    %v1530 = vsel %vm1469, %v1511, 0.0
    %1531 = vadd.xlane.f32.xlu0 %v1530
    %v1532 = vpop.xlane.xlu0 %1531
    %v1533 = vsel %vm1469, %v1513, 0.0
    %1534 = vadd.xlane.f32.xlu0 %v1533
    %v1535 = vpop.xlane.xlu0 %1534
    %v1536 = vsel %vm1469, %v1515, 0.0
    %1537 = vadd.xlane.f32.xlu0 %v1536
    %v1538 = vpop.xlane.xlu0 %1537
    %v1539 = vsel %vm1469, %v1517, 0.0
    %1540 = vadd.xlane.f32.xlu0 %v1539
    %v1541 = vpop.xlane.xlu0 %1540
    %v1542 = vlog2.pop %v1520
    %v1543 = vmul.f32 %v1542, 0.6931472
    %v1544 = vlog2.pop %v1523
    %v1545 = vmul.f32 %v1544, 0.6931472
    %v1546 = vlog2.pop %v1526
    %v1547 = vmul.f32 %v1546, 0.6931472
    %v1548 = vlog2.pop %v1529
    %v1549 = vmul.f32 %v1548, 0.6931472
    %v1550 = vlog2.pop %v1532
    %v1551 = vmul.f32 %v1550, 0.6931472
    %v1552 = vlog2.pop %v1535
    %v1553 = vmul.f32 %v1552, 0.6931472
    %v1554 = vlog2.pop %v1538
    %v1555 = vmul.f32 %v1554, 0.6931472
    %v1556 = vlog2.pop %v1541
    %v1557 = vmul.f32 %v1556, 0.6931472
    %v1558 = vadd.f32 %v1472, %v1543
    %v1559 = vadd.f32 %v1475, %v1545
    %v1560 = vadd.f32 %v1478, %v1547
    %v1561 = vadd.f32 %v1481, %v1549
    %v1562 = vadd.f32 %v1484, %v1551
    %v1563 = vadd.f32 %v1487, %v1553
    %v1564 = vadd.f32 %v1490, %v1555
    %v1565 = vadd.f32 %v1493, %v1557
    %v1566 = vsub.f32 %v1461, %v1558
    %v1567 = vsub.f32 %v1462, %v1559
    %v1568 = vsub.f32 %v1463, %v1560
    %v1569 = vsub.f32 %v1464, %v1561
    %v1570 = vsub.f32 %v1465, %v1562
    %v1571 = vsub.f32 %v1466, %v1563
    %v1572 = vsub.f32 %v1467, %v1564
    %v1573 = vsub.f32 %v1468, %v1565
    %v1574 = vsel %vm1469, %v1566, -inf
    %v1575 = vrot.slane %v1574, 4
    %v1576 = vmax.f32 %v1574, %v1575
    %v1577 = vrot.slane %v1576, 2
    %v1578 = vmax.f32 %v1576, %v1577
    %v1579 = vrot.slane %v1578, 1
    %v1580 = vmax.f32 %v1578, %v1579
    %v1581 = vsel %vm1469, %v1567, -inf
    %v1582 = vrot.slane %v1581, 4
    %v1583 = vmax.f32 %v1581, %v1582
    %v1584 = vrot.slane %v1583, 2
    %v1585 = vmax.f32 %v1583, %v1584
    %v1586 = vrot.slane %v1585, 1
    %v1587 = vmax.f32 %v1585, %v1586
    %v1588 = vsel %vm1469, %v1568, -inf
    %v1589 = vrot.slane %v1588, 4
    %v1590 = vmax.f32 %v1588, %v1589
    %v1591 = vrot.slane %v1590, 2
    %v1592 = vmax.f32 %v1590, %v1591
    %v1593 = vrot.slane %v1592, 1
    %v1594 = vmax.f32 %v1592, %v1593
    %v1595 = vsel %vm1469, %v1569, -inf
    %v1596 = vrot.slane %v1595, 4
    %v1597 = vmax.f32 %v1595, %v1596
    %v1598 = vrot.slane %v1597, 2
    %v1599 = vmax.f32 %v1597, %v1598
    %v1600 = vrot.slane %v1599, 1
    %v1601 = vmax.f32 %v1599, %v1600
    %v1602 = vsel %vm1469, %v1570, -inf
    %v1603 = vrot.slane %v1602, 4
    %v1604 = vmax.f32 %v1602, %v1603
    %v1605 = vrot.slane %v1604, 2
    %v1606 = vmax.f32 %v1604, %v1605
    %v1607 = vrot.slane %v1606, 1
    %v1608 = vmax.f32 %v1606, %v1607
    %v1609 = vsel %vm1469, %v1571, -inf
    %v1610 = vrot.slane %v1609, 4
    %v1611 = vmax.f32 %v1609, %v1610
    %v1612 = vrot.slane %v1611, 2
    %v1613 = vmax.f32 %v1611, %v1612
    %v1614 = vrot.slane %v1613, 1
    %v1615 = vmax.f32 %v1613, %v1614
    %v1616 = vsel %vm1469, %v1572, -inf
    %v1617 = vrot.slane %v1616, 4
    %v1618 = vmax.f32 %v1616, %v1617
    %v1619 = vrot.slane %v1618, 2
    %v1620 = vmax.f32 %v1618, %v1619
    %v1621 = vrot.slane %v1620, 1
    %v1622 = vmax.f32 %v1620, %v1621
    %v1623 = vsel %vm1469, %v1573, -inf
    %v1624 = vrot.slane %v1623, 4
    %v1625 = vmax.f32 %v1623, %v1624
    %v1626 = vrot.slane %v1625, 2
    %v1627 = vmax.f32 %v1625, %v1626
    %v1628 = vrot.slane %v1627, 1
    %v1629 = vmax.f32 %v1627, %v1628
    %v1630 = vsub.f32 %v1566, %v1580
    %v1631 = vsub.f32 %v1567, %v1587
    %v1632 = vsub.f32 %v1568, %v1594
    %v1633 = vsub.f32 %v1569, %v1601
    %v1634 = vsub.f32 %v1570, %v1608
    %v1635 = vsub.f32 %v1571, %v1615
    %v1636 = vsub.f32 %v1572, %v1622
    %v1637 = vsub.f32 %v1573, %v1629
    %v1638 = vmul.f32 %v1630, 1.442695
    %v1639 = vpow.pop %v1638
    %v1640 = vmul.f32 %v1631, 1.442695
    %v1641 = vpow.pop %v1640
    %v1642 = vmul.f32 %v1632, 1.442695
    %v1643 = vpow.pop %v1642
    %v1644 = vmul.f32 %v1633, 1.442695
    %v1645 = vpow.pop %v1644
    %v1646 = vmul.f32 %v1634, 1.442695
    %v1647 = vpow.pop %v1646
    %v1648 = vmul.f32 %v1635, 1.442695
    %v1649 = vpow.pop %v1648
    %v1650 = vmul.f32 %v1636, 1.442695
    %v1651 = vpow.pop %v1650
    %v1652 = vmul.f32 %v1637, 1.442695
    %v1653 = vpow.pop %v1652
    %v1654 = vsel %vm1469, %v1639, 0.0
    %v1655 = vrot.slane %v1654, 4
    %v1656 = vadd.f32 %v1654, %v1655
    %v1657 = vrot.slane %v1656, 2
    %v1658 = vadd.f32 %v1656, %v1657
    %v1659 = vrot.slane %v1658, 1
    %v1660 = vadd.f32 %v1658, %v1659
    %v1661 = vsel %vm1469, %v1641, 0.0
    %v1662 = vrot.slane %v1661, 4
    %v1663 = vadd.f32 %v1661, %v1662
    %v1664 = vrot.slane %v1663, 2
    %v1665 = vadd.f32 %v1663, %v1664
    %v1666 = vrot.slane %v1665, 1
    %v1667 = vadd.f32 %v1665, %v1666
    %v1668 = vsel %vm1469, %v1643, 0.0
    %v1669 = vrot.slane %v1668, 4
    %v1670 = vadd.f32 %v1668, %v1669
    %v1671 = vrot.slane %v1670, 2
    %v1672 = vadd.f32 %v1670, %v1671
    %v1673 = vrot.slane %v1672, 1
    %v1674 = vadd.f32 %v1672, %v1673
    %v1675 = vsel %vm1469, %v1645, 0.0
    %v1676 = vrot.slane %v1675, 4
    %v1677 = vadd.f32 %v1675, %v1676
    %v1678 = vrot.slane %v1677, 2
    %v1679 = vadd.f32 %v1677, %v1678
    %v1680 = vrot.slane %v1679, 1
    %v1681 = vadd.f32 %v1679, %v1680
    %v1682 = vsel %vm1469, %v1647, 0.0
    %v1683 = vrot.slane %v1682, 4
    %v1684 = vadd.f32 %v1682, %v1683
    %v1685 = vrot.slane %v1684, 2
    %v1686 = vadd.f32 %v1684, %v1685
    %v1687 = vrot.slane %v1686, 1
    %v1688 = vadd.f32 %v1686, %v1687
    %v1689 = vsel %vm1469, %v1649, 0.0
    %v1690 = vrot.slane %v1689, 4
    %v1691 = vadd.f32 %v1689, %v1690
    %v1692 = vrot.slane %v1691, 2
    %v1693 = vadd.f32 %v1691, %v1692
    %v1694 = vrot.slane %v1693, 1
    %v1695 = vadd.f32 %v1693, %v1694
    %v1696 = vsel %vm1469, %v1651, 0.0
    %v1697 = vrot.slane %v1696, 4
    %v1698 = vadd.f32 %v1696, %v1697
    %v1699 = vrot.slane %v1698, 2
    %v1700 = vadd.f32 %v1698, %v1699
    %v1701 = vrot.slane %v1700, 1
    %v1702 = vadd.f32 %v1700, %v1701
    %v1703 = vsel %vm1469, %v1653, 0.0
    %v1704 = vrot.slane %v1703, 4
    %v1705 = vadd.f32 %v1703, %v1704
    %v1706 = vrot.slane %v1705, 2
    %v1707 = vadd.f32 %v1705, %v1706
    %v1708 = vrot.slane %v1707, 1
    %v1709 = vadd.f32 %v1707, %v1708
    %v1710 = vlog2.pop %v1660
    %v1711 = vmul.f32 %v1710, 0.6931472
    %v1712 = vlog2.pop %v1667
    %v1713 = vmul.f32 %v1712, 0.6931472
    %v1714 = vlog2.pop %v1674
    %v1715 = vmul.f32 %v1714, 0.6931472
    %v1716 = vlog2.pop %v1681
    %v1717 = vmul.f32 %v1716, 0.6931472
    %v1718 = vlog2.pop %v1688
    %v1719 = vmul.f32 %v1718, 0.6931472
    %v1720 = vlog2.pop %v1695
    %v1721 = vmul.f32 %v1720, 0.6931472
    %v1722 = vlog2.pop %v1702
    %v1723 = vmul.f32 %v1722, 0.6931472
    %v1724 = vlog2.pop %v1709
    %v1725 = vmul.f32 %v1724, 0.6931472
    %v1726 = vadd.f32 %v1580, %v1711
    %v1727 = vadd.f32 %v1587, %v1713
    %v1728 = vadd.f32 %v1594, %v1715
    %v1729 = vadd.f32 %v1601, %v1717
    %v1730 = vadd.f32 %v1608, %v1719
    %v1731 = vadd.f32 %v1615, %v1721
    %v1732 = vadd.f32 %v1622, %v1723
    %v1733 = vadd.f32 %v1629, %v1725
    %v1734 = vsub.f32 %v1566, %v1726
    %v1735 = vsub.f32 %v1567, %v1727
    %v1736 = vsub.f32 %v1568, %v1728
    %v1737 = vsub.f32 %v1569, %v1729
    %v1738 = vsub.f32 %v1570, %v1730
    %v1739 = vsub.f32 %v1571, %v1731
    %v1740 = vsub.f32 %v1572, %v1732
    %v1741 = vsub.f32 %v1573, %v1733
    %v1742 = vsel %vm1469, %v1734, -inf
    %1743 = vmax.xlane.f32.xlu0 %v1742
    %v1744 = vpop.xlane.xlu0 %1743
    %v1745 = vsel %vm1469, %v1735, -inf
    %1746 = vmax.xlane.f32.xlu0 %v1745
    %v1747 = vpop.xlane.xlu0 %1746
    %v1748 = vsel %vm1469, %v1736, -inf
    %1749 = vmax.xlane.f32.xlu0 %v1748
    %v1750 = vpop.xlane.xlu0 %1749
    %v1751 = vsel %vm1469, %v1737, -inf
    %1752 = vmax.xlane.f32.xlu0 %v1751
    %v1753 = vpop.xlane.xlu0 %1752
    %v1754 = vsel %vm1469, %v1738, -inf
    %1755 = vmax.xlane.f32.xlu0 %v1754
    %v1756 = vpop.xlane.xlu0 %1755
    %v1757 = vsel %vm1469, %v1739, -inf
    %1758 = vmax.xlane.f32.xlu0 %v1757
    %v1759 = vpop.xlane.xlu0 %1758
    %v1760 = vsel %vm1469, %v1740, -inf
    %1761 = vmax.xlane.f32.xlu0 %v1760
    %v1762 = vpop.xlane.xlu0 %1761
    %v1763 = vsel %vm1469, %v1741, -inf
    %1764 = vmax.xlane.f32.xlu0 %v1763
    %v1765 = vpop.xlane.xlu0 %1764
    %v1766 = vsub.f32 %v1734, %v1744
    %v1767 = vsub.f32 %v1735, %v1747
    %v1768 = vsub.f32 %v1736, %v1750
    %v1769 = vsub.f32 %v1737, %v1753
    %v1770 = vsub.f32 %v1738, %v1756
    %v1771 = vsub.f32 %v1739, %v1759
    %v1772 = vsub.f32 %v1740, %v1762
    %v1773 = vsub.f32 %v1741, %v1765
    %v1774 = vmul.f32 %v1766, 1.442695
    %v1775 = vpow.pop %v1774
    %v1776 = vmul.f32 %v1767, 1.442695
    %v1777 = vpow.pop %v1776
    %v1778 = vmul.f32 %v1768, 1.442695
    %v1779 = vpow.pop %v1778
    %v1780 = vmul.f32 %v1769, 1.442695
    %v1781 = vpow.pop %v1780
    %v1782 = vmul.f32 %v1770, 1.442695
    %v1783 = vpow.pop %v1782
    %v1784 = vmul.f32 %v1771, 1.442695
    %v1785 = vpow.pop %v1784
    %v1786 = vmul.f32 %v1772, 1.442695
    %v1787 = vpow.pop %v1786
    %v1788 = vmul.f32 %v1773, 1.442695
    %v1789 = vpow.pop %v1788
    %v1790 = vsel %vm1469, %v1775, 0.0
    %1791 = vadd.xlane.f32.xlu0 %v1790
    %v1792 = vpop.xlane.xlu0 %1791
    %v1793 = vsel %vm1469, %v1777, 0.0
    %1794 = vadd.xlane.f32.xlu0 %v1793
    %v1795 = vpop.xlane.xlu0 %1794
    %v1796 = vsel %vm1469, %v1779, 0.0
    %1797 = vadd.xlane.f32.xlu0 %v1796
    %v1798 = vpop.xlane.xlu0 %1797
    %v1799 = vsel %vm1469, %v1781, 0.0
    %1800 = vadd.xlane.f32.xlu0 %v1799
    %v1801 = vpop.xlane.xlu0 %1800
    %v1802 = vsel %vm1469, %v1783, 0.0
    %1803 = vadd.xlane.f32.xlu0 %v1802
    %v1804 = vpop.xlane.xlu0 %1803
    %v1805 = vsel %vm1469, %v1785, 0.0
    %1806 = vadd.xlane.f32.xlu0 %v1805
    %v1807 = vpop.xlane.xlu0 %1806
    %v1808 = vsel %vm1469, %v1787, 0.0
    %1809 = vadd.xlane.f32.xlu0 %v1808
    %v1810 = vpop.xlane.xlu0 %1809
    %v1811 = vsel %vm1469, %v1789, 0.0
    %1812 = vadd.xlane.f32.xlu0 %v1811
    %v1813 = vpop.xlane.xlu0 %1812
    %v1814 = vlog2.pop %v1792
    %v1815 = vmul.f32 %v1814, 0.6931472
    %v1816 = vlog2.pop %v1795
    %v1817 = vmul.f32 %v1816, 0.6931472
    %v1818 = vlog2.pop %v1798
    %v1819 = vmul.f32 %v1818, 0.6931472
    %v1820 = vlog2.pop %v1801
    %v1821 = vmul.f32 %v1820, 0.6931472
    %v1822 = vlog2.pop %v1804
    %v1823 = vmul.f32 %v1822, 0.6931472
    %v1824 = vlog2.pop %v1807
    %v1825 = vmul.f32 %v1824, 0.6931472
    %v1826 = vlog2.pop %v1810
    %v1827 = vmul.f32 %v1826, 0.6931472
    %v1828 = vlog2.pop %v1813
    %v1829 = vmul.f32 %v1828, 0.6931472
    %v1830 = vadd.f32 %v1744, %v1815
    %v1831 = vadd.f32 %v1747, %v1817
    %v1832 = vadd.f32 %v1750, %v1819
    %v1833 = vadd.f32 %v1753, %v1821
    %v1834 = vadd.f32 %v1756, %v1823
    %v1835 = vadd.f32 %v1759, %v1825
    %v1836 = vadd.f32 %v1762, %v1827
    %v1837 = vadd.f32 %v1765, %v1829
    %v1838 = vsub.f32 %v1734, %v1830
    %v1839 = vsub.f32 %v1735, %v1831
    %v1840 = vsub.f32 %v1736, %v1832
    %v1841 = vsub.f32 %v1737, %v1833
    %v1842 = vsub.f32 %v1738, %v1834
    %v1843 = vsub.f32 %v1739, %v1835
    %v1844 = vsub.f32 %v1740, %v1836
    %v1845 = vsub.f32 %v1741, %v1837
    %v1846 = vsel %vm1469, %v1838, -inf
    %v1847 = vrot.slane %v1846, 4
    %v1848 = vmax.f32 %v1846, %v1847
    %v1849 = vrot.slane %v1848, 2
    %v1850 = vmax.f32 %v1848, %v1849
    %v1851 = vrot.slane %v1850, 1
    %v1852 = vmax.f32 %v1850, %v1851
    %v1853 = vsel %vm1469, %v1839, -inf
    %v1854 = vrot.slane %v1853, 4
    %v1855 = vmax.f32 %v1853, %v1854
    %v1856 = vrot.slane %v1855, 2
    %v1857 = vmax.f32 %v1855, %v1856
    %v1858 = vrot.slane %v1857, 1
    %v1859 = vmax.f32 %v1857, %v1858
    %v1860 = vsel %vm1469, %v1840, -inf
    %v1861 = vrot.slane %v1860, 4
    %v1862 = vmax.f32 %v1860, %v1861
    %v1863 = vrot.slane %v1862, 2
    %v1864 = vmax.f32 %v1862, %v1863
    %v1865 = vrot.slane %v1864, 1
    %v1866 = vmax.f32 %v1864, %v1865
    %v1867 = vsel %vm1469, %v1841, -inf
    %v1868 = vrot.slane %v1867, 4
    %v1869 = vmax.f32 %v1867, %v1868
    %v1870 = vrot.slane %v1869, 2
    %v1871 = vmax.f32 %v1869, %v1870
    %v1872 = vrot.slane %v1871, 1
    %v1873 = vmax.f32 %v1871, %v1872
    %v1874 = vsel %vm1469, %v1842, -inf
    %v1875 = vrot.slane %v1874, 4
    %v1876 = vmax.f32 %v1874, %v1875
    %v1877 = vrot.slane %v1876, 2
    %v1878 = vmax.f32 %v1876, %v1877
    %v1879 = vrot.slane %v1878, 1
    %v1880 = vmax.f32 %v1878, %v1879
    %v1881 = vsel %vm1469, %v1843, -inf
    %v1882 = vrot.slane %v1881, 4
    %v1883 = vmax.f32 %v1881, %v1882
    %v1884 = vrot.slane %v1883, 2
    %v1885 = vmax.f32 %v1883, %v1884
    %v1886 = vrot.slane %v1885, 1
    %v1887 = vmax.f32 %v1885, %v1886
    %v1888 = vsel %vm1469, %v1844, -inf
    %v1889 = vrot.slane %v1888, 4
    %v1890 = vmax.f32 %v1888, %v1889
    %v1891 = vrot.slane %v1890, 2
    %v1892 = vmax.f32 %v1890, %v1891
    %v1893 = vrot.slane %v1892, 1
    %v1894 = vmax.f32 %v1892, %v1893
    %v1895 = vsel %vm1469, %v1845, -inf
    %v1896 = vrot.slane %v1895, 4
    %v1897 = vmax.f32 %v1895, %v1896
    %v1898 = vrot.slane %v1897, 2
    %v1899 = vmax.f32 %v1897, %v1898
    %v1900 = vrot.slane %v1899, 1
    %v1901 = vmax.f32 %v1899, %v1900
    %v1902 = vsub.f32 %v1838, %v1852
    %v1903 = vsub.f32 %v1839, %v1859
    %v1904 = vsub.f32 %v1840, %v1866
    %v1905 = vsub.f32 %v1841, %v1873
    %v1906 = vsub.f32 %v1842, %v1880
    %v1907 = vsub.f32 %v1843, %v1887
    %v1908 = vsub.f32 %v1844, %v1894
    %v1909 = vsub.f32 %v1845, %v1901
    %v1910 = vmul.f32 %v1902, 1.442695
    %v1911 = vpow.pop %v1910
    %v1912 = vmul.f32 %v1903, 1.442695
    %v1913 = vpow.pop %v1912
    %v1914 = vmul.f32 %v1904, 1.442695
    %v1915 = vpow.pop %v1914
    %v1916 = vmul.f32 %v1905, 1.442695
    %v1917 = vpow.pop %v1916
    %v1918 = vmul.f32 %v1906, 1.442695
    %v1919 = vpow.pop %v1918
    %v1920 = vmul.f32 %v1907, 1.442695
    %v1921 = vpow.pop %v1920
    %v1922 = vmul.f32 %v1908, 1.442695
    %v1923 = vpow.pop %v1922
    %v1924 = vmul.f32 %v1909, 1.442695
    %v1925 = vpow.pop %v1924
    %v1926 = vsel %vm1469, %v1911, 0.0
    %v1927 = vrot.slane %v1926, 4
    %v1928 = vadd.f32 %v1926, %v1927
    %v1929 = vrot.slane %v1928, 2
    %v1930 = vadd.f32 %v1928, %v1929
    %v1931 = vrot.slane %v1930, 1
    %v1932 = vadd.f32 %v1930, %v1931
    %v1933 = vsel %vm1469, %v1913, 0.0
    %v1934 = vrot.slane %v1933, 4
    %v1935 = vadd.f32 %v1933, %v1934
    %v1936 = vrot.slane %v1935, 2
    %v1937 = vadd.f32 %v1935, %v1936
    %v1938 = vrot.slane %v1937, 1
    %v1939 = vadd.f32 %v1937, %v1938
    %v1940 = vsel %vm1469, %v1915, 0.0
    %v1941 = vrot.slane %v1940, 4
    %v1942 = vadd.f32 %v1940, %v1941
    %v1943 = vrot.slane %v1942, 2
    %v1944 = vadd.f32 %v1942, %v1943
    %v1945 = vrot.slane %v1944, 1
    %v1946 = vadd.f32 %v1944, %v1945
    %v1947 = vsel %vm1469, %v1917, 0.0
    %v1948 = vrot.slane %v1947, 4
    %v1949 = vadd.f32 %v1947, %v1948
    %v1950 = vrot.slane %v1949, 2
    %v1951 = vadd.f32 %v1949, %v1950
    %v1952 = vrot.slane %v1951, 1
    %v1953 = vadd.f32 %v1951, %v1952
    %v1954 = vsel %vm1469, %v1919, 0.0
    %v1955 = vrot.slane %v1954, 4
    %v1956 = vadd.f32 %v1954, %v1955
    %v1957 = vrot.slane %v1956, 2
    %v1958 = vadd.f32 %v1956, %v1957
    %v1959 = vrot.slane %v1958, 1
    %v1960 = vadd.f32 %v1958, %v1959
    %v1961 = vsel %vm1469, %v1921, 0.0
    %v1962 = vrot.slane %v1961, 4
    %v1963 = vadd.f32 %v1961, %v1962
    %v1964 = vrot.slane %v1963, 2
    %v1965 = vadd.f32 %v1963, %v1964
    %v1966 = vrot.slane %v1965, 1
    %v1967 = vadd.f32 %v1965, %v1966
    %v1968 = vsel %vm1469, %v1923, 0.0
    %v1969 = vrot.slane %v1968, 4
    %v1970 = vadd.f32 %v1968, %v1969
    %v1971 = vrot.slane %v1970, 2
    %v1972 = vadd.f32 %v1970, %v1971
    %v1973 = vrot.slane %v1972, 1
    %v1974 = vadd.f32 %v1972, %v1973
    %v1975 = vsel %vm1469, %v1925, 0.0
    %v1976 = vrot.slane %v1975, 4
    %v1977 = vadd.f32 %v1975, %v1976
    %v1978 = vrot.slane %v1977, 2
    %v1979 = vadd.f32 %v1977, %v1978
    %v1980 = vrot.slane %v1979, 1
    %v1981 = vadd.f32 %v1979, %v1980
    %v1982 = vlog2.pop %v1932
    %v1983 = vmul.f32 %v1982, 0.6931472
    %v1984 = vlog2.pop %v1939
    %v1985 = vmul.f32 %v1984, 0.6931472
    %v1986 = vlog2.pop %v1946
    %v1987 = vmul.f32 %v1986, 0.6931472
    %v1988 = vlog2.pop %v1953
    %v1989 = vmul.f32 %v1988, 0.6931472
    %v1990 = vlog2.pop %v1960
    %v1991 = vmul.f32 %v1990, 0.6931472
    %v1992 = vlog2.pop %v1967
    %v1993 = vmul.f32 %v1992, 0.6931472
    %v1994 = vlog2.pop %v1974
    %v1995 = vmul.f32 %v1994, 0.6931472
    %v1996 = vlog2.pop %v1981
    %v1997 = vmul.f32 %v1996, 0.6931472
    %v1998 = vadd.f32 %v1852, %v1983
    %v1999 = vadd.f32 %v1859, %v1985
    %v2000 = vadd.f32 %v1866, %v1987
    %v2001 = vadd.f32 %v1873, %v1989
    %v2002 = vadd.f32 %v1880, %v1991
    %v2003 = vadd.f32 %v1887, %v1993
    %v2004 = vadd.f32 %v1894, %v1995
    %v2005 = vadd.f32 %v1901, %v1997
    %v2006 = vsub.f32 %v1838, %v1998
    %v2007 = vsub.f32 %v1839, %v1999
    %v2008 = vsub.f32 %v1840, %v2000
    %v2009 = vsub.f32 %v1841, %v2001
    %v2010 = vsub.f32 %v1842, %v2002
    %v2011 = vsub.f32 %v1843, %v2003
    %v2012 = vsub.f32 %v1844, %v2004
    %v2013 = vsub.f32 %v1845, %v2005
    %v2014 = vsel %vm1469, %v2006, -inf
    %2015 = vmax.xlane.f32.xlu0 %v2014
    %v2016 = vpop.xlane.xlu0 %2015
    %v2017 = vsel %vm1469, %v2007, -inf
    %2018 = vmax.xlane.f32.xlu0 %v2017
    %v2019 = vpop.xlane.xlu0 %2018
    %v2020 = vsel %vm1469, %v2008, -inf
    %2021 = vmax.xlane.f32.xlu0 %v2020
    %v2022 = vpop.xlane.xlu0 %2021
    %v2023 = vsel %vm1469, %v2009, -inf
    %2024 = vmax.xlane.f32.xlu0 %v2023
    %v2025 = vpop.xlane.xlu0 %2024
    %v2026 = vsel %vm1469, %v2010, -inf
    %2027 = vmax.xlane.f32.xlu0 %v2026
    %v2028 = vpop.xlane.xlu0 %2027
    %v2029 = vsel %vm1469, %v2011, -inf
    %2030 = vmax.xlane.f32.xlu0 %v2029
    %v2031 = vpop.xlane.xlu0 %2030
    %v2032 = vsel %vm1469, %v2012, -inf
    %2033 = vmax.xlane.f32.xlu0 %v2032
    %v2034 = vpop.xlane.xlu0 %2033
    %v2035 = vsel %vm1469, %v2013, -inf
    %2036 = vmax.xlane.f32.xlu0 %v2035
    %v2037 = vpop.xlane.xlu0 %2036
    %v2038 = vsub.f32 %v2006, %v2016
    %v2039 = vsub.f32 %v2007, %v2019
    %v2040 = vsub.f32 %v2008, %v2022
    %v2041 = vsub.f32 %v2009, %v2025
    %v2042 = vsub.f32 %v2010, %v2028
    %v2043 = vsub.f32 %v2011, %v2031
    %v2044 = vsub.f32 %v2012, %v2034
    %v2045 = vsub.f32 %v2013, %v2037
    %v2046 = vmul.f32 %v2038, 1.442695
    %v2047 = vpow.pop %v2046
    %v2048 = vmul.f32 %v2039, 1.442695
    %v2049 = vpow.pop %v2048
    %v2050 = vmul.f32 %v2040, 1.442695
    %v2051 = vpow.pop %v2050
    %v2052 = vmul.f32 %v2041, 1.442695
    %v2053 = vpow.pop %v2052
    %v2054 = vmul.f32 %v2042, 1.442695
    %v2055 = vpow.pop %v2054
    %v2056 = vmul.f32 %v2043, 1.442695
    %v2057 = vpow.pop %v2056
    %v2058 = vmul.f32 %v2044, 1.442695
    %v2059 = vpow.pop %v2058
    %v2060 = vmul.f32 %v2045, 1.442695
    %v2061 = vpow.pop %v2060
    %v2062 = vsel %vm1469, %v2047, 0.0
    %2063 = vadd.xlane.f32.xlu0 %v2062
    %v2064 = vpop.xlane.xlu0 %2063
    %v2065 = vsel %vm1469, %v2049, 0.0
    %2066 = vadd.xlane.f32.xlu0 %v2065
    %v2067 = vpop.xlane.xlu0 %2066
    %v2068 = vsel %vm1469, %v2051, 0.0
    %2069 = vadd.xlane.f32.xlu0 %v2068
    %v2070 = vpop.xlane.xlu0 %2069
    %v2071 = vsel %vm1469, %v2053, 0.0
    %2072 = vadd.xlane.f32.xlu0 %v2071
    %v2073 = vpop.xlane.xlu0 %2072
    %v2074 = vsel %vm1469, %v2055, 0.0
    %2075 = vadd.xlane.f32.xlu0 %v2074
    %v2076 = vpop.xlane.xlu0 %2075
    %v2077 = vsel %vm1469, %v2057, 0.0
    %2078 = vadd.xlane.f32.xlu0 %v2077
    %v2079 = vpop.xlane.xlu0 %2078
    %v2080 = vsel %vm1469, %v2059, 0.0
    %2081 = vadd.xlane.f32.xlu0 %v2080
    %v2082 = vpop.xlane.xlu0 %2081
    %v2083 = vsel %vm1469, %v2061, 0.0
    %2084 = vadd.xlane.f32.xlu0 %v2083
    %v2085 = vpop.xlane.xlu0 %2084
    %v2086 = vlog2.pop %v2064
    %v2087 = vmul.f32 %v2086, 0.6931472
    %v2088 = vlog2.pop %v2067
    %v2089 = vmul.f32 %v2088, 0.6931472
    %v2090 = vlog2.pop %v2070
    %v2091 = vmul.f32 %v2090, 0.6931472
    %v2092 = vlog2.pop %v2073
    %v2093 = vmul.f32 %v2092, 0.6931472
    %v2094 = vlog2.pop %v2076
    %v2095 = vmul.f32 %v2094, 0.6931472
    %v2096 = vlog2.pop %v2079
    %v2097 = vmul.f32 %v2096, 0.6931472
    %v2098 = vlog2.pop %v2082
    %v2099 = vmul.f32 %v2098, 0.6931472
    %v2100 = vlog2.pop %v2085
    %v2101 = vmul.f32 %v2100, 0.6931472
    %v2102 = vadd.f32 %v2016, %v2087
    %v2103 = vadd.f32 %v2019, %v2089
    %v2104 = vadd.f32 %v2022, %v2091
    %v2105 = vadd.f32 %v2025, %v2093
    %v2106 = vadd.f32 %v2028, %v2095
    %v2107 = vadd.f32 %v2031, %v2097
    %v2108 = vadd.f32 %v2034, %v2099
    %v2109 = vadd.f32 %v2037, %v2101
    %v2110 = vsub.f32 %v2006, %v2102
    %v2111 = vsub.f32 %v2007, %v2103
    %v2112 = vsub.f32 %v2008, %v2104
    %v2113 = vsub.f32 %v2009, %v2105
    %v2114 = vsub.f32 %v2010, %v2106
    %v2115 = vsub.f32 %v2011, %v2107
    %v2116 = vsub.f32 %v2012, %v2108
    %v2117 = vsub.f32 %v2013, %v2109
    %v2118 = vsel %vm1469, %v2110, -inf
    %v2119 = vrot.slane %v2118, 4
    %v2120 = vmax.f32 %v2118, %v2119
    %v2121 = vrot.slane %v2120, 2
    %v2122 = vmax.f32 %v2120, %v2121
    %v2123 = vrot.slane %v2122, 1
    %v2124 = vmax.f32 %v2122, %v2123
    %v2125 = vsel %vm1469, %v2111, -inf
    %v2126 = vrot.slane %v2125, 4
    %v2127 = vmax.f32 %v2125, %v2126
    %v2128 = vrot.slane %v2127, 2
    %v2129 = vmax.f32 %v2127, %v2128
    %v2130 = vrot.slane %v2129, 1
    %v2131 = vmax.f32 %v2129, %v2130
    %v2132 = vsel %vm1469, %v2112, -inf
    %v2133 = vrot.slane %v2132, 4
    %v2134 = vmax.f32 %v2132, %v2133
    %v2135 = vrot.slane %v2134, 2
    %v2136 = vmax.f32 %v2134, %v2135
    %v2137 = vrot.slane %v2136, 1
    %v2138 = vmax.f32 %v2136, %v2137
    %v2139 = vsel %vm1469, %v2113, -inf
    %v2140 = vrot.slane %v2139, 4
    %v2141 = vmax.f32 %v2139, %v2140
    %v2142 = vrot.slane %v2141, 2
    %v2143 = vmax.f32 %v2141, %v2142
    %v2144 = vrot.slane %v2143, 1
    %v2145 = vmax.f32 %v2143, %v2144
    %v2146 = vsel %vm1469, %v2114, -inf
    %v2147 = vrot.slane %v2146, 4
    %v2148 = vmax.f32 %v2146, %v2147
    %v2149 = vrot.slane %v2148, 2
    %v2150 = vmax.f32 %v2148, %v2149
    %v2151 = vrot.slane %v2150, 1
    %v2152 = vmax.f32 %v2150, %v2151
    %v2153 = vsel %vm1469, %v2115, -inf
    %v2154 = vrot.slane %v2153, 4
    %v2155 = vmax.f32 %v2153, %v2154
    %v2156 = vrot.slane %v2155, 2
    %v2157 = vmax.f32 %v2155, %v2156
    %v2158 = vrot.slane %v2157, 1
    %v2159 = vmax.f32 %v2157, %v2158
    %v2160 = vsel %vm1469, %v2116, -inf
    %v2161 = vrot.slane %v2160, 4
    %v2162 = vmax.f32 %v2160, %v2161
    %v2163 = vrot.slane %v2162, 2
    %v2164 = vmax.f32 %v2162, %v2163
    %v2165 = vrot.slane %v2164, 1
    %v2166 = vmax.f32 %v2164, %v2165
    %v2167 = vsel %vm1469, %v2117, -inf
    %v2168 = vrot.slane %v2167, 4
    %v2169 = vmax.f32 %v2167, %v2168
    %v2170 = vrot.slane %v2169, 2
    %v2171 = vmax.f32 %v2169, %v2170
    %v2172 = vrot.slane %v2171, 1
    %v2173 = vmax.f32 %v2171, %v2172
    %v2174 = vsub.f32 %v2110, %v2124
    %v2175 = vsub.f32 %v2111, %v2131
    %v2176 = vsub.f32 %v2112, %v2138
    %v2177 = vsub.f32 %v2113, %v2145
    %v2178 = vsub.f32 %v2114, %v2152
    %v2179 = vsub.f32 %v2115, %v2159
    %v2180 = vsub.f32 %v2116, %v2166
    %v2181 = vsub.f32 %v2117, %v2173
    %v2182 = vmul.f32 %v2174, 1.442695
    %v2183 = vpow.pop %v2182
    %v2184 = vmul.f32 %v2175, 1.442695
    %v2185 = vpow.pop %v2184
    %v2186 = vmul.f32 %v2176, 1.442695
    %v2187 = vpow.pop %v2186
    %v2188 = vmul.f32 %v2177, 1.442695
    %v2189 = vpow.pop %v2188
    %v2190 = vmul.f32 %v2178, 1.442695
    %v2191 = vpow.pop %v2190
    %v2192 = vmul.f32 %v2179, 1.442695
    %v2193 = vpow.pop %v2192
    %v2194 = vmul.f32 %v2180, 1.442695
    %v2195 = vpow.pop %v2194
    %v2196 = vmul.f32 %v2181, 1.442695
    %v2197 = vpow.pop %v2196
    %v2198 = vsel %vm1469, %v2183, 0.0
    %v2199 = vrot.slane %v2198, 4
    %v2200 = vadd.f32 %v2198, %v2199
    %v2201 = vrot.slane %v2200, 2
    %v2202 = vadd.f32 %v2200, %v2201
    %v2203 = vrot.slane %v2202, 1
    %v2204 = vadd.f32 %v2202, %v2203
    %v2205 = vsel %vm1469, %v2185, 0.0
    %v2206 = vrot.slane %v2205, 4
    %v2207 = vadd.f32 %v2205, %v2206
    %v2208 = vrot.slane %v2207, 2
    %v2209 = vadd.f32 %v2207, %v2208
    %v2210 = vrot.slane %v2209, 1
    %v2211 = vadd.f32 %v2209, %v2210
    %v2212 = vsel %vm1469, %v2187, 0.0
    %v2213 = vrot.slane %v2212, 4
    %v2214 = vadd.f32 %v2212, %v2213
    %v2215 = vrot.slane %v2214, 2
    %v2216 = vadd.f32 %v2214, %v2215
    %v2217 = vrot.slane %v2216, 1
    %v2218 = vadd.f32 %v2216, %v2217
    %v2219 = vsel %vm1469, %v2189, 0.0
    %v2220 = vrot.slane %v2219, 4
    %v2221 = vadd.f32 %v2219, %v2220
    %v2222 = vrot.slane %v2221, 2
    %v2223 = vadd.f32 %v2221, %v2222
    %v2224 = vrot.slane %v2223, 1
    %v2225 = vadd.f32 %v2223, %v2224
    %v2226 = vsel %vm1469, %v2191, 0.0
    %v2227 = vrot.slane %v2226, 4
    %v2228 = vadd.f32 %v2226, %v2227
    %v2229 = vrot.slane %v2228, 2
    %v2230 = vadd.f32 %v2228, %v2229
    %v2231 = vrot.slane %v2230, 1
    %v2232 = vadd.f32 %v2230, %v2231
    %v2233 = vsel %vm1469, %v2193, 0.0
    %v2234 = vrot.slane %v2233, 4
    %v2235 = vadd.f32 %v2233, %v2234
    %v2236 = vrot.slane %v2235, 2
    %v2237 = vadd.f32 %v2235, %v2236
    %v2238 = vrot.slane %v2237, 1
    %v2239 = vadd.f32 %v2237, %v2238
    %v2240 = vsel %vm1469, %v2195, 0.0
    %v2241 = vrot.slane %v2240, 4
    %v2242 = vadd.f32 %v2240, %v2241
    %v2243 = vrot.slane %v2242, 2
    %v2244 = vadd.f32 %v2242, %v2243
    %v2245 = vrot.slane %v2244, 1
    %v2246 = vadd.f32 %v2244, %v2245
    %v2247 = vsel %vm1469, %v2197, 0.0
    %v2248 = vrot.slane %v2247, 4
    %v2249 = vadd.f32 %v2247, %v2248
    %v2250 = vrot.slane %v2249, 2
    %v2251 = vadd.f32 %v2249, %v2250
    %v2252 = vrot.slane %v2251, 1
    %v2253 = vadd.f32 %v2251, %v2252
    %v2254 = vlog2.pop %v2204
    %v2255 = vmul.f32 %v2254, 0.6931472
    %v2256 = vlog2.pop %v2211
    %v2257 = vmul.f32 %v2256, 0.6931472
    %v2258 = vlog2.pop %v2218
    %v2259 = vmul.f32 %v2258, 0.6931472
    %v2260 = vlog2.pop %v2225
    %v2261 = vmul.f32 %v2260, 0.6931472
    %v2262 = vlog2.pop %v2232
    %v2263 = vmul.f32 %v2262, 0.6931472
    %v2264 = vlog2.pop %v2239
    %v2265 = vmul.f32 %v2264, 0.6931472
    %v2266 = vlog2.pop %v2246
    %v2267 = vmul.f32 %v2266, 0.6931472
    %v2268 = vlog2.pop %v2253
    %v2269 = vmul.f32 %v2268, 0.6931472
    %v2270 = vadd.f32 %v2124, %v2255
    %v2271 = vadd.f32 %v2131, %v2257
    %v2272 = vadd.f32 %v2138, %v2259
    %v2273 = vadd.f32 %v2145, %v2261
    %v2274 = vadd.f32 %v2152, %v2263
    %v2275 = vadd.f32 %v2159, %v2265
    %v2276 = vadd.f32 %v2166, %v2267
    %v2277 = vadd.f32 %v2173, %v2269
    %v2278 = vsub.f32 %v2110, %v2270
    %v2279 = vsub.f32 %v2111, %v2271
    %v2280 = vsub.f32 %v2112, %v2272
    %v2281 = vsub.f32 %v2113, %v2273
    %v2282 = vsub.f32 %v2114, %v2274
    %v2283 = vsub.f32 %v2115, %v2275
    %v2284 = vsub.f32 %v2116, %v2276
    %v2285 = vsub.f32 %v2117, %v2277
    %v2286 = vsel %vm1469, %v2278, -inf
    %2287 = vmax.xlane.f32.xlu0 %v2286
    %v2288 = vpop.xlane.xlu0 %2287
    %v2289 = vsel %vm1469, %v2279, -inf
    %2290 = vmax.xlane.f32.xlu0 %v2289
    %v2291 = vpop.xlane.xlu0 %2290
    %v2292 = vsel %vm1469, %v2280, -inf
    %2293 = vmax.xlane.f32.xlu0 %v2292
    %v2294 = vpop.xlane.xlu0 %2293
    %v2295 = vsel %vm1469, %v2281, -inf
    %2296 = vmax.xlane.f32.xlu0 %v2295
    %v2297 = vpop.xlane.xlu0 %2296
    %v2298 = vsel %vm1469, %v2282, -inf
    %2299 = vmax.xlane.f32.xlu0 %v2298
    %v2300 = vpop.xlane.xlu0 %2299
    %v2301 = vsel %vm1469, %v2283, -inf
    %2302 = vmax.xlane.f32.xlu0 %v2301
    %v2303 = vpop.xlane.xlu0 %2302
    %v2304 = vsel %vm1469, %v2284, -inf
    %2305 = vmax.xlane.f32.xlu0 %v2304
    %v2306 = vpop.xlane.xlu0 %2305
    %v2307 = vsel %vm1469, %v2285, -inf
    %2308 = vmax.xlane.f32.xlu0 %v2307
    %v2309 = vpop.xlane.xlu0 %2308
    %v2310 = vsub.f32 %v2278, %v2288
    %v2311 = vsub.f32 %v2279, %v2291
    %v2312 = vsub.f32 %v2280, %v2294
    %v2313 = vsub.f32 %v2281, %v2297
    %v2314 = vsub.f32 %v2282, %v2300
    %v2315 = vsub.f32 %v2283, %v2303
    %v2316 = vsub.f32 %v2284, %v2306
    %v2317 = vsub.f32 %v2285, %v2309
    %v2318 = vmul.f32 %v2310, 1.442695
    %v2319 = vpow.pop %v2318
    %v2320 = vmul.f32 %v2311, 1.442695
    %v2321 = vpow.pop %v2320
    %v2322 = vmul.f32 %v2312, 1.442695
    %v2323 = vpow.pop %v2322
    %v2324 = vmul.f32 %v2313, 1.442695
    %v2325 = vpow.pop %v2324
    %v2326 = vmul.f32 %v2314, 1.442695
    %v2327 = vpow.pop %v2326
    %v2328 = vmul.f32 %v2315, 1.442695
    %v2329 = vpow.pop %v2328
    %v2330 = vmul.f32 %v2316, 1.442695
    %v2331 = vpow.pop %v2330
    %v2332 = vmul.f32 %v2317, 1.442695
    %v2333 = vpow.pop %v2332
    %v2334 = vsel %vm1469, %v2319, 0.0
    %2335 = vadd.xlane.f32.xlu0 %v2334
    %v2336 = vpop.xlane.xlu0 %2335
    %v2337 = vsel %vm1469, %v2321, 0.0
    %2338 = vadd.xlane.f32.xlu0 %v2337
    %v2339 = vpop.xlane.xlu0 %2338
    %v2340 = vsel %vm1469, %v2323, 0.0
    %2341 = vadd.xlane.f32.xlu0 %v2340
    %v2342 = vpop.xlane.xlu0 %2341
    %v2343 = vsel %vm1469, %v2325, 0.0
    %2344 = vadd.xlane.f32.xlu0 %v2343
    %v2345 = vpop.xlane.xlu0 %2344
    %v2346 = vsel %vm1469, %v2327, 0.0
    %2347 = vadd.xlane.f32.xlu0 %v2346
    %v2348 = vpop.xlane.xlu0 %2347
    %v2349 = vsel %vm1469, %v2329, 0.0
    %2350 = vadd.xlane.f32.xlu0 %v2349
    %v2351 = vpop.xlane.xlu0 %2350
    %v2352 = vsel %vm1469, %v2331, 0.0
    %2353 = vadd.xlane.f32.xlu0 %v2352
    %v2354 = vpop.xlane.xlu0 %2353
    %v2355 = vsel %vm1469, %v2333, 0.0
    %2356 = vadd.xlane.f32.xlu0 %v2355
    %v2357 = vpop.xlane.xlu0 %2356
    %v2358 = vlog2.pop %v2336
    %v2359 = vmul.f32 %v2358, 0.6931472
    %v2360 = vlog2.pop %v2339
    %v2361 = vmul.f32 %v2360, 0.6931472
    %v2362 = vlog2.pop %v2342
    %v2363 = vmul.f32 %v2362, 0.6931472
    %v2364 = vlog2.pop %v2345
    %v2365 = vmul.f32 %v2364, 0.6931472
    %v2366 = vlog2.pop %v2348
    %v2367 = vmul.f32 %v2366, 0.6931472
    %v2368 = vlog2.pop %v2351
    %v2369 = vmul.f32 %v2368, 0.6931472
    %v2370 = vlog2.pop %v2354
    %v2371 = vmul.f32 %v2370, 0.6931472
    %v2372 = vlog2.pop %v2357
    %v2373 = vmul.f32 %v2372, 0.6931472
    %v2374 = vadd.f32 %v2288, %v2359
    %v2375 = vadd.f32 %v2291, %v2361
    %v2376 = vadd.f32 %v2294, %v2363
    %v2377 = vadd.f32 %v2297, %v2365
    %v2378 = vadd.f32 %v2300, %v2367
    %v2379 = vadd.f32 %v2303, %v2369
    %v2380 = vadd.f32 %v2306, %v2371
    %v2381 = vadd.f32 %v2309, %v2373
    %v2382 = vsub.f32 %v2278, %v2374
    %v2383 = vsub.f32 %v2279, %v2375
    %v2384 = vsub.f32 %v2280, %v2376
    %v2385 = vsub.f32 %v2281, %v2377
    %v2386 = vsub.f32 %v2282, %v2378
    %v2387 = vsub.f32 %v2283, %v2379
    %v2388 = vsub.f32 %v2284, %v2380
    %v2389 = vsub.f32 %v2285, %v2381
    %v2390 = vsel %vm1469, %v2382, -inf
    %v2391 = vrot.slane %v2390, 4
    %v2392 = vmax.f32 %v2390, %v2391
    %v2393 = vrot.slane %v2392, 2
    %v2394 = vmax.f32 %v2392, %v2393
    %v2395 = vrot.slane %v2394, 1
    %v2396 = vmax.f32 %v2394, %v2395
    %v2397 = vsel %vm1469, %v2383, -inf
    %v2398 = vrot.slane %v2397, 4
    %v2399 = vmax.f32 %v2397, %v2398
    %v2400 = vrot.slane %v2399, 2
    %v2401 = vmax.f32 %v2399, %v2400
    %v2402 = vrot.slane %v2401, 1
    %v2403 = vmax.f32 %v2401, %v2402
    %v2404 = vsel %vm1469, %v2384, -inf
    %v2405 = vrot.slane %v2404, 4
    %v2406 = vmax.f32 %v2404, %v2405
    %v2407 = vrot.slane %v2406, 2
    %v2408 = vmax.f32 %v2406, %v2407
    %v2409 = vrot.slane %v2408, 1
    %v2410 = vmax.f32 %v2408, %v2409
    %v2411 = vsel %vm1469, %v2385, -inf
    %v2412 = vrot.slane %v2411, 4
    %v2413 = vmax.f32 %v2411, %v2412
    %v2414 = vrot.slane %v2413, 2
    %v2415 = vmax.f32 %v2413, %v2414
    %v2416 = vrot.slane %v2415, 1
    %v2417 = vmax.f32 %v2415, %v2416
    %v2418 = vsel %vm1469, %v2386, -inf
    %v2419 = vrot.slane %v2418, 4
    %v2420 = vmax.f32 %v2418, %v2419
    %v2421 = vrot.slane %v2420, 2
    %v2422 = vmax.f32 %v2420, %v2421
    %v2423 = vrot.slane %v2422, 1
    %v2424 = vmax.f32 %v2422, %v2423
    %v2425 = vsel %vm1469, %v2387, -inf
    %v2426 = vrot.slane %v2425, 4
    %v2427 = vmax.f32 %v2425, %v2426
    %v2428 = vrot.slane %v2427, 2
    %v2429 = vmax.f32 %v2427, %v2428
    %v2430 = vrot.slane %v2429, 1
    %v2431 = vmax.f32 %v2429, %v2430
    %v2432 = vsel %vm1469, %v2388, -inf
    %v2433 = vrot.slane %v2432, 4
    %v2434 = vmax.f32 %v2432, %v2433
    %v2435 = vrot.slane %v2434, 2
    %v2436 = vmax.f32 %v2434, %v2435
    %v2437 = vrot.slane %v2436, 1
    %v2438 = vmax.f32 %v2436, %v2437
    %v2439 = vsel %vm1469, %v2389, -inf
    %v2440 = vrot.slane %v2439, 4
    %v2441 = vmax.f32 %v2439, %v2440
    %v2442 = vrot.slane %v2441, 2
    %v2443 = vmax.f32 %v2441, %v2442
    %v2444 = vrot.slane %v2443, 1
    %v2445 = vmax.f32 %v2443, %v2444
    %v2446 = vsub.f32 %v2382, %v2396
    %v2447 = vsub.f32 %v2383, %v2403
    %v2448 = vsub.f32 %v2384, %v2410
    %v2449 = vsub.f32 %v2385, %v2417
    %v2450 = vsub.f32 %v2386, %v2424
    %v2451 = vsub.f32 %v2387, %v2431
    %v2452 = vsub.f32 %v2388, %v2438
    %v2453 = vsub.f32 %v2389, %v2445
    %v2454 = vmul.f32 %v2446, 1.442695
    %v2455 = vpow.pop %v2454
    %v2456 = vmul.f32 %v2447, 1.442695
    %v2457 = vpow.pop %v2456
    %v2458 = vmul.f32 %v2448, 1.442695
    %v2459 = vpow.pop %v2458
    %v2460 = vmul.f32 %v2449, 1.442695
    %v2461 = vpow.pop %v2460
    %v2462 = vmul.f32 %v2450, 1.442695
    %v2463 = vpow.pop %v2462
    %v2464 = vmul.f32 %v2451, 1.442695
    %v2465 = vpow.pop %v2464
    %v2466 = vmul.f32 %v2452, 1.442695
    %v2467 = vpow.pop %v2466
    %v2468 = vmul.f32 %v2453, 1.442695
    %v2469 = vpow.pop %v2468
    %v2470 = vsel %vm1469, %v2455, 0.0
    %v2471 = vrot.slane %v2470, 4
    %v2472 = vadd.f32 %v2470, %v2471
    %v2473 = vrot.slane %v2472, 2
    %v2474 = vadd.f32 %v2472, %v2473
    %v2475 = vrot.slane %v2474, 1
    %v2476 = vadd.f32 %v2474, %v2475
    %v2477 = vsel %vm1469, %v2457, 0.0
    %v2478 = vrot.slane %v2477, 4
    %v2479 = vadd.f32 %v2477, %v2478
    %v2480 = vrot.slane %v2479, 2
    %v2481 = vadd.f32 %v2479, %v2480
    %v2482 = vrot.slane %v2481, 1
    %v2483 = vadd.f32 %v2481, %v2482
    %v2484 = vsel %vm1469, %v2459, 0.0
    %v2485 = vrot.slane %v2484, 4
    %v2486 = vadd.f32 %v2484, %v2485
    %v2487 = vrot.slane %v2486, 2
    %v2488 = vadd.f32 %v2486, %v2487
    %v2489 = vrot.slane %v2488, 1
    %v2490 = vadd.f32 %v2488, %v2489
    %v2491 = vsel %vm1469, %v2461, 0.0
    %v2492 = vrot.slane %v2491, 4
    %v2493 = vadd.f32 %v2491, %v2492
    %v2494 = vrot.slane %v2493, 2
    %v2495 = vadd.f32 %v2493, %v2494
    %v2496 = vrot.slane %v2495, 1
    %v2497 = vadd.f32 %v2495, %v2496
    %v2498 = vsel %vm1469, %v2463, 0.0
    %v2499 = vrot.slane %v2498, 4
    %v2500 = vadd.f32 %v2498, %v2499
    %v2501 = vrot.slane %v2500, 2
    %v2502 = vadd.f32 %v2500, %v2501
    %v2503 = vrot.slane %v2502, 1
    %v2504 = vadd.f32 %v2502, %v2503
    %v2505 = vsel %vm1469, %v2465, 0.0
    %v2506 = vrot.slane %v2505, 4
    %v2507 = vadd.f32 %v2505, %v2506
    %v2508 = vrot.slane %v2507, 2
    %v2509 = vadd.f32 %v2507, %v2508
    %v2510 = vrot.slane %v2509, 1
    %v2511 = vadd.f32 %v2509, %v2510
    %v2512 = vsel %vm1469, %v2467, 0.0
    %v2513 = vrot.slane %v2512, 4
    %v2514 = vadd.f32 %v2512, %v2513
    %v2515 = vrot.slane %v2514, 2
    %v2516 = vadd.f32 %v2514, %v2515
    %v2517 = vrot.slane %v2516, 1
    %v2518 = vadd.f32 %v2516, %v2517
    %v2519 = vsel %vm1469, %v2469, 0.0
    %v2520 = vrot.slane %v2519, 4
    %v2521 = vadd.f32 %v2519, %v2520
    %v2522 = vrot.slane %v2521, 2
    %v2523 = vadd.f32 %v2521, %v2522
    %v2524 = vrot.slane %v2523, 1
    %v2525 = vadd.f32 %v2523, %v2524
    %v2526 = vlog2.pop %v2476
    %v2527 = vmul.f32 %v2526, 0.6931472
    %v2528 = vlog2.pop %v2483
    %v2529 = vmul.f32 %v2528, 0.6931472
    %v2530 = vlog2.pop %v2490
    %v2531 = vmul.f32 %v2530, 0.6931472
    %v2532 = vlog2.pop %v2497
    %v2533 = vmul.f32 %v2532, 0.6931472
    %v2534 = vlog2.pop %v2504
    %v2535 = vmul.f32 %v2534, 0.6931472
    %v2536 = vlog2.pop %v2511
    %v2537 = vmul.f32 %v2536, 0.6931472
    %v2538 = vlog2.pop %v2518
    %v2539 = vmul.f32 %v2538, 0.6931472
    %v2540 = vlog2.pop %v2525
    %v2541 = vmul.f32 %v2540, 0.6931472
    %v2542 = vadd.f32 %v2396, %v2527
    %v2543 = vadd.f32 %v2403, %v2529
    %v2544 = vadd.f32 %v2410, %v2531
    %v2545 = vadd.f32 %v2417, %v2533
    %v2546 = vadd.f32 %v2424, %v2535
    %v2547 = vadd.f32 %v2431, %v2537
    %v2548 = vadd.f32 %v2438, %v2539
    %v2549 = vadd.f32 %v2445, %v2541
    %v2550 = vsub.f32 %v2382, %v2542
    %v2551 = vsub.f32 %v2383, %v2543
    %v2552 = vsub.f32 %v2384, %v2544
    %v2553 = vsub.f32 %v2385, %v2545
    %v2554 = vsub.f32 %v2386, %v2546
    %v2555 = vsub.f32 %v2387, %v2547
    %v2556 = vsub.f32 %v2388, %v2548
    %v2557 = vsub.f32 %v2389, %v2549
    %v2558 = vsel %vm1469, %v2550, -inf
    %2559 = vmax.xlane.f32.xlu0 %v2558
    %v2560 = vpop.xlane.xlu0 %2559
    %v2561 = vsel %vm1469, %v2551, -inf
    %2562 = vmax.xlane.f32.xlu0 %v2561
    %v2563 = vpop.xlane.xlu0 %2562
    %v2564 = vsel %vm1469, %v2552, -inf
    %2565 = vmax.xlane.f32.xlu0 %v2564
    %v2566 = vpop.xlane.xlu0 %2565
    %v2567 = vsel %vm1469, %v2553, -inf
    %2568 = vmax.xlane.f32.xlu0 %v2567
    %v2569 = vpop.xlane.xlu0 %2568
    %v2570 = vsel %vm1469, %v2554, -inf
    %2571 = vmax.xlane.f32.xlu0 %v2570
    %v2572 = vpop.xlane.xlu0 %2571
    %v2573 = vsel %vm1469, %v2555, -inf
    %2574 = vmax.xlane.f32.xlu0 %v2573
    %v2575 = vpop.xlane.xlu0 %2574
    %v2576 = vsel %vm1469, %v2556, -inf
    %2577 = vmax.xlane.f32.xlu0 %v2576
    %v2578 = vpop.xlane.xlu0 %2577
    %v2579 = vsel %vm1469, %v2557, -inf
    %2580 = vmax.xlane.f32.xlu0 %v2579
    %v2581 = vpop.xlane.xlu0 %2580
    %v2582 = vsub.f32 %v2550, %v2560
    %v2583 = vsub.f32 %v2551, %v2563
    %v2584 = vsub.f32 %v2552, %v2566
    %v2585 = vsub.f32 %v2553, %v2569
    %v2586 = vsub.f32 %v2554, %v2572
    %v2587 = vsub.f32 %v2555, %v2575
    %v2588 = vsub.f32 %v2556, %v2578
    %v2589 = vsub.f32 %v2557, %v2581
    %v2590 = vmul.f32 %v2582, 1.442695
    %v2591 = vpow.pop %v2590
    %v2592 = vmul.f32 %v2583, 1.442695
    %v2593 = vpow.pop %v2592
    %v2594 = vmul.f32 %v2584, 1.442695
    %v2595 = vpow.pop %v2594
    %v2596 = vmul.f32 %v2585, 1.442695
    %v2597 = vpow.pop %v2596
    %v2598 = vmul.f32 %v2586, 1.442695
    %v2599 = vpow.pop %v2598
    %v2600 = vmul.f32 %v2587, 1.442695
    %v2601 = vpow.pop %v2600
    %v2602 = vmul.f32 %v2588, 1.442695
    %v2603 = vpow.pop %v2602
    %v2604 = vmul.f32 %v2589, 1.442695
    %v2605 = vpow.pop %v2604
    %v2606 = vsel %vm1469, %v2591, 0.0
    %2607 = vadd.xlane.f32.xlu0 %v2606
    %v2608 = vpop.xlane.xlu0 %2607
    %v2609 = vsel %vm1469, %v2593, 0.0
    %2610 = vadd.xlane.f32.xlu0 %v2609
    %v2611 = vpop.xlane.xlu0 %2610
    %v2612 = vsel %vm1469, %v2595, 0.0
    %2613 = vadd.xlane.f32.xlu0 %v2612
    %v2614 = vpop.xlane.xlu0 %2613
    %v2615 = vsel %vm1469, %v2597, 0.0
    %2616 = vadd.xlane.f32.xlu0 %v2615
    %v2617 = vpop.xlane.xlu0 %2616
    %v2618 = vsel %vm1469, %v2599, 0.0
    %2619 = vadd.xlane.f32.xlu0 %v2618
    %v2620 = vpop.xlane.xlu0 %2619
    %v2621 = vsel %vm1469, %v2601, 0.0
    %2622 = vadd.xlane.f32.xlu0 %v2621
    %v2623 = vpop.xlane.xlu0 %2622
    %v2624 = vsel %vm1469, %v2603, 0.0
    %2625 = vadd.xlane.f32.xlu0 %v2624
    %v2626 = vpop.xlane.xlu0 %2625
    %v2627 = vsel %vm1469, %v2605, 0.0
    %2628 = vadd.xlane.f32.xlu0 %v2627
    %v2629 = vpop.xlane.xlu0 %2628
    %v2630 = vlog2.pop %v2608
    %v2631 = vmul.f32 %v2630, 0.6931472
    %v2632 = vlog2.pop %v2611
    %v2633 = vmul.f32 %v2632, 0.6931472
    %v2634 = vlog2.pop %v2614
    %v2635 = vmul.f32 %v2634, 0.6931472
    %v2636 = vlog2.pop %v2617
    %v2637 = vmul.f32 %v2636, 0.6931472
    %v2638 = vlog2.pop %v2620
    %v2639 = vmul.f32 %v2638, 0.6931472
    %v2640 = vlog2.pop %v2623
    %v2641 = vmul.f32 %v2640, 0.6931472
    %v2642 = vlog2.pop %v2626
    %v2643 = vmul.f32 %v2642, 0.6931472
    %v2644 = vlog2.pop %v2629
    %v2645 = vmul.f32 %v2644, 0.6931472
    %v2646 = vadd.f32 %v2560, %v2631
    %v2647 = vadd.f32 %v2563, %v2633
    %v2648 = vadd.f32 %v2566, %v2635
    %v2649 = vadd.f32 %v2569, %v2637
    %v2650 = vadd.f32 %v2572, %v2639
    %v2651 = vadd.f32 %v2575, %v2641
    %v2652 = vadd.f32 %v2578, %v2643
    %v2653 = vadd.f32 %v2581, %v2645
    %v2654 = vsub.f32 %v2550, %v2646
    %v2655 = vsub.f32 %v2551, %v2647
    %v2656 = vsub.f32 %v2552, %v2648
    %v2657 = vsub.f32 %v2553, %v2649
    %v2658 = vsub.f32 %v2554, %v2650
    %v2659 = vsub.f32 %v2555, %v2651
    %v2660 = vsub.f32 %v2556, %v2652
    %v2661 = vsub.f32 %v2557, %v2653
    %v2662 = vsel %vm1469, %v2654, -inf
    %v2663 = vrot.slane %v2662, 4
    %v2664 = vmax.f32 %v2662, %v2663
    %v2665 = vrot.slane %v2664, 2
    %v2666 = vmax.f32 %v2664, %v2665
    %v2667 = vrot.slane %v2666, 1
    %v2668 = vmax.f32 %v2666, %v2667
    %v2669 = vsel %vm1469, %v2655, -inf
    %v2670 = vrot.slane %v2669, 4
    %v2671 = vmax.f32 %v2669, %v2670
    %v2672 = vrot.slane %v2671, 2
    %v2673 = vmax.f32 %v2671, %v2672
    %v2674 = vrot.slane %v2673, 1
    %v2675 = vmax.f32 %v2673, %v2674
    %v2676 = vsel %vm1469, %v2656, -inf
    %v2677 = vrot.slane %v2676, 4
    %v2678 = vmax.f32 %v2676, %v2677
    %v2679 = vrot.slane %v2678, 2
    %v2680 = vmax.f32 %v2678, %v2679
    %v2681 = vrot.slane %v2680, 1
    %v2682 = vmax.f32 %v2680, %v2681
    %v2683 = vsel %vm1469, %v2657, -inf
    %v2684 = vrot.slane %v2683, 4
    %v2685 = vmax.f32 %v2683, %v2684
    %v2686 = vrot.slane %v2685, 2
    %v2687 = vmax.f32 %v2685, %v2686
    %v2688 = vrot.slane %v2687, 1
    %v2689 = vmax.f32 %v2687, %v2688
    %v2690 = vsel %vm1469, %v2658, -inf
    %v2691 = vrot.slane %v2690, 4
    %v2692 = vmax.f32 %v2690, %v2691
    %v2693 = vrot.slane %v2692, 2
    %v2694 = vmax.f32 %v2692, %v2693
    %v2695 = vrot.slane %v2694, 1
    %v2696 = vmax.f32 %v2694, %v2695
    %v2697 = vsel %vm1469, %v2659, -inf
    %v2698 = vrot.slane %v2697, 4
    %v2699 = vmax.f32 %v2697, %v2698
    %v2700 = vrot.slane %v2699, 2
    %v2701 = vmax.f32 %v2699, %v2700
    %v2702 = vrot.slane %v2701, 1
    %v2703 = vmax.f32 %v2701, %v2702
    %v2704 = vsel %vm1469, %v2660, -inf
    %v2705 = vrot.slane %v2704, 4
    %v2706 = vmax.f32 %v2704, %v2705
    %v2707 = vrot.slane %v2706, 2
    %v2708 = vmax.f32 %v2706, %v2707
    %v2709 = vrot.slane %v2708, 1
    %v2710 = vmax.f32 %v2708, %v2709
    %v2711 = vsel %vm1469, %v2661, -inf
    %v2712 = vrot.slane %v2711, 4
    %v2713 = vmax.f32 %v2711, %v2712
    %v2714 = vrot.slane %v2713, 2
    %v2715 = vmax.f32 %v2713, %v2714
    %v2716 = vrot.slane %v2715, 1
    %v2717 = vmax.f32 %v2715, %v2716
    %v2718 = vsub.f32 %v2654, %v2668
    %v2719 = vsub.f32 %v2655, %v2675
    %v2720 = vsub.f32 %v2656, %v2682
    %v2721 = vsub.f32 %v2657, %v2689
    %v2722 = vsub.f32 %v2658, %v2696
    %v2723 = vsub.f32 %v2659, %v2703
    %v2724 = vsub.f32 %v2660, %v2710
    %v2725 = vsub.f32 %v2661, %v2717
    %v2726 = vmul.f32 %v2718, 1.442695
    %v2727 = vpow.pop %v2726
    %v2728 = vmul.f32 %v2719, 1.442695
    %v2729 = vpow.pop %v2728
    %v2730 = vmul.f32 %v2720, 1.442695
    %v2731 = vpow.pop %v2730
    %v2732 = vmul.f32 %v2721, 1.442695
    %v2733 = vpow.pop %v2732
    %v2734 = vmul.f32 %v2722, 1.442695
    %v2735 = vpow.pop %v2734
    %v2736 = vmul.f32 %v2723, 1.442695
    %v2737 = vpow.pop %v2736
    %v2738 = vmul.f32 %v2724, 1.442695
    %v2739 = vpow.pop %v2738
    %v2740 = vmul.f32 %v2725, 1.442695
    %v2741 = vpow.pop %v2740
    %v2742 = vsel %vm1469, %v2727, 0.0
    %v2743 = vrot.slane %v2742, 4
    %v2744 = vadd.f32 %v2742, %v2743
    %v2745 = vrot.slane %v2744, 2
    %v2746 = vadd.f32 %v2744, %v2745
    %v2747 = vrot.slane %v2746, 1
    %v2748 = vadd.f32 %v2746, %v2747
    %v2749 = vsel %vm1469, %v2729, 0.0
    %v2750 = vrot.slane %v2749, 4
    %v2751 = vadd.f32 %v2749, %v2750
    %v2752 = vrot.slane %v2751, 2
    %v2753 = vadd.f32 %v2751, %v2752
    %v2754 = vrot.slane %v2753, 1
    %v2755 = vadd.f32 %v2753, %v2754
    %v2756 = vsel %vm1469, %v2731, 0.0
    %v2757 = vrot.slane %v2756, 4
    %v2758 = vadd.f32 %v2756, %v2757
    %v2759 = vrot.slane %v2758, 2
    %v2760 = vadd.f32 %v2758, %v2759
    %v2761 = vrot.slane %v2760, 1
    %v2762 = vadd.f32 %v2760, %v2761
    %v2763 = vsel %vm1469, %v2733, 0.0
    %v2764 = vrot.slane %v2763, 4
    %v2765 = vadd.f32 %v2763, %v2764
    %v2766 = vrot.slane %v2765, 2
    %v2767 = vadd.f32 %v2765, %v2766
    %v2768 = vrot.slane %v2767, 1
    %v2769 = vadd.f32 %v2767, %v2768
    %v2770 = vsel %vm1469, %v2735, 0.0
    %v2771 = vrot.slane %v2770, 4
    %v2772 = vadd.f32 %v2770, %v2771
    %v2773 = vrot.slane %v2772, 2
    %v2774 = vadd.f32 %v2772, %v2773
    %v2775 = vrot.slane %v2774, 1
    %v2776 = vadd.f32 %v2774, %v2775
    %v2777 = vsel %vm1469, %v2737, 0.0
    %v2778 = vrot.slane %v2777, 4
    %v2779 = vadd.f32 %v2777, %v2778
    %v2780 = vrot.slane %v2779, 2
    %v2781 = vadd.f32 %v2779, %v2780
    %v2782 = vrot.slane %v2781, 1
    %v2783 = vadd.f32 %v2781, %v2782
    %v2784 = vsel %vm1469, %v2739, 0.0
    %v2785 = vrot.slane %v2784, 4
    %v2786 = vadd.f32 %v2784, %v2785
    %v2787 = vrot.slane %v2786, 2
    %v2788 = vadd.f32 %v2786, %v2787
    %v2789 = vrot.slane %v2788, 1
    %v2790 = vadd.f32 %v2788, %v2789
    %v2791 = vsel %vm1469, %v2741, 0.0
    %v2792 = vrot.slane %v2791, 4
    %v2793 = vadd.f32 %v2791, %v2792
    %v2794 = vrot.slane %v2793, 2
    %v2795 = vadd.f32 %v2793, %v2794
    %v2796 = vrot.slane %v2795, 1
    %v2797 = vadd.f32 %v2795, %v2796
    %v2798 = vlog2.pop %v2748
    %v2799 = vmul.f32 %v2798, 0.6931472
    %v2800 = vlog2.pop %v2755
    %v2801 = vmul.f32 %v2800, 0.6931472
    %v2802 = vlog2.pop %v2762
    %v2803 = vmul.f32 %v2802, 0.6931472
    %v2804 = vlog2.pop %v2769
    %v2805 = vmul.f32 %v2804, 0.6931472
    %v2806 = vlog2.pop %v2776
    %v2807 = vmul.f32 %v2806, 0.6931472
    %v2808 = vlog2.pop %v2783
    %v2809 = vmul.f32 %v2808, 0.6931472
    %v2810 = vlog2.pop %v2790
    %v2811 = vmul.f32 %v2810, 0.6931472
    %v2812 = vlog2.pop %v2797
    %v2813 = vmul.f32 %v2812, 0.6931472
    %v2814 = vadd.f32 %v2668, %v2799
    %v2815 = vadd.f32 %v2675, %v2801
    %v2816 = vadd.f32 %v2682, %v2803
    %v2817 = vadd.f32 %v2689, %v2805
    %v2818 = vadd.f32 %v2696, %v2807
    %v2819 = vadd.f32 %v2703, %v2809
    %v2820 = vadd.f32 %v2710, %v2811
    %v2821 = vadd.f32 %v2717, %v2813
    %v2822 = vsub.f32 %v2654, %v2814
    %v2823 = vsub.f32 %v2655, %v2815
    %v2824 = vsub.f32 %v2656, %v2816
    %v2825 = vsub.f32 %v2657, %v2817
    %v2826 = vsub.f32 %v2658, %v2818
    %v2827 = vsub.f32 %v2659, %v2819
    %v2828 = vsub.f32 %v2660, %v2820
    %v2829 = vsub.f32 %v2661, %v2821
    %v2830 = vsel %vm1469, %v2822, -inf
    %2831 = vmax.xlane.f32.xlu0 %v2830
    %v2832 = vpop.xlane.xlu0 %2831
    %v2833 = vsel %vm1469, %v2823, -inf
    %2834 = vmax.xlane.f32.xlu0 %v2833
    %v2835 = vpop.xlane.xlu0 %2834
    %v2836 = vsel %vm1469, %v2824, -inf
    %2837 = vmax.xlane.f32.xlu0 %v2836
    %v2838 = vpop.xlane.xlu0 %2837
    %v2839 = vsel %vm1469, %v2825, -inf
    %2840 = vmax.xlane.f32.xlu0 %v2839
    %v2841 = vpop.xlane.xlu0 %2840
    %v2842 = vsel %vm1469, %v2826, -inf
    %2843 = vmax.xlane.f32.xlu0 %v2842
    %v2844 = vpop.xlane.xlu0 %2843
    %v2845 = vsel %vm1469, %v2827, -inf
    %2846 = vmax.xlane.f32.xlu0 %v2845
    %v2847 = vpop.xlane.xlu0 %2846
    %v2848 = vsel %vm1469, %v2828, -inf
    %2849 = vmax.xlane.f32.xlu0 %v2848
    %v2850 = vpop.xlane.xlu0 %2849
    %v2851 = vsel %vm1469, %v2829, -inf
    %2852 = vmax.xlane.f32.xlu0 %v2851
    %v2853 = vpop.xlane.xlu0 %2852
    %v2854 = vsub.f32 %v2822, %v2832
    %v2855 = vsub.f32 %v2823, %v2835
    %v2856 = vsub.f32 %v2824, %v2838
    %v2857 = vsub.f32 %v2825, %v2841
    %v2858 = vsub.f32 %v2826, %v2844
    %v2859 = vsub.f32 %v2827, %v2847
    %v2860 = vsub.f32 %v2828, %v2850
    %v2861 = vsub.f32 %v2829, %v2853
    %v2862 = vmul.f32 %v2854, 1.442695
    %v2863 = vpow.pop %v2862
    %v2864 = vmul.f32 %v2855, 1.442695
    %v2865 = vpow.pop %v2864
    %v2866 = vmul.f32 %v2856, 1.442695
    %v2867 = vpow.pop %v2866
    %v2868 = vmul.f32 %v2857, 1.442695
    %v2869 = vpow.pop %v2868
    %v2870 = vmul.f32 %v2858, 1.442695
    %v2871 = vpow.pop %v2870
    %v2872 = vmul.f32 %v2859, 1.442695
    %v2873 = vpow.pop %v2872
    %v2874 = vmul.f32 %v2860, 1.442695
    %v2875 = vpow.pop %v2874
    %v2876 = vmul.f32 %v2861, 1.442695
    %v2877 = vpow.pop %v2876
    %v2878 = vsel %vm1469, %v2863, 0.0
    %2879 = vadd.xlane.f32.xlu0 %v2878
    %v2880 = vpop.xlane.xlu0 %2879
    %v2881 = vsel %vm1469, %v2865, 0.0
    %2882 = vadd.xlane.f32.xlu0 %v2881
    %v2883 = vpop.xlane.xlu0 %2882
    %v2884 = vsel %vm1469, %v2867, 0.0
    %2885 = vadd.xlane.f32.xlu0 %v2884
    %v2886 = vpop.xlane.xlu0 %2885
    %v2887 = vsel %vm1469, %v2869, 0.0
    %2888 = vadd.xlane.f32.xlu0 %v2887
    %v2889 = vpop.xlane.xlu0 %2888
    %v2890 = vsel %vm1469, %v2871, 0.0
    %2891 = vadd.xlane.f32.xlu0 %v2890
    %v2892 = vpop.xlane.xlu0 %2891
    %v2893 = vsel %vm1469, %v2873, 0.0
    %2894 = vadd.xlane.f32.xlu0 %v2893
    %v2895 = vpop.xlane.xlu0 %2894
    %v2896 = vsel %vm1469, %v2875, 0.0
    %2897 = vadd.xlane.f32.xlu0 %v2896
    %v2898 = vpop.xlane.xlu0 %2897
    %v2899 = vsel %vm1469, %v2877, 0.0
    %2900 = vadd.xlane.f32.xlu0 %v2899
    %v2901 = vpop.xlane.xlu0 %2900
    %v2902 = vlog2.pop %v2880
    %v2903 = vmul.f32 %v2902, 0.6931472
    %v2904 = vlog2.pop %v2883
    %v2905 = vmul.f32 %v2904, 0.6931472
    %v2906 = vlog2.pop %v2886
    %v2907 = vmul.f32 %v2906, 0.6931472
    %v2908 = vlog2.pop %v2889
    %v2909 = vmul.f32 %v2908, 0.6931472
    %v2910 = vlog2.pop %v2892
    %v2911 = vmul.f32 %v2910, 0.6931472
    %v2912 = vlog2.pop %v2895
    %v2913 = vmul.f32 %v2912, 0.6931472
    %v2914 = vlog2.pop %v2898
    %v2915 = vmul.f32 %v2914, 0.6931472
    %v2916 = vlog2.pop %v2901
    %v2917 = vmul.f32 %v2916, 0.6931472
    %v2918 = vadd.f32 %v2832, %v2903
    %v2919 = vadd.f32 %v2835, %v2905
    %v2920 = vadd.f32 %v2838, %v2907
    %v2921 = vadd.f32 %v2841, %v2909
    %v2922 = vadd.f32 %v2844, %v2911
    %v2923 = vadd.f32 %v2847, %v2913
    %v2924 = vadd.f32 %v2850, %v2915
    %v2925 = vadd.f32 %v2853, %v2917
    %v2926 = vsub.f32 %v2822, %v2918
    %v2927 = vsub.f32 %v2823, %v2919
    %v2928 = vsub.f32 %v2824, %v2920
    %v2929 = vsub.f32 %v2825, %v2921
    %v2930 = vsub.f32 %v2826, %v2922
    %v2931 = vsub.f32 %v2827, %v2923
    %v2932 = vsub.f32 %v2828, %v2924
    %v2933 = vsub.f32 %v2829, %v2925
    %v2934 = vsel %vm1469, %v2926, -inf
    %v2935 = vrot.slane %v2934, 4
    %v2936 = vmax.f32 %v2934, %v2935
    %v2937 = vrot.slane %v2936, 2
    %v2938 = vmax.f32 %v2936, %v2937
    %v2939 = vrot.slane %v2938, 1
    %v2940 = vmax.f32 %v2938, %v2939
    %v2941 = vsel %vm1469, %v2927, -inf
    %v2942 = vrot.slane %v2941, 4
    %v2943 = vmax.f32 %v2941, %v2942
    %v2944 = vrot.slane %v2943, 2
    %v2945 = vmax.f32 %v2943, %v2944
    %v2946 = vrot.slane %v2945, 1
    %v2947 = vmax.f32 %v2945, %v2946
    %v2948 = vsel %vm1469, %v2928, -inf
    %v2949 = vrot.slane %v2948, 4
    %v2950 = vmax.f32 %v2948, %v2949
    %v2951 = vrot.slane %v2950, 2
    %v2952 = vmax.f32 %v2950, %v2951
    %v2953 = vrot.slane %v2952, 1
    %v2954 = vmax.f32 %v2952, %v2953
    %v2955 = vsel %vm1469, %v2929, -inf
    %v2956 = vrot.slane %v2955, 4
    %v2957 = vmax.f32 %v2955, %v2956
    %v2958 = vrot.slane %v2957, 2
    %v2959 = vmax.f32 %v2957, %v2958
    %v2960 = vrot.slane %v2959, 1
    %v2961 = vmax.f32 %v2959, %v2960
    %v2962 = vsel %vm1469, %v2930, -inf
    %v2963 = vrot.slane %v2962, 4
    %v2964 = vmax.f32 %v2962, %v2963
    %v2965 = vrot.slane %v2964, 2
    %v2966 = vmax.f32 %v2964, %v2965
    %v2967 = vrot.slane %v2966, 1
    %v2968 = vmax.f32 %v2966, %v2967
    %v2969 = vsel %vm1469, %v2931, -inf
    %v2970 = vrot.slane %v2969, 4
    %v2971 = vmax.f32 %v2969, %v2970
    %v2972 = vrot.slane %v2971, 2
    %v2973 = vmax.f32 %v2971, %v2972
    %v2974 = vrot.slane %v2973, 1
    %v2975 = vmax.f32 %v2973, %v2974
    %v2976 = vsel %vm1469, %v2932, -inf
    %v2977 = vrot.slane %v2976, 4
    %v2978 = vmax.f32 %v2976, %v2977
    %v2979 = vrot.slane %v2978, 2
    %v2980 = vmax.f32 %v2978, %v2979
    %v2981 = vrot.slane %v2980, 1
    %v2982 = vmax.f32 %v2980, %v2981
    %v2983 = vsel %vm1469, %v2933, -inf
    %v2984 = vrot.slane %v2983, 4
    %v2985 = vmax.f32 %v2983, %v2984
    %v2986 = vrot.slane %v2985, 2
    %v2987 = vmax.f32 %v2985, %v2986
    %v2988 = vrot.slane %v2987, 1
    %v2989 = vmax.f32 %v2987, %v2988
    %v2990 = vsub.f32 %v2926, %v2940
    %v2991 = vsub.f32 %v2927, %v2947
    %v2992 = vsub.f32 %v2928, %v2954
    %v2993 = vsub.f32 %v2929, %v2961
    %v2994 = vsub.f32 %v2930, %v2968
    %v2995 = vsub.f32 %v2931, %v2975
    %v2996 = vsub.f32 %v2932, %v2982
    %v2997 = vsub.f32 %v2933, %v2989
    %v2998 = vmul.f32 %v2990, 1.442695
    %v2999 = vpow.pop %v2998
    %v3000 = vmul.f32 %v2991, 1.442695
    %v3001 = vpow.pop %v3000
    %v3002 = vmul.f32 %v2992, 1.442695
    %v3003 = vpow.pop %v3002
    %v3004 = vmul.f32 %v2993, 1.442695
    %v3005 = vpow.pop %v3004
    %v3006 = vmul.f32 %v2994, 1.442695
    %v3007 = vpow.pop %v3006
    %v3008 = vmul.f32 %v2995, 1.442695
    %v3009 = vpow.pop %v3008
    %v3010 = vmul.f32 %v2996, 1.442695
    %v3011 = vpow.pop %v3010
    %v3012 = vmul.f32 %v2997, 1.442695
    %v3013 = vpow.pop %v3012
    %v3014 = vsel %vm1469, %v2999, 0.0
    %v3015 = vrot.slane %v3014, 4
    %v3016 = vadd.f32 %v3014, %v3015
    %v3017 = vrot.slane %v3016, 2
    %v3018 = vadd.f32 %v3016, %v3017
    %v3019 = vrot.slane %v3018, 1
    %v3020 = vadd.f32 %v3018, %v3019
    %v3021 = vsel %vm1469, %v3001, 0.0
    %v3022 = vrot.slane %v3021, 4
    %v3023 = vadd.f32 %v3021, %v3022
    %v3024 = vrot.slane %v3023, 2
    %v3025 = vadd.f32 %v3023, %v3024
    %v3026 = vrot.slane %v3025, 1
    %v3027 = vadd.f32 %v3025, %v3026
    %v3028 = vsel %vm1469, %v3003, 0.0
    %v3029 = vrot.slane %v3028, 4
    %v3030 = vadd.f32 %v3028, %v3029
    %v3031 = vrot.slane %v3030, 2
    %v3032 = vadd.f32 %v3030, %v3031
    %v3033 = vrot.slane %v3032, 1
    %v3034 = vadd.f32 %v3032, %v3033
    %v3035 = vsel %vm1469, %v3005, 0.0
    %v3036 = vrot.slane %v3035, 4
    %v3037 = vadd.f32 %v3035, %v3036
    %v3038 = vrot.slane %v3037, 2
    %v3039 = vadd.f32 %v3037, %v3038
    %v3040 = vrot.slane %v3039, 1
    %v3041 = vadd.f32 %v3039, %v3040
    %v3042 = vsel %vm1469, %v3007, 0.0
    %v3043 = vrot.slane %v3042, 4
    %v3044 = vadd.f32 %v3042, %v3043
    %v3045 = vrot.slane %v3044, 2
    %v3046 = vadd.f32 %v3044, %v3045
    %v3047 = vrot.slane %v3046, 1
    %v3048 = vadd.f32 %v3046, %v3047
    %v3049 = vsel %vm1469, %v3009, 0.0
    %v3050 = vrot.slane %v3049, 4
    %v3051 = vadd.f32 %v3049, %v3050
    %v3052 = vrot.slane %v3051, 2
    %v3053 = vadd.f32 %v3051, %v3052
    %v3054 = vrot.slane %v3053, 1
    %v3055 = vadd.f32 %v3053, %v3054
    %v3056 = vsel %vm1469, %v3011, 0.0
    %v3057 = vrot.slane %v3056, 4
    %v3058 = vadd.f32 %v3056, %v3057
    %v3059 = vrot.slane %v3058, 2
    %v3060 = vadd.f32 %v3058, %v3059
    %v3061 = vrot.slane %v3060, 1
    %v3062 = vadd.f32 %v3060, %v3061
    %v3063 = vsel %vm1469, %v3013, 0.0
    %v3064 = vrot.slane %v3063, 4
    %v3065 = vadd.f32 %v3063, %v3064
    %v3066 = vrot.slane %v3065, 2
    %v3067 = vadd.f32 %v3065, %v3066
    %v3068 = vrot.slane %v3067, 1
    %v3069 = vadd.f32 %v3067, %v3068
    %v3070 = vlog2.pop %v3020
    %v3071 = vmul.f32 %v3070, 0.6931472
    %v3072 = vlog2.pop %v3027
    %v3073 = vmul.f32 %v3072, 0.6931472
    %v3074 = vlog2.pop %v3034
    %v3075 = vmul.f32 %v3074, 0.6931472
    %v3076 = vlog2.pop %v3041
    %v3077 = vmul.f32 %v3076, 0.6931472
    %v3078 = vlog2.pop %v3048
    %v3079 = vmul.f32 %v3078, 0.6931472
    %v3080 = vlog2.pop %v3055
    %v3081 = vmul.f32 %v3080, 0.6931472
    %v3082 = vlog2.pop %v3062
    %v3083 = vmul.f32 %v3082, 0.6931472
    %v3084 = vlog2.pop %v3069
    %v3085 = vmul.f32 %v3084, 0.6931472
    %v3086 = vadd.f32 %v2940, %v3071
    %v3087 = vadd.f32 %v2947, %v3073
    %v3088 = vadd.f32 %v2954, %v3075
    %v3089 = vadd.f32 %v2961, %v3077
    %v3090 = vadd.f32 %v2968, %v3079
    %v3091 = vadd.f32 %v2975, %v3081
    %v3092 = vadd.f32 %v2982, %v3083
    %v3093 = vadd.f32 %v2989, %v3085
    %v3094 = vsub.f32 %v2926, %v3086
    %v3095 = vsub.f32 %v2927, %v3087
    %v3096 = vsub.f32 %v2928, %v3088
    %v3097 = vsub.f32 %v2929, %v3089
    %v3098 = vsub.f32 %v2930, %v3090
    %v3099 = vsub.f32 %v2931, %v3091
    %v3100 = vsub.f32 %v2932, %v3092
    %v3101 = vsub.f32 %v2933, %v3093
    %v3102 = vsel %vm1469, %v3094, -inf
    %3103 = vmax.xlane.f32.xlu0 %v3102
    %v3104 = vpop.xlane.xlu0 %3103
    %v3105 = vsel %vm1469, %v3095, -inf
    %3106 = vmax.xlane.f32.xlu0 %v3105
    %v3107 = vpop.xlane.xlu0 %3106
    %v3108 = vsel %vm1469, %v3096, -inf
    %3109 = vmax.xlane.f32.xlu0 %v3108
    %v3110 = vpop.xlane.xlu0 %3109
    %v3111 = vsel %vm1469, %v3097, -inf
    %3112 = vmax.xlane.f32.xlu0 %v3111
    %v3113 = vpop.xlane.xlu0 %3112
    %v3114 = vsel %vm1469, %v3098, -inf
    %3115 = vmax.xlane.f32.xlu0 %v3114
    %v3116 = vpop.xlane.xlu0 %3115
    %v3117 = vsel %vm1469, %v3099, -inf
    %3118 = vmax.xlane.f32.xlu0 %v3117
    %v3119 = vpop.xlane.xlu0 %3118
    %v3120 = vsel %vm1469, %v3100, -inf
    %3121 = vmax.xlane.f32.xlu0 %v3120
    %v3122 = vpop.xlane.xlu0 %3121
    %v3123 = vsel %vm1469, %v3101, -inf
    %3124 = vmax.xlane.f32.xlu0 %v3123
    %v3125 = vpop.xlane.xlu0 %3124
    %v3126 = vsub.f32 %v3094, %v3104
    %v3127 = vsub.f32 %v3095, %v3107
    %v3128 = vsub.f32 %v3096, %v3110
    %v3129 = vsub.f32 %v3097, %v3113
    %v3130 = vsub.f32 %v3098, %v3116
    %v3131 = vsub.f32 %v3099, %v3119
    %v3132 = vsub.f32 %v3100, %v3122
    %v3133 = vsub.f32 %v3101, %v3125
    %v3134 = vmul.f32 %v3126, 1.442695
    %v3135 = vpow.pop %v3134
    %v3136 = vmul.f32 %v3127, 1.442695
    %v3137 = vpow.pop %v3136
    %v3138 = vmul.f32 %v3128, 1.442695
    %v3139 = vpow.pop %v3138
    %v3140 = vmul.f32 %v3129, 1.442695
    %v3141 = vpow.pop %v3140
    %v3142 = vmul.f32 %v3130, 1.442695
    %v3143 = vpow.pop %v3142
    %v3144 = vmul.f32 %v3131, 1.442695
    %v3145 = vpow.pop %v3144
    %v3146 = vmul.f32 %v3132, 1.442695
    %v3147 = vpow.pop %v3146
    %v3148 = vmul.f32 %v3133, 1.442695
    %v3149 = vpow.pop %v3148
    %v3150 = vsel %vm1469, %v3135, 0.0
    %3151 = vadd.xlane.f32.xlu0 %v3150
    %v3152 = vpop.xlane.xlu0 %3151
    %v3153 = vsel %vm1469, %v3137, 0.0
    %3154 = vadd.xlane.f32.xlu0 %v3153
    %v3155 = vpop.xlane.xlu0 %3154
    %v3156 = vsel %vm1469, %v3139, 0.0
    %3157 = vadd.xlane.f32.xlu0 %v3156
    %v3158 = vpop.xlane.xlu0 %3157
    %v3159 = vsel %vm1469, %v3141, 0.0
    %3160 = vadd.xlane.f32.xlu0 %v3159
    %v3161 = vpop.xlane.xlu0 %3160
    %v3162 = vsel %vm1469, %v3143, 0.0
    %3163 = vadd.xlane.f32.xlu0 %v3162
    %v3164 = vpop.xlane.xlu0 %3163
    %v3165 = vsel %vm1469, %v3145, 0.0
    %3166 = vadd.xlane.f32.xlu0 %v3165
    %v3167 = vpop.xlane.xlu0 %3166
    %v3168 = vsel %vm1469, %v3147, 0.0
    %3169 = vadd.xlane.f32.xlu0 %v3168
    %v3170 = vpop.xlane.xlu0 %3169
    %v3171 = vsel %vm1469, %v3149, 0.0
    %3172 = vadd.xlane.f32.xlu0 %v3171
    %v3173 = vpop.xlane.xlu0 %3172
    %v3174 = vlog2.pop %v3152
    %v3175 = vmul.f32 %v3174, 0.6931472
    %v3176 = vlog2.pop %v3155
    %v3177 = vmul.f32 %v3176, 0.6931472
    %v3178 = vlog2.pop %v3158
    %v3179 = vmul.f32 %v3178, 0.6931472
    %v3180 = vlog2.pop %v3161
    %v3181 = vmul.f32 %v3180, 0.6931472
    %v3182 = vlog2.pop %v3164
    %v3183 = vmul.f32 %v3182, 0.6931472
    %v3184 = vlog2.pop %v3167
    %v3185 = vmul.f32 %v3184, 0.6931472
    %v3186 = vlog2.pop %v3170
    %v3187 = vmul.f32 %v3186, 0.6931472
    %v3188 = vlog2.pop %v3173
    %v3189 = vmul.f32 %v3188, 0.6931472
    %v3190 = vadd.f32 %v3104, %v3175
    %v3191 = vadd.f32 %v3107, %v3177
    %v3192 = vadd.f32 %v3110, %v3179
    %v3193 = vadd.f32 %v3113, %v3181
    %v3194 = vadd.f32 %v3116, %v3183
    %v3195 = vadd.f32 %v3119, %v3185
    %v3196 = vadd.f32 %v3122, %v3187
    %v3197 = vadd.f32 %v3125, %v3189
    %v3198 = vsub.f32 %v3094, %v3190
    %v3199 = vsub.f32 %v3095, %v3191
    %v3200 = vsub.f32 %v3096, %v3192
    %v3201 = vsub.f32 %v3097, %v3193
    %v3202 = vsub.f32 %v3098, %v3194
    %v3203 = vsub.f32 %v3099, %v3195
    %v3204 = vsub.f32 %v3100, %v3196
    %v3205 = vsub.f32 %v3101, %v3197
    %v3206 = vsel %vm1469, %v3198, -inf
    %v3207 = vrot.slane %v3206, 4
    %v3208 = vmax.f32 %v3206, %v3207
    %v3209 = vrot.slane %v3208, 2
    %v3210 = vmax.f32 %v3208, %v3209
    %v3211 = vrot.slane %v3210, 1
    %v3212 = vmax.f32 %v3210, %v3211
    %v3213 = vsel %vm1469, %v3199, -inf
    %v3214 = vrot.slane %v3213, 4
    %v3215 = vmax.f32 %v3213, %v3214
    %v3216 = vrot.slane %v3215, 2
    %v3217 = vmax.f32 %v3215, %v3216
    %v3218 = vrot.slane %v3217, 1
    %v3219 = vmax.f32 %v3217, %v3218
    %v3220 = vsel %vm1469, %v3200, -inf
    %v3221 = vrot.slane %v3220, 4
    %v3222 = vmax.f32 %v3220, %v3221
    %v3223 = vrot.slane %v3222, 2
    %v3224 = vmax.f32 %v3222, %v3223
    %v3225 = vrot.slane %v3224, 1
    %v3226 = vmax.f32 %v3224, %v3225
    %v3227 = vsel %vm1469, %v3201, -inf
    %v3228 = vrot.slane %v3227, 4
    %v3229 = vmax.f32 %v3227, %v3228
    %v3230 = vrot.slane %v3229, 2
    %v3231 = vmax.f32 %v3229, %v3230
    %v3232 = vrot.slane %v3231, 1
    %v3233 = vmax.f32 %v3231, %v3232
    %v3234 = vsel %vm1469, %v3202, -inf
    %v3235 = vrot.slane %v3234, 4
    %v3236 = vmax.f32 %v3234, %v3235
    %v3237 = vrot.slane %v3236, 2
    %v3238 = vmax.f32 %v3236, %v3237
    %v3239 = vrot.slane %v3238, 1
    %v3240 = vmax.f32 %v3238, %v3239
    %v3241 = vsel %vm1469, %v3203, -inf
    %v3242 = vrot.slane %v3241, 4
    %v3243 = vmax.f32 %v3241, %v3242
    %v3244 = vrot.slane %v3243, 2
    %v3245 = vmax.f32 %v3243, %v3244
    %v3246 = vrot.slane %v3245, 1
    %v3247 = vmax.f32 %v3245, %v3246
    %v3248 = vsel %vm1469, %v3204, -inf
    %v3249 = vrot.slane %v3248, 4
    %v3250 = vmax.f32 %v3248, %v3249
    %v3251 = vrot.slane %v3250, 2
    %v3252 = vmax.f32 %v3250, %v3251
    %v3253 = vrot.slane %v3252, 1
    %v3254 = vmax.f32 %v3252, %v3253
    %v3255 = vsel %vm1469, %v3205, -inf
    %v3256 = vrot.slane %v3255, 4
    %v3257 = vmax.f32 %v3255, %v3256
    %v3258 = vrot.slane %v3257, 2
    %v3259 = vmax.f32 %v3257, %v3258
    %v3260 = vrot.slane %v3259, 1
    %v3261 = vmax.f32 %v3259, %v3260
    %v3262 = vsub.f32 %v3198, %v3212
    %v3263 = vsub.f32 %v3199, %v3219
    %v3264 = vsub.f32 %v3200, %v3226
    %v3265 = vsub.f32 %v3201, %v3233
    %v3266 = vsub.f32 %v3202, %v3240
    %v3267 = vsub.f32 %v3203, %v3247
    %v3268 = vsub.f32 %v3204, %v3254
    %v3269 = vsub.f32 %v3205, %v3261
    %v3270 = vmul.f32 %v3262, 1.442695
    %v3271 = vpow.pop %v3270
    %v3272 = vmul.f32 %v3263, 1.442695
    %v3273 = vpow.pop %v3272
    %v3274 = vmul.f32 %v3264, 1.442695
    %v3275 = vpow.pop %v3274
    %v3276 = vmul.f32 %v3265, 1.442695
    %v3277 = vpow.pop %v3276
    %v3278 = vmul.f32 %v3266, 1.442695
    %v3279 = vpow.pop %v3278
    %v3280 = vmul.f32 %v3267, 1.442695
    %v3281 = vpow.pop %v3280
    %v3282 = vmul.f32 %v3268, 1.442695
    %v3283 = vpow.pop %v3282
    %v3284 = vmul.f32 %v3269, 1.442695
    %v3285 = vpow.pop %v3284
    %v3286 = vsel %vm1469, %v3271, 0.0
    %v3287 = vrot.slane %v3286, 4
    %v3288 = vadd.f32 %v3286, %v3287
    %v3289 = vrot.slane %v3288, 2
    %v3290 = vadd.f32 %v3288, %v3289
    %v3291 = vrot.slane %v3290, 1
    %v3292 = vadd.f32 %v3290, %v3291
    %v3293 = vsel %vm1469, %v3273, 0.0
    %v3294 = vrot.slane %v3293, 4
    %v3295 = vadd.f32 %v3293, %v3294
    %v3296 = vrot.slane %v3295, 2
    %v3297 = vadd.f32 %v3295, %v3296
    %v3298 = vrot.slane %v3297, 1
    %v3299 = vadd.f32 %v3297, %v3298
    %v3300 = vsel %vm1469, %v3275, 0.0
    %v3301 = vrot.slane %v3300, 4
    %v3302 = vadd.f32 %v3300, %v3301
    %v3303 = vrot.slane %v3302, 2
    %v3304 = vadd.f32 %v3302, %v3303
    %v3305 = vrot.slane %v3304, 1
    %v3306 = vadd.f32 %v3304, %v3305
    %v3307 = vsel %vm1469, %v3277, 0.0
    %v3308 = vrot.slane %v3307, 4
    %v3309 = vadd.f32 %v3307, %v3308
    %v3310 = vrot.slane %v3309, 2
    %v3311 = vadd.f32 %v3309, %v3310
    %v3312 = vrot.slane %v3311, 1
    %v3313 = vadd.f32 %v3311, %v3312
    %v3314 = vsel %vm1469, %v3279, 0.0
    %v3315 = vrot.slane %v3314, 4
    %v3316 = vadd.f32 %v3314, %v3315
    %v3317 = vrot.slane %v3316, 2
    %v3318 = vadd.f32 %v3316, %v3317
    %v3319 = vrot.slane %v3318, 1
    %v3320 = vadd.f32 %v3318, %v3319
    %v3321 = vsel %vm1469, %v3281, 0.0
    %v3322 = vrot.slane %v3321, 4
    %v3323 = vadd.f32 %v3321, %v3322
    %v3324 = vrot.slane %v3323, 2
    %v3325 = vadd.f32 %v3323, %v3324
    %v3326 = vrot.slane %v3325, 1
    %v3327 = vadd.f32 %v3325, %v3326
    %v3328 = vsel %vm1469, %v3283, 0.0
    %v3329 = vrot.slane %v3328, 4
    %v3330 = vadd.f32 %v3328, %v3329
    %v3331 = vrot.slane %v3330, 2
    %v3332 = vadd.f32 %v3330, %v3331
    %v3333 = vrot.slane %v3332, 1
    %v3334 = vadd.f32 %v3332, %v3333
    %v3335 = vsel %vm1469, %v3285, 0.0
    %v3336 = vrot.slane %v3335, 4
    %v3337 = vadd.f32 %v3335, %v3336
    %v3338 = vrot.slane %v3337, 2
    %v3339 = vadd.f32 %v3337, %v3338
    %v3340 = vrot.slane %v3339, 1
    %v3341 = vadd.f32 %v3339, %v3340
    %v3342 = vlog2.pop %v3292
    %v3343 = vmul.f32 %v3342, 0.6931472
    %v3344 = vlog2.pop %v3299
    %v3345 = vmul.f32 %v3344, 0.6931472
    %v3346 = vlog2.pop %v3306
    %v3347 = vmul.f32 %v3346, 0.6931472
    %v3348 = vlog2.pop %v3313
    %v3349 = vmul.f32 %v3348, 0.6931472
    %v3350 = vlog2.pop %v3320
    %v3351 = vmul.f32 %v3350, 0.6931472
    %v3352 = vlog2.pop %v3327
    %v3353 = vmul.f32 %v3352, 0.6931472
    %v3354 = vlog2.pop %v3334
    %v3355 = vmul.f32 %v3354, 0.6931472
    %v3356 = vlog2.pop %v3341
    %v3357 = vmul.f32 %v3356, 0.6931472
    %v3358 = vadd.f32 %v3212, %v3343
    %v3359 = vadd.f32 %v3219, %v3345
    %v3360 = vadd.f32 %v3226, %v3347
    %v3361 = vadd.f32 %v3233, %v3349
    %v3362 = vadd.f32 %v3240, %v3351
    %v3363 = vadd.f32 %v3247, %v3353
    %v3364 = vadd.f32 %v3254, %v3355
    %v3365 = vadd.f32 %v3261, %v3357
    %v3366 = vsub.f32 %v3198, %v3358
    %v3367 = vsub.f32 %v3199, %v3359
    %v3368 = vsub.f32 %v3200, %v3360
    %v3369 = vsub.f32 %v3201, %v3361
    %v3370 = vsub.f32 %v3202, %v3362
    %v3371 = vsub.f32 %v3203, %v3363
    %v3372 = vsub.f32 %v3204, %v3364
    %v3373 = vsub.f32 %v3205, %v3365
    %v3374 = vsel %vm1469, %v3366, -inf
    %3375 = vmax.xlane.f32.xlu0 %v3374
    %v3376 = vpop.xlane.xlu0 %3375
    %v3377 = vsel %vm1469, %v3367, -inf
    %3378 = vmax.xlane.f32.xlu0 %v3377
    %v3379 = vpop.xlane.xlu0 %3378
    %v3380 = vsel %vm1469, %v3368, -inf
    %3381 = vmax.xlane.f32.xlu0 %v3380
    %v3382 = vpop.xlane.xlu0 %3381
    %v3383 = vsel %vm1469, %v3369, -inf
    %3384 = vmax.xlane.f32.xlu0 %v3383
    %v3385 = vpop.xlane.xlu0 %3384
    %v3386 = vsel %vm1469, %v3370, -inf
    %3387 = vmax.xlane.f32.xlu0 %v3386
    %v3388 = vpop.xlane.xlu0 %3387
    %v3389 = vsel %vm1469, %v3371, -inf
    %3390 = vmax.xlane.f32.xlu0 %v3389
    %v3391 = vpop.xlane.xlu0 %3390
    %v3392 = vsel %vm1469, %v3372, -inf
    %3393 = vmax.xlane.f32.xlu0 %v3392
    %v3394 = vpop.xlane.xlu0 %3393
    %v3395 = vsel %vm1469, %v3373, -inf
    %3396 = vmax.xlane.f32.xlu0 %v3395
    %v3397 = vpop.xlane.xlu0 %3396
    %v3398 = vsub.f32 %v3366, %v3376
    %v3399 = vsub.f32 %v3367, %v3379
    %v3400 = vsub.f32 %v3368, %v3382
    %v3401 = vsub.f32 %v3369, %v3385
    %v3402 = vsub.f32 %v3370, %v3388
    %v3403 = vsub.f32 %v3371, %v3391
    %v3404 = vsub.f32 %v3372, %v3394
    %v3405 = vsub.f32 %v3373, %v3397
    %v3406 = vmul.f32 %v3398, 1.442695
    %v3407 = vpow.pop %v3406
    %v3408 = vmul.f32 %v3399, 1.442695
    %v3409 = vpow.pop %v3408
    %v3410 = vmul.f32 %v3400, 1.442695
    %v3411 = vpow.pop %v3410
    %v3412 = vmul.f32 %v3401, 1.442695
    %v3413 = vpow.pop %v3412
    %v3414 = vmul.f32 %v3402, 1.442695
    %v3415 = vpow.pop %v3414
    %v3416 = vmul.f32 %v3403, 1.442695
    %v3417 = vpow.pop %v3416
    %v3418 = vmul.f32 %v3404, 1.442695
    %v3419 = vpow.pop %v3418
    %v3420 = vmul.f32 %v3405, 1.442695
    %v3421 = vpow.pop %v3420
    %v3422 = vsel %vm1469, %v3407, 0.0
    %3423 = vadd.xlane.f32.xlu0 %v3422
    %v3424 = vpop.xlane.xlu0 %3423
    %v3425 = vsel %vm1469, %v3409, 0.0
    %3426 = vadd.xlane.f32.xlu0 %v3425
    %v3427 = vpop.xlane.xlu0 %3426
    %v3428 = vsel %vm1469, %v3411, 0.0
    %3429 = vadd.xlane.f32.xlu0 %v3428
    %v3430 = vpop.xlane.xlu0 %3429
    %v3431 = vsel %vm1469, %v3413, 0.0
    %3432 = vadd.xlane.f32.xlu0 %v3431
    %v3433 = vpop.xlane.xlu0 %3432
    %v3434 = vsel %vm1469, %v3415, 0.0
    %3435 = vadd.xlane.f32.xlu0 %v3434
    %v3436 = vpop.xlane.xlu0 %3435
    %v3437 = vsel %vm1469, %v3417, 0.0
    %3438 = vadd.xlane.f32.xlu0 %v3437
    %v3439 = vpop.xlane.xlu0 %3438
    %v3440 = vsel %vm1469, %v3419, 0.0
    %3441 = vadd.xlane.f32.xlu0 %v3440
    %v3442 = vpop.xlane.xlu0 %3441
    %v3443 = vsel %vm1469, %v3421, 0.0
    %3444 = vadd.xlane.f32.xlu0 %v3443
    %v3445 = vpop.xlane.xlu0 %3444
    %v3446 = vlog2.pop %v3424
    %v3447 = vmul.f32 %v3446, 0.6931472
    %v3448 = vlog2.pop %v3427
    %v3449 = vmul.f32 %v3448, 0.6931472
    %v3450 = vlog2.pop %v3430
    %v3451 = vmul.f32 %v3450, 0.6931472
    %v3452 = vlog2.pop %v3433
    %v3453 = vmul.f32 %v3452, 0.6931472
    %v3454 = vlog2.pop %v3436
    %v3455 = vmul.f32 %v3454, 0.6931472
    %v3456 = vlog2.pop %v3439
    %v3457 = vmul.f32 %v3456, 0.6931472
    %v3458 = vlog2.pop %v3442
    %v3459 = vmul.f32 %v3458, 0.6931472
    %v3460 = vlog2.pop %v3445
    %v3461 = vmul.f32 %v3460, 0.6931472
    %v3462 = vadd.f32 %v3376, %v3447
    %v3463 = vadd.f32 %v3379, %v3449
    %v3464 = vadd.f32 %v3382, %v3451
    %v3465 = vadd.f32 %v3385, %v3453
    %v3466 = vadd.f32 %v3388, %v3455
    %v3467 = vadd.f32 %v3391, %v3457
    %v3468 = vadd.f32 %v3394, %v3459
    %v3469 = vadd.f32 %v3397, %v3461
    %v3470 = vsub.f32 %v3366, %v3462
    %v3471 = vsub.f32 %v3367, %v3463
    %v3472 = vsub.f32 %v3368, %v3464
    %v3473 = vsub.f32 %v3369, %v3465
    %v3474 = vsub.f32 %v3370, %v3466
    %v3475 = vsub.f32 %v3371, %v3467
    %v3476 = vsub.f32 %v3372, %v3468
    %v3477 = vsub.f32 %v3373, %v3469
    %v3478 = vsel %vm1469, %v3470, -inf
    %v3479 = vrot.slane %v3478, 4
    %v3480 = vmax.f32 %v3478, %v3479
    %v3481 = vrot.slane %v3480, 2
    %v3482 = vmax.f32 %v3480, %v3481
    %v3483 = vrot.slane %v3482, 1
    %v3484 = vmax.f32 %v3482, %v3483
    %v3485 = vsel %vm1469, %v3471, -inf
    %v3486 = vrot.slane %v3485, 4
    %v3487 = vmax.f32 %v3485, %v3486
    %v3488 = vrot.slane %v3487, 2
    %v3489 = vmax.f32 %v3487, %v3488
    %v3490 = vrot.slane %v3489, 1
    %v3491 = vmax.f32 %v3489, %v3490
    %v3492 = vsel %vm1469, %v3472, -inf
    %v3493 = vrot.slane %v3492, 4
    %v3494 = vmax.f32 %v3492, %v3493
    %v3495 = vrot.slane %v3494, 2
    %v3496 = vmax.f32 %v3494, %v3495
    %v3497 = vrot.slane %v3496, 1
    %v3498 = vmax.f32 %v3496, %v3497
    %v3499 = vsel %vm1469, %v3473, -inf
    %v3500 = vrot.slane %v3499, 4
    %v3501 = vmax.f32 %v3499, %v3500
    %v3502 = vrot.slane %v3501, 2
    %v3503 = vmax.f32 %v3501, %v3502
    %v3504 = vrot.slane %v3503, 1
    %v3505 = vmax.f32 %v3503, %v3504
    %v3506 = vsel %vm1469, %v3474, -inf
    %v3507 = vrot.slane %v3506, 4
    %v3508 = vmax.f32 %v3506, %v3507
    %v3509 = vrot.slane %v3508, 2
    %v3510 = vmax.f32 %v3508, %v3509
    %v3511 = vrot.slane %v3510, 1
    %v3512 = vmax.f32 %v3510, %v3511
    %v3513 = vsel %vm1469, %v3475, -inf
    %v3514 = vrot.slane %v3513, 4
    %v3515 = vmax.f32 %v3513, %v3514
    %v3516 = vrot.slane %v3515, 2
    %v3517 = vmax.f32 %v3515, %v3516
    %v3518 = vrot.slane %v3517, 1
    %v3519 = vmax.f32 %v3517, %v3518
    %v3520 = vsel %vm1469, %v3476, -inf
    %v3521 = vrot.slane %v3520, 4
    %v3522 = vmax.f32 %v3520, %v3521
    %v3523 = vrot.slane %v3522, 2
    %v3524 = vmax.f32 %v3522, %v3523
    %v3525 = vrot.slane %v3524, 1
    %v3526 = vmax.f32 %v3524, %v3525
    %v3527 = vsel %vm1469, %v3477, -inf
    %v3528 = vrot.slane %v3527, 4
    %v3529 = vmax.f32 %v3527, %v3528
    %v3530 = vrot.slane %v3529, 2
    %v3531 = vmax.f32 %v3529, %v3530
    %v3532 = vrot.slane %v3531, 1
    %v3533 = vmax.f32 %v3531, %v3532
    %v3534 = vsub.f32 %v3470, %v3484
    %v3535 = vsub.f32 %v3471, %v3491
    %v3536 = vsub.f32 %v3472, %v3498
    %v3537 = vsub.f32 %v3473, %v3505
    %v3538 = vsub.f32 %v3474, %v3512
    %v3539 = vsub.f32 %v3475, %v3519
    %v3540 = vsub.f32 %v3476, %v3526
    %v3541 = vsub.f32 %v3477, %v3533
    %v3542 = vmul.f32 %v3534, 1.442695
    %v3543 = vpow.pop %v3542
    %v3544 = vmul.f32 %v3535, 1.442695
    %v3545 = vpow.pop %v3544
    %v3546 = vmul.f32 %v3536, 1.442695
    %v3547 = vpow.pop %v3546
    %v3548 = vmul.f32 %v3537, 1.442695
    %v3549 = vpow.pop %v3548
    %v3550 = vmul.f32 %v3538, 1.442695
    %v3551 = vpow.pop %v3550
    %v3552 = vmul.f32 %v3539, 1.442695
    %v3553 = vpow.pop %v3552
    %v3554 = vmul.f32 %v3540, 1.442695
    %v3555 = vpow.pop %v3554
    %v3556 = vmul.f32 %v3541, 1.442695
    %v3557 = vpow.pop %v3556
    %v3558 = vsel %vm1469, %v3543, 0.0
    %v3559 = vrot.slane %v3558, 4
    %v3560 = vadd.f32 %v3558, %v3559
    %v3561 = vrot.slane %v3560, 2
    %v3562 = vadd.f32 %v3560, %v3561
    %v3563 = vrot.slane %v3562, 1
    %v3564 = vadd.f32 %v3562, %v3563
    %v3565 = vsel %vm1469, %v3545, 0.0
    %v3566 = vrot.slane %v3565, 4
    %v3567 = vadd.f32 %v3565, %v3566
    %v3568 = vrot.slane %v3567, 2
    %v3569 = vadd.f32 %v3567, %v3568
    %v3570 = vrot.slane %v3569, 1
    %v3571 = vadd.f32 %v3569, %v3570
    %v3572 = vsel %vm1469, %v3547, 0.0
    %v3573 = vrot.slane %v3572, 4
    %v3574 = vadd.f32 %v3572, %v3573
    %v3575 = vrot.slane %v3574, 2
    %v3576 = vadd.f32 %v3574, %v3575
    %v3577 = vrot.slane %v3576, 1
    %v3578 = vadd.f32 %v3576, %v3577
    %v3579 = vsel %vm1469, %v3549, 0.0
    %v3580 = vrot.slane %v3579, 4
    %v3581 = vadd.f32 %v3579, %v3580
    %v3582 = vrot.slane %v3581, 2
    %v3583 = vadd.f32 %v3581, %v3582
    %v3584 = vrot.slane %v3583, 1
    %v3585 = vadd.f32 %v3583, %v3584
    %v3586 = vsel %vm1469, %v3551, 0.0
    %v3587 = vrot.slane %v3586, 4
    %v3588 = vadd.f32 %v3586, %v3587
    %v3589 = vrot.slane %v3588, 2
    %v3590 = vadd.f32 %v3588, %v3589
    %v3591 = vrot.slane %v3590, 1
    %v3592 = vadd.f32 %v3590, %v3591
    %v3593 = vsel %vm1469, %v3553, 0.0
    %v3594 = vrot.slane %v3593, 4
    %v3595 = vadd.f32 %v3593, %v3594
    %v3596 = vrot.slane %v3595, 2
    %v3597 = vadd.f32 %v3595, %v3596
    %v3598 = vrot.slane %v3597, 1
    %v3599 = vadd.f32 %v3597, %v3598
    %v3600 = vsel %vm1469, %v3555, 0.0
    %v3601 = vrot.slane %v3600, 4
    %v3602 = vadd.f32 %v3600, %v3601
    %v3603 = vrot.slane %v3602, 2
    %v3604 = vadd.f32 %v3602, %v3603
    %v3605 = vrot.slane %v3604, 1
    %v3606 = vadd.f32 %v3604, %v3605
    %v3607 = vsel %vm1469, %v3557, 0.0
    %v3608 = vrot.slane %v3607, 4
    %v3609 = vadd.f32 %v3607, %v3608
    %v3610 = vrot.slane %v3609, 2
    %v3611 = vadd.f32 %v3609, %v3610
    %v3612 = vrot.slane %v3611, 1
    %v3613 = vadd.f32 %v3611, %v3612
    %v3614 = vlog2.pop %v3564
    %v3615 = vmul.f32 %v3614, 0.6931472
    %v3616 = vlog2.pop %v3571
    %v3617 = vmul.f32 %v3616, 0.6931472
    %v3618 = vlog2.pop %v3578
    %v3619 = vmul.f32 %v3618, 0.6931472
    %v3620 = vlog2.pop %v3585
    %v3621 = vmul.f32 %v3620, 0.6931472
    %v3622 = vlog2.pop %v3592
    %v3623 = vmul.f32 %v3622, 0.6931472
    %v3624 = vlog2.pop %v3599
    %v3625 = vmul.f32 %v3624, 0.6931472
    %v3626 = vlog2.pop %v3606
    %v3627 = vmul.f32 %v3626, 0.6931472
    %v3628 = vlog2.pop %v3613
    %v3629 = vmul.f32 %v3628, 0.6931472
    %v3630 = vadd.f32 %v3484, %v3615
    %v3631 = vadd.f32 %v3491, %v3617
    %v3632 = vadd.f32 %v3498, %v3619
    %v3633 = vadd.f32 %v3505, %v3621
    %v3634 = vadd.f32 %v3512, %v3623
    %v3635 = vadd.f32 %v3519, %v3625
    %v3636 = vadd.f32 %v3526, %v3627
    %v3637 = vadd.f32 %v3533, %v3629
    %v3638 = vsub.f32 %v3470, %v3630
    %v3639 = vsub.f32 %v3471, %v3631
    %v3640 = vsub.f32 %v3472, %v3632
    %v3641 = vsub.f32 %v3473, %v3633
    %v3642 = vsub.f32 %v3474, %v3634
    %v3643 = vsub.f32 %v3475, %v3635
    %v3644 = vsub.f32 %v3476, %v3636
    %v3645 = vsub.f32 %v3477, %v3637
    %v3646 = vmul.f32 %v3638, 1.442695
    %v3647 = vpow.pop %v3646
    %v3648 = vmul.f32 %v3639, 1.442695
    %v3649 = vpow.pop %v3648
    %v3650 = vmul.f32 %v3640, 1.442695
    %v3651 = vpow.pop %v3650
    %v3652 = vmul.f32 %v3641, 1.442695
    %v3653 = vpow.pop %v3652
    %v3654 = vmul.f32 %v3642, 1.442695
    %v3655 = vpow.pop %v3654
    %v3656 = vmul.f32 %v3643, 1.442695
    %v3657 = vpow.pop %v3656
    %v3658 = vmul.f32 %v3644, 1.442695
    %v3659 = vpow.pop %v3658
    %v3660 = vmul.f32 %v3645, 1.442695
    %v3661 = vpow.pop %v3660
    %3662 = vst.msk [vmem:[#allocation8] sm:$0xf] %vm1469, %v3647
    %3663 = vst.msk [vmem:[#allocation8 + $0x4] sm:$0xf] %vm1469, %v3649
    %3664 = vst.msk [vmem:[#allocation8 + $0x8] sm:$0xf] %vm1469, %v3651
    %3665 = vst.msk [vmem:[#allocation8 + $0xc] sm:$0xf] %vm1469, %v3653
    %3666 = vst.msk [vmem:[#allocation8 + $0x10] sm:$0xf] %vm1469, %v3655
    %3667 = vst.msk [vmem:[#allocation8 + $0x14] sm:$0xf] %vm1469, %v3657
    %3668 = vst.msk [vmem:[#allocation8 + $0x18] sm:$0xf] %vm1469, %v3659
    %3669 = vst.msk [vmem:[#allocation8 + $0x1c] sm:$0xf] %vm1469, %v3661
    // Predicated region
    $region26: #{tpu_custom_call.1} parent=1 // pred_check
      _
    $region27: #{tpu_custom_call.1} parent=1 // pred_check_branch
      %3671 = sbr.rel (0) target = $region29
    $region28: #{tpu_custom_call.1} parent=1 // pred_region
      %s3673 = ssub.s32 512, 512
      %3674 = vsyncadd [#allocation4], %s3673
      %s3675 = sshll.u32 [#allocation8], 4
      %s3676 = int_to_ptr.vmem [resolvable:$true] %s3675
      %3681 = dma.vmem_to_hbm [thread:$0]  %s3676, 512, %s3, [#allocation4], 64, 64, 4
    $region29: #{tpu_custom_call.1} parent=1 // pred_fallthru
      _
    // Predicated region
    $region30: #{tpu_custom_call.1} parent=1 // pred_check
      _
    $region31: #{tpu_custom_call.1} parent=1 // pred_check_branch
      %3683 = sbr.rel (0) target = $region33
    $region32: #{tpu_custom_call.1} parent=1 // pred_region
      %3684 = dma.done [#allocation4], 512
    $region33: #{tpu_custom_call.1} parent=1 // pred_fallthru
      _
    %3685 = vsyncpa [#allocation3], 1
    %3686 = vsyncpa [#allocation6], 1
    %3687 = vsyncpa [#allocation4], 1

</llo_original>
